<compile_context>
chip_gen: v5e
topology: v5e:2x2
jax: 0.10.0
libtpu: 0.0.40
codegen_flags: <defaults>
</compile_context>

<pallas_src>
import functools
import math

import jax
import jax.numpy as jnp
from jax.experimental import pallas as pl
from jax.experimental.pallas import tpu as pltpu

BN_EPS = 1e-5
LANE = 128


def _round_up(x, m):
    return (x + m - 1) // m * m


def _vmem_limit_bytes():
    # Size the scoped-VMEM budget from the chip (64 MiB on v7x, 128 MiB on
    # v5e/v6e) instead of a fixed number tuned for neither.
    try:
        cap = pltpu.get_tpu_info().vmem_capacity_bytes
    except Exception:
        cap = 64 * 1024 * 1024
    return min(int(cap * 3 // 4), 100 * 1024 * 1024)


def _pick_tile_h(H, W, max_rows):
    # Largest divisor of H whose row tile (tile_h*W) is lane/sublane legal and
    # fits the target GEMM-M (amortizes grid-step overhead, fills the MXU).
    cand = [t for t in range(1, H + 1)
            if H % t == 0 and t * W <= max_rows and (t * W) % 8 == 0]
    if cand:
        return max(cand)
    return H   # one tile per image: block == full dim is always legal


def _conv_fused_kernel(scale_ref, shift_ref, x_ref, w_ref, y_ref, ps_ref,
                       pad_ref, *, tile_h, H, W, cin, n_tiles, fuse_input):
    """One (batch, row-tile) step of Conv3x3 "pass 1".

    x_ref     : (H, W, cin)          bf16 un-padded image, resident across j
    w_ref     : (9*cin, cout_p)      bf16 conv weight as a GEMM matrix
    scale_ref : (1, cin) f32         producer layer's folded BN scale (fused)
    shift_ref : (1, cin) f32         producer layer's folded BN shift (fused)
    y_ref     : (tile_h*W, cout_p)   bf16 raw conv output rows of this tile
    ps_ref    : (2, cout_p) f32      per-tile [sum, sum_sq] BN partials
    pad_ref   : (tile_h+2, W+2, cin) bf16 VMEM scratch: activated, zero-haloed
                input band for this tile.
    """
    j = pl.program_id(1)
    row0 = pl.multiple_of(j * tile_h, tile_h)
    rows = tile_h * W

    def act(v):
        # Fused BN(scale/shift) + ReLU of the *previous* layer in f32, then
        # bf16 for the MXU.  Layer 1 skips it (its input is not normalized).
        if fuse_input:
            v = jnp.maximum(
                v.astype(jnp.float32) * scale_ref[0, :] + shift_ref[0, :], 0.0)
        return v.astype(jnp.bfloat16)

    # Build the zero-padded, activated (tile_h+2, W+2, cin) band in VMEM.
    # Conv pads the *post-activation* tensor with zeros, so the halo ring must
    # stay exactly zero (it must NOT go through scale/shift/ReLU).
    pad_ref[...] = jnp.zeros_like(pad_ref)
    if n_tiles == 1:
        pad_ref[1:H + 1, 1:W + 1, :] = act(x_ref[...])
    else:
        @pl.when(j == 0)
        def _():   # top image boundary: top halo row stays zero
            pad_ref[1:tile_h + 2, 1:W + 1, :] = act(
                x_ref[pl.ds(0, tile_h + 1), :, :])

        if n_tiles > 2:
            @pl.when(jnp.logical_and(j > 0, j < n_tiles - 1))
            def _():   # interior tile: halo rows come from the neighbours
                pad_ref[0:tile_h + 2, 1:W + 1, :] = act(
                    x_ref[pl.ds(row0 - 1, tile_h + 2), :, :])

        @pl.when(j == n_tiles - 1)
        def _():   # bottom image boundary: bottom halo row stays zero
            pad_ref[0:tile_h + 1, 1:W + 1, :] = act(
                x_ref[pl.ds(row0 - 1, tile_h + 1), :, :])

    # 3x3 conv as 9 accumulating GEMMs over shifted slices of the padded band
    # (no (rows, 9*cin) concat buffer).  Weight layout matches
    # w_hwio.reshape(9*cin, cout): row block (dy*3+dx)*cin : +cin.
    acc = jnp.zeros((rows, y_ref.shape[-1]), jnp.float32)
    for dx in range(3):
        band = pad_ref[:, dx:dx + W, :]                  # (tile_h+2, W, cin)
        for dy in range(3):
            patch = band[dy:dy + tile_h].reshape(rows, cin)
            w_blk = w_ref[(dy * 3 + dx) * cin:(dy * 3 + dx + 1) * cin, :]
            acc = acc + jnp.dot(patch, w_blk,
                                preferred_element_type=jnp.float32)

    y_ref[...] = acc.astype(y_ref.dtype)
    # Per-tile BN partial statistics, reduced globally outside the kernel.
    # TODO(synk): E[y^2]-E[y]^2 in f32 can lose precision for very large
    # N*H*W; switch to Welford-style (count, mean, M2) merging if needed.
    ps_ref[...] = jnp.concatenate(
        [jnp.sum(acc, axis=0, keepdims=True),
         jnp.sum(acc * acc, axis=0, keepdims=True)], axis=0)


def _bn_relu_kernel(y_ref, scale_ref, shift_ref, o_ref):
    # Final layer only: out = max(y * scale + shift, 0) with pre-folded affine.
    o_ref[...] = jnp.maximum(
        y_ref[...].astype(jnp.float32) * scale_ref[...] + shift_ref[...],
        0.0).astype(o_ref.dtype)


def _conv_pass(img, wmat, in_scale, in_shift, *, fuse_input, max_rows=2048):
    """Conv3x3 pass 1: raw conv output (bf16) + per-tile BN stat partials.

    img      : (N, H, W, Cin)  bf16 (Cin already zero-padded as needed)
    wmat     : (9*Cin, Cout_p) bf16
    in_scale / in_shift : (1, Cin) f32 folded BN affine of the producer layer
    """
    N, H, W, Cin = img.shape
    K, Cout_p = wmat.shape
    assert K == 9 * Cin, (K, Cin)
    tile_h = _pick_tile_h(H, W, max_rows)
    J = H // tile_h
    TR = tile_h * W

    kernel = functools.partial(
        _conv_fused_kernel, tile_h=tile_h, H=H, W=W, cin=Cin, n_tiles=J,
        fuse_input=fuse_input)

    flops = 2 * N * H * W * K * Cout_p
    bytes_accessed = (img.size * 2 + wmat.size * 2
                      + N * H * W * Cout_p * 2 + N * J * 2 * Cout_p * 4)

    y, ps = pl.pallas_call(
        kernel,
        out_shape=(jax.ShapeDtypeStruct((N, H * W, Cout_p), jnp.bfloat16),
                   jax.ShapeDtypeStruct((N, J, 2, Cout_p), jnp.float32)),
        grid=(N, J),
        in_specs=[
            pl.BlockSpec((1, Cin), lambda n, j: (0, 0)),
            pl.BlockSpec((1, Cin), lambda n, j: (0, 0)),
            # Whole un-padded image resident in VMEM across its row tiles
            # (block index ignores j, so it is fetched once per image).
            # TODO(synk): for images too large for VMEM, tile H with a manual
            # haloed DMA (pltpu.make_async_copy) and/or pl.Buffered(1) on v7x.
            pl.BlockSpec((None, H, W, Cin), lambda n, j: (n, 0, 0, 0)),
            pl.BlockSpec((K, Cout_p), lambda n, j: (0, 0)),
        ],
        out_specs=(
            pl.BlockSpec((None, TR, Cout_p), lambda n, j: (n, j, 0)),
            pl.BlockSpec((None, None, 2, Cout_p), lambda n, j: (n, j, 0, 0)),
        ),
        scratch_shapes=[pltpu.VMEM((tile_h + 2, W + 2, Cin), jnp.bfloat16)],
        compiler_params=pltpu.CompilerParams(
            # Batch is sharded across TensorCores; row tiles of one resident
            # image stay on one core so its VMEM copy / DMA is not duplicated.
            dimension_semantics=("parallel", "arbitrary"),
            vmem_limit_bytes=_vmem_limit_bytes()),
        cost_estimate=pl.CostEstimate(
            flops=flops, transcendentals=0, bytes_accessed=bytes_accessed),
    )(in_scale, in_shift, img, wmat)
    return y, ps


def _bn_scale_shift(ps, gamma, beta, count, cout_p):
    # Global training-mode BN statistics (biased variance) over all N*H*W
    # rows; fold gamma/beta into a per-channel scale/shift once.
    # TODO(synk): running_mean / running_var bookkeeping (in-place side effect
    # of training-mode BN, not part of the returned tensor) is not reproduced.
    s = jnp.sum(ps, axis=(0, 1))                       # (2, Cout_p) f32
    mean = s[0] / count
    var = jnp.maximum(s[1] / count - mean * mean, 0.0)
    g = jnp.pad(gamma.astype(jnp.float32), (0, cout_p - gamma.shape[0]))
    b = jnp.pad(beta.astype(jnp.float32), (0, cout_p - beta.shape[0]))
    scale = g * jax.lax.rsqrt(var + BN_EPS)
    shift = b - mean * scale
    return scale.reshape(1, cout_p), shift.reshape(1, cout_p)


def _bn_relu_pass(y, scale, shift, *, max_rows=8192):
    """Standalone BN+ReLU (final layer only), large lane-dense blocks."""
    R, Cout_p = y.shape
    blk = R if R <= max_rows else next(
        (r for r in range(max_rows, 7, -1) if R % r == 0 and r % 8 == 0), R)
    return pl.pallas_call(
        _bn_relu_kernel,
        out_shape=jax.ShapeDtypeStruct((R, Cout_p), jnp.float32),
        grid=(R // blk,),
        in_specs=[pl.BlockSpec((blk, Cout_p), lambda i: (i, 0)),
                  pl.BlockSpec((1, Cout_p), lambda i: (0, 0)),
                  pl.BlockSpec((1, Cout_p), lambda i: (0, 0))],
        out_specs=pl.BlockSpec((blk, Cout_p), lambda i: (i, 0)),
        compiler_params=pltpu.CompilerParams(
            dimension_semantics=("parallel",),
            vmem_limit_bytes=_vmem_limit_bytes()),
    )(y, scale, shift)


def init_double_conv_params(key, in_channels, out_channels):
    k1, k2 = jax.random.split(key)
    # PyTorch Conv2d weight is (Cout, Cin, 3, 3); stored here as HWIO.
    bound1 = 1.0 / math.sqrt(in_channels * 9)
    bound2 = 1.0 / math.sqrt(out_channels * 9)
    return {
        "w1": jax.random.uniform(k1, (3, 3, in_channels, out_channels),
                                 jnp.float32, -bound1, bound1),
        "g1": jnp.ones((out_channels,), jnp.float32),   # BN defaults
        "b1": jnp.zeros((out_channels,), jnp.float32),
        "w2": jax.random.uniform(k2, (3, 3, out_channels, out_channels),
                                 jnp.float32, -bound2, bound2),
        "g2": jnp.ones((out_channels,), jnp.float32),
        "b2": jnp.zeros((out_channels,), jnp.float32),
    }


def double_conv(x_nchw, params, *, max_rows=2048):
    """Forward pass equivalent to DoubleConv.forward (NCHW in, NCHW out)."""
    N, Cin, H, W = x_nchw.shape
    c1 = params["w1"].shape[-1]
    c2 = params["w2"].shape[-1]
    c1_p = _round_up(c1, LANE)
    c2_p = _round_up(c2, LANE)
    cin_p = _round_up(Cin, 8)   # sublane-align the tiny first-layer channels
    # TODO(synk): a fully lane-dense first-layer layout (W*Cin on lanes) would
    # remove the remaining masked loads when Cin is tiny.

    x = jnp.transpose(x_nchw, (0, 2, 3, 1)).astype(jnp.bfloat16)   # NCHW->NHWC
    x = jnp.pad(x, ((0, 0), (0, 0), (0, 0), (0, cin_p - Cin)))

    w1 = jnp.pad(params["w1"],
                 ((0, 0), (0, 0), (0, cin_p - Cin), (0, c1_p - c1)))
    w1 = w1.reshape(9 * cin_p, c1_p).astype(jnp.bfloat16)
    w2 = jnp.pad(params["w2"],
                 ((0, 0), (0, 0), (0, c1_p - c1), (0, c2_p - c2)))
    w2 = w2.reshape(9 * c1_p, c2_p).astype(jnp.bfloat16)

    ones = jnp.ones((1, cin_p), jnp.float32)
    zeros = jnp.zeros((1, cin_p), jnp.float32)
    count = jnp.float32(N * H * W)

    # Layer 1: conv pass (no fused input activation) + BN stat partials.
    y1, ps1 = _conv_pass(x, w1, ones, zeros,
                         fuse_input=False, max_rows=max_rows)
    scale1, shift1 = _bn_scale_shift(ps1, params["g1"], params["b1"],
                                     count, c1_p)

    # Layer 2: BN1 + ReLU fused into the conv kernel (y1 stays bf16 in HBM and
    # never round-trips through a standalone normalize pass).
    y2, ps2 = _conv_pass(y1.reshape(N, H, W, c1_p), w2, scale1, shift1,
                         fuse_input=True, max_rows=max_rows)
    scale2, shift2 = _bn_scale_shift(ps2, params["g2"], params["b2"],
                                     count, c2_p)

    # Final BN2 + ReLU (the only standalone normalize pass), f32 output.
    out = _bn_relu_pass(y2.reshape(N * H * W, c2_p), scale2, shift2)
    out = out.reshape(N, H, W, c2_p)[..., :c2]
    # TODO(synk): fold the channel strip + NHWC->NCHW transpose into the final
    # kernel's output BlockSpec to save one more HBM pass.
    return jnp.transpose(out, (0, 3, 1, 2))


def reference_double_conv(x_nchw, params):
    """Plain-JAX reference mirroring the kernel's precision policy (bf16 MXU
    operands, bf16 HBM intermediates, f32 accumulation and BN statistics)."""
    x = jnp.transpose(x_nchw, (0, 2, 3, 1))

    def conv(a, w):
        return jax.lax.conv_general_dilated(
            a.astype(jnp.bfloat16), w.astype(jnp.bfloat16),
            window_strides=(1, 1), padding="SAME",
            dimension_numbers=("NHWC", "HWIO", "NHWC"),
            preferred_element_type=jnp.float32)

    def bn_relu(y_f32, g, b):
        mean = jnp.mean(y_f32, axis=(0, 1, 2))
        var = jnp.mean(jnp.square(y_f32 - mean), axis=(0, 1, 2))
        scale = g * jax.lax.rsqrt(var + BN_EPS)
        shift = b - mean * scale
        yq = y_f32.astype(jnp.bfloat16).astype(jnp.float32)  # bf16 HBM storage
        return jnp.maximum(yq * scale + shift, 0.0)

    a1 = bn_relu(conv(x, params["w1"]), params["g1"], params["b1"])
    out = bn_relu(conv(a1, params["w2"]), params["g2"], params["b2"])
    return jnp.transpose(out, (0, 3, 1, 2))


if __name__ == "__main__":
    key = jax.random.PRNGKey(0)
    k_x, k_p = jax.random.split(key)

    N, Cin, Cout, H, W = 2, 4, 8, 16, 16
    x = jax.random.normal(k_x, (N, Cin, H, W), jnp.float32)   # NCHW like torch
    params = init_double_conv_params(k_p, Cin, Cout)

    ref = jax.block_until_ready(reference_double_conv(x, params))

    # Run the default config (single row tile per image) and a forced
    # multi-tile config that exercises the in-kernel halo handling for
    # top / interior / bottom row tiles.
    for max_rows in (2048, 64):
        fwd = jax.jit(functools.partial(double_conv, max_rows=max_rows))
        out = jax.block_until_ready(fwd(x, params))
        assert out.shape == (N, Cout, H, W), out.shape
        err_max = float(jnp.max(jnp.abs(out - ref)))
        err_mean = float(jnp.mean(jnp.abs(out - ref)))
        # bf16 MXU operands + bf16 HBM intermediates: isolated one-ulp rounding
        # flips vs the XLA reference are expected after BN normalization; a
        # genuinely wrong kernel is off by O(1).
        assert err_max < 3e-2 and err_mean < 2e-3, (err_max, err_mean)

    print("KERNEL_OK")
</pallas_src>

<mosaic_0001>
module attributes {stable_mosaic.version = 11 : i64} {
  func.func @_conv_fused_kernel(%arg0: i32, %arg1: i32, %arg2: memref<1x8xf32, #tpu.memory_space<vmem>>, %arg3: memref<1x8xf32, #tpu.memory_space<vmem>>, %arg4: memref<1x16x16x8xbf16, #tpu.memory_space<vmem>>, %arg5: memref<72x128xbf16, #tpu.memory_space<vmem>>, %arg6: memref<1x256x128xbf16, #tpu.memory_space<vmem>>, %arg7: memref<1x1x2x128xf32, #tpu.memory_space<vmem>>, %arg8: memref<18x18x8xbf16, #tpu.memory_space<vmem>>) attributes {dimension_semantics = [#tpu.dimension_semantics<parallel>, #tpu.dimension_semantics<arbitrary>], iteration_bounds = array<i64: 2, 1>, scalar_prefetch = 0 : i64, scratch_operands = 1 : i64, tpu.core_type = #tpu.core_type<tc>, window_params = [{pipeline_mode = #tpu.pipeline_mode<synchronous>, transform_indices = @transform_0, window_bounds = array<i64: 1, 8>}, {pipeline_mode = #tpu.pipeline_mode<synchronous>, transform_indices = @transform_1, window_bounds = array<i64: 1, 8>}, {transform_indices = @transform_2, window_bounds = array<i64: 1, 16, 16, 8>}, {pipeline_mode = #tpu.pipeline_mode<synchronous>, transform_indices = @transform_3, window_bounds = array<i64: 72, 128>}, {transform_indices = @transform_4, window_bounds = array<i64: 1, 256, 128>}, {transform_indices = @transform_5, window_bounds = array<i64: 1, 1, 2, 128>}]} {
    %cst = arith.constant 0.000000e+00 : bf16
    %0 = vector.broadcast %cst : bf16 to vector<18x18x8xbf16>
    %c0 = arith.constant 0 : index
    %c0_0 = arith.constant 0 : index
    %c0_1 = arith.constant 0 : index
    %1 = vector.load %arg8[%c0, %c0_0, %c0_1] : memref<18x18x8xbf16, #tpu.memory_space<vmem>>, vector<18x18x8xbf16>
    tpu.vector_store %arg8[%c0, %c0_0, %c0_1], %0 {strides = array<i32>} : memref<18x18x8xbf16, #tpu.memory_space<vmem>>, vector<18x18x8xbf16>,
    %c0_2 = arith.constant 0 : index
    %c0_3 = arith.constant 0 : index
    %c0_4 = arith.constant 0 : index
    %c0_5 = arith.constant 0 : index
    %2 = vector.load %arg4[%c0_2, %c0_3, %c0_4, %c0_5] : memref<1x16x16x8xbf16, #tpu.memory_space<vmem>>, vector<1x16x16x8xbf16>
    %3 = vector.shape_cast %2 : vector<1x16x16x8xbf16> to vector<16x16x8xbf16>
    %c1 = arith.constant 1 : index
    %c1_6 = arith.constant 1 : index
    %c0_7 = arith.constant 0 : index
    %4 = vector.load %arg8[%c1, %c1_6, %c0_7] : memref<18x18x8xbf16, #tpu.memory_space<vmem>>, vector<16x16x8xbf16>
    tpu.vector_store %arg8[%c1, %c1_6, %c0_7], %3 {strides = array<i32>} : memref<18x18x8xbf16, #tpu.memory_space<vmem>>, vector<16x16x8xbf16>,
    %cst_8 = arith.constant 0.000000e+00 : f32
    %5 = vector.broadcast %cst_8 : f32 to vector<256x128xf32>
    %c0_9 = arith.constant 0 : index
    %c0_10 = arith.constant 0 : index
    %c0_11 = arith.constant 0 : index
    %6 = vector.load %arg8[%c0_9, %c0_10, %c0_11] : memref<18x18x8xbf16, #tpu.memory_space<vmem>>, vector<18x16x8xbf16>
    %7 = vector.extract_strided_slice %6 {offsets = [0, 0, 0], sizes = [16, 16, 8], strides = [1, 1, 1]} : vector<18x16x8xbf16> to vector<16x16x8xbf16>
    %8 = vector.shape_cast %7 : vector<16x16x8xbf16> to vector<256x8xbf16>
    %c0_12 = arith.constant 0 : index
    %c0_13 = arith.constant 0 : index
    %9 = vector.load %arg5[%c0_12, %c0_13] : memref<72x128xbf16, #tpu.memory_space<vmem>>, vector<8x128xbf16>
    %cst_14 = arith.constant dense<0.000000e+00> : vector<256x128xf32>
    %10 = tpu.matmul %8, %9, %cst_14 {dimension_numbers = #tpu.dot_dimension_numbers<[1], [0], [0], [1], [0, 0, 1, 1], [], []>} : vector<256x8xbf16>, vector<8x128xbf16>, vector<256x128xf32> -> vector<256x128xf32>
    %11 = arith.addf %5, %10 : vector<256x128xf32>
    %12 = vector.extract_strided_slice %6 {offsets = [1, 0, 0], sizes = [16, 16, 8], strides = [1, 1, 1]} : vector<18x16x8xbf16> to vector<16x16x8xbf16>
    %13 = vector.shape_cast %12 : vector<16x16x8xbf16> to vector<256x8xbf16>
    %c24 = arith.constant 24 : index
    %c0_15 = arith.constant 0 : index
    %14 = vector.load %arg5[%c24, %c0_15] : memref<72x128xbf16, #tpu.memory_space<vmem>>, vector<8x128xbf16>
    %cst_16 = arith.constant dense<0.000000e+00> : vector<256x128xf32>
    %15 = tpu.matmul %13, %14, %cst_16 {dimension_numbers = #tpu.dot_dimension_numbers<[1], [0], [0], [1], [0, 0, 1, 1], [], []>} : vector<256x8xbf16>, vector<8x128xbf16>, vector<256x128xf32> -> vector<256x128xf32>
    %16 = arith.addf %11, %15 : vector<256x128xf32>
    %17 = vector.extract_strided_slice %6 {offsets = [2, 0, 0], sizes = [16, 16, 8], strides = [1, 1, 1]} : vector<18x16x8xbf16> to vector<16x16x8xbf16>
    %18 = vector.shape_cast %17 : vector<16x16x8xbf16> to vector<256x8xbf16>
    %c48 = arith.constant 48 : index
    %c0_17 = arith.constant 0 : index
    %19 = vector.load %arg5[%c48, %c0_17] : memref<72x128xbf16, #tpu.memory_space<vmem>>, vector<8x128xbf16>
    %cst_18 = arith.constant dense<0.000000e+00> : vector<256x128xf32>
    %20 = tpu.matmul %18, %19, %cst_18 {dimension_numbers = #tpu.dot_dimension_numbers<[1], [0], [0], [1], [0, 0, 1, 1], [], []>} : vector<256x8xbf16>, vector<8x128xbf16>, vector<256x128xf32> -> vector<256x128xf32>
    %21 = arith.addf %16, %20 : vector<256x128xf32>
    %c0_19 = arith.constant 0 : index
    %c1_20 = arith.constant 1 : index
    %c0_21 = arith.constant 0 : index
    %22 = vector.load %arg8[%c0_19, %c1_20, %c0_21] : memref<18x18x8xbf16, #tpu.memory_space<vmem>>, vector<18x16x8xbf16>
    %23 = vector.extract_strided_slice %22 {offsets = [0, 0, 0], sizes = [16, 16, 8], strides = [1, 1, 1]} : vector<18x16x8xbf16> to vector<16x16x8xbf16>
    %24 = vector.shape_cast %23 : vector<16x16x8xbf16> to vector<256x8xbf16>
    %c8 = arith.constant 8 : index
    %c0_22 = arith.constant 0 : index
    %25 = vector.load %arg5[%c8, %c0_22] : memref<72x128xbf16, #tpu.memory_space<vmem>>, vector<8x128xbf16>
    %cst_23 = arith.constant dense<0.000000e+00> : vector<256x128xf32>
    %26 = tpu.matmul %24, %25, %cst_23 {dimension_numbers = #tpu.dot_dimension_numbers<[1], [0], [0], [1], [0, 0, 1, 1], [], []>} : vector<256x8xbf16>, vector<8x128xbf16>, vector<256x128xf32> -> vector<256x128xf32>
    %27 = arith.addf %21, %26 : vector<256x128xf32>
    %28 = vector.extract_strided_slice %22 {offsets = [1, 0, 0], sizes = [16, 16, 8], strides = [1, 1, 1]} : vector<18x16x8xbf16> to vector<16x16x8xbf16>
    %29 = vector.shape_cast %28 : vector<16x16x8xbf16> to vector<256x8xbf16>
    %c32 = arith.constant 32 : index
    %c0_24 = arith.constant 0 : index
    %30 = vector.load %arg5[%c32, %c0_24] : memref<72x128xbf16, #tpu.memory_space<vmem>>, vector<8x128xbf16>
    %cst_25 = arith.constant dense<0.000000e+00> : vector<256x128xf32>
    %31 = tpu.matmul %29, %30, %cst_25 {dimension_numbers = #tpu.dot_dimension_numbers<[1], [0], [0], [1], [0, 0, 1, 1], [], []>} : vector<256x8xbf16>, vector<8x128xbf16>, vector<256x128xf32> -> vector<256x128xf32>
    %32 = arith.addf %27, %31 : vector<256x128xf32>
    %33 = vector.extract_strided_slice %22 {offsets = [2, 0, 0], sizes = [16, 16, 8], strides = [1, 1, 1]} : vector<18x16x8xbf16> to vector<16x16x8xbf16>
    %34 = vector.shape_cast %33 : vector<16x16x8xbf16> to vector<256x8xbf16>
    %c56 = arith.constant 56 : index
    %c0_26 = arith.constant 0 : index
    %35 = vector.load %arg5[%c56, %c0_26] : memref<72x128xbf16, #tpu.memory_space<vmem>>, vector<8x128xbf16>
    %cst_27 = arith.constant dense<0.000000e+00> : vector<256x128xf32>
    %36 = tpu.matmul %34, %35, %cst_27 {dimension_numbers = #tpu.dot_dimension_numbers<[1], [0], [0], [1], [0, 0, 1, 1], [], []>} : vector<256x8xbf16>, vector<8x128xbf16>, vector<256x128xf32> -> vector<256x128xf32>
    %37 = arith.addf %32, %36 : vector<256x128xf32>
    %c0_28 = arith.constant 0 : index
    %c2 = arith.constant 2 : index
    %c0_29 = arith.constant 0 : index
    %38 = vector.load %arg8[%c0_28, %c2, %c0_29] : memref<18x18x8xbf16, #tpu.memory_space<vmem>>, vector<18x16x8xbf16>
    %39 = vector.extract_strided_slice %38 {offsets = [0, 0, 0], sizes = [16, 16, 8], strides = [1, 1, 1]} : vector<18x16x8xbf16> to vector<16x16x8xbf16>
    %40 = vector.shape_cast %39 : vector<16x16x8xbf16> to vector<256x8xbf16>
    %c16 = arith.constant 16 : index
    %c0_30 = arith.constant 0 : index
    %41 = vector.load %arg5[%c16, %c0_30] : memref<72x128xbf16, #tpu.memory_space<vmem>>, vector<8x128xbf16>
    %cst_31 = arith.constant dense<0.000000e+00> : vector<256x128xf32>
    %42 = tpu.matmul %40, %41, %cst_31 {dimension_numbers = #tpu.dot_dimension_numbers<[1], [0], [0], [1], [0, 0, 1, 1], [], []>} : vector<256x8xbf16>, vector<8x128xbf16>, vector<256x128xf32> -> vector<256x128xf32>
    %43 = arith.addf %37, %42 : vector<256x128xf32>
    %44 = vector.extract_strided_slice %38 {offsets = [1, 0, 0], sizes = [16, 16, 8], strides = [1, 1, 1]} : vector<18x16x8xbf16> to vector<16x16x8xbf16>
    %45 = vector.shape_cast %44 : vector<16x16x8xbf16> to vector<256x8xbf16>
    %c40 = arith.constant 40 : index
    %c0_32 = arith.constant 0 : index
    %46 = vector.load %arg5[%c40, %c0_32] : memref<72x128xbf16, #tpu.memory_space<vmem>>, vector<8x128xbf16>
    %cst_33 = arith.constant dense<0.000000e+00> : vector<256x128xf32>
    %47 = tpu.matmul %45, %46, %cst_33 {dimension_numbers = #tpu.dot_dimension_numbers<[1], [0], [0], [1], [0, 0, 1, 1], [], []>} : vector<256x8xbf16>, vector<8x128xbf16>, vector<256x128xf32> -> vector<256x128xf32>
    %48 = arith.addf %43, %47 : vector<256x128xf32>
    %49 = vector.extract_strided_slice %38 {offsets = [2, 0, 0], sizes = [16, 16, 8], strides = [1, 1, 1]} : vector<18x16x8xbf16> to vector<16x16x8xbf16>
    %50 = vector.shape_cast %49 : vector<16x16x8xbf16> to vector<256x8xbf16>
    %c64 = arith.constant 64 : index
    %c0_34 = arith.constant 0 : index
    %51 = vector.load %arg5[%c64, %c0_34] : memref<72x128xbf16, #tpu.memory_space<vmem>>, vector<8x128xbf16>
    %cst_35 = arith.constant dense<0.000000e+00> : vector<256x128xf32>
    %52 = tpu.matmul %50, %51, %cst_35 {dimension_numbers = #tpu.dot_dimension_numbers<[1], [0], [0], [1], [0, 0, 1, 1], [], []>} : vector<256x8xbf16>, vector<8x128xbf16>, vector<256x128xf32> -> vector<256x128xf32>
    %53 = arith.addf %48, %52 : vector<256x128xf32>
    %54 = arith.truncf %53 : vector<256x128xf32> to vector<256x128xbf16>
    %c0_36 = arith.constant 0 : index
    %c0_37 = arith.constant 0 : index
    %c0_38 = arith.constant 0 : index
    %55 = vector.load %arg6[%c0_36, %c0_37, %c0_38] : memref<1x256x128xbf16, #tpu.memory_space<vmem>>, vector<1x256x128xbf16>
    %56 = vector.shape_cast %55 : vector<1x256x128xbf16> to vector<256x128xbf16>
    %57 = vector.shape_cast %54 : vector<256x128xbf16> to vector<1x256x128xbf16>
    tpu.vector_store %arg6[%c0_36, %c0_37, %c0_38], %57 {strides = array<i32>} : memref<1x256x128xbf16, #tpu.memory_space<vmem>>, vector<1x256x128xbf16>,
    %cst_39 = arith.constant dense<0.000000e+00> : vector<128xf32>
    %58 = vector.multi_reduction <add>, %53, %cst_39 [0] : vector<256x128xf32> to vector<128xf32>
    %59 = vector.shape_cast %58 : vector<128xf32> to vector<1x128xf32>
    %60 = arith.mulf %53, %53 : vector<256x128xf32>
    %cst_40 = arith.constant dense<0.000000e+00> : vector<128xf32>
    %61 = vector.multi_reduction <add>, %60, %cst_40 [0] : vector<256x128xf32> to vector<128xf32>
    %62 = vector.shape_cast %61 : vector<128xf32> to vector<1x128xf32>
    %63 = tpu.concatenate %59, %62 in 0 : vector<1x128xf32>, vector<1x128xf32> -> vector<2x128xf32>
    %c0_41 = arith.constant 0 : index
    %c0_42 = arith.constant 0 : index
    %c0_43 = arith.constant 0 : index
    %c0_44 = arith.constant 0 : index
    %64 = vector.load %arg7[%c0_41, %c0_42, %c0_43, %c0_44] : memref<1x1x2x128xf32, #tpu.memory_space<vmem>>, vector<1x1x2x128xf32>
    %65 = vector.shape_cast %64 : vector<1x1x2x128xf32> to vector<2x128xf32>
    %66 = vector.shape_cast %63 : vector<2x128xf32> to vector<1x1x2x128xf32>
    tpu.vector_store %arg7[%c0_41, %c0_42, %c0_43, %c0_44], %66 {strides = array<i32>} : memref<1x1x2x128xf32, #tpu.memory_space<vmem>>, vector<1x1x2x128xf32>,
    return
  }
  func.func @transform_0(%arg0: i32, %arg1: i32) -> (i32, i32) {
    %c0_i32 = arith.constant 0 : i32
    %c0_i32_0 = arith.constant 0 : i32
    %c0_i32_1 = arith.constant 0 : i32
    return %c0_i32, %c0_i32_0 : i32, i32
  }
  func.func @transform_1(%arg0: i32, %arg1: i32) -> (i32, i32) {
    %c0_i32 = arith.constant 0 : i32
    %c0_i32_0 = arith.constant 0 : i32
    %c0_i32_1 = arith.constant 0 : i32
    return %c0_i32, %c0_i32_0 : i32, i32
  }
  func.func @transform_2(%arg0: i32, %arg1: i32) -> (i32, i32, i32, i32) {
    %c0_i32 = arith.constant 0 : i32
    %c0_i32_0 = arith.constant 0 : i32
    %c0_i32_1 = arith.constant 0 : i32
    %c0_i32_2 = arith.constant 0 : i32
    return %arg0, %c0_i32, %c0_i32_0, %c0_i32_1 : i32, i32, i32, i32
  }
  func.func @transform_3(%arg0: i32, %arg1: i32) -> (i32, i32) {
    %c0_i32 = arith.constant 0 : i32
    %c0_i32_0 = arith.constant 0 : i32
    %c0_i32_1 = arith.constant 0 : i32
    return %c0_i32, %c0_i32_0 : i32, i32
  }
  func.func @transform_4(%arg0: i32, %arg1: i32) -> (i32, i32, i32) {
    %c0_i32 = arith.constant 0 : i32
    %c0_i32_0 = arith.constant 0 : i32
    return %arg0, %arg1, %c0_i32 : i32, i32, i32
  }
  func.func @transform_5(%arg0: i32, %arg1: i32) -> (i32, i32, i32, i32) {
    %c0_i32 = arith.constant 0 : i32
    %c0_i32_0 = arith.constant 0 : i32
    %c0_i32_1 = arith.constant 0 : i32
    return %arg0, %arg1, %c0_i32, %c0_i32_0 : i32, i32, i32, i32
  }
}

module attributes {stable_mosaic.version = 11 : i64} {
  func.func @_conv_fused_kernel(%arg0: i32, %arg1: i32, %arg2: memref<1x128xf32, #tpu.memory_space<vmem>>, %arg3: memref<1x128xf32, #tpu.memory_space<vmem>>, %arg4: memref<1x16x16x128xbf16, #tpu.memory_space<vmem>>, %arg5: memref<1152x128xbf16, #tpu.memory_space<vmem>>, %arg6: memref<1x256x128xbf16, #tpu.memory_space<vmem>>, %arg7: memref<1x1x2x128xf32, #tpu.memory_space<vmem>>, %arg8: memref<18x18x128xbf16, #tpu.memory_space<vmem>>) attributes {dimension_semantics = [#tpu.dimension_semantics<parallel>, #tpu.dimension_semantics<arbitrary>], iteration_bounds = array<i64: 2, 1>, scalar_prefetch = 0 : i64, scratch_operands = 1 : i64, tpu.core_type = #tpu.core_type<tc>, window_params = [{pipeline_mode = #tpu.pipeline_mode<synchronous>, transform_indices = @transform_0, window_bounds = array<i64: 1, 128>}, {pipeline_mode = #tpu.pipeline_mode<synchronous>, transform_indices = @transform_1, window_bounds = array<i64: 1, 128>}, {transform_indices = @transform_2, window_bounds = array<i64: 1, 16, 16, 128>}, {pipeline_mode = #tpu.pipeline_mode<synchronous>, transform_indices = @transform_3, window_bounds = array<i64: 1152, 128>}, {transform_indices = @transform_4, window_bounds = array<i64: 1, 256, 128>}, {transform_indices = @transform_5, window_bounds = array<i64: 1, 1, 2, 128>}]} {
    %cst = arith.constant 0.000000e+00 : bf16
    %0 = vector.broadcast %cst : bf16 to vector<18x18x128xbf16>
    %c0 = arith.constant 0 : index
    %c0_0 = arith.constant 0 : index
    %c0_1 = arith.constant 0 : index
    %1 = vector.load %arg8[%c0, %c0_0, %c0_1] : memref<18x18x128xbf16, #tpu.memory_space<vmem>>, vector<18x18x128xbf16>
    tpu.vector_store %arg8[%c0, %c0_0, %c0_1], %0 {strides = array<i32>} : memref<18x18x128xbf16, #tpu.memory_space<vmem>>, vector<18x18x128xbf16>,
    %c0_2 = arith.constant 0 : index
    %c0_3 = arith.constant 0 : index
    %c0_4 = arith.constant 0 : index
    %c0_5 = arith.constant 0 : index
    %2 = vector.load %arg4[%c0_2, %c0_3, %c0_4, %c0_5] : memref<1x16x16x128xbf16, #tpu.memory_space<vmem>>, vector<1x16x16x128xbf16>
    %3 = vector.shape_cast %2 : vector<1x16x16x128xbf16> to vector<16x16x128xbf16>
    %4 = arith.extf %3 : vector<16x16x128xbf16> to vector<16x16x128xf32>
    %c0_6 = arith.constant 0 : index
    %c0_7 = arith.constant 0 : index
    %5 = vector.load %arg2[%c0_6, %c0_7] : memref<1x128xf32, #tpu.memory_space<vmem>>, vector<1x128xf32>
    %6 = vector.shape_cast %5 : vector<1x128xf32> to vector<128xf32>
    %7 = vector.shape_cast %6 : vector<128xf32> to vector<1x1x128xf32>
    %8 = vector.broadcast %7 : vector<1x1x128xf32> to vector<16x16x128xf32>
    %9 = arith.mulf %4, %8 : vector<16x16x128xf32>
    %c0_8 = arith.constant 0 : index
    %c0_9 = arith.constant 0 : index
    %10 = vector.load %arg3[%c0_8, %c0_9] : memref<1x128xf32, #tpu.memory_space<vmem>>, vector<1x128xf32>
    %11 = vector.shape_cast %10 : vector<1x128xf32> to vector<128xf32>
    %12 = vector.shape_cast %11 : vector<128xf32> to vector<1x1x128xf32>
    %13 = vector.broadcast %12 : vector<1x1x128xf32> to vector<16x16x128xf32>
    %14 = arith.addf %9, %13 : vector<16x16x128xf32>
    %cst_10 = arith.constant 0.000000e+00 : f32
    %15 = vector.broadcast %cst_10 : f32 to vector<16x16x128xf32>
    %16 = arith.maximumf %14, %15 : vector<16x16x128xf32>
    %17 = arith.truncf %16 : vector<16x16x128xf32> to vector<16x16x128xbf16>
    %c1 = arith.constant 1 : index
    %c1_11 = arith.constant 1 : index
    %c0_12 = arith.constant 0 : index
    %18 = vector.load %arg8[%c1, %c1_11, %c0_12] : memref<18x18x128xbf16, #tpu.memory_space<vmem>>, vector<16x16x128xbf16>
    tpu.vector_store %arg8[%c1, %c1_11, %c0_12], %17 {strides = array<i32>} : memref<18x18x128xbf16, #tpu.memory_space<vmem>>, vector<16x16x128xbf16>,
    %cst_13 = arith.constant 0.000000e+00 : f32
    %19 = vector.broadcast %cst_13 : f32 to vector<256x128xf32>
    %c0_14 = arith.constant 0 : index
    %c0_15 = arith.constant 0 : index
    %c0_16 = arith.constant 0 : index
    %20 = vector.load %arg8[%c0_14, %c0_15, %c0_16] : memref<18x18x128xbf16, #tpu.memory_space<vmem>>, vector<18x16x128xbf16>
    %21 = vector.extract_strided_slice %20 {offsets = [0, 0, 0], sizes = [16, 16, 128], strides = [1, 1, 1]} : vector<18x16x128xbf16> to vector<16x16x128xbf16>
    %22 = vector.shape_cast %21 : vector<16x16x128xbf16> to vector<256x128xbf16>
    %c0_17 = arith.constant 0 : index
    %c0_18 = arith.constant 0 : index
    %23 = vector.load %arg5[%c0_17, %c0_18] : memref<1152x128xbf16, #tpu.memory_space<vmem>>, vector<128x128xbf16>
    %cst_19 = arith.constant dense<0.000000e+00> : vector<256x128xf32>
    %24 = tpu.matmul %22, %23, %cst_19 {dimension_numbers = #tpu.dot_dimension_numbers<[1], [0], [0], [1], [0, 0, 1, 1], [], []>} : vector<256x128xbf16>, vector<128x128xbf16>, vector<256x128xf32> -> vector<256x128xf32>
    %25 = arith.addf %19, %24 : vector<256x128xf32>
    %26 = vector.extract_strided_slice %20 {offsets = [1, 0, 0], sizes = [16, 16, 128], strides = [1, 1, 1]} : vector<18x16x128xbf16> to vector<16x16x128xbf16>
    %27 = vector.shape_cast %26 : vector<16x16x128xbf16> to vector<256x128xbf16>
    %c384 = arith.constant 384 : index
    %c0_20 = arith.constant 0 : index
    %28 = vector.load %arg5[%c384, %c0_20] : memref<1152x128xbf16, #tpu.memory_space<vmem>>, vector<128x128xbf16>
    %cst_21 = arith.constant dense<0.000000e+00> : vector<256x128xf32>
    %29 = tpu.matmul %27, %28, %cst_21 {dimension_numbers = #tpu.dot_dimension_numbers<[1], [0], [0], [1], [0, 0, 1, 1], [], []>} : vector<256x128xbf16>, vector<128x128xbf16>, vector<256x128xf32> -> vector<256x128xf32>
    %30 = arith.addf %25, %29 : vector<256x128xf32>
    %31 = vector.extract_strided_slice %20 {offsets = [2, 0, 0], sizes = [16, 16, 128], strides = [1, 1, 1]} : vector<18x16x128xbf16> to vector<16x16x128xbf16>
    %32 = vector.shape_cast %31 : vector<16x16x128xbf16> to vector<256x128xbf16>
    %c768 = arith.constant 768 : index
    %c0_22 = arith.constant 0 : index
    %33 = vector.load %arg5[%c768, %c0_22] : memref<1152x128xbf16, #tpu.memory_space<vmem>>, vector<128x128xbf16>
    %cst_23 = arith.constant dense<0.000000e+00> : vector<256x128xf32>
    %34 = tpu.matmul %32, %33, %cst_23 {dimension_numbers = #tpu.dot_dimension_numbers<[1], [0], [0], [1], [0, 0, 1, 1], [], []>} : vector<256x128xbf16>, vector<128x128xbf16>, vector<256x128xf32> -> vector<256x128xf32>
    %35 = arith.addf %30, %34 : vector<256x128xf32>
    %c0_24 = arith.constant 0 : index
    %c1_25 = arith.constant 1 : index
    %c0_26 = arith.constant 0 : index
    %36 = vector.load %arg8[%c0_24, %c1_25, %c0_26] : memref<18x18x128xbf16, #tpu.memory_space<vmem>>, vector<18x16x128xbf16>
    %37 = vector.extract_strided_slice %36 {offsets = [0, 0, 0], sizes = [16, 16, 128], strides = [1, 1, 1]} : vector<18x16x128xbf16> to vector<16x16x128xbf16>
    %38 = vector.shape_cast %37 : vector<16x16x128xbf16> to vector<256x128xbf16>
    %c128 = arith.constant 128 : index
    %c0_27 = arith.constant 0 : index
    %39 = vector.load %arg5[%c128, %c0_27] : memref<1152x128xbf16, #tpu.memory_space<vmem>>, vector<128x128xbf16>
    %cst_28 = arith.constant dense<0.000000e+00> : vector<256x128xf32>
    %40 = tpu.matmul %38, %39, %cst_28 {dimension_numbers = #tpu.dot_dimension_numbers<[1], [0], [0], [1], [0, 0, 1, 1], [], []>} : vector<256x128xbf16>, vector<128x128xbf16>, vector<256x128xf32> -> vector<256x128xf32>
    %41 = arith.addf %35, %40 : vector<256x128xf32>
    %42 = vector.extract_strided_slice %36 {offsets = [1, 0, 0], sizes = [16, 16, 128], strides = [1, 1, 1]} : vector<18x16x128xbf16> to vector<16x16x128xbf16>
    %43 = vector.shape_cast %42 : vector<16x16x128xbf16> to vector<256x128xbf16>
    %c512 = arith.constant 512 : index
    %c0_29 = arith.constant 0 : index
    %44 = vector.load %arg5[%c512, %c0_29] : memref<1152x128xbf16, #tpu.memory_space<vmem>>, vector<128x128xbf16>
    %cst_30 = arith.constant dense<0.000000e+00> : vector<256x128xf32>
    %45 = tpu.matmul %43, %44, %cst_30 {dimension_numbers = #tpu.dot_dimension_numbers<[1], [0], [0], [1], [0, 0, 1, 1], [], []>} : vector<256x128xbf16>, vector<128x128xbf16>, vector<256x128xf32> -> vector<256x128xf32>
    %46 = arith.addf %41, %45 : vector<256x128xf32>
    %47 = vector.extract_strided_slice %36 {offsets = [2, 0, 0], sizes = [16, 16, 128], strides = [1, 1, 1]} : vector<18x16x128xbf16> to vector<16x16x128xbf16>
    %48 = vector.shape_cast %47 : vector<16x16x128xbf16> to vector<256x128xbf16>
    %c896 = arith.constant 896 : index
    %c0_31 = arith.constant 0 : index
    %49 = vector.load %arg5[%c896, %c0_31] : memref<1152x128xbf16, #tpu.memory_space<vmem>>, vector<128x128xbf16>
    %cst_32 = arith.constant dense<0.000000e+00> : vector<256x128xf32>
    %50 = tpu.matmul %48, %49, %cst_32 {dimension_numbers = #tpu.dot_dimension_numbers<[1], [0], [0], [1], [0, 0, 1, 1], [], []>} : vector<256x128xbf16>, vector<128x128xbf16>, vector<256x128xf32> -> vector<256x128xf32>
    %51 = arith.addf %46, %50 : vector<256x128xf32>
    %c0_33 = arith.constant 0 : index
    %c2 = arith.constant 2 : index
    %c0_34 = arith.constant 0 : index
    %52 = vector.load %arg8[%c0_33, %c2, %c0_34] : memref<18x18x128xbf16, #tpu.memory_space<vmem>>, vector<18x16x128xbf16>
    %53 = vector.extract_strided_slice %52 {offsets = [0, 0, 0], sizes = [16, 16, 128], strides = [1, 1, 1]} : vector<18x16x128xbf16> to vector<16x16x128xbf16>
    %54 = vector.shape_cast %53 : vector<16x16x128xbf16> to vector<256x128xbf16>
    %c256 = arith.constant 256 : index
    %c0_35 = arith.constant 0 : index
    %55 = vector.load %arg5[%c256, %c0_35] : memref<1152x128xbf16, #tpu.memory_space<vmem>>, vector<128x128xbf16>
    %cst_36 = arith.constant dense<0.000000e+00> : vector<256x128xf32>
    %56 = tpu.matmul %54, %55, %cst_36 {dimension_numbers = #tpu.dot_dimension_numbers<[1], [0], [0], [1], [0, 0, 1, 1], [], []>} : vector<256x128xbf16>, vector<128x128xbf16>, vector<256x128xf32> -> vector<256x128xf32>
    %57 = arith.addf %51, %56 : vector<256x128xf32>
    %58 = vector.extract_strided_slice %52 {offsets = [1, 0, 0], sizes = [16, 16, 128], strides = [1, 1, 1]} : vector<18x16x128xbf16> to vector<16x16x128xbf16>
    %59 = vector.shape_cast %58 : vector<16x16x128xbf16> to vector<256x128xbf16>
    %c640 = arith.constant 640 : index
    %c0_37 = arith.constant 0 : index
    %60 = vector.load %arg5[%c640, %c0_37] : memref<1152x128xbf16, #tpu.memory_space<vmem>>, vector<128x128xbf16>
    %cst_38 = arith.constant dense<0.000000e+00> : vector<256x128xf32>
    %61 = tpu.matmul %59, %60, %cst_38 {dimension_numbers = #tpu.dot_dimension_numbers<[1], [0], [0], [1], [0, 0, 1, 1], [], []>} : vector<256x128xbf16>, vector<128x128xbf16>, vector<256x128xf32> -> vector<256x128xf32>
    %62 = arith.addf %57, %61 : vector<256x128xf32>
    %63 = vector.extract_strided_slice %52 {offsets = [2, 0, 0], sizes = [16, 16, 128], strides = [1, 1, 1]} : vector<18x16x128xbf16> to vector<16x16x128xbf16>
    %64 = vector.shape_cast %63 : vector<16x16x128xbf16> to vector<256x128xbf16>
    %c1024 = arith.constant 1024 : index
    %c0_39 = arith.constant 0 : index
    %65 = vector.load %arg5[%c1024, %c0_39] : memref<1152x128xbf16, #tpu.memory_space<vmem>>, vector<128x128xbf16>
    %cst_40 = arith.constant dense<0.000000e+00> : vector<256x128xf32>
    %66 = tpu.matmul %64, %65, %cst_40 {dimension_numbers = #tpu.dot_dimension_numbers<[1], [0], [0], [1], [0, 0, 1, 1], [], []>} : vector<256x128xbf16>, vector<128x128xbf16>, vector<256x128xf32> -> vector<256x128xf32>
    %67 = arith.addf %62, %66 : vector<256x128xf32>
    %68 = arith.truncf %67 : vector<256x128xf32> to vector<256x128xbf16>
    %c0_41 = arith.constant 0 : index
    %c0_42 = arith.constant 0 : index
    %c0_43 = arith.constant 0 : index
    %69 = vector.load %arg6[%c0_41, %c0_42, %c0_43] : memref<1x256x128xbf16, #tpu.memory_space<vmem>>, vector<1x256x128xbf16>
    %70 = vector.shape_cast %69 : vector<1x256x128xbf16> to vector<256x128xbf16>
    %71 = vector.shape_cast %68 : vector<256x128xbf16> to vector<1x256x128xbf16>
    tpu.vector_store %arg6[%c0_41, %c0_42, %c0_43], %71 {strides = array<i32>} : memref<1x256x128xbf16, #tpu.memory_space<vmem>>, vector<1x256x128xbf16>,
    %cst_44 = arith.constant dense<0.000000e+00> : vector<128xf32>
    %72 = vector.multi_reduction <add>, %67, %cst_44 [0] : vector<256x128xf32> to vector<128xf32>
    %73 = vector.shape_cast %72 : vector<128xf32> to vector<1x128xf32>
    %74 = arith.mulf %67, %67 : vector<256x128xf32>
    %cst_45 = arith.constant dense<0.000000e+00> : vector<128xf32>
    %75 = vector.multi_reduction <add>, %74, %cst_45 [0] : vector<256x128xf32> to vector<128xf32>
    %76 = vector.shape_cast %75 : vector<128xf32> to vector<1x128xf32>
    %77 = tpu.concatenate %73, %76 in 0 : vector<1x128xf32>, vector<1x128xf32> -> vector<2x128xf32>
    %c0_46 = arith.constant 0 : index
    %c0_47 = arith.constant 0 : index
    %c0_48 = arith.constant 0 : index
    %c0_49 = arith.constant 0 : index
    %78 = vector.load %arg7[%c0_46, %c0_47, %c0_48, %c0_49] : memref<1x1x2x128xf32, #tpu.memory_space<vmem>>, vector<1x1x2x128xf32>
    %79 = vector.shape_cast %78 : vector<1x1x2x128xf32> to vector<2x128xf32>
    %80 = vector.shape_cast %77 : vector<2x128xf32> to vector<1x1x2x128xf32>
    tpu.vector_store %arg7[%c0_46, %c0_47, %c0_48, %c0_49], %80 {strides = array<i32>} : memref<1x1x2x128xf32, #tpu.memory_space<vmem>>, vector<1x1x2x128xf32>,
    return
  }
  func.func @transform_0(%arg0: i32, %arg1: i32) -> (i32, i32) {
    %c0_i32 = arith.constant 0 : i32
    %c0_i32_0 = arith.constant 0 : i32
    %c0_i32_1 = arith.constant 0 : i32
    return %c0_i32, %c0_i32_0 : i32, i32
  }
  func.func @transform_1(%arg0: i32, %arg1: i32) -> (i32, i32) {
    %c0_i32 = arith.constant 0 : i32
    %c0_i32_0 = arith.constant 0 : i32
    %c0_i32_1 = arith.constant 0 : i32
    return %c0_i32, %c0_i32_0 : i32, i32
  }
  func.func @transform_2(%arg0: i32, %arg1: i32) -> (i32, i32, i32, i32) {
    %c0_i32 = arith.constant 0 : i32
    %c0_i32_0 = arith.constant 0 : i32
    %c0_i32_1 = arith.constant 0 : i32
    %c0_i32_2 = arith.constant 0 : i32
    return %arg0, %c0_i32, %c0_i32_0, %c0_i32_1 : i32, i32, i32, i32
  }
  func.func @transform_3(%arg0: i32, %arg1: i32) -> (i32, i32) {
    %c0_i32 = arith.constant 0 : i32
    %c0_i32_0 = arith.constant 0 : i32
    %c0_i32_1 = arith.constant 0 : i32
    return %c0_i32, %c0_i32_0 : i32, i32
  }
  func.func @transform_4(%arg0: i32, %arg1: i32) -> (i32, i32, i32) {
    %c0_i32 = arith.constant 0 : i32
    %c0_i32_0 = arith.constant 0 : i32
    return %arg0, %arg1, %c0_i32 : i32, i32, i32
  }
  func.func @transform_5(%arg0: i32, %arg1: i32) -> (i32, i32, i32, i32) {
    %c0_i32 = arith.constant 0 : i32
    %c0_i32_0 = arith.constant 0 : i32
    %c0_i32_1 = arith.constant 0 : i32
    return %arg0, %arg1, %c0_i32, %c0_i32_0 : i32, i32, i32, i32
  }
}

module attributes {stable_mosaic.version = 11 : i64} {
  func.func @_bn_relu_kernel(%arg0: i32, %arg1: memref<512x128xbf16, #tpu.memory_space<vmem>>, %arg2: memref<1x128xf32, #tpu.memory_space<vmem>>, %arg3: memref<1x128xf32, #tpu.memory_space<vmem>>, %arg4: memref<512x128xf32, #tpu.memory_space<vmem>>) attributes {dimension_semantics = [#tpu.dimension_semantics<parallel>], iteration_bounds = array<i64: 1>, scalar_prefetch = 0 : i64, scratch_operands = 0 : i64, tpu.core_type = #tpu.core_type<tc>, window_params = [{transform_indices = @transform_0, window_bounds = array<i64: 512, 128>}, {pipeline_mode = #tpu.pipeline_mode<synchronous>, transform_indices = @transform_1, window_bounds = array<i64: 1, 128>}, {pipeline_mode = #tpu.pipeline_mode<synchronous>, transform_indices = @transform_2, window_bounds = array<i64: 1, 128>}, {transform_indices = @transform_3, window_bounds = array<i64: 512, 128>}]} {
    %c0 = arith.constant 0 : index
    %c0_0 = arith.constant 0 : index
    %0 = vector.load %arg1[%c0, %c0_0] : memref<512x128xbf16, #tpu.memory_space<vmem>>, vector<512x128xbf16>
    %1 = arith.extf %0 : vector<512x128xbf16> to vector<512x128xf32>
    %c0_1 = arith.constant 0 : index
    %c0_2 = arith.constant 0 : index
    %2 = vector.load %arg2[%c0_1, %c0_2] : memref<1x128xf32, #tpu.memory_space<vmem>>, vector<1x128xf32>
    %3 = vector.broadcast %2 : vector<1x128xf32> to vector<512x128xf32>
    %4 = arith.mulf %1, %3 : vector<512x128xf32>
    %c0_3 = arith.constant 0 : index
    %c0_4 = arith.constant 0 : index
    %5 = vector.load %arg3[%c0_3, %c0_4] : memref<1x128xf32, #tpu.memory_space<vmem>>, vector<1x128xf32>
    %6 = vector.broadcast %5 : vector<1x128xf32> to vector<512x128xf32>
    %7 = arith.addf %4, %6 : vector<512x128xf32>
    %cst = arith.constant 0.000000e+00 : f32
    %8 = vector.broadcast %cst : f32 to vector<512x128xf32>
    %9 = arith.maximumf %7, %8 : vector<512x128xf32>
    %c0_5 = arith.constant 0 : index
    %c0_6 = arith.constant 0 : index
    %10 = vector.load %arg4[%c0_5, %c0_6] : memref<512x128xf32, #tpu.memory_space<vmem>>, vector<512x128xf32>
    tpu.vector_store %arg4[%c0_5, %c0_6], %9 {strides = array<i32>} : memref<512x128xf32, #tpu.memory_space<vmem>>, vector<512x128xf32>,
    return
  }
  func.func @transform_0(%arg0: i32) -> (i32, i32) {
    %c0_i32 = arith.constant 0 : i32
    %c0_i32_0 = arith.constant 0 : i32
    return %arg0, %c0_i32 : i32, i32
  }
  func.func @transform_1(%arg0: i32) -> (i32, i32) {
    %c0_i32 = arith.constant 0 : i32
    %c0_i32_0 = arith.constant 0 : i32
    %c0_i32_1 = arith.constant 0 : i32
    return %c0_i32, %c0_i32_0 : i32, i32
  }
  func.func @transform_2(%arg0: i32) -> (i32, i32) {
    %c0_i32 = arith.constant 0 : i32
    %c0_i32_0 = arith.constant 0 : i32
    %c0_i32_1 = arith.constant 0 : i32
    return %c0_i32, %c0_i32_0 : i32, i32
  }
  func.func @transform_3(%arg0: i32) -> (i32, i32) {
    %c0_i32 = arith.constant 0 : i32
    %c0_i32_0 = arith.constant 0 : i32
    return %arg0, %c0_i32 : i32, i32
  }
}

</mosaic_0001>

<llo_original>
// kernel: double_conv.5
$region0: #{double_conv.5}
  #allocation0 [shape = 'u32[]', space=smem, size = 0x4, offset = 0x4, fixed_abs, tag = 'smem constant byte address 0x4 - core index']
  #allocation1 [shape = 'u32[72,128]{1,0:T(1,128)}', space=vmem, size = 0x9000, scoped, tag = 'internal scratch']
  %s0 = inlined_call_operand.vmem [shape: bf16[512,128], index: 0, kind: input, shape index: {}]
  %s1 = inlined_call_operand.vmem [shape: f32[1,128], index: 1, kind: input, shape index: {}]
  %s2 = inlined_call_operand.vmem [shape: f32[1,128], index: 2, kind: input, shape index: {}]
  %s3 = inlined_call_operand.vmem [shape: f32[512,128], index: 3, kind: output, shape index: {}]
  %s4 = sld [smem:[#allocation0]]
  $region22: #{double_conv.5} parent=0
    _
  %s6 = ssub.s32 1, %s4
  %s7 = scalar_select 0, %s6, %s4
  // Predicated region
  $region2: #{double_conv.5} parent=0 // pred_check
    _
  $region3: #{double_conv.5} parent=0 // pred_check_branch
    %9 = sbr.rel (0) target = $region5
  $region4: #{double_conv.5} parent=0 // pred_region
    _
  $region5: #{double_conv.5} parent=0 // pred_fallthru
    _
  // Predicated region
  $region6: #{double_conv.5} parent=0 // pred_check
    _
  $region7: #{double_conv.5} parent=0 // pred_check_branch
    %11 = sbr.rel (0) target = $region9
  $region8: #{double_conv.5} parent=0 // pred_region
    _
  $region9: #{double_conv.5} parent=0 // pred_fallthru
    _
  // Predicated region
  $region10: #{double_conv.5} parent=0 // pred_check
    _
  $region11: #{double_conv.5} parent=0 // pred_check_branch
    %13 = sbr.rel (0) target = $region13
  $region12: #{double_conv.5} parent=0 // pred_region
    _
  $region13: #{double_conv.5} parent=0 // pred_fallthru
    _
  %v14 = vld [vmem:[%s0] sm:$0xf]
  %v15 = vld [vmem:[%s0 + $0x4] sm:$0xf]
  %v16 = vld [vmem:[%s0 + $0x8] sm:$0xf]
  %v17 = vld [vmem:[%s0 + $0xc] sm:$0xf]
  %v18 = vld [vmem:[%s0 + $0x10] sm:$0xf]
  %v19 = vld [vmem:[%s0 + $0x14] sm:$0xf]
  %v20 = vld [vmem:[%s0 + $0x18] sm:$0xf]
  %v21 = vld [vmem:[%s0 + $0x1c] sm:$0xf]
  %v22 = vld [vmem:[%s0 + $0x20] sm:$0xf]
  %v23 = vld [vmem:[%s0 + $0x24] sm:$0xf]
  %v24 = vld [vmem:[%s0 + $0x28] sm:$0xf]
  %v25 = vld [vmem:[%s0 + $0x2c] sm:$0xf]
  %v26 = vld [vmem:[%s0 + $0x30] sm:$0xf]
  %v27 = vld [vmem:[%s0 + $0x34] sm:$0xf]
  %v28 = vld [vmem:[%s0 + $0x38] sm:$0xf]
  %v29 = vld [vmem:[%s0 + $0x3c] sm:$0xf]
  %v30 = vld [vmem:[%s0 + $0x40] sm:$0xf]
  %v31 = vld [vmem:[%s0 + $0x44] sm:$0xf]
  %v32 = vld [vmem:[%s0 + $0x48] sm:$0xf]
  %v33 = vld [vmem:[%s0 + $0x4c] sm:$0xf]
  %v34 = vld [vmem:[%s0 + $0x50] sm:$0xf]
  %v35 = vld [vmem:[%s0 + $0x54] sm:$0xf]
  %v36 = vld [vmem:[%s0 + $0x58] sm:$0xf]
  %v37 = vld [vmem:[%s0 + $0x5c] sm:$0xf]
  %v38 = vld [vmem:[%s0 + $0x60] sm:$0xf]
  %v39 = vld [vmem:[%s0 + $0x64] sm:$0xf]
  %v40 = vld [vmem:[%s0 + $0x68] sm:$0xf]
  %v41 = vld [vmem:[%s0 + $0x6c] sm:$0xf]
  %v42 = vld [vmem:[%s0 + $0x70] sm:$0xf]
  %v43 = vld [vmem:[%s0 + $0x74] sm:$0xf]
  %v44 = vld [vmem:[%s0 + $0x78] sm:$0xf]
  %v45 = vld [vmem:[%s0 + $0x7c] sm:$0xf]
  %v46 = vld [vmem:[%s0 + $0x80] sm:$0xf]
  %v47 = vld [vmem:[%s0 + $0x84] sm:$0xf]
  %v48 = vld [vmem:[%s0 + $0x88] sm:$0xf]
  %v49 = vld [vmem:[%s0 + $0x8c] sm:$0xf]
  %v50 = vld [vmem:[%s0 + $0x90] sm:$0xf]
  %v51 = vld [vmem:[%s0 + $0x94] sm:$0xf]
  %v52 = vld [vmem:[%s0 + $0x98] sm:$0xf]
  %v53 = vld [vmem:[%s0 + $0x9c] sm:$0xf]
  %v54 = vld [vmem:[%s0 + $0xa0] sm:$0xf]
  %v55 = vld [vmem:[%s0 + $0xa4] sm:$0xf]
  %v56 = vld [vmem:[%s0 + $0xa8] sm:$0xf]
  %v57 = vld [vmem:[%s0 + $0xac] sm:$0xf]
  %v58 = vld [vmem:[%s0 + $0xb0] sm:$0xf]
  %v59 = vld [vmem:[%s0 + $0xb4] sm:$0xf]
  %v60 = vld [vmem:[%s0 + $0xb8] sm:$0xf]
  %v61 = vld [vmem:[%s0 + $0xbc] sm:$0xf]
  %v62 = vld [vmem:[%s0 + $0xc0] sm:$0xf]
  %v63 = vld [vmem:[%s0 + $0xc4] sm:$0xf]
  %v64 = vld [vmem:[%s0 + $0xc8] sm:$0xf]
  %v65 = vld [vmem:[%s0 + $0xcc] sm:$0xf]
  %v66 = vld [vmem:[%s0 + $0xd0] sm:$0xf]
  %v67 = vld [vmem:[%s0 + $0xd4] sm:$0xf]
  %v68 = vld [vmem:[%s0 + $0xd8] sm:$0xf]
  %v69 = vld [vmem:[%s0 + $0xdc] sm:$0xf]
  %v70 = vld [vmem:[%s0 + $0xe0] sm:$0xf]
  %v71 = vld [vmem:[%s0 + $0xe4] sm:$0xf]
  %v72 = vld [vmem:[%s0 + $0xe8] sm:$0xf]
  %v73 = vld [vmem:[%s0 + $0xec] sm:$0xf]
  %v74 = vld [vmem:[%s0 + $0xf0] sm:$0xf]
  %v75 = vld [vmem:[%s0 + $0xf4] sm:$0xf]
  %v76 = vld [vmem:[%s0 + $0xf8] sm:$0xf]
  %v77 = vld [vmem:[%s0 + $0xfc] sm:$0xf]
  %v78 = vunpack.c.l.bf16 %v14
  %v79 = vunpack.c.l.bf16 %v15
  %v80 = vunpack.c.l.bf16 %v16
  %v81 = vunpack.c.l.bf16 %v17
  %v82 = vunpack.c.l.bf16 %v18
  %v83 = vunpack.c.l.bf16 %v19
  %v84 = vunpack.c.l.bf16 %v20
  %v85 = vunpack.c.l.bf16 %v21
  %v86 = vunpack.c.l.bf16 %v22
  %v87 = vunpack.c.l.bf16 %v23
  %v88 = vunpack.c.l.bf16 %v24
  %v89 = vunpack.c.l.bf16 %v25
  %v90 = vunpack.c.l.bf16 %v26
  %v91 = vunpack.c.l.bf16 %v27
  %v92 = vunpack.c.l.bf16 %v28
  %v93 = vunpack.c.l.bf16 %v29
  %v94 = vunpack.c.l.bf16 %v30
  %v95 = vunpack.c.l.bf16 %v31
  %v96 = vunpack.c.l.bf16 %v32
  %v97 = vunpack.c.l.bf16 %v33
  %v98 = vunpack.c.l.bf16 %v34
  %v99 = vunpack.c.l.bf16 %v35
  %v100 = vunpack.c.l.bf16 %v36
  %v101 = vunpack.c.l.bf16 %v37
  %v102 = vunpack.c.l.bf16 %v38
  %v103 = vunpack.c.l.bf16 %v39
  %v104 = vunpack.c.l.bf16 %v40
  %v105 = vunpack.c.l.bf16 %v41
  %v106 = vunpack.c.l.bf16 %v42
  %v107 = vunpack.c.l.bf16 %v43
  %v108 = vunpack.c.l.bf16 %v44
  %v109 = vunpack.c.l.bf16 %v45
  %v110 = vunpack.c.l.bf16 %v46
  %v111 = vunpack.c.l.bf16 %v47
  %v112 = vunpack.c.l.bf16 %v48
  %v113 = vunpack.c.l.bf16 %v49
  %v114 = vunpack.c.l.bf16 %v50
  %v115 = vunpack.c.l.bf16 %v51
  %v116 = vunpack.c.l.bf16 %v52
  %v117 = vunpack.c.l.bf16 %v53
  %v118 = vunpack.c.l.bf16 %v54
  %v119 = vunpack.c.l.bf16 %v55
  %v120 = vunpack.c.l.bf16 %v56
  %v121 = vunpack.c.l.bf16 %v57
  %v122 = vunpack.c.l.bf16 %v58
  %v123 = vunpack.c.l.bf16 %v59
  %v124 = vunpack.c.l.bf16 %v60
  %v125 = vunpack.c.l.bf16 %v61
  %v126 = vunpack.c.l.bf16 %v62
  %v127 = vunpack.c.l.bf16 %v63
  %v128 = vunpack.c.l.bf16 %v64
  %v129 = vunpack.c.l.bf16 %v65
  %v130 = vunpack.c.l.bf16 %v66
  %v131 = vunpack.c.l.bf16 %v67
  %v132 = vunpack.c.l.bf16 %v68
  %v133 = vunpack.c.l.bf16 %v69
  %v134 = vunpack.c.l.bf16 %v70
  %v135 = vunpack.c.l.bf16 %v71
  %v136 = vunpack.c.l.bf16 %v72
  %v137 = vunpack.c.l.bf16 %v73
  %v138 = vunpack.c.l.bf16 %v74
  %v139 = vunpack.c.l.bf16 %v75
  %v140 = vunpack.c.l.bf16 %v76
  %v141 = vunpack.c.l.bf16 %v77
  %v142 = vld [vmem:[%s1] sm:$0x1]
  %v144 = vperm.slane %v142, 0
  %v146 = vmul.f32 %v78, %v144
  %v147 = vmul.f32 %v79, %v144
  %v148 = vmul.f32 %v80, %v144
  %v149 = vmul.f32 %v81, %v144
  %v150 = vmul.f32 %v82, %v144
  %v151 = vmul.f32 %v83, %v144
  %v152 = vmul.f32 %v84, %v144
  %v153 = vmul.f32 %v85, %v144
  %v154 = vmul.f32 %v86, %v144
  %v155 = vmul.f32 %v87, %v144
  %v156 = vmul.f32 %v88, %v144
  %v157 = vmul.f32 %v89, %v144
  %v158 = vmul.f32 %v90, %v144
  %v159 = vmul.f32 %v91, %v144
  %v160 = vmul.f32 %v92, %v144
  %v161 = vmul.f32 %v93, %v144
  %v162 = vmul.f32 %v94, %v144
  %v163 = vmul.f32 %v95, %v144
  %v164 = vmul.f32 %v96, %v144
  %v165 = vmul.f32 %v97, %v144
  %v166 = vmul.f32 %v98, %v144
  %v167 = vmul.f32 %v99, %v144
  %v168 = vmul.f32 %v100, %v144
  %v169 = vmul.f32 %v101, %v144
  %v170 = vmul.f32 %v102, %v144
  %v171 = vmul.f32 %v103, %v144
  %v172 = vmul.f32 %v104, %v144
  %v173 = vmul.f32 %v105, %v144
  %v174 = vmul.f32 %v106, %v144
  %v175 = vmul.f32 %v107, %v144
  %v176 = vmul.f32 %v108, %v144
  %v177 = vmul.f32 %v109, %v144
  %v178 = vmul.f32 %v110, %v144
  %v179 = vmul.f32 %v111, %v144
  %v180 = vmul.f32 %v112, %v144
  %v181 = vmul.f32 %v113, %v144
  %v182 = vmul.f32 %v114, %v144
  %v183 = vmul.f32 %v115, %v144
  %v184 = vmul.f32 %v116, %v144
  %v185 = vmul.f32 %v117, %v144
  %v186 = vmul.f32 %v118, %v144
  %v187 = vmul.f32 %v119, %v144
  %v188 = vmul.f32 %v120, %v144
  %v189 = vmul.f32 %v121, %v144
  %v190 = vmul.f32 %v122, %v144
  %v191 = vmul.f32 %v123, %v144
  %v192 = vmul.f32 %v124, %v144
  %v193 = vmul.f32 %v125, %v144
  %v194 = vmul.f32 %v126, %v144
  %v195 = vmul.f32 %v127, %v144
  %v196 = vmul.f32 %v128, %v144
  %v197 = vmul.f32 %v129, %v144
  %v198 = vmul.f32 %v130, %v144
  %v199 = vmul.f32 %v131, %v144
  %v200 = vmul.f32 %v132, %v144
  %v201 = vmul.f32 %v133, %v144
  %v202 = vmul.f32 %v134, %v144
  %v203 = vmul.f32 %v135, %v144
  %v204 = vmul.f32 %v136, %v144
  %v205 = vmul.f32 %v137, %v144
  %v206 = vmul.f32 %v138, %v144
  %v207 = vmul.f32 %v139, %v144
  %v208 = vmul.f32 %v140, %v144
  %v209 = vmul.f32 %v141, %v144
  %v210 = vld [vmem:[%s2] sm:$0x1]
  %v212 = vperm.slane %v210, 0
  %v214 = vadd.f32 %v146, %v212
  %v215 = vadd.f32 %v147, %v212
  %v216 = vadd.f32 %v148, %v212
  %v217 = vadd.f32 %v149, %v212
  %v218 = vadd.f32 %v150, %v212
  %v219 = vadd.f32 %v151, %v212
  %v220 = vadd.f32 %v152, %v212
  %v221 = vadd.f32 %v153, %v212
  %v222 = vadd.f32 %v154, %v212
  %v223 = vadd.f32 %v155, %v212
  %v224 = vadd.f32 %v156, %v212
  %v225 = vadd.f32 %v157, %v212
  %v226 = vadd.f32 %v158, %v212
  %v227 = vadd.f32 %v159, %v212
  %v228 = vadd.f32 %v160, %v212
  %v229 = vadd.f32 %v161, %v212
  %v230 = vadd.f32 %v162, %v212
  %v231 = vadd.f32 %v163, %v212
  %v232 = vadd.f32 %v164, %v212
  %v233 = vadd.f32 %v165, %v212
  %v234 = vadd.f32 %v166, %v212
  %v235 = vadd.f32 %v167, %v212
  %v236 = vadd.f32 %v168, %v212
  %v237 = vadd.f32 %v169, %v212
  %v238 = vadd.f32 %v170, %v212
  %v239 = vadd.f32 %v171, %v212
  %v240 = vadd.f32 %v172, %v212
  %v241 = vadd.f32 %v173, %v212
  %v242 = vadd.f32 %v174, %v212
  %v243 = vadd.f32 %v175, %v212
  %v244 = vadd.f32 %v176, %v212
  %v245 = vadd.f32 %v177, %v212
  %v246 = vadd.f32 %v178, %v212
  %v247 = vadd.f32 %v179, %v212
  %v248 = vadd.f32 %v180, %v212
  %v249 = vadd.f32 %v181, %v212
  %v250 = vadd.f32 %v182, %v212
  %v251 = vadd.f32 %v183, %v212
  %v252 = vadd.f32 %v184, %v212
  %v253 = vadd.f32 %v185, %v212
  %v254 = vadd.f32 %v186, %v212
  %v255 = vadd.f32 %v187, %v212
  %v256 = vadd.f32 %v188, %v212
  %v257 = vadd.f32 %v189, %v212
  %v258 = vadd.f32 %v190, %v212
  %v259 = vadd.f32 %v191, %v212
  %v260 = vadd.f32 %v192, %v212
  %v261 = vadd.f32 %v193, %v212
  %v262 = vadd.f32 %v194, %v212
  %v263 = vadd.f32 %v195, %v212
  %v264 = vadd.f32 %v196, %v212
  %v265 = vadd.f32 %v197, %v212
  %v266 = vadd.f32 %v198, %v212
  %v267 = vadd.f32 %v199, %v212
  %v268 = vadd.f32 %v200, %v212
  %v269 = vadd.f32 %v201, %v212
  %v270 = vadd.f32 %v202, %v212
  %v271 = vadd.f32 %v203, %v212
  %v272 = vadd.f32 %v204, %v212
  %v273 = vadd.f32 %v205, %v212
  %v274 = vadd.f32 %v206, %v212
  %v275 = vadd.f32 %v207, %v212
  %v276 = vadd.f32 %v208, %v212
  %v277 = vadd.f32 %v209, %v212
  %v278 = vmax.f32 %v214, 0.0
  %v279 = vmax.f32 %v215, 0.0
  %v280 = vmax.f32 %v216, 0.0
  %v281 = vmax.f32 %v217, 0.0
  %v282 = vmax.f32 %v218, 0.0
  %v283 = vmax.f32 %v219, 0.0
  %v284 = vmax.f32 %v220, 0.0
  %v285 = vmax.f32 %v221, 0.0
  %v286 = vmax.f32 %v222, 0.0
  %v287 = vmax.f32 %v223, 0.0
  %v288 = vmax.f32 %v224, 0.0
  %v289 = vmax.f32 %v225, 0.0
  %v290 = vmax.f32 %v226, 0.0
  %v291 = vmax.f32 %v227, 0.0
  %v292 = vmax.f32 %v228, 0.0
  %v293 = vmax.f32 %v229, 0.0
  %v294 = vmax.f32 %v230, 0.0
  %v295 = vmax.f32 %v231, 0.0
  %v296 = vmax.f32 %v232, 0.0
  %v297 = vmax.f32 %v233, 0.0
  %v298 = vmax.f32 %v234, 0.0
  %v299 = vmax.f32 %v235, 0.0
  %v300 = vmax.f32 %v236, 0.0
  %v301 = vmax.f32 %v237, 0.0
  %v302 = vmax.f32 %v238, 0.0
  %v303 = vmax.f32 %v239, 0.0
  %v304 = vmax.f32 %v240, 0.0
  %v305 = vmax.f32 %v241, 0.0
  %v306 = vmax.f32 %v242, 0.0
  %v307 = vmax.f32 %v243, 0.0
  %v308 = vmax.f32 %v244, 0.0
  %v309 = vmax.f32 %v245, 0.0
  %v310 = vmax.f32 %v246, 0.0
  %v311 = vmax.f32 %v247, 0.0
  %v312 = vmax.f32 %v248, 0.0
  %v313 = vmax.f32 %v249, 0.0
  %v314 = vmax.f32 %v250, 0.0
  %v315 = vmax.f32 %v251, 0.0
  %v316 = vmax.f32 %v252, 0.0
  %v317 = vmax.f32 %v253, 0.0
  %v318 = vmax.f32 %v254, 0.0
  %v319 = vmax.f32 %v255, 0.0
  %v320 = vmax.f32 %v256, 0.0
  %v321 = vmax.f32 %v257, 0.0
  %v322 = vmax.f32 %v258, 0.0
  %v323 = vmax.f32 %v259, 0.0
  %v324 = vmax.f32 %v260, 0.0
  %v325 = vmax.f32 %v261, 0.0
  %v326 = vmax.f32 %v262, 0.0
  %v327 = vmax.f32 %v263, 0.0
  %v328 = vmax.f32 %v264, 0.0
  %v329 = vmax.f32 %v265, 0.0
  %v330 = vmax.f32 %v266, 0.0
  %v331 = vmax.f32 %v267, 0.0
  %v332 = vmax.f32 %v268, 0.0
  %v333 = vmax.f32 %v269, 0.0
  %v334 = vmax.f32 %v270, 0.0
  %v335 = vmax.f32 %v271, 0.0
  %v336 = vmax.f32 %v272, 0.0
  %v337 = vmax.f32 %v273, 0.0
  %v338 = vmax.f32 %v274, 0.0
  %v339 = vmax.f32 %v275, 0.0
  %v340 = vmax.f32 %v276, 0.0
  %v341 = vmax.f32 %v277, 0.0
  %342 = vst [vmem:[%s3] sm:$0xff] %v278
  %343 = vst [vmem:[%s3 + $0x8] sm:$0xff] %v279
  %344 = vst [vmem:[%s3 + $0x10] sm:$0xff] %v280
  %345 = vst [vmem:[%s3 + $0x18] sm:$0xff] %v281
  %346 = vst [vmem:[%s3 + $0x20] sm:$0xff] %v282
  %347 = vst [vmem:[%s3 + $0x28] sm:$0xff] %v283
  %348 = vst [vmem:[%s3 + $0x30] sm:$0xff] %v284
  %349 = vst [vmem:[%s3 + $0x38] sm:$0xff] %v285
  %350 = vst [vmem:[%s3 + $0x40] sm:$0xff] %v286
  %351 = vst [vmem:[%s3 + $0x48] sm:$0xff] %v287
  %352 = vst [vmem:[%s3 + $0x50] sm:$0xff] %v288
  %353 = vst [vmem:[%s3 + $0x58] sm:$0xff] %v289
  %354 = vst [vmem:[%s3 + $0x60] sm:$0xff] %v290
  %355 = vst [vmem:[%s3 + $0x68] sm:$0xff] %v291
  %356 = vst [vmem:[%s3 + $0x70] sm:$0xff] %v292
  %357 = vst [vmem:[%s3 + $0x78] sm:$0xff] %v293
  %358 = vst [vmem:[%s3 + $0x80] sm:$0xff] %v294
  %359 = vst [vmem:[%s3 + $0x88] sm:$0xff] %v295
  %360 = vst [vmem:[%s3 + $0x90] sm:$0xff] %v296
  %361 = vst [vmem:[%s3 + $0x98] sm:$0xff] %v297
  %362 = vst [vmem:[%s3 + $0xa0] sm:$0xff] %v298
  %363 = vst [vmem:[%s3 + $0xa8] sm:$0xff] %v299
  %364 = vst [vmem:[%s3 + $0xb0] sm:$0xff] %v300
  %365 = vst [vmem:[%s3 + $0xb8] sm:$0xff] %v301
  %366 = vst [vmem:[%s3 + $0xc0] sm:$0xff] %v302
  %367 = vst [vmem:[%s3 + $0xc8] sm:$0xff] %v303
  %368 = vst [vmem:[%s3 + $0xd0] sm:$0xff] %v304
  %369 = vst [vmem:[%s3 + $0xd8] sm:$0xff] %v305
  %370 = vst [vmem:[%s3 + $0xe0] sm:$0xff] %v306
  %371 = vst [vmem:[%s3 + $0xe8] sm:$0xff] %v307
  %372 = vst [vmem:[%s3 + $0xf0] sm:$0xff] %v308
  %373 = vst [vmem:[%s3 + $0xf8] sm:$0xff] %v309
  %374 = vst [vmem:[%s3 + $0x100] sm:$0xff] %v310
  %375 = vst [vmem:[%s3 + $0x108] sm:$0xff] %v311
  %376 = vst [vmem:[%s3 + $0x110] sm:$0xff] %v312
  %377 = vst [vmem:[%s3 + $0x118] sm:$0xff] %v313
  %378 = vst [vmem:[%s3 + $0x120] sm:$0xff] %v314
  %379 = vst [vmem:[%s3 + $0x128] sm:$0xff] %v315
  %380 = vst [vmem:[%s3 + $0x130] sm:$0xff] %v316
  %381 = vst [vmem:[%s3 + $0x138] sm:$0xff] %v317
  %382 = vst [vmem:[%s3 + $0x140] sm:$0xff] %v318
  %383 = vst [vmem:[%s3 + $0x148] sm:$0xff] %v319
  %384 = vst [vmem:[%s3 + $0x150] sm:$0xff] %v320
  %385 = vst [vmem:[%s3 + $0x158] sm:$0xff] %v321
  %386 = vst [vmem:[%s3 + $0x160] sm:$0xff] %v322
  %387 = vst [vmem:[%s3 + $0x168] sm:$0xff] %v323
  %388 = vst [vmem:[%s3 + $0x170] sm:$0xff] %v324
  %389 = vst [vmem:[%s3 + $0x178] sm:$0xff] %v325
  %390 = vst [vmem:[%s3 + $0x180] sm:$0xff] %v326
  %391 = vst [vmem:[%s3 + $0x188] sm:$0xff] %v327
  %392 = vst [vmem:[%s3 + $0x190] sm:$0xff] %v328
  %393 = vst [vmem:[%s3 + $0x198] sm:$0xff] %v329
  %394 = vst [vmem:[%s3 + $0x1a0] sm:$0xff] %v330
  %395 = vst [vmem:[%s3 + $0x1a8] sm:$0xff] %v331
  %396 = vst [vmem:[%s3 + $0x1b0] sm:$0xff] %v332
  %397 = vst [vmem:[%s3 + $0x1b8] sm:$0xff] %v333
  %398 = vst [vmem:[%s3 + $0x1c0] sm:$0xff] %v334
  %399 = vst [vmem:[%s3 + $0x1c8] sm:$0xff] %v335
  %400 = vst [vmem:[%s3 + $0x1d0] sm:$0xff] %v336
  %401 = vst [vmem:[%s3 + $0x1d8] sm:$0xff] %v337
  %402 = vst [vmem:[%s3 + $0x1e0] sm:$0xff] %v338
  %403 = vst [vmem:[%s3 + $0x1e8] sm:$0xff] %v339
  %404 = vst [vmem:[%s3 + $0x1f0] sm:$0xff] %v340
  %405 = vst [vmem:[%s3 + $0x1f8] sm:$0xff] %v341
  // Predicated region
  $region14: #{double_conv.5} parent=0 // pred_check
    _
  $region15: #{double_conv.5} parent=0 // pred_check_branch
    %407 = sbr.rel (0) target = $region17
  $region16: #{double_conv.5} parent=0 // pred_region
    _
  $region17: #{double_conv.5} parent=0 // pred_fallthru
    _
  // Predicated region
  $region18: #{double_conv.5} parent=0 // pred_check
    _
  $region19: #{double_conv.5} parent=0 // pred_check_branch
    %409 = sbr.rel (0) target = $region21
  $region20: #{double_conv.5} parent=0 // pred_region
    _
  $region21: #{double_conv.5} parent=0 // pred_fallthru
    _

// kernel: double_conv.3
$region0: #{double_conv.3}
  #allocation0 [shape = 'u32[]', space=smem, size = 0x4, offset = 0x4, fixed_abs, tag = 'smem constant byte address 0x4 - core index']
  #allocation1 [shape = 'u32[72,128]{1,0:T(1,128)}', space=vmem, size = 0x9000, scoped, tag = 'internal scratch']
  #allocation2 [shape = 'bf16[18,18,8]{2,1,0:T(8,128)(2,1)}', space=vmem, size = 0x1b000, scoped, tag = 'scratch operand']
  %s0 = inlined_call_operand.vmem [shape: f32[1,8], index: 0, kind: input, shape index: {}]
  %s1 = inlined_call_operand.vmem [shape: f32[1,8], index: 1, kind: input, shape index: {}]
  %s2 = inlined_call_operand.vmem [shape: bf16[2,16,16,8], index: 2, kind: input, shape index: {}]
  %s3 = inlined_call_operand.vmem [shape: bf16[72,128], index: 3, kind: input, shape index: {}]
  %s4 = inlined_call_operand.vmem [shape: bf16[2,256,128], index: 4, kind: output, shape index: {0}]
  %s5 = inlined_call_operand.vmem [shape: f32[2,1,2,128], index: 5, kind: output, shape index: {1}]
  %6 = xla_tuple %s4, %s5
  %s7 = sld [smem:[#allocation0]]
  $region57: #{double_conv.3} parent=0
    _
  %s9 = ssub.s32 1, %s7
  %s10 = scalar_select 0, %s9, %s7
  loop: start=0, step=1, limit=4
  $region2: #{double_conv.3} parent=0 // loop_pre_header
    _
  $region3: #{double_conv.3} parent=0 // loop_header
    %s12 = sphi 0, %s16
    %p13 = scmp.ge.s32.totalorder %s12, 4
    %s19 = sphi 0, %s31
    %s20 = sphi 0, %s27
    %s21 = sphi 0, %s19
    %s22 = sphi 0, %s20
    %s23 = sphi 0, %s21
    %s24 = sphi 0, %s22
    %s32 = sphi 0, %s32
    %s34 = sphi 0, %s32
    %s35 = sphi 0, %s34
    %s49 = sphi 0, %s35
    %s53 = sphi 0, %s53
    %s55 = sphi 0, %s53
    %s56 = sphi 0, %s55
    %s70 = sphi 0, %s56
    %s76 = sphi 0, %s78
    %s79 = sphi 0, %s76
    %s80 = sphi 0, %s79
    %s96 = sphi 0, %s80
    %s100 = sphi 0, %s100
    %s102 = sphi 0, %s100
    %s103 = sphi 0, %s102
    %s117 = sphi 0, %s103
    %s125 = sphi 0, %s127
    %s128 = sphi 0, %s125
    %s129 = sphi 0, %s128
    %s145 = sphi 0, %s129
    %s153 = sphi 0, %s155
    %s156 = sphi 0, %s153
    %s157 = sphi 0, %s156
    %s173 = sphi 0, %s157
  $region4: #{double_conv.3} parent=0 // loop_header_branch
    %15 = sbr.rel (%p13) target = $region8
  $region5: #{double_conv.3} parent=0 // loop_body
    %s17 = ssub.s32 %s12, 1
    %s18 = ssub.s32 %s12, 2
    %s25 = sadd.s32 1, %s20
    %p26 = scmp.ge.s32.totalorder %s25, 1
    %s27 = scalar_select %p26, 0, %s25
    %s28 = sadd.s32 1, %s19
    %s29 = scalar_select %p26, %s28, %s19
    %p30 = scmp.ge.s32.totalorder %s29, 2
    %s31 = scalar_select %p30, 0, %s29
    %s33 = sadd.s32 %s32, 1
    %p36 = scmp.eq.s32.totalorder %s12, 1
    %p37 = scmp.ne.s32.totalorder %s32, %s34
    %p38 = scmp.eq.s32.totalorder %s12, 0
    %p39 = por %p37, %p38
    %p40 = scmp.ne.s32.totalorder %s32, %s34
    %p41 = scmp.eq.s32.totalorder %s17, 1
    %p42 = por %p40, %p41
    %p43 = scmp.ne.s32.totalorder %s34, %s35
    %p44 = scmp.eq.s32.totalorder %s17, 0
    %p45 = por %p43, %p44
    %p46 = scmp.ne.s32.totalorder %s34, %s35
    %p47 = scmp.eq.s32.totalorder %s18, 1
    %p48 = por %p46, %p47
    %p50 = scmp.ne.s32.totalorder %s35, %s49
    %p51 = scmp.eq.s32.totalorder %s18, 0
    %p52 = por %p50, %p51
    %s54 = sadd.s32 %s53, 1
    %p57 = scmp.eq.s32.totalorder %s12, 1
    %p58 = scmp.ne.s32.totalorder %s53, %s55
    %p59 = scmp.eq.s32.totalorder %s12, 0
    %p60 = por %p58, %p59
    %p61 = scmp.ne.s32.totalorder %s53, %s55
    %p62 = scmp.eq.s32.totalorder %s17, 1
    %p63 = por %p61, %p62
    %p64 = scmp.ne.s32.totalorder %s55, %s56
    %p65 = scmp.eq.s32.totalorder %s17, 0
    %p66 = por %p64, %p65
    %p67 = scmp.ne.s32.totalorder %s55, %s56
    %p68 = scmp.eq.s32.totalorder %s18, 1
    %p69 = por %p67, %p68
    %p71 = scmp.ne.s32.totalorder %s56, %s70
    %p72 = scmp.eq.s32.totalorder %s18, 0
    %p73 = por %p71, %p72
    %s74 = ssub.s32 %s19, %s31
    %p75 = scmp.eq.s32.totalorder %s74, 0
    %s77 = sadd.s32 %s76, 1
    %s78 = scalar_select %p75, %s76, %s77
    %p81 = pneg %p75
    %p82 = scmp.eq.s32.totalorder %s12, 1
    %p83 = por %p81, %p82
    %p84 = scmp.ne.s32.totalorder %s76, %s79
    %p85 = scmp.eq.s32.totalorder %s12, 0
    %p86 = por %p84, %p85
    %p87 = scmp.ne.s32.totalorder %s76, %s79
    %p88 = scmp.eq.s32.totalorder %s17, 1
    %p89 = por %p87, %p88
    %p90 = scmp.ne.s32.totalorder %s79, %s80
    %p91 = scmp.eq.s32.totalorder %s17, 0
    %p92 = por %p90, %p91
    %p93 = scmp.ne.s32.totalorder %s79, %s80
    %p94 = scmp.eq.s32.totalorder %s18, 1
    %p95 = por %p93, %p94
    %p97 = scmp.ne.s32.totalorder %s80, %s96
    %p98 = scmp.eq.s32.totalorder %s18, 0
    %p99 = por %p97, %p98
    %s101 = sadd.s32 %s100, 1
    %p104 = scmp.eq.s32.totalorder %s12, 1
    %p105 = scmp.ne.s32.totalorder %s100, %s102
    %p106 = scmp.eq.s32.totalorder %s12, 0
    %p107 = por %p105, %p106
    %p108 = scmp.ne.s32.totalorder %s100, %s102
    %p109 = scmp.eq.s32.totalorder %s17, 1
    %p110 = por %p108, %p109
    %p111 = scmp.ne.s32.totalorder %s102, %s103
    %p112 = scmp.eq.s32.totalorder %s17, 0
    %p113 = por %p111, %p112
    %p114 = scmp.ne.s32.totalorder %s102, %s103
    %p115 = scmp.eq.s32.totalorder %s18, 1
    %p116 = por %p114, %p115
    %p118 = scmp.ne.s32.totalorder %s103, %s117
    %p119 = scmp.eq.s32.totalorder %s18, 0
    %p120 = por %p118, %p119
    %s121 = ssub.s32 %s19, %s31
    %s122 = ssub.s32 %s20, %s27
    %s123 = sor.u32 %s121, %s122
    %p124 = scmp.eq.s32.totalorder %s123, 0
    %s126 = sadd.s32 %s125, 1
    %s127 = scalar_select %p124, %s125, %s126
    %p130 = pneg %p124
    %p131 = scmp.eq.s32.totalorder %s12, 1
    %p132 = por %p130, %p131
    %p133 = scmp.ne.s32.totalorder %s125, %s128
    %p134 = scmp.eq.s32.totalorder %s12, 0
    %p135 = por %p133, %p134
    %p136 = scmp.ne.s32.totalorder %s125, %s128
    %p137 = scmp.eq.s32.totalorder %s17, 1
    %p138 = por %p136, %p137
    %p139 = scmp.ne.s32.totalorder %s128, %s129
    %p140 = scmp.eq.s32.totalorder %s17, 0
    %p141 = por %p139, %p140
    %p142 = scmp.ne.s32.totalorder %s128, %s129
    %p143 = scmp.eq.s32.totalorder %s18, 1
    %p144 = por %p142, %p143
    %p146 = scmp.ne.s32.totalorder %s129, %s145
    %p147 = scmp.eq.s32.totalorder %s18, 0
    %p148 = por %p146, %p147
    %s149 = ssub.s32 %s19, %s31
    %s150 = ssub.s32 %s20, %s27
    %s151 = sor.u32 %s149, %s150
    %p152 = scmp.eq.s32.totalorder %s151, 0
    %s154 = sadd.s32 %s153, 1
    %s155 = scalar_select %p152, %s153, %s154
    %p158 = pneg %p152
    %p159 = scmp.eq.s32.totalorder %s12, 1
    %p160 = por %p158, %p159
    %p161 = scmp.ne.s32.totalorder %s153, %s156
    %p162 = scmp.eq.s32.totalorder %s12, 0
    %p163 = por %p161, %p162
    %p164 = scmp.ne.s32.totalorder %s153, %s156
    %p165 = scmp.eq.s32.totalorder %s17, 1
    %p166 = por %p164, %p165
    %p167 = scmp.ne.s32.totalorder %s156, %s157
    %p168 = scmp.eq.s32.totalorder %s17, 0
    %p169 = por %p167, %p168
    %p170 = scmp.ne.s32.totalorder %s156, %s157
    %p171 = scmp.eq.s32.totalorder %s18, 1
    %p172 = por %p170, %p171
    %p174 = scmp.ne.s32.totalorder %s157, %s173
    %p175 = scmp.eq.s32.totalorder %s18, 0
    %p176 = por %p174, %p175
    %p177 = scmp.le.s32.totalorder 1, %s12
    %p178 = scmp.lt.s32.totalorder %s12, 3
    %p179 = pnand %p177, %p178
    %p180 = pneg %p179
    // Predicated region
    $region9: #{double_conv.3} parent=5 // pred_check
      _
    $region10: #{double_conv.3} parent=5 // pred_check_branch
      %182 = sbr.rel (%p179) target = $region12
    $region11: #{double_conv.3} parent=5 // pred_region
      %s183 = ssub.s32 %s12, 1
      // Predicated region
      $region13: #{double_conv.3} parent=11 // pred_check
        %p184 = pneg %p45
      $region14: #{double_conv.3} parent=11 // pred_check_branch
        %186 = sbr.rel (%p184) target = $region16
      $region15: #{double_conv.3} parent=11 // pred_region
        _
      $region16: #{double_conv.3} parent=11 // pred_fallthru
        _
      // Predicated region
      $region17: #{double_conv.3} parent=11 // pred_check
        %p187 = pneg %p66
      $region18: #{double_conv.3} parent=11 // pred_check_branch
        %189 = sbr.rel (%p187) target = $region20
      $region19: #{double_conv.3} parent=11 // pred_region
        _
      $region20: #{double_conv.3} parent=11 // pred_fallthru
        _
      // Predicated region
      $region21: #{double_conv.3} parent=11 // pred_check
        %p190 = pneg %p113
      $region22: #{double_conv.3} parent=11 // pred_check_branch
        %192 = sbr.rel (%p190) target = $region24
      $region23: #{double_conv.3} parent=11 // pred_region
        _
      $region24: #{double_conv.3} parent=11 // pred_fallthru
        _
    $region12: #{double_conv.3} parent=5 // pred_fallthru
      _
    %p193 = scmp.lt.s32.totalorder %s12, 2
    // Predicated region
    $region25: #{double_conv.3} parent=5 // pred_check
      %p194 = pneg %p193
    $region26: #{double_conv.3} parent=5 // pred_check_branch
      %196 = sbr.rel (%p194) target = $region28
    $region27: #{double_conv.3} parent=5 // pred_region
      // Predicated region
      $region29: #{double_conv.3} parent=27 // pred_check
        %p197 = pneg %p86
      $region30: #{double_conv.3} parent=27 // pred_check_branch
        %199 = sbr.rel (%p197) target = $region32
      $region31: #{double_conv.3} parent=27 // pred_region
        %p200 = scmp.lt.s32.totalorder %s19, 1
        %s201 = scalar_select %p200, %s19, 1
        %s202 = smul.addr %s201, 32
        %s203 = smul.addr %s202, 4
        %s204 = scalar_lea.vmem %s2, %s203
      $region32: #{double_conv.3} parent=27 // pred_fallthru
        _
    $region28: #{double_conv.3} parent=5 // pred_fallthru
      _
    %p205 = scmp.le.s32.totalorder 1, %s12
    %p206 = scmp.lt.s32.totalorder %s12, 3
    %p207 = pnand %p205, %p206
    %p208 = pneg %p207
    // Predicated region
    $region33: #{double_conv.3} parent=5 // pred_check
      _
    $region34: #{double_conv.3} parent=5 // pred_check_branch
      %210 = sbr.rel (%p207) target = $region36
    $region35: #{double_conv.3} parent=5 // pred_region
      %s211 = ssub.s32 %s12, 1
      %p212 = pneg %p45
      %p213 = pneg %p42
      %p214 = pneg %p66
      %p215 = pneg %p63
      %p216 = scmp.lt.s32.totalorder %s21, 1
      %s217 = scalar_select %p216, %s21, 1
      %s218 = smul.addr %s217, 32
      %s219 = smul.addr %s218, 4
      %s220 = scalar_lea.vmem %s2, %s219
      %p221 = pneg %p92
      %p222 = pneg %p89
      %p223 = pneg %p113
      %p224 = pneg %p110
      %p225 = pneg %p141
      %p226 = pneg %p138
      %s227 = smul.u32 32, %s22
      %p228 = scmp.lt.s32.totalorder %s21, 1
      %s229 = scalar_select %p228, %s21, 1
      %p230 = scmp.lt.s32.totalorder %s227, 31
      %s231 = scalar_select %p230, %s227, 31
      %s232 = smul.addr %s229, 32
      %s233 = sadd.s32 %s231, %s232
      %s234 = smul.addr %s233, 4
      %s235 = scalar_lea.vmem %s4, %s234
      %p236 = pneg %p169
      %p237 = pneg %p166
      %p238 = scmp.lt.s32.totalorder %s21, 1
      %s239 = scalar_select %p238, %s21, 1
      %p240 = scmp.lt.s32.totalorder %s22, 0
      %s241 = scalar_select %p240, %s22, 0
      %s242 = sadd.s32 %s241, %s239
      %s243 = smul.addr %s242, 2
      %s244 = scalar_lea.vmem %s5, %s243
      %p245 = scmp.lt.s32.totalorder %s21, 1
      %s246 = scalar_select %p245, %s21, 1
      %s247 = smul.addr %s246, 32
      %s248 = smul.addr %s247, 4
      %s249 = scalar_lea.vmem %s2, %s248
      %s250 = smul.u32 32, %s22
      %p251 = scmp.lt.s32.totalorder %s21, 1
      %s252 = scalar_select %p251, %s21, 1
      %p253 = scmp.lt.s32.totalorder %s250, 31
      %s254 = scalar_select %p253, %s250, 31
      %s255 = smul.addr %s252, 32
      %s256 = sadd.s32 %s254, %s255
      %s257 = smul.addr %s256, 4
      %s258 = scalar_lea.vmem %s4, %s257
      %s259 = smul.u32 32, %s22
      %p260 = scmp.lt.s32.totalorder %s21, 1
      %s261 = scalar_select %p260, %s21, 1
      %p262 = scmp.lt.s32.totalorder %s22, 0
      %s263 = scalar_select %p262, %s22, 0
      %s264 = sadd.s32 %s263, %s261
      %s265 = smul.addr %s264, 2
      %s266 = scalar_lea.vmem %s5, %s265
      %vm268 = vcmask 60416
      %269 = vst.msk [vmem:[#allocation2] sm:$0xf] %vm268, 0
      %270 = vst.msk [vmem:[#allocation2 + $0x4] sm:$0xf] %vm268, 0
      %vm271 = vcmask 57344
      %272 = vst.msk [vmem:[#allocation2 + $0x8] sm:$0x1] %vm271, 0
      %273 = vst.msk [vmem:[#allocation2 + $0xc] sm:$0xf] %vm268, 0
      %274 = vst.msk [vmem:[#allocation2 + $0x10] sm:$0xf] %vm268, 0
      %275 = vst.msk [vmem:[#allocation2 + $0x14] sm:$0x1] %vm271, 0
      %276 = vst.msk [vmem:[#allocation2 + $0x18] sm:$0xf] %vm268, 0
      %277 = vst.msk [vmem:[#allocation2 + $0x1c] sm:$0xf] %vm268, 0
      %278 = vst.msk [vmem:[#allocation2 + $0x20] sm:$0x1] %vm271, 0
      %279 = vst.msk [vmem:[#allocation2 + $0x24] sm:$0xf] %vm268, 0
      %280 = vst.msk [vmem:[#allocation2 + $0x28] sm:$0xf] %vm268, 0
      %281 = vst.msk [vmem:[#allocation2 + $0x2c] sm:$0x1] %vm271, 0
      %282 = vst.msk [vmem:[#allocation2 + $0x30] sm:$0xf] %vm268, 0
      %283 = vst.msk [vmem:[#allocation2 + $0x34] sm:$0xf] %vm268, 0
      %284 = vst.msk [vmem:[#allocation2 + $0x38] sm:$0x1] %vm271, 0
      %285 = vst.msk [vmem:[#allocation2 + $0x3c] sm:$0xf] %vm268, 0
      %286 = vst.msk [vmem:[#allocation2 + $0x40] sm:$0xf] %vm268, 0
      %287 = vst.msk [vmem:[#allocation2 + $0x44] sm:$0x1] %vm271, 0
      %288 = vst.msk [vmem:[#allocation2 + $0x48] sm:$0xf] %vm268, 0
      %289 = vst.msk [vmem:[#allocation2 + $0x4c] sm:$0xf] %vm268, 0
      %290 = vst.msk [vmem:[#allocation2 + $0x50] sm:$0x1] %vm271, 0
      %291 = vst.msk [vmem:[#allocation2 + $0x54] sm:$0xf] %vm268, 0
      %292 = vst.msk [vmem:[#allocation2 + $0x58] sm:$0xf] %vm268, 0
      %293 = vst.msk [vmem:[#allocation2 + $0x5c] sm:$0x1] %vm271, 0
      %294 = vst.msk [vmem:[#allocation2 + $0x60] sm:$0xf] %vm268, 0
      %295 = vst.msk [vmem:[#allocation2 + $0x64] sm:$0xf] %vm268, 0
      %296 = vst.msk [vmem:[#allocation2 + $0x68] sm:$0x1] %vm271, 0
      %297 = vst.msk [vmem:[#allocation2 + $0x6c] sm:$0xf] %vm268, 0
      %298 = vst.msk [vmem:[#allocation2 + $0x70] sm:$0xf] %vm268, 0
      %299 = vst.msk [vmem:[#allocation2 + $0x74] sm:$0x1] %vm271, 0
      %300 = vst.msk [vmem:[#allocation2 + $0x78] sm:$0xf] %vm268, 0
      %301 = vst.msk [vmem:[#allocation2 + $0x7c] sm:$0xf] %vm268, 0
      %302 = vst.msk [vmem:[#allocation2 + $0x80] sm:$0x1] %vm271, 0
      %303 = vst.msk [vmem:[#allocation2 + $0x84] sm:$0xf] %vm268, 0
      %304 = vst.msk [vmem:[#allocation2 + $0x88] sm:$0xf] %vm268, 0
      %305 = vst.msk [vmem:[#allocation2 + $0x8c] sm:$0x1] %vm271, 0
      %306 = vst.msk [vmem:[#allocation2 + $0x90] sm:$0xf] %vm268, 0
      %307 = vst.msk [vmem:[#allocation2 + $0x94] sm:$0xf] %vm268, 0
      %308 = vst.msk [vmem:[#allocation2 + $0x98] sm:$0x1] %vm271, 0
      %309 = vst.msk [vmem:[#allocation2 + $0x9c] sm:$0xf] %vm268, 0
      %310 = vst.msk [vmem:[#allocation2 + $0xa0] sm:$0xf] %vm268, 0
      %311 = vst.msk [vmem:[#allocation2 + $0xa4] sm:$0x1] %vm271, 0
      %312 = vst.msk [vmem:[#allocation2 + $0xa8] sm:$0xf] %vm268, 0
      %313 = vst.msk [vmem:[#allocation2 + $0xac] sm:$0xf] %vm268, 0
      %314 = vst.msk [vmem:[#allocation2 + $0xb0] sm:$0x1] %vm271, 0
      %315 = vst.msk [vmem:[#allocation2 + $0xb4] sm:$0xf] %vm268, 0
      %316 = vst.msk [vmem:[#allocation2 + $0xb8] sm:$0xf] %vm268, 0
      %317 = vst.msk [vmem:[#allocation2 + $0xbc] sm:$0x1] %vm271, 0
      %318 = vst.msk [vmem:[#allocation2 + $0xc0] sm:$0xf] %vm268, 0
      %319 = vst.msk [vmem:[#allocation2 + $0xc4] sm:$0xf] %vm268, 0
      %320 = vst.msk [vmem:[#allocation2 + $0xc8] sm:$0x1] %vm271, 0
      %321 = vst.msk [vmem:[#allocation2 + $0xcc] sm:$0xf] %vm268, 0
      %322 = vst.msk [vmem:[#allocation2 + $0xd0] sm:$0xf] %vm268, 0
      %323 = vst.msk [vmem:[#allocation2 + $0xd4] sm:$0x1] %vm271, 0
      %v324 = vld [vmem:[%s249] sm:$0xf]
      %v325 = vld [vmem:[%s249 + $0x4] sm:$0xf]
      %v326 = vld [vmem:[%s249 + $0x8] sm:$0xf]
      %v327 = vld [vmem:[%s249 + $0xc] sm:$0xf]
      %v328 = vld [vmem:[%s249 + $0x10] sm:$0xf]
      %v329 = vld [vmem:[%s249 + $0x14] sm:$0xf]
      %v330 = vld [vmem:[%s249 + $0x18] sm:$0xf]
      %v331 = vld [vmem:[%s249 + $0x1c] sm:$0xf]
      %v332 = vld [vmem:[%s249 + $0x20] sm:$0xf]
      %v333 = vld [vmem:[%s249 + $0x24] sm:$0xf]
      %v334 = vld [vmem:[%s249 + $0x28] sm:$0xf]
      %v335 = vld [vmem:[%s249 + $0x2c] sm:$0xf]
      %v336 = vld [vmem:[%s249 + $0x30] sm:$0xf]
      %v337 = vld [vmem:[%s249 + $0x34] sm:$0xf]
      %v338 = vld [vmem:[%s249 + $0x38] sm:$0xf]
      %v339 = vld [vmem:[%s249 + $0x3c] sm:$0xf]
      %v340 = vld [vmem:[%s249 + $0x40] sm:$0xf]
      %v341 = vld [vmem:[%s249 + $0x44] sm:$0xf]
      %v342 = vld [vmem:[%s249 + $0x48] sm:$0xf]
      %v343 = vld [vmem:[%s249 + $0x4c] sm:$0xf]
      %v344 = vld [vmem:[%s249 + $0x50] sm:$0xf]
      %v345 = vld [vmem:[%s249 + $0x54] sm:$0xf]
      %v346 = vld [vmem:[%s249 + $0x58] sm:$0xf]
      %v347 = vld [vmem:[%s249 + $0x5c] sm:$0xf]
      %v348 = vld [vmem:[%s249 + $0x60] sm:$0xf]
      %v349 = vld [vmem:[%s249 + $0x64] sm:$0xf]
      %v350 = vld [vmem:[%s249 + $0x68] sm:$0xf]
      %v351 = vld [vmem:[%s249 + $0x6c] sm:$0xf]
      %v352 = vld [vmem:[%s249 + $0x70] sm:$0xf]
      %v353 = vld [vmem:[%s249 + $0x74] sm:$0xf]
      %v354 = vld [vmem:[%s249 + $0x78] sm:$0xf]
      %v355 = vld [vmem:[%s249 + $0x7c] sm:$0xf]
      %vm356 = vsmask.f32 256
      %vm357 = vsmask.f32 4368
      %vm358 = vmor %vm356, %vm357
      %v360 = vshrl.u32 %v324, 16
      %v362 = vrot.slane %v360, 7
      %v363 = vshll.u32 %v324, 16
      %v365 = vor.u32 %v362, %v363
      %v366 = vrot.slane %v362, 4
      %v368 = vshrl.u32 %v325, 16
      %v370 = vrot.slane %v368, 7
      %v371 = vshll.u32 %v325, 16
      %v373 = vor.u32 %v370, %v371
      %v374 = vsel %vm358, %v366, %v373
      %v375 = vrot.slane %v370, 4
      %v377 = vshrl.u32 %v326, 16
      %v379 = vrot.slane %v377, 7
      %v380 = vshll.u32 %v326, 16
      %v382 = vor.u32 %v379, %v380
      %v383 = vrot.slane %v379, 4
      %v385 = vshrl.u32 %v327, 16
      %v387 = vrot.slane %v385, 7
      %v388 = vshll.u32 %v327, 16
      %v390 = vor.u32 %v387, %v388
      %v391 = vsel %vm358, %v383, %v390
      %v392 = vrot.slane %v387, 4
      %v394 = vshrl.u32 %v328, 16
      %v396 = vrot.slane %v394, 7
      %v397 = vshll.u32 %v328, 16
      %v399 = vor.u32 %v396, %v397
      %v400 = vrot.slane %v396, 4
      %v402 = vshrl.u32 %v329, 16
      %v404 = vrot.slane %v402, 7
      %v405 = vshll.u32 %v329, 16
      %v407 = vor.u32 %v404, %v405
      %v408 = vsel %vm358, %v400, %v407
      %v409 = vrot.slane %v404, 4
      %v411 = vshrl.u32 %v330, 16
      %v413 = vrot.slane %v411, 7
      %v414 = vshll.u32 %v330, 16
      %v416 = vor.u32 %v413, %v414
      %v417 = vrot.slane %v413, 4
      %v419 = vshrl.u32 %v331, 16
      %v421 = vrot.slane %v419, 7
      %v422 = vshll.u32 %v331, 16
      %v424 = vor.u32 %v421, %v422
      %v425 = vsel %vm358, %v417, %v424
      %v426 = vrot.slane %v421, 4
      %v428 = vshrl.u32 %v332, 16
      %v430 = vrot.slane %v428, 7
      %v431 = vshll.u32 %v332, 16
      %v433 = vor.u32 %v430, %v431
      %v434 = vrot.slane %v430, 4
      %v436 = vshrl.u32 %v333, 16
      %v438 = vrot.slane %v436, 7
      %v439 = vshll.u32 %v333, 16
      %v441 = vor.u32 %v438, %v439
      %v442 = vsel %vm358, %v434, %v441
      %v443 = vrot.slane %v438, 4
      %v445 = vshrl.u32 %v334, 16
      %v447 = vrot.slane %v445, 7
      %v448 = vshll.u32 %v334, 16
      %v450 = vor.u32 %v447, %v448
      %v451 = vrot.slane %v447, 4
      %v453 = vshrl.u32 %v335, 16
      %v455 = vrot.slane %v453, 7
      %v456 = vshll.u32 %v335, 16
      %v458 = vor.u32 %v455, %v456
      %v459 = vsel %vm358, %v451, %v458
      %v460 = vrot.slane %v455, 4
      %v462 = vshrl.u32 %v336, 16
      %v464 = vrot.slane %v462, 7
      %v465 = vshll.u32 %v336, 16
      %v467 = vor.u32 %v464, %v465
      %v468 = vrot.slane %v464, 4
      %v470 = vshrl.u32 %v337, 16
      %v472 = vrot.slane %v470, 7
      %v473 = vshll.u32 %v337, 16
      %v475 = vor.u32 %v472, %v473
      %v476 = vsel %vm358, %v468, %v475
      %v477 = vrot.slane %v472, 4
      %v479 = vshrl.u32 %v338, 16
      %v481 = vrot.slane %v479, 7
      %v482 = vshll.u32 %v338, 16
      %v484 = vor.u32 %v481, %v482
      %v485 = vrot.slane %v481, 4
      %v487 = vshrl.u32 %v339, 16
      %v489 = vrot.slane %v487, 7
      %v490 = vshll.u32 %v339, 16
      %v492 = vor.u32 %v489, %v490
      %v493 = vsel %vm358, %v485, %v492
      %v494 = vrot.slane %v489, 4
      %v496 = vshrl.u32 %v340, 16
      %v498 = vrot.slane %v496, 7
      %v499 = vshll.u32 %v340, 16
      %v501 = vor.u32 %v498, %v499
      %v502 = vrot.slane %v498, 4
      %v504 = vshrl.u32 %v341, 16
      %v506 = vrot.slane %v504, 7
      %v507 = vshll.u32 %v341, 16
      %v509 = vor.u32 %v506, %v507
      %v510 = vsel %vm358, %v502, %v509
      %v511 = vrot.slane %v506, 4
      %v513 = vshrl.u32 %v342, 16
      %v515 = vrot.slane %v513, 7
      %v516 = vshll.u32 %v342, 16
      %v518 = vor.u32 %v515, %v516
      %v519 = vrot.slane %v515, 4
      %v521 = vshrl.u32 %v343, 16
      %v523 = vrot.slane %v521, 7
      %v524 = vshll.u32 %v343, 16
      %v526 = vor.u32 %v523, %v524
      %v527 = vsel %vm358, %v519, %v526
      %v528 = vrot.slane %v523, 4
      %v530 = vshrl.u32 %v344, 16
      %v532 = vrot.slane %v530, 7
      %v533 = vshll.u32 %v344, 16
      %v535 = vor.u32 %v532, %v533
      %v536 = vrot.slane %v532, 4
      %v538 = vshrl.u32 %v345, 16
      %v540 = vrot.slane %v538, 7
      %v541 = vshll.u32 %v345, 16
      %v543 = vor.u32 %v540, %v541
      %v544 = vsel %vm358, %v536, %v543
      %v545 = vrot.slane %v540, 4
      %v547 = vshrl.u32 %v346, 16
      %v549 = vrot.slane %v547, 7
      %v550 = vshll.u32 %v346, 16
      %v552 = vor.u32 %v549, %v550
      %v553 = vrot.slane %v549, 4
      %v555 = vshrl.u32 %v347, 16
      %v557 = vrot.slane %v555, 7
      %v558 = vshll.u32 %v347, 16
      %v560 = vor.u32 %v557, %v558
      %v561 = vsel %vm358, %v553, %v560
      %v562 = vrot.slane %v557, 4
      %v564 = vshrl.u32 %v348, 16
      %v566 = vrot.slane %v564, 7
      %v567 = vshll.u32 %v348, 16
      %v569 = vor.u32 %v566, %v567
      %v570 = vrot.slane %v566, 4
      %v572 = vshrl.u32 %v349, 16
      %v574 = vrot.slane %v572, 7
      %v575 = vshll.u32 %v349, 16
      %v577 = vor.u32 %v574, %v575
      %v578 = vsel %vm358, %v570, %v577
      %v579 = vrot.slane %v574, 4
      %v581 = vshrl.u32 %v350, 16
      %v583 = vrot.slane %v581, 7
      %v584 = vshll.u32 %v350, 16
      %v586 = vor.u32 %v583, %v584
      %v587 = vrot.slane %v583, 4
      %v589 = vshrl.u32 %v351, 16
      %v591 = vrot.slane %v589, 7
      %v592 = vshll.u32 %v351, 16
      %v594 = vor.u32 %v591, %v592
      %v595 = vsel %vm358, %v587, %v594
      %v596 = vrot.slane %v591, 4
      %v598 = vshrl.u32 %v352, 16
      %v600 = vrot.slane %v598, 7
      %v601 = vshll.u32 %v352, 16
      %v603 = vor.u32 %v600, %v601
      %v604 = vrot.slane %v600, 4
      %v606 = vshrl.u32 %v353, 16
      %v608 = vrot.slane %v606, 7
      %v609 = vshll.u32 %v353, 16
      %v611 = vor.u32 %v608, %v609
      %v612 = vsel %vm358, %v604, %v611
      %v613 = vrot.slane %v608, 4
      %v615 = vshrl.u32 %v354, 16
      %v617 = vrot.slane %v615, 7
      %v618 = vshll.u32 %v354, 16
      %v620 = vor.u32 %v617, %v618
      %v621 = vrot.slane %v617, 4
      %v623 = vshrl.u32 %v355, 16
      %v625 = vrot.slane %v623, 7
      %v626 = vshll.u32 %v355, 16
      %v628 = vor.u32 %v625, %v626
      %v629 = vsel %vm358, %v621, %v628
      %v630 = vrot.slane %v625, 4
      %s679 = scalar_lea.vmem [#allocation2], 12
      %vm680 = vcmask 60416
      %vm681 = vsmask.f32 7938
      %vm682 = vmand %vm680, %vm681
      %v683 = vld [vmem:[%s679] sm:$0xf]
      %v684 = vsel %vm682, %v365, %v683
      %685 = vst [vmem:[%s679] sm:$0xf] %v684
      %686 = vst.msk [vmem:[%s679 + $0x4] sm:$0xf] %vm268, %v374
      %vm687 = vcmask 57344
      %vm688 = vmand %vm687, %vm356
      %v689 = vld [vmem:[%s679 + $0x8] sm:$0x1]
      %v690 = vsel %vm688, %v375, %v689
      %691 = vst [vmem:[%s679 + $0x8] sm:$0x1] %v690
      %v692 = vld [vmem:[%s679 + $0xc] sm:$0xf]
      %v693 = vsel %vm682, %v382, %v692
      %694 = vst [vmem:[%s679 + $0xc] sm:$0xf] %v693
      %695 = vst.msk [vmem:[%s679 + $0x10] sm:$0xf] %vm268, %v391
      %v696 = vld [vmem:[%s679 + $0x14] sm:$0x1]
      %v697 = vsel %vm688, %v392, %v696
      %698 = vst [vmem:[%s679 + $0x14] sm:$0x1] %v697
      %v699 = vld [vmem:[%s679 + $0x18] sm:$0xf]
      %v700 = vsel %vm682, %v399, %v699
      %701 = vst [vmem:[%s679 + $0x18] sm:$0xf] %v700
      %702 = vst.msk [vmem:[%s679 + $0x1c] sm:$0xf] %vm268, %v408
      %v703 = vld [vmem:[%s679 + $0x20] sm:$0x1]
      %v704 = vsel %vm688, %v409, %v703
      %705 = vst [vmem:[%s679 + $0x20] sm:$0x1] %v704
      %v706 = vld [vmem:[%s679 + $0x24] sm:$0xf]
      %v707 = vsel %vm682, %v416, %v706
      %708 = vst [vmem:[%s679 + $0x24] sm:$0xf] %v707
      %709 = vst.msk [vmem:[%s679 + $0x28] sm:$0xf] %vm268, %v425
      %v710 = vld [vmem:[%s679 + $0x2c] sm:$0x1]
      %v711 = vsel %vm688, %v426, %v710
      %712 = vst [vmem:[%s679 + $0x2c] sm:$0x1] %v711
      %v713 = vld [vmem:[%s679 + $0x30] sm:$0xf]
      %v714 = vsel %vm682, %v433, %v713
      %715 = vst [vmem:[%s679 + $0x30] sm:$0xf] %v714
      %716 = vst.msk [vmem:[%s679 + $0x34] sm:$0xf] %vm268, %v442
      %v717 = vld [vmem:[%s679 + $0x38] sm:$0x1]
      %v718 = vsel %vm688, %v443, %v717
      %719 = vst [vmem:[%s679 + $0x38] sm:$0x1] %v718
      %v720 = vld [vmem:[%s679 + $0x3c] sm:$0xf]
      %v721 = vsel %vm682, %v450, %v720
      %722 = vst [vmem:[%s679 + $0x3c] sm:$0xf] %v721
      %723 = vst.msk [vmem:[%s679 + $0x40] sm:$0xf] %vm268, %v459
      %v724 = vld [vmem:[%s679 + $0x44] sm:$0x1]
      %v725 = vsel %vm688, %v460, %v724
      %726 = vst [vmem:[%s679 + $0x44] sm:$0x1] %v725
      %v727 = vld [vmem:[%s679 + $0x48] sm:$0xf]
      %v728 = vsel %vm682, %v467, %v727
      %729 = vst [vmem:[%s679 + $0x48] sm:$0xf] %v728
      %730 = vst.msk [vmem:[%s679 + $0x4c] sm:$0xf] %vm268, %v476
      %v731 = vld [vmem:[%s679 + $0x50] sm:$0x1]
      %v732 = vsel %vm688, %v477, %v731
      %733 = vst [vmem:[%s679 + $0x50] sm:$0x1] %v732
      %v734 = vld [vmem:[%s679 + $0x54] sm:$0xf]
      %v735 = vsel %vm682, %v484, %v734
      %736 = vst [vmem:[%s679 + $0x54] sm:$0xf] %v735
      %737 = vst.msk [vmem:[%s679 + $0x58] sm:$0xf] %vm268, %v493
      %v738 = vld [vmem:[%s679 + $0x5c] sm:$0x1]
      %v739 = vsel %vm688, %v494, %v738
      %740 = vst [vmem:[%s679 + $0x5c] sm:$0x1] %v739
      %v741 = vld [vmem:[%s679 + $0x60] sm:$0xf]
      %v742 = vsel %vm682, %v501, %v741
      %743 = vst [vmem:[%s679 + $0x60] sm:$0xf] %v742
      %744 = vst.msk [vmem:[%s679 + $0x64] sm:$0xf] %vm268, %v510
      %v745 = vld [vmem:[%s679 + $0x68] sm:$0x1]
      %v746 = vsel %vm688, %v511, %v745
      %747 = vst [vmem:[%s679 + $0x68] sm:$0x1] %v746
      %v748 = vld [vmem:[%s679 + $0x6c] sm:$0xf]
      %v749 = vsel %vm682, %v518, %v748
      %750 = vst [vmem:[%s679 + $0x6c] sm:$0xf] %v749
      %751 = vst.msk [vmem:[%s679 + $0x70] sm:$0xf] %vm268, %v527
      %v752 = vld [vmem:[%s679 + $0x74] sm:$0x1]
      %v753 = vsel %vm688, %v528, %v752
      %754 = vst [vmem:[%s679 + $0x74] sm:$0x1] %v753
      %v755 = vld [vmem:[%s679 + $0x78] sm:$0xf]
      %v756 = vsel %vm682, %v535, %v755
      %757 = vst [vmem:[%s679 + $0x78] sm:$0xf] %v756
      %758 = vst.msk [vmem:[%s679 + $0x7c] sm:$0xf] %vm268, %v544
      %v759 = vld [vmem:[%s679 + $0x80] sm:$0x1]
      %v760 = vsel %vm688, %v545, %v759
      %761 = vst [vmem:[%s679 + $0x80] sm:$0x1] %v760
      %v762 = vld [vmem:[%s679 + $0x84] sm:$0xf]
      %v763 = vsel %vm682, %v552, %v762
      %764 = vst [vmem:[%s679 + $0x84] sm:$0xf] %v763
      %765 = vst.msk [vmem:[%s679 + $0x88] sm:$0xf] %vm268, %v561
      %v766 = vld [vmem:[%s679 + $0x8c] sm:$0x1]
      %v767 = vsel %vm688, %v562, %v766
      %768 = vst [vmem:[%s679 + $0x8c] sm:$0x1] %v767
      %v769 = vld [vmem:[%s679 + $0x90] sm:$0xf]
      %v770 = vsel %vm682, %v569, %v769
      %771 = vst [vmem:[%s679 + $0x90] sm:$0xf] %v770
      %772 = vst.msk [vmem:[%s679 + $0x94] sm:$0xf] %vm268, %v578
      %v773 = vld [vmem:[%s679 + $0x98] sm:$0x1]
      %v774 = vsel %vm688, %v579, %v773
      %775 = vst [vmem:[%s679 + $0x98] sm:$0x1] %v774
      %v776 = vld [vmem:[%s679 + $0x9c] sm:$0xf]
      %v777 = vsel %vm682, %v586, %v776
      %778 = vst [vmem:[%s679 + $0x9c] sm:$0xf] %v777
      %779 = vst.msk [vmem:[%s679 + $0xa0] sm:$0xf] %vm268, %v595
      %v780 = vld [vmem:[%s679 + $0xa4] sm:$0x1]
      %v781 = vsel %vm688, %v596, %v780
      %782 = vst [vmem:[%s679 + $0xa4] sm:$0x1] %v781
      %v783 = vld [vmem:[%s679 + $0xa8] sm:$0xf]
      %v784 = vsel %vm682, %v603, %v783
      %785 = vst [vmem:[%s679 + $0xa8] sm:$0xf] %v784
      %786 = vst.msk [vmem:[%s679 + $0xac] sm:$0xf] %vm268, %v612
      %v787 = vld [vmem:[%s679 + $0xb0] sm:$0x1]
      %v788 = vsel %vm688, %v613, %v787
      %789 = vst [vmem:[%s679 + $0xb0] sm:$0x1] %v788
      %v790 = vld [vmem:[%s679 + $0xb4] sm:$0xf]
      %v791 = vsel %vm682, %v620, %v790
      %792 = vst [vmem:[%s679 + $0xb4] sm:$0xf] %v791
      %793 = vst.msk [vmem:[%s679 + $0xb8] sm:$0xf] %vm268, %v629
      %v794 = vld [vmem:[%s679 + $0xbc] sm:$0x1]
      %v795 = vsel %vm688, %v630, %v794
      %796 = vst [vmem:[%s679 + $0xbc] sm:$0x1] %v795
      %v797 = vld [vmem:[#allocation2] sm:$0xf]
      %v798 = vld [vmem:[#allocation2 + $0x4] sm:$0xf]
      %v799 = vld [vmem:[#allocation2 + $0xc] sm:$0xf]
      %v800 = vld [vmem:[#allocation2 + $0x10] sm:$0xf]
      %v801 = vld [vmem:[#allocation2 + $0x18] sm:$0xf]
      %v802 = vld [vmem:[#allocation2 + $0x1c] sm:$0xf]
      %v803 = vld [vmem:[#allocation2 + $0x24] sm:$0xf]
      %v804 = vld [vmem:[#allocation2 + $0x28] sm:$0xf]
      %v805 = vld [vmem:[#allocation2 + $0x30] sm:$0xf]
      %v806 = vld [vmem:[#allocation2 + $0x34] sm:$0xf]
      %v807 = vld [vmem:[#allocation2 + $0x3c] sm:$0xf]
      %v808 = vld [vmem:[#allocation2 + $0x40] sm:$0xf]
      %v809 = vld [vmem:[#allocation2 + $0x48] sm:$0xf]
      %v810 = vld [vmem:[#allocation2 + $0x4c] sm:$0xf]
      %v811 = vld [vmem:[#allocation2 + $0x54] sm:$0xf]
      %v812 = vld [vmem:[#allocation2 + $0x58] sm:$0xf]
      %v813 = vld [vmem:[#allocation2 + $0x60] sm:$0xf]
      %v814 = vld [vmem:[#allocation2 + $0x64] sm:$0xf]
      %v815 = vld [vmem:[#allocation2 + $0x6c] sm:$0xf]
      %v816 = vld [vmem:[#allocation2 + $0x70] sm:$0xf]
      %v817 = vld [vmem:[#allocation2 + $0x78] sm:$0xf]
      %v818 = vld [vmem:[#allocation2 + $0x7c] sm:$0xf]
      %v819 = vld [vmem:[#allocation2 + $0x84] sm:$0xf]
      %v820 = vld [vmem:[#allocation2 + $0x88] sm:$0xf]
      %v821 = vld [vmem:[#allocation2 + $0x90] sm:$0xf]
      %v822 = vld [vmem:[#allocation2 + $0x94] sm:$0xf]
      %v823 = vld [vmem:[#allocation2 + $0x9c] sm:$0xf]
      %v824 = vld [vmem:[#allocation2 + $0xa0] sm:$0xf]
      %v825 = vld [vmem:[#allocation2 + $0xa8] sm:$0xf]
      %v826 = vld [vmem:[#allocation2 + $0xac] sm:$0xf]
      %v827 = vld [vmem:[#allocation2 + $0xb4] sm:$0xf]
      %v828 = vld [vmem:[#allocation2 + $0xb8] sm:$0xf]
      %v829 = vld [vmem:[#allocation2 + $0xc0] sm:$0xf]
      %v830 = vld [vmem:[#allocation2 + $0xc4] sm:$0xf]
      %v831 = vld [vmem:[#allocation2 + $0xcc] sm:$0xf]
      %v832 = vld [vmem:[#allocation2 + $0xd0] sm:$0xf]
      %v833 = vld [vmem:[%s3] sm:$0xf]
      %v834 = vld [vmem:[%s3 + $0xc] sm:$0xf]
      %v867 = vunpack.c.l.b16 %v799
      %v868 = vunpack.c.l.b16 %v800
      %v869 = vunpack.c.l.b16 %v801
      %v870 = vunpack.c.l.b16 %v802
      %v871 = vunpack.c.l.b16 %v803
      %v872 = vunpack.c.l.b16 %v804
      %v873 = vunpack.c.l.b16 %v805
      %v874 = vunpack.c.l.b16 %v806
      %v875 = vunpack.c.l.b16 %v807
      %v876 = vunpack.c.l.b16 %v808
      %v877 = vunpack.c.l.b16 %v809
      %v878 = vunpack.c.l.b16 %v810
      %v879 = vunpack.c.l.b16 %v811
      %v880 = vunpack.c.l.b16 %v812
      %v881 = vunpack.c.l.b16 %v813
      %v882 = vunpack.c.l.b16 %v814
      %v883 = vunpack.c.l.b16 %v815
      %v884 = vunpack.c.l.b16 %v816
      %v885 = vunpack.c.l.b16 %v817
      %v886 = vunpack.c.l.b16 %v818
      %v887 = vunpack.c.l.b16 %v819
      %v888 = vunpack.c.l.b16 %v820
      %v889 = vunpack.c.l.b16 %v821
      %v890 = vunpack.c.l.b16 %v822
      %v891 = vunpack.c.l.b16 %v823
      %v892 = vunpack.c.l.b16 %v824
      %v893 = vunpack.c.l.b16 %v825
      %v894 = vunpack.c.l.b16 %v826
      %v895 = vunpack.c.l.b16 %v827
      %v896 = vunpack.c.l.b16 %v828
      %v897 = vunpack.c.l.b16 %v829
      %v898 = vunpack.c.l.b16 %v830
      %v899 = vpack.c.b16 %v868, %v867
      %v900 = vpack.c.b16 %v870, %v869
      %v901 = vpack.c.b16 %v872, %v871
      %v902 = vpack.c.b16 %v874, %v873
      %v903 = vpack.c.b16 %v876, %v875
      %v904 = vpack.c.b16 %v878, %v877
      %v905 = vpack.c.b16 %v880, %v879
      %v906 = vpack.c.b16 %v882, %v881
      %v907 = vpack.c.b16 %v884, %v883
      %v908 = vpack.c.b16 %v886, %v885
      %v909 = vpack.c.b16 %v888, %v887
      %v910 = vpack.c.b16 %v890, %v889
      %v911 = vpack.c.b16 %v892, %v891
      %v912 = vpack.c.b16 %v894, %v893
      %v913 = vpack.c.b16 %v896, %v895
      %v914 = vpack.c.b16 %v898, %v897
      %vm915 = vcmask 64512
      %v917 = vsel %vm915, %v899, 0
      %v920 = vsel %vm915, %v900, 0
      %v923 = vsel %vm915, %v901, 0
      %v926 = vsel %vm915, %v902, 0
      %v929 = vsel %vm915, %v903, 0
      %v932 = vsel %vm915, %v904, 0
      %v935 = vsel %vm915, %v905, 0
      %v938 = vsel %vm915, %v906, 0
      %v941 = vsel %vm915, %v907, 0
      %v944 = vsel %vm915, %v908, 0
      %v947 = vsel %vm915, %v909, 0
      %v950 = vsel %vm915, %v910, 0
      %v953 = vsel %vm915, %v911, 0
      %v956 = vsel %vm915, %v912, 0
      %v959 = vsel %vm915, %v913, 0
      %v962 = vsel %vm915, %v914, 0
      %vm964 = vcmask 1043456
      %v966 = vsel %vm964, %v834, 0
      %968 = vmatpush.bf16.msra.mxu0 0
      %969 = vmatpush.bf16.msra.mxu0 0
      %970 = vmatpush.bf16.msra.mxu0 0
      %971 = vmatpush.bf16.msra.mxu0 0
      %972 = vmatpush.bf16.msra.mxu0 0
      %973 = vmatpush.bf16.msra.mxu0 0
      %974 = vmatpush.bf16.msra.mxu0 0
      %975 = vmatpush.bf16.msra.mxu0 %v966
      %976 = vmatmul.bf16.gmra.mxu0 %v917
      %v977 = vpop.f32.mrf.mxu0
      %v978 = vadd.f32 0.0, %v977
      %v979 = vpop.f32.mrf.mxu0
      %v980 = vadd.f32 0.0, %v979
      %981 = vmatmul.bf16.gmra.mxu0 %v920
      %v982 = vpop.f32.mrf.mxu0
      %v983 = vadd.f32 0.0, %v982
      %v984 = vpop.f32.mrf.mxu0
      %v985 = vadd.f32 0.0, %v984
      %986 = vmatmul.bf16.gmra.mxu0 %v923
      %v987 = vpop.f32.mrf.mxu0
      %v988 = vadd.f32 0.0, %v987
      %v989 = vpop.f32.mrf.mxu0
      %v990 = vadd.f32 0.0, %v989
      %991 = vmatmul.bf16.gmra.mxu0 %v926
      %v992 = vpop.f32.mrf.mxu0
      %v993 = vadd.f32 0.0, %v992
      %v994 = vpop.f32.mrf.mxu0
      %v995 = vadd.f32 0.0, %v994
      %996 = vmatmul.bf16.gmra.mxu0 %v929
      %v997 = vpop.f32.mrf.mxu0
      %v998 = vadd.f32 0.0, %v997
      %v999 = vpop.f32.mrf.mxu0
      %v1000 = vadd.f32 0.0, %v999
      %1001 = vmatmul.bf16.gmra.mxu0 %v932
      %v1002 = vpop.f32.mrf.mxu0
      %v1003 = vadd.f32 0.0, %v1002
      %v1004 = vpop.f32.mrf.mxu0
      %v1005 = vadd.f32 0.0, %v1004
      %1006 = vmatmul.bf16.gmra.mxu0 %v935
      %v1007 = vpop.f32.mrf.mxu0
      %v1008 = vadd.f32 0.0, %v1007
      %v1009 = vpop.f32.mrf.mxu0
      %v1010 = vadd.f32 0.0, %v1009
      %1011 = vmatmul.bf16.gmra.mxu0 %v938
      %v1012 = vpop.f32.mrf.mxu0
      %v1013 = vadd.f32 0.0, %v1012
      %v1014 = vpop.f32.mrf.mxu0
      %v1015 = vadd.f32 0.0, %v1014
      %1016 = vmatmul.bf16.gmra.mxu0 %v941
      %v1017 = vpop.f32.mrf.mxu0
      %v1018 = vadd.f32 0.0, %v1017
      %v1019 = vpop.f32.mrf.mxu0
      %v1020 = vadd.f32 0.0, %v1019
      %1021 = vmatmul.bf16.gmra.mxu0 %v944
      %v1022 = vpop.f32.mrf.mxu0
      %v1023 = vadd.f32 0.0, %v1022
      %v1024 = vpop.f32.mrf.mxu0
      %v1025 = vadd.f32 0.0, %v1024
      %1026 = vmatmul.bf16.gmra.mxu0 %v947
      %v1027 = vpop.f32.mrf.mxu0
      %v1028 = vadd.f32 0.0, %v1027
      %v1029 = vpop.f32.mrf.mxu0
      %v1030 = vadd.f32 0.0, %v1029
      %1031 = vmatmul.bf16.gmra.mxu0 %v950
      %v1032 = vpop.f32.mrf.mxu0
      %v1033 = vadd.f32 0.0, %v1032
      %v1034 = vpop.f32.mrf.mxu0
      %v1035 = vadd.f32 0.0, %v1034
      %1036 = vmatmul.bf16.gmra.mxu0 %v953
      %v1037 = vpop.f32.mrf.mxu0
      %v1038 = vadd.f32 0.0, %v1037
      %v1039 = vpop.f32.mrf.mxu0
      %v1040 = vadd.f32 0.0, %v1039
      %1041 = vmatmul.bf16.gmra.mxu0 %v956
      %v1042 = vpop.f32.mrf.mxu0
      %v1043 = vadd.f32 0.0, %v1042
      %v1044 = vpop.f32.mrf.mxu0
      %v1045 = vadd.f32 0.0, %v1044
      %1046 = vmatmul.bf16.gmra.mxu0 %v959
      %v1047 = vpop.f32.mrf.mxu0
      %v1048 = vadd.f32 0.0, %v1047
      %v1049 = vpop.f32.mrf.mxu0
      %v1050 = vadd.f32 0.0, %v1049
      %1051 = vmatmul.bf16.gmra.mxu0 %v962
      %v1052 = vpop.f32.mrf.mxu0
      %v1053 = vadd.f32 0.0, %v1052
      %v1054 = vpop.f32.mrf.mxu0
      %v1055 = vadd.f32 0.0, %v1054
      %1056 = vdwg.mxu0
      %v1059 = vunpack.c.l.b16 %v797
      %v1060 = vunpack.c.l.b16 %v798
      %v1061 = vpack.c.b16 %v1060, %v1059
      %v1063 = vsel %vm915, %v1061, 0
      %v1066 = vsel %vm964, %v833, 0
      %1068 = vmatpush.bf16.msra.mxu0 0
      %1069 = vmatpush.bf16.msra.mxu0 0
      %1070 = vmatpush.bf16.msra.mxu0 0
      %1071 = vmatpush.bf16.msra.mxu0 0
      %1072 = vmatpush.bf16.msra.mxu0 0
      %1073 = vmatpush.bf16.msra.mxu0 0
      %1074 = vmatpush.bf16.msra.mxu0 0
      %1075 = vmatpush.bf16.msra.mxu0 %v1066
      %1076 = vmatmul.bf16.gmra.mxu0 %v1063
      %v1077 = vpop.f32.mrf.mxu0
      %v1078 = vadd.f32 %v978, %v1077
      %v1079 = vpop.f32.mrf.mxu0
      %v1080 = vadd.f32 %v980, %v1079
      %1081 = vmatmul.bf16.gmra.mxu0 %v917
      %v1082 = vpop.f32.mrf.mxu0
      %v1083 = vadd.f32 %v983, %v1082
      %v1084 = vpop.f32.mrf.mxu0
      %v1085 = vadd.f32 %v985, %v1084
      %1086 = vmatmul.bf16.gmra.mxu0 %v920
      %v1087 = vpop.f32.mrf.mxu0
      %v1088 = vadd.f32 %v988, %v1087
      %v1089 = vpop.f32.mrf.mxu0
      %v1090 = vadd.f32 %v990, %v1089
      %1091 = vmatmul.bf16.gmra.mxu0 %v923
      %v1092 = vpop.f32.mrf.mxu0
      %v1093 = vadd.f32 %v993, %v1092
      %v1094 = vpop.f32.mrf.mxu0
      %v1095 = vadd.f32 %v995, %v1094
      %1096 = vmatmul.bf16.gmra.mxu0 %v926
      %v1097 = vpop.f32.mrf.mxu0
      %v1098 = vadd.f32 %v998, %v1097
      %v1099 = vpop.f32.mrf.mxu0
      %v1100 = vadd.f32 %v1000, %v1099
      %1101 = vmatmul.bf16.gmra.mxu0 %v929
      %v1102 = vpop.f32.mrf.mxu0
      %v1103 = vadd.f32 %v1003, %v1102
      %v1104 = vpop.f32.mrf.mxu0
      %v1105 = vadd.f32 %v1005, %v1104
      %1106 = vmatmul.bf16.gmra.mxu0 %v932
      %v1107 = vpop.f32.mrf.mxu0
      %v1108 = vadd.f32 %v1008, %v1107
      %v1109 = vpop.f32.mrf.mxu0
      %v1110 = vadd.f32 %v1010, %v1109
      %1111 = vmatmul.bf16.gmra.mxu0 %v935
      %v1112 = vpop.f32.mrf.mxu0
      %v1113 = vadd.f32 %v1013, %v1112
      %v1114 = vpop.f32.mrf.mxu0
      %v1115 = vadd.f32 %v1015, %v1114
      %1116 = vmatmul.bf16.gmra.mxu0 %v938
      %v1117 = vpop.f32.mrf.mxu0
      %v1118 = vadd.f32 %v1018, %v1117
      %v1119 = vpop.f32.mrf.mxu0
      %v1120 = vadd.f32 %v1020, %v1119
      %1121 = vmatmul.bf16.gmra.mxu0 %v941
      %v1122 = vpop.f32.mrf.mxu0
      %v1123 = vadd.f32 %v1023, %v1122
      %v1124 = vpop.f32.mrf.mxu0
      %v1125 = vadd.f32 %v1025, %v1124
      %1126 = vmatmul.bf16.gmra.mxu0 %v944
      %v1127 = vpop.f32.mrf.mxu0
      %v1128 = vadd.f32 %v1028, %v1127
      %v1129 = vpop.f32.mrf.mxu0
      %v1130 = vadd.f32 %v1030, %v1129
      %1131 = vmatmul.bf16.gmra.mxu0 %v947
      %v1132 = vpop.f32.mrf.mxu0
      %v1133 = vadd.f32 %v1033, %v1132
      %v1134 = vpop.f32.mrf.mxu0
      %v1135 = vadd.f32 %v1035, %v1134
      %1136 = vmatmul.bf16.gmra.mxu0 %v950
      %v1137 = vpop.f32.mrf.mxu0
      %v1138 = vadd.f32 %v1038, %v1137
      %v1139 = vpop.f32.mrf.mxu0
      %v1140 = vadd.f32 %v1040, %v1139
      %1141 = vmatmul.bf16.gmra.mxu0 %v953
      %v1142 = vpop.f32.mrf.mxu0
      %v1143 = vadd.f32 %v1043, %v1142
      %v1144 = vpop.f32.mrf.mxu0
      %v1145 = vadd.f32 %v1045, %v1144
      %1146 = vmatmul.bf16.gmra.mxu0 %v956
      %v1147 = vpop.f32.mrf.mxu0
      %v1148 = vadd.f32 %v1048, %v1147
      %v1149 = vpop.f32.mrf.mxu0
      %v1150 = vadd.f32 %v1050, %v1149
      %1151 = vmatmul.bf16.gmra.mxu0 %v959
      %v1152 = vpop.f32.mrf.mxu0
      %v1153 = vadd.f32 %v1053, %v1152
      %v1154 = vpop.f32.mrf.mxu0
      %v1155 = vadd.f32 %v1055, %v1154
      %1156 = vdwg.mxu0
      %v1157 = vld [vmem:[%s3 + $0x18] sm:$0xf]
      %v1160 = vunpack.c.l.b16 %v831
      %v1161 = vunpack.c.l.b16 %v832
      %v1162 = vpack.c.b16 %v1161, %v1160
      %v1164 = vsel %vm915, %v1162, 0
      %v1167 = vsel %vm964, %v1157, 0
      %1169 = vmatpush.bf16.msra.mxu0 0
      %1170 = vmatpush.bf16.msra.mxu0 0
      %1171 = vmatpush.bf16.msra.mxu0 0
      %1172 = vmatpush.bf16.msra.mxu0 0
      %1173 = vmatpush.bf16.msra.mxu0 0
      %1174 = vmatpush.bf16.msra.mxu0 0
      %1175 = vmatpush.bf16.msra.mxu0 0
      %1176 = vmatpush.bf16.msra.mxu0 %v1167
      %1177 = vmatmul.bf16.gmra.mxu0 %v920
      %v1178 = vpop.f32.mrf.mxu0
      %v1179 = vadd.f32 0.0, %v1178
      %v1180 = vpop.f32.mrf.mxu0
      %v1181 = vadd.f32 0.0, %v1180
      %1182 = vmatmul.bf16.gmra.mxu0 %v923
      %v1183 = vpop.f32.mrf.mxu0
      %v1184 = vadd.f32 0.0, %v1183
      %v1185 = vpop.f32.mrf.mxu0
      %v1186 = vadd.f32 0.0, %v1185
      %1187 = vmatmul.bf16.gmra.mxu0 %v926
      %v1188 = vpop.f32.mrf.mxu0
      %v1189 = vadd.f32 0.0, %v1188
      %v1190 = vpop.f32.mrf.mxu0
      %v1191 = vadd.f32 0.0, %v1190
      %1192 = vmatmul.bf16.gmra.mxu0 %v929
      %v1193 = vpop.f32.mrf.mxu0
      %v1194 = vadd.f32 0.0, %v1193
      %v1195 = vpop.f32.mrf.mxu0
      %v1196 = vadd.f32 0.0, %v1195
      %1197 = vmatmul.bf16.gmra.mxu0 %v932
      %v1198 = vpop.f32.mrf.mxu0
      %v1199 = vadd.f32 0.0, %v1198
      %v1200 = vpop.f32.mrf.mxu0
      %v1201 = vadd.f32 0.0, %v1200
      %1202 = vmatmul.bf16.gmra.mxu0 %v935
      %v1203 = vpop.f32.mrf.mxu0
      %v1204 = vadd.f32 0.0, %v1203
      %v1205 = vpop.f32.mrf.mxu0
      %v1206 = vadd.f32 0.0, %v1205
      %1207 = vmatmul.bf16.gmra.mxu0 %v938
      %v1208 = vpop.f32.mrf.mxu0
      %v1209 = vadd.f32 0.0, %v1208
      %v1210 = vpop.f32.mrf.mxu0
      %v1211 = vadd.f32 0.0, %v1210
      %1212 = vmatmul.bf16.gmra.mxu0 %v941
      %v1213 = vpop.f32.mrf.mxu0
      %v1214 = vadd.f32 0.0, %v1213
      %v1215 = vpop.f32.mrf.mxu0
      %v1216 = vadd.f32 0.0, %v1215
      %1217 = vmatmul.bf16.gmra.mxu0 %v944
      %v1218 = vpop.f32.mrf.mxu0
      %v1219 = vadd.f32 0.0, %v1218
      %v1220 = vpop.f32.mrf.mxu0
      %v1221 = vadd.f32 0.0, %v1220
      %1222 = vmatmul.bf16.gmra.mxu0 %v947
      %v1223 = vpop.f32.mrf.mxu0
      %v1224 = vadd.f32 0.0, %v1223
      %v1225 = vpop.f32.mrf.mxu0
      %v1226 = vadd.f32 0.0, %v1225
      %1227 = vmatmul.bf16.gmra.mxu0 %v950
      %v1228 = vpop.f32.mrf.mxu0
      %v1229 = vadd.f32 0.0, %v1228
      %v1230 = vpop.f32.mrf.mxu0
      %v1231 = vadd.f32 0.0, %v1230
      %1232 = vmatmul.bf16.gmra.mxu0 %v953
      %v1233 = vpop.f32.mrf.mxu0
      %v1234 = vadd.f32 0.0, %v1233
      %v1235 = vpop.f32.mrf.mxu0
      %v1236 = vadd.f32 0.0, %v1235
      %1237 = vmatmul.bf16.gmra.mxu0 %v956
      %v1238 = vpop.f32.mrf.mxu0
      %v1239 = vadd.f32 0.0, %v1238
      %v1240 = vpop.f32.mrf.mxu0
      %v1241 = vadd.f32 0.0, %v1240
      %1242 = vmatmul.bf16.gmra.mxu0 %v959
      %v1243 = vpop.f32.mrf.mxu0
      %v1244 = vadd.f32 0.0, %v1243
      %v1245 = vpop.f32.mrf.mxu0
      %v1246 = vadd.f32 0.0, %v1245
      %1247 = vmatmul.bf16.gmra.mxu0 %v962
      %v1248 = vpop.f32.mrf.mxu0
      %v1249 = vadd.f32 0.0, %v1248
      %v1250 = vpop.f32.mrf.mxu0
      %v1251 = vadd.f32 0.0, %v1250
      %1252 = vmatmul.bf16.gmra.mxu0 %v1164
      %v1253 = vpop.f32.mrf.mxu0
      %v1254 = vadd.f32 0.0, %v1253
      %v1255 = vpop.f32.mrf.mxu0
      %v1256 = vadd.f32 0.0, %v1255
      %1257 = vdwg.mxu0
      %v1258 = vadd.f32 %v1078, %v1179
      %v1259 = vadd.f32 %v1080, %v1181
      %v1260 = vadd.f32 %v1083, %v1184
      %v1261 = vadd.f32 %v1085, %v1186
      %v1262 = vadd.f32 %v1088, %v1189
      %v1263 = vadd.f32 %v1090, %v1191
      %v1264 = vadd.f32 %v1093, %v1194
      %v1265 = vadd.f32 %v1095, %v1196
      %v1266 = vadd.f32 %v1098, %v1199
      %v1267 = vadd.f32 %v1100, %v1201
      %v1268 = vadd.f32 %v1103, %v1204
      %v1269 = vadd.f32 %v1105, %v1206
      %v1270 = vadd.f32 %v1108, %v1209
      %v1271 = vadd.f32 %v1110, %v1211
      %v1272 = vadd.f32 %v1113, %v1214
      %v1273 = vadd.f32 %v1115, %v1216
      %v1274 = vadd.f32 %v1118, %v1219
      %v1275 = vadd.f32 %v1120, %v1221
      %v1276 = vadd.f32 %v1123, %v1224
      %v1277 = vadd.f32 %v1125, %v1226
      %v1278 = vadd.f32 %v1128, %v1229
      %v1279 = vadd.f32 %v1130, %v1231
      %v1280 = vadd.f32 %v1133, %v1234
      %v1281 = vadd.f32 %v1135, %v1236
      %v1282 = vadd.f32 %v1138, %v1239
      %v1283 = vadd.f32 %v1140, %v1241
      %v1284 = vadd.f32 %v1143, %v1244
      %v1285 = vadd.f32 %v1145, %v1246
      %v1286 = vadd.f32 %v1148, %v1249
      %v1287 = vadd.f32 %v1150, %v1251
      %v1288 = vadd.f32 %v1153, %v1254
      %v1289 = vadd.f32 %v1155, %v1256
      %v1290 = vld [vmem:[#allocation2] sm:$0xf]
      %v1291 = vld [vmem:[#allocation2 + $0x4] sm:$0xf]
      %v1292 = vld [vmem:[#allocation2 + $0x8] sm:$0x1]
      %v1293 = vld [vmem:[#allocation2 + $0xc] sm:$0xf]
      %v1294 = vld [vmem:[#allocation2 + $0x10] sm:$0xf]
      %v1295 = vld [vmem:[#allocation2 + $0x14] sm:$0x1]
      %v1296 = vld [vmem:[#allocation2 + $0x18] sm:$0xf]
      %v1297 = vld [vmem:[#allocation2 + $0x1c] sm:$0xf]
      %v1298 = vld [vmem:[#allocation2 + $0x20] sm:$0x1]
      %v1299 = vld [vmem:[#allocation2 + $0x24] sm:$0xf]
      %v1300 = vld [vmem:[#allocation2 + $0x28] sm:$0xf]
      %v1301 = vld [vmem:[#allocation2 + $0x2c] sm:$0x1]
      %v1302 = vld [vmem:[#allocation2 + $0x30] sm:$0xf]
      %v1303 = vld [vmem:[#allocation2 + $0x34] sm:$0xf]
      %v1304 = vld [vmem:[#allocation2 + $0x38] sm:$0x1]
      %v1305 = vld [vmem:[#allocation2 + $0x3c] sm:$0xf]
      %v1306 = vld [vmem:[#allocation2 + $0x40] sm:$0xf]
      %v1307 = vld [vmem:[#allocation2 + $0x44] sm:$0x1]
      %v1308 = vld [vmem:[#allocation2 + $0x48] sm:$0xf]
      %v1309 = vld [vmem:[#allocation2 + $0x4c] sm:$0xf]
      %v1310 = vld [vmem:[#allocation2 + $0x50] sm:$0x1]
      %v1311 = vld [vmem:[#allocation2 + $0x54] sm:$0xf]
      %v1312 = vld [vmem:[#allocation2 + $0x58] sm:$0xf]
      %v1313 = vld [vmem:[#allocation2 + $0x5c] sm:$0x1]
      %v1314 = vld [vmem:[#allocation2 + $0x60] sm:$0xf]
      %v1315 = vld [vmem:[#allocation2 + $0x64] sm:$0xf]
      %v1316 = vld [vmem:[#allocation2 + $0x68] sm:$0x1]
      %v1317 = vld [vmem:[#allocation2 + $0x6c] sm:$0xf]
      %v1318 = vld [vmem:[#allocation2 + $0x70] sm:$0xf]
      %v1319 = vld [vmem:[#allocation2 + $0x74] sm:$0x1]
      %v1320 = vld [vmem:[#allocation2 + $0x78] sm:$0xf]
      %v1321 = vld [vmem:[#allocation2 + $0x7c] sm:$0xf]
      %v1322 = vld [vmem:[#allocation2 + $0x80] sm:$0x1]
      %v1323 = vld [vmem:[#allocation2 + $0x84] sm:$0xf]
      %v1324 = vld [vmem:[#allocation2 + $0x88] sm:$0xf]
      %v1325 = vld [vmem:[#allocation2 + $0x8c] sm:$0x1]
      %v1326 = vld [vmem:[#allocation2 + $0x90] sm:$0xf]
      %v1327 = vld [vmem:[#allocation2 + $0x94] sm:$0xf]
      %v1328 = vld [vmem:[#allocation2 + $0x98] sm:$0x1]
      %v1329 = vld [vmem:[#allocation2 + $0x9c] sm:$0xf]
      %v1330 = vld [vmem:[#allocation2 + $0xa0] sm:$0xf]
      %v1331 = vld [vmem:[#allocation2 + $0xa4] sm:$0x1]
      %v1332 = vld [vmem:[#allocation2 + $0xa8] sm:$0xf]
      %v1333 = vld [vmem:[#allocation2 + $0xac] sm:$0xf]
      %v1334 = vld [vmem:[#allocation2 + $0xb0] sm:$0x1]
      %v1335 = vld [vmem:[#allocation2 + $0xb4] sm:$0xf]
      %v1336 = vld [vmem:[#allocation2 + $0xb8] sm:$0xf]
      %v1337 = vld [vmem:[#allocation2 + $0xbc] sm:$0x1]
      %v1338 = vld [vmem:[#allocation2 + $0xc0] sm:$0xf]
      %v1339 = vld [vmem:[#allocation2 + $0xc4] sm:$0xf]
      %v1340 = vld [vmem:[#allocation2 + $0xc8] sm:$0x1]
      %v1341 = vld [vmem:[#allocation2 + $0xcc] sm:$0xf]
      %v1342 = vld [vmem:[#allocation2 + $0xd0] sm:$0xf]
      %v1343 = vld [vmem:[#allocation2 + $0xd4] sm:$0x1]
      %vm1344 = vsmask.f32 3328
      %vm1345 = vsmask.f32 7440
      %vm1346 = vmor %vm1344, %vm1345
      %v1348 = vshrl.u32 %v1290, 16
      %v1350 = vrot.slane %v1348, 4
      %v1351 = vshll.u32 %v1290, 16
      %v1353 = vrot.slane %v1351, 5
      %v1354 = vor.u32 %v1350, %v1353
      %v1355 = vrot.slane %v1354, 4
      %v1357 = vshll.u32 %v1291, 16
      %v1359 = vrot.slane %v1357, 5
      %v1360 = vsel %vm1346, %v1355, %v1359
      %v1361 = vshrl.u32 %v1291, 16
      %v1363 = vrot.slane %v1361, 4
      %v1364 = vor.u32 %v1363, %v1359
      %v1365 = vrot.slane %v1364, 4
      %v1367 = vshll.u32 %v1292, 16
      %v1369 = vrot.slane %v1367, 5
      %v1370 = vsel %vm1346, %v1365, %v1369
      %v1372 = vshrl.u32 %v1293, 16
      %v1374 = vrot.slane %v1372, 4
      %v1375 = vshll.u32 %v1293, 16
      %v1377 = vrot.slane %v1375, 5
      %v1378 = vor.u32 %v1374, %v1377
      %v1379 = vrot.slane %v1378, 4
      %v1381 = vshll.u32 %v1294, 16
      %v1383 = vrot.slane %v1381, 5
      %v1384 = vsel %vm1346, %v1379, %v1383
      %v1385 = vshrl.u32 %v1294, 16
      %v1387 = vrot.slane %v1385, 4
      %v1388 = vor.u32 %v1387, %v1383
      %v1389 = vrot.slane %v1388, 4
      %v1391 = vshll.u32 %v1295, 16
      %v1393 = vrot.slane %v1391, 5
      %v1394 = vsel %vm1346, %v1389, %v1393
      %v1396 = vshrl.u32 %v1296, 16
      %v1398 = vrot.slane %v1396, 4
      %v1399 = vshll.u32 %v1296, 16
      %v1401 = vrot.slane %v1399, 5
      %v1402 = vor.u32 %v1398, %v1401
      %v1403 = vrot.slane %v1402, 4
      %v1405 = vshll.u32 %v1297, 16
      %v1407 = vrot.slane %v1405, 5
      %v1408 = vsel %vm1346, %v1403, %v1407
      %v1409 = vshrl.u32 %v1297, 16
      %v1411 = vrot.slane %v1409, 4
      %v1412 = vor.u32 %v1411, %v1407
      %v1413 = vrot.slane %v1412, 4
      %v1415 = vshll.u32 %v1298, 16
      %v1417 = vrot.slane %v1415, 5
      %v1418 = vsel %vm1346, %v1413, %v1417
      %v1420 = vshrl.u32 %v1299, 16
      %v1422 = vrot.slane %v1420, 4
      %v1423 = vshll.u32 %v1299, 16
      %v1425 = vrot.slane %v1423, 5
      %v1426 = vor.u32 %v1422, %v1425
      %v1427 = vrot.slane %v1426, 4
      %v1429 = vshll.u32 %v1300, 16
      %v1431 = vrot.slane %v1429, 5
      %v1432 = vsel %vm1346, %v1427, %v1431
      %v1433 = vshrl.u32 %v1300, 16
      %v1435 = vrot.slane %v1433, 4
      %v1436 = vor.u32 %v1435, %v1431
      %v1437 = vrot.slane %v1436, 4
      %v1439 = vshll.u32 %v1301, 16
      %v1441 = vrot.slane %v1439, 5
      %v1442 = vsel %vm1346, %v1437, %v1441
      %v1444 = vshrl.u32 %v1302, 16
      %v1446 = vrot.slane %v1444, 4
      %v1447 = vshll.u32 %v1302, 16
      %v1449 = vrot.slane %v1447, 5
      %v1450 = vor.u32 %v1446, %v1449
      %v1451 = vrot.slane %v1450, 4
      %v1453 = vshll.u32 %v1303, 16
      %v1455 = vrot.slane %v1453, 5
      %v1456 = vsel %vm1346, %v1451, %v1455
      %v1457 = vshrl.u32 %v1303, 16
      %v1459 = vrot.slane %v1457, 4
      %v1460 = vor.u32 %v1459, %v1455
      %v1461 = vrot.slane %v1460, 4
      %v1463 = vshll.u32 %v1304, 16
      %v1465 = vrot.slane %v1463, 5
      %v1466 = vsel %vm1346, %v1461, %v1465
      %v1468 = vshrl.u32 %v1305, 16
      %v1470 = vrot.slane %v1468, 4
      %v1471 = vshll.u32 %v1305, 16
      %v1473 = vrot.slane %v1471, 5
      %v1474 = vor.u32 %v1470, %v1473
      %v1475 = vrot.slane %v1474, 4
      %v1477 = vshll.u32 %v1306, 16
      %v1479 = vrot.slane %v1477, 5
      %v1480 = vsel %vm1346, %v1475, %v1479
      %v1481 = vshrl.u32 %v1306, 16
      %v1483 = vrot.slane %v1481, 4
      %v1484 = vor.u32 %v1483, %v1479
      %v1485 = vrot.slane %v1484, 4
      %v1487 = vshll.u32 %v1307, 16
      %v1489 = vrot.slane %v1487, 5
      %v1490 = vsel %vm1346, %v1485, %v1489
      %v1492 = vshrl.u32 %v1308, 16
      %v1494 = vrot.slane %v1492, 4
      %v1495 = vshll.u32 %v1308, 16
      %v1497 = vrot.slane %v1495, 5
      %v1498 = vor.u32 %v1494, %v1497
      %v1499 = vrot.slane %v1498, 4
      %v1501 = vshll.u32 %v1309, 16
      %v1503 = vrot.slane %v1501, 5
      %v1504 = vsel %vm1346, %v1499, %v1503
      %v1505 = vshrl.u32 %v1309, 16
      %v1507 = vrot.slane %v1505, 4
      %v1508 = vor.u32 %v1507, %v1503
      %v1509 = vrot.slane %v1508, 4
      %v1511 = vshll.u32 %v1310, 16
      %v1513 = vrot.slane %v1511, 5
      %v1514 = vsel %vm1346, %v1509, %v1513
      %v1516 = vshrl.u32 %v1311, 16
      %v1518 = vrot.slane %v1516, 4
      %v1519 = vshll.u32 %v1311, 16
      %v1521 = vrot.slane %v1519, 5
      %v1522 = vor.u32 %v1518, %v1521
      %v1523 = vrot.slane %v1522, 4
      %v1525 = vshll.u32 %v1312, 16
      %v1527 = vrot.slane %v1525, 5
      %v1528 = vsel %vm1346, %v1523, %v1527
      %v1529 = vshrl.u32 %v1312, 16
      %v1531 = vrot.slane %v1529, 4
      %v1532 = vor.u32 %v1531, %v1527
      %v1533 = vrot.slane %v1532, 4
      %v1535 = vshll.u32 %v1313, 16
      %v1537 = vrot.slane %v1535, 5
      %v1538 = vsel %vm1346, %v1533, %v1537
      %v1540 = vshrl.u32 %v1314, 16
      %v1542 = vrot.slane %v1540, 4
      %v1543 = vshll.u32 %v1314, 16
      %v1545 = vrot.slane %v1543, 5
      %v1546 = vor.u32 %v1542, %v1545
      %v1547 = vrot.slane %v1546, 4
      %v1549 = vshll.u32 %v1315, 16
      %v1551 = vrot.slane %v1549, 5
      %v1552 = vsel %vm1346, %v1547, %v1551
      %v1553 = vshrl.u32 %v1315, 16
      %v1555 = vrot.slane %v1553, 4
      %v1556 = vor.u32 %v1555, %v1551
      %v1557 = vrot.slane %v1556, 4
      %v1559 = vshll.u32 %v1316, 16
      %v1561 = vrot.slane %v1559, 5
      %v1562 = vsel %vm1346, %v1557, %v1561
      %v1564 = vshrl.u32 %v1317, 16
      %v1566 = vrot.slane %v1564, 4
      %v1567 = vshll.u32 %v1317, 16
      %v1569 = vrot.slane %v1567, 5
      %v1570 = vor.u32 %v1566, %v1569
      %v1571 = vrot.slane %v1570, 4
      %v1573 = vshll.u32 %v1318, 16
      %v1575 = vrot.slane %v1573, 5
      %v1576 = vsel %vm1346, %v1571, %v1575
      %v1577 = vshrl.u32 %v1318, 16
      %v1579 = vrot.slane %v1577, 4
      %v1580 = vor.u32 %v1579, %v1575
      %v1581 = vrot.slane %v1580, 4
      %v1583 = vshll.u32 %v1319, 16
      %v1585 = vrot.slane %v1583, 5
      %v1586 = vsel %vm1346, %v1581, %v1585
      %v1588 = vshrl.u32 %v1320, 16
      %v1590 = vrot.slane %v1588, 4
      %v1591 = vshll.u32 %v1320, 16
      %v1593 = vrot.slane %v1591, 5
      %v1594 = vor.u32 %v1590, %v1593
      %v1595 = vrot.slane %v1594, 4
      %v1597 = vshll.u32 %v1321, 16
      %v1599 = vrot.slane %v1597, 5
      %v1600 = vsel %vm1346, %v1595, %v1599
      %v1601 = vshrl.u32 %v1321, 16
      %v1603 = vrot.slane %v1601, 4
      %v1604 = vor.u32 %v1603, %v1599
      %v1605 = vrot.slane %v1604, 4
      %v1607 = vshll.u32 %v1322, 16
      %v1609 = vrot.slane %v1607, 5
      %v1610 = vsel %vm1346, %v1605, %v1609
      %v1612 = vshrl.u32 %v1323, 16
      %v1614 = vrot.slane %v1612, 4
      %v1615 = vshll.u32 %v1323, 16
      %v1617 = vrot.slane %v1615, 5
      %v1618 = vor.u32 %v1614, %v1617
      %v1619 = vrot.slane %v1618, 4
      %v1621 = vshll.u32 %v1324, 16
      %v1623 = vrot.slane %v1621, 5
      %v1624 = vsel %vm1346, %v1619, %v1623
      %v1625 = vshrl.u32 %v1324, 16
      %v1627 = vrot.slane %v1625, 4
      %v1628 = vor.u32 %v1627, %v1623
      %v1629 = vrot.slane %v1628, 4
      %v1631 = vshll.u32 %v1325, 16
      %v1633 = vrot.slane %v1631, 5
      %v1634 = vsel %vm1346, %v1629, %v1633
      %v1636 = vshrl.u32 %v1326, 16
      %v1638 = vrot.slane %v1636, 4
      %v1639 = vshll.u32 %v1326, 16
      %v1641 = vrot.slane %v1639, 5
      %v1642 = vor.u32 %v1638, %v1641
      %v1643 = vrot.slane %v1642, 4
      %v1645 = vshll.u32 %v1327, 16
      %v1647 = vrot.slane %v1645, 5
      %v1648 = vsel %vm1346, %v1643, %v1647
      %v1649 = vshrl.u32 %v1327, 16
      %v1651 = vrot.slane %v1649, 4
      %v1652 = vor.u32 %v1651, %v1647
      %v1653 = vrot.slane %v1652, 4
      %v1655 = vshll.u32 %v1328, 16
      %v1657 = vrot.slane %v1655, 5
      %v1658 = vsel %vm1346, %v1653, %v1657
      %v1660 = vshrl.u32 %v1329, 16
      %v1662 = vrot.slane %v1660, 4
      %v1663 = vshll.u32 %v1329, 16
      %v1665 = vrot.slane %v1663, 5
      %v1666 = vor.u32 %v1662, %v1665
      %v1667 = vrot.slane %v1666, 4
      %v1669 = vshll.u32 %v1330, 16
      %v1671 = vrot.slane %v1669, 5
      %v1672 = vsel %vm1346, %v1667, %v1671
      %v1673 = vshrl.u32 %v1330, 16
      %v1675 = vrot.slane %v1673, 4
      %v1676 = vor.u32 %v1675, %v1671
      %v1677 = vrot.slane %v1676, 4
      %v1679 = vshll.u32 %v1331, 16
      %v1681 = vrot.slane %v1679, 5
      %v1682 = vsel %vm1346, %v1677, %v1681
      %v1684 = vshrl.u32 %v1332, 16
      %v1686 = vrot.slane %v1684, 4
      %v1687 = vshll.u32 %v1332, 16
      %v1689 = vrot.slane %v1687, 5
      %v1690 = vor.u32 %v1686, %v1689
      %v1691 = vrot.slane %v1690, 4
      %v1693 = vshll.u32 %v1333, 16
      %v1695 = vrot.slane %v1693, 5
      %v1696 = vsel %vm1346, %v1691, %v1695
      %v1697 = vshrl.u32 %v1333, 16
      %v1699 = vrot.slane %v1697, 4
      %v1700 = vor.u32 %v1699, %v1695
      %v1701 = vrot.slane %v1700, 4
      %v1703 = vshll.u32 %v1334, 16
      %v1705 = vrot.slane %v1703, 5
      %v1706 = vsel %vm1346, %v1701, %v1705
      %v1708 = vshrl.u32 %v1335, 16
      %v1710 = vrot.slane %v1708, 4
      %v1711 = vshll.u32 %v1335, 16
      %v1713 = vrot.slane %v1711, 5
      %v1714 = vor.u32 %v1710, %v1713
      %v1715 = vrot.slane %v1714, 4
      %v1717 = vshll.u32 %v1336, 16
      %v1719 = vrot.slane %v1717, 5
      %v1720 = vsel %vm1346, %v1715, %v1719
      %v1721 = vshrl.u32 %v1336, 16
      %v1723 = vrot.slane %v1721, 4
      %v1724 = vor.u32 %v1723, %v1719
      %v1725 = vrot.slane %v1724, 4
      %v1727 = vshll.u32 %v1337, 16
      %v1729 = vrot.slane %v1727, 5
      %v1730 = vsel %vm1346, %v1725, %v1729
      %v1731 = vld [vmem:[%s3 + $0x4] sm:$0xf]
      %v1732 = vunpack.c.l.b16 %v1360
      %v1733 = vunpack.c.l.b16 %v1370
      %v1734 = vunpack.c.l.b16 %v1384
      %v1735 = vunpack.c.l.b16 %v1394
      %v1736 = vunpack.c.l.b16 %v1408
      %v1737 = vunpack.c.l.b16 %v1418
      %v1738 = vunpack.c.l.b16 %v1432
      %v1739 = vunpack.c.l.b16 %v1442
      %v1740 = vunpack.c.l.b16 %v1456
      %v1741 = vunpack.c.l.b16 %v1466
      %v1742 = vunpack.c.l.b16 %v1480
      %v1743 = vunpack.c.l.b16 %v1490
      %v1744 = vunpack.c.l.b16 %v1504
      %v1745 = vunpack.c.l.b16 %v1514
      %v1746 = vunpack.c.l.b16 %v1528
      %v1747 = vunpack.c.l.b16 %v1538
      %v1748 = vunpack.c.l.b16 %v1552
      %v1749 = vunpack.c.l.b16 %v1562
      %v1750 = vunpack.c.l.b16 %v1576
      %v1751 = vunpack.c.l.b16 %v1586
      %v1752 = vunpack.c.l.b16 %v1600
      %v1753 = vunpack.c.l.b16 %v1610
      %v1754 = vunpack.c.l.b16 %v1624
      %v1755 = vunpack.c.l.b16 %v1634
      %v1756 = vunpack.c.l.b16 %v1648
      %v1757 = vunpack.c.l.b16 %v1658
      %v1758 = vunpack.c.l.b16 %v1672
      %v1759 = vunpack.c.l.b16 %v1682
      %v1760 = vunpack.c.l.b16 %v1696
      %v1761 = vunpack.c.l.b16 %v1706
      %v1762 = vunpack.c.l.b16 %v1720
      %v1763 = vunpack.c.l.b16 %v1730
      %v1764 = vpack.c.b16 %v1733, %v1732
      %v1765 = vpack.c.b16 %v1735, %v1734
      %v1766 = vpack.c.b16 %v1737, %v1736
      %v1767 = vpack.c.b16 %v1739, %v1738
      %v1768 = vpack.c.b16 %v1741, %v1740
      %v1769 = vpack.c.b16 %v1743, %v1742
      %v1770 = vpack.c.b16 %v1745, %v1744
      %v1771 = vpack.c.b16 %v1747, %v1746
      %v1772 = vpack.c.b16 %v1749, %v1748
      %v1773 = vpack.c.b16 %v1751, %v1750
      %v1774 = vpack.c.b16 %v1753, %v1752
      %v1775 = vpack.c.b16 %v1755, %v1754
      %v1776 = vpack.c.b16 %v1757, %v1756
      %v1777 = vpack.c.b16 %v1759, %v1758
      %v1778 = vpack.c.b16 %v1761, %v1760
      %v1779 = vpack.c.b16 %v1763, %v1762
      %v1781 = vsel %vm915, %v1764, 0
      %v1784 = vsel %vm915, %v1765, 0
      %v1787 = vsel %vm915, %v1766, 0
      %v1790 = vsel %vm915, %v1767, 0
      %v1793 = vsel %vm915, %v1768, 0
      %v1796 = vsel %vm915, %v1769, 0
      %v1799 = vsel %vm915, %v1770, 0
      %v1802 = vsel %vm915, %v1771, 0
      %v1805 = vsel %vm915, %v1772, 0
      %v1808 = vsel %vm915, %v1773, 0
      %v1811 = vsel %vm915, %v1774, 0
      %v1814 = vsel %vm915, %v1775, 0
      %v1817 = vsel %vm915, %v1776, 0
      %v1820 = vsel %vm915, %v1777, 0
      %v1823 = vsel %vm915, %v1778, 0
      %v1826 = vsel %vm915, %v1779, 0
      %v1829 = vsel %vm964, %v1731, 0
      %1831 = vmatpush.bf16.msra.mxu0 0
      %1832 = vmatpush.bf16.msra.mxu0 0
      %1833 = vmatpush.bf16.msra.mxu0 0
      %1834 = vmatpush.bf16.msra.mxu0 0
      %1835 = vmatpush.bf16.msra.mxu0 0
      %1836 = vmatpush.bf16.msra.mxu0 0
      %1837 = vmatpush.bf16.msra.mxu0 0
      %1838 = vmatpush.bf16.msra.mxu0 %v1829
      %1839 = vmatmul.bf16.gmra.mxu0 %v1781
      %v1840 = vpop.f32.mrf.mxu0
      %v1841 = vadd.f32 0.0, %v1840
      %v1842 = vpop.f32.mrf.mxu0
      %v1843 = vadd.f32 0.0, %v1842
      %1844 = vmatmul.bf16.gmra.mxu0 %v1784
      %v1845 = vpop.f32.mrf.mxu0
      %v1846 = vadd.f32 0.0, %v1845
      %v1847 = vpop.f32.mrf.mxu0
      %v1848 = vadd.f32 0.0, %v1847
      %1849 = vmatmul.bf16.gmra.mxu0 %v1787
      %v1850 = vpop.f32.mrf.mxu0
      %v1851 = vadd.f32 0.0, %v1850
      %v1852 = vpop.f32.mrf.mxu0
      %v1853 = vadd.f32 0.0, %v1852
      %1854 = vmatmul.bf16.gmra.mxu0 %v1790
      %v1855 = vpop.f32.mrf.mxu0
      %v1856 = vadd.f32 0.0, %v1855
      %v1857 = vpop.f32.mrf.mxu0
      %v1858 = vadd.f32 0.0, %v1857
      %1859 = vmatmul.bf16.gmra.mxu0 %v1793
      %v1860 = vpop.f32.mrf.mxu0
      %v1861 = vadd.f32 0.0, %v1860
      %v1862 = vpop.f32.mrf.mxu0
      %v1863 = vadd.f32 0.0, %v1862
      %1864 = vmatmul.bf16.gmra.mxu0 %v1796
      %v1865 = vpop.f32.mrf.mxu0
      %v1866 = vadd.f32 0.0, %v1865
      %v1867 = vpop.f32.mrf.mxu0
      %v1868 = vadd.f32 0.0, %v1867
      %1869 = vmatmul.bf16.gmra.mxu0 %v1799
      %v1870 = vpop.f32.mrf.mxu0
      %v1871 = vadd.f32 0.0, %v1870
      %v1872 = vpop.f32.mrf.mxu0
      %v1873 = vadd.f32 0.0, %v1872
      %1874 = vmatmul.bf16.gmra.mxu0 %v1802
      %v1875 = vpop.f32.mrf.mxu0
      %v1876 = vadd.f32 0.0, %v1875
      %v1877 = vpop.f32.mrf.mxu0
      %v1878 = vadd.f32 0.0, %v1877
      %1879 = vmatmul.bf16.gmra.mxu0 %v1805
      %v1880 = vpop.f32.mrf.mxu0
      %v1881 = vadd.f32 0.0, %v1880
      %v1882 = vpop.f32.mrf.mxu0
      %v1883 = vadd.f32 0.0, %v1882
      %1884 = vmatmul.bf16.gmra.mxu0 %v1808
      %v1885 = vpop.f32.mrf.mxu0
      %v1886 = vadd.f32 0.0, %v1885
      %v1887 = vpop.f32.mrf.mxu0
      %v1888 = vadd.f32 0.0, %v1887
      %1889 = vmatmul.bf16.gmra.mxu0 %v1811
      %v1890 = vpop.f32.mrf.mxu0
      %v1891 = vadd.f32 0.0, %v1890
      %v1892 = vpop.f32.mrf.mxu0
      %v1893 = vadd.f32 0.0, %v1892
      %1894 = vmatmul.bf16.gmra.mxu0 %v1814
      %v1895 = vpop.f32.mrf.mxu0
      %v1896 = vadd.f32 0.0, %v1895
      %v1897 = vpop.f32.mrf.mxu0
      %v1898 = vadd.f32 0.0, %v1897
      %1899 = vmatmul.bf16.gmra.mxu0 %v1817
      %v1900 = vpop.f32.mrf.mxu0
      %v1901 = vadd.f32 0.0, %v1900
      %v1902 = vpop.f32.mrf.mxu0
      %v1903 = vadd.f32 0.0, %v1902
      %1904 = vmatmul.bf16.gmra.mxu0 %v1820
      %v1905 = vpop.f32.mrf.mxu0
      %v1906 = vadd.f32 0.0, %v1905
      %v1907 = vpop.f32.mrf.mxu0
      %v1908 = vadd.f32 0.0, %v1907
      %1909 = vmatmul.bf16.gmra.mxu0 %v1823
      %v1910 = vpop.f32.mrf.mxu0
      %v1911 = vadd.f32 0.0, %v1910
      %v1912 = vpop.f32.mrf.mxu0
      %v1913 = vadd.f32 0.0, %v1912
      %1914 = vmatmul.bf16.gmra.mxu0 %v1826
      %v1915 = vpop.f32.mrf.mxu0
      %v1916 = vadd.f32 0.0, %v1915
      %v1917 = vpop.f32.mrf.mxu0
      %v1918 = vadd.f32 0.0, %v1917
      %1919 = vdwg.mxu0
      %v1920 = vadd.f32 %v1258, %v1841
      %v1921 = vadd.f32 %v1259, %v1843
      %v1922 = vadd.f32 %v1260, %v1846
      %v1923 = vadd.f32 %v1261, %v1848
      %v1924 = vadd.f32 %v1262, %v1851
      %v1925 = vadd.f32 %v1263, %v1853
      %v1926 = vadd.f32 %v1264, %v1856
      %v1927 = vadd.f32 %v1265, %v1858
      %v1928 = vadd.f32 %v1266, %v1861
      %v1929 = vadd.f32 %v1267, %v1863
      %v1930 = vadd.f32 %v1268, %v1866
      %v1931 = vadd.f32 %v1269, %v1868
      %v1932 = vadd.f32 %v1270, %v1871
      %v1933 = vadd.f32 %v1271, %v1873
      %v1934 = vadd.f32 %v1272, %v1876
      %v1935 = vadd.f32 %v1273, %v1878
      %v1936 = vadd.f32 %v1274, %v1881
      %v1937 = vadd.f32 %v1275, %v1883
      %v1938 = vadd.f32 %v1276, %v1886
      %v1939 = vadd.f32 %v1277, %v1888
      %v1940 = vadd.f32 %v1278, %v1891
      %v1941 = vadd.f32 %v1279, %v1893
      %v1942 = vadd.f32 %v1280, %v1896
      %v1943 = vadd.f32 %v1281, %v1898
      %v1944 = vadd.f32 %v1282, %v1901
      %v1945 = vadd.f32 %v1283, %v1903
      %v1946 = vadd.f32 %v1284, %v1906
      %v1947 = vadd.f32 %v1285, %v1908
      %v1948 = vadd.f32 %v1286, %v1911
      %v1949 = vadd.f32 %v1287, %v1913
      %v1950 = vadd.f32 %v1288, %v1916
      %v1951 = vadd.f32 %v1289, %v1918
      %v1953 = vshrl.u32 %v1338, 16
      %v1955 = vrot.slane %v1953, 4
      %v1956 = vshll.u32 %v1338, 16
      %v1958 = vrot.slane %v1956, 5
      %v1959 = vor.u32 %v1955, %v1958
      %v1960 = vrot.slane %v1959, 4
      %v1962 = vshll.u32 %v1339, 16
      %v1964 = vrot.slane %v1962, 5
      %v1965 = vsel %vm1346, %v1960, %v1964
      %v1966 = vshrl.u32 %v1339, 16
      %v1968 = vrot.slane %v1966, 4
      %v1969 = vor.u32 %v1968, %v1964
      %v1970 = vrot.slane %v1969, 4
      %v1972 = vshll.u32 %v1340, 16
      %v1974 = vrot.slane %v1972, 5
      %v1975 = vsel %vm1346, %v1970, %v1974
      %v1976 = vld [vmem:[%s3 + $0x10] sm:$0xf]
      %v1977 = vunpack.c.l.b16 %v1965
      %v1978 = vunpack.c.l.b16 %v1975
      %v1979 = vpack.c.b16 %v1978, %v1977
      %v1981 = vsel %vm915, %v1979, 0
      %v1984 = vsel %vm964, %v1976, 0
      %1986 = vmatpush.bf16.msra.mxu0 0
      %1987 = vmatpush.bf16.msra.mxu0 0
      %1988 = vmatpush.bf16.msra.mxu0 0
      %1989 = vmatpush.bf16.msra.mxu0 0
      %1990 = vmatpush.bf16.msra.mxu0 0
      %1991 = vmatpush.bf16.msra.mxu0 0
      %1992 = vmatpush.bf16.msra.mxu0 0
      %1993 = vmatpush.bf16.msra.mxu0 %v1984
      %1994 = vmatmul.bf16.gmra.mxu0 %v1784
      %v1995 = vpop.f32.mrf.mxu0
      %v1996 = vadd.f32 0.0, %v1995
      %v1997 = vpop.f32.mrf.mxu0
      %v1998 = vadd.f32 0.0, %v1997
      %1999 = vmatmul.bf16.gmra.mxu0 %v1787
      %v2000 = vpop.f32.mrf.mxu0
      %v2001 = vadd.f32 0.0, %v2000
      %v2002 = vpop.f32.mrf.mxu0
      %v2003 = vadd.f32 0.0, %v2002
      %2004 = vmatmul.bf16.gmra.mxu0 %v1790
      %v2005 = vpop.f32.mrf.mxu0
      %v2006 = vadd.f32 0.0, %v2005
      %v2007 = vpop.f32.mrf.mxu0
      %v2008 = vadd.f32 0.0, %v2007
      %2009 = vmatmul.bf16.gmra.mxu0 %v1793
      %v2010 = vpop.f32.mrf.mxu0
      %v2011 = vadd.f32 0.0, %v2010
      %v2012 = vpop.f32.mrf.mxu0
      %v2013 = vadd.f32 0.0, %v2012
      %2014 = vmatmul.bf16.gmra.mxu0 %v1796
      %v2015 = vpop.f32.mrf.mxu0
      %v2016 = vadd.f32 0.0, %v2015
      %v2017 = vpop.f32.mrf.mxu0
      %v2018 = vadd.f32 0.0, %v2017
      %2019 = vmatmul.bf16.gmra.mxu0 %v1799
      %v2020 = vpop.f32.mrf.mxu0
      %v2021 = vadd.f32 0.0, %v2020
      %v2022 = vpop.f32.mrf.mxu0
      %v2023 = vadd.f32 0.0, %v2022
      %2024 = vmatmul.bf16.gmra.mxu0 %v1802
      %v2025 = vpop.f32.mrf.mxu0
      %v2026 = vadd.f32 0.0, %v2025
      %v2027 = vpop.f32.mrf.mxu0
      %v2028 = vadd.f32 0.0, %v2027
      %2029 = vmatmul.bf16.gmra.mxu0 %v1805
      %v2030 = vpop.f32.mrf.mxu0
      %v2031 = vadd.f32 0.0, %v2030
      %v2032 = vpop.f32.mrf.mxu0
      %v2033 = vadd.f32 0.0, %v2032
      %2034 = vmatmul.bf16.gmra.mxu0 %v1808
      %v2035 = vpop.f32.mrf.mxu0
      %v2036 = vadd.f32 0.0, %v2035
      %v2037 = vpop.f32.mrf.mxu0
      %v2038 = vadd.f32 0.0, %v2037
      %2039 = vmatmul.bf16.gmra.mxu0 %v1811
      %v2040 = vpop.f32.mrf.mxu0
      %v2041 = vadd.f32 0.0, %v2040
      %v2042 = vpop.f32.mrf.mxu0
      %v2043 = vadd.f32 0.0, %v2042
      %2044 = vmatmul.bf16.gmra.mxu0 %v1814
      %v2045 = vpop.f32.mrf.mxu0
      %v2046 = vadd.f32 0.0, %v2045
      %v2047 = vpop.f32.mrf.mxu0
      %v2048 = vadd.f32 0.0, %v2047
      %2049 = vmatmul.bf16.gmra.mxu0 %v1817
      %v2050 = vpop.f32.mrf.mxu0
      %v2051 = vadd.f32 0.0, %v2050
      %v2052 = vpop.f32.mrf.mxu0
      %v2053 = vadd.f32 0.0, %v2052
      %2054 = vmatmul.bf16.gmra.mxu0 %v1820
      %v2055 = vpop.f32.mrf.mxu0
      %v2056 = vadd.f32 0.0, %v2055
      %v2057 = vpop.f32.mrf.mxu0
      %v2058 = vadd.f32 0.0, %v2057
      %2059 = vmatmul.bf16.gmra.mxu0 %v1823
      %v2060 = vpop.f32.mrf.mxu0
      %v2061 = vadd.f32 0.0, %v2060
      %v2062 = vpop.f32.mrf.mxu0
      %v2063 = vadd.f32 0.0, %v2062
      %2064 = vmatmul.bf16.gmra.mxu0 %v1826
      %v2065 = vpop.f32.mrf.mxu0
      %v2066 = vadd.f32 0.0, %v2065
      %v2067 = vpop.f32.mrf.mxu0
      %v2068 = vadd.f32 0.0, %v2067
      %2069 = vmatmul.bf16.gmra.mxu0 %v1981
      %v2070 = vpop.f32.mrf.mxu0
      %v2071 = vadd.f32 0.0, %v2070
      %v2072 = vpop.f32.mrf.mxu0
      %v2073 = vadd.f32 0.0, %v2072
      %2074 = vdwg.mxu0
      %v2075 = vadd.f32 %v1920, %v1996
      %v2076 = vadd.f32 %v1921, %v1998
      %v2077 = vadd.f32 %v1922, %v2001
      %v2078 = vadd.f32 %v1923, %v2003
      %v2079 = vadd.f32 %v1924, %v2006
      %v2080 = vadd.f32 %v1925, %v2008
      %v2081 = vadd.f32 %v1926, %v2011
      %v2082 = vadd.f32 %v1927, %v2013
      %v2083 = vadd.f32 %v1928, %v2016
      %v2084 = vadd.f32 %v1929, %v2018
      %v2085 = vadd.f32 %v1930, %v2021
      %v2086 = vadd.f32 %v1931, %v2023
      %v2087 = vadd.f32 %v1932, %v2026
      %v2088 = vadd.f32 %v1933, %v2028
      %v2089 = vadd.f32 %v1934, %v2031
      %v2090 = vadd.f32 %v1935, %v2033
      %v2091 = vadd.f32 %v1936, %v2036
      %v2092 = vadd.f32 %v1937, %v2038
      %v2093 = vadd.f32 %v1938, %v2041
      %v2094 = vadd.f32 %v1939, %v2043
      %v2095 = vadd.f32 %v1940, %v2046
      %v2096 = vadd.f32 %v1941, %v2048
      %v2097 = vadd.f32 %v1942, %v2051
      %v2098 = vadd.f32 %v1943, %v2053
      %v2099 = vadd.f32 %v1944, %v2056
      %v2100 = vadd.f32 %v1945, %v2058
      %v2101 = vadd.f32 %v1946, %v2061
      %v2102 = vadd.f32 %v1947, %v2063
      %v2103 = vadd.f32 %v1948, %v2066
      %v2104 = vadd.f32 %v1949, %v2068
      %v2105 = vadd.f32 %v1950, %v2071
      %v2106 = vadd.f32 %v1951, %v2073
      %v2108 = vshrl.u32 %v1341, 16
      %v2110 = vrot.slane %v2108, 4
      %v2111 = vshll.u32 %v1341, 16
      %v2113 = vrot.slane %v2111, 5
      %v2114 = vor.u32 %v2110, %v2113
      %v2115 = vrot.slane %v2114, 4
      %v2117 = vshll.u32 %v1342, 16
      %v2119 = vrot.slane %v2117, 5
      %v2120 = vsel %vm1346, %v2115, %v2119
      %v2121 = vshrl.u32 %v1342, 16
      %v2123 = vrot.slane %v2121, 4
      %v2124 = vor.u32 %v2123, %v2119
      %v2125 = vrot.slane %v2124, 4
      %v2127 = vshll.u32 %v1343, 16
      %v2129 = vrot.slane %v2127, 5
      %v2130 = vsel %vm1346, %v2125, %v2129
      %v2131 = vld [vmem:[%s3 + $0x1c] sm:$0xf]
      %v2132 = vunpack.c.l.b16 %v2120
      %v2133 = vunpack.c.l.b16 %v2130
      %v2134 = vpack.c.b16 %v2133, %v2132
      %v2136 = vsel %vm915, %v2134, 0
      %v2139 = vsel %vm964, %v2131, 0
      %2141 = vmatpush.bf16.msra.mxu0 0
      %2142 = vmatpush.bf16.msra.mxu0 0
      %2143 = vmatpush.bf16.msra.mxu0 0
      %2144 = vmatpush.bf16.msra.mxu0 0
      %2145 = vmatpush.bf16.msra.mxu0 0
      %2146 = vmatpush.bf16.msra.mxu0 0
      %2147 = vmatpush.bf16.msra.mxu0 0
      %2148 = vmatpush.bf16.msra.mxu0 %v2139
      %2149 = vmatmul.bf16.gmra.mxu0 %v1787
      %v2150 = vpop.f32.mrf.mxu0
      %v2151 = vadd.f32 0.0, %v2150
      %v2152 = vpop.f32.mrf.mxu0
      %v2153 = vadd.f32 0.0, %v2152
      %2154 = vmatmul.bf16.gmra.mxu0 %v1790
      %v2155 = vpop.f32.mrf.mxu0
      %v2156 = vadd.f32 0.0, %v2155
      %v2157 = vpop.f32.mrf.mxu0
      %v2158 = vadd.f32 0.0, %v2157
      %2159 = vmatmul.bf16.gmra.mxu0 %v1793
      %v2160 = vpop.f32.mrf.mxu0
      %v2161 = vadd.f32 0.0, %v2160
      %v2162 = vpop.f32.mrf.mxu0
      %v2163 = vadd.f32 0.0, %v2162
      %2164 = vmatmul.bf16.gmra.mxu0 %v1796
      %v2165 = vpop.f32.mrf.mxu0
      %v2166 = vadd.f32 0.0, %v2165
      %v2167 = vpop.f32.mrf.mxu0
      %v2168 = vadd.f32 0.0, %v2167
      %2169 = vmatmul.bf16.gmra.mxu0 %v1799
      %v2170 = vpop.f32.mrf.mxu0
      %v2171 = vadd.f32 0.0, %v2170
      %v2172 = vpop.f32.mrf.mxu0
      %v2173 = vadd.f32 0.0, %v2172
      %2174 = vmatmul.bf16.gmra.mxu0 %v1802
      %v2175 = vpop.f32.mrf.mxu0
      %v2176 = vadd.f32 0.0, %v2175
      %v2177 = vpop.f32.mrf.mxu0
      %v2178 = vadd.f32 0.0, %v2177
      %2179 = vmatmul.bf16.gmra.mxu0 %v1805
      %v2180 = vpop.f32.mrf.mxu0
      %v2181 = vadd.f32 0.0, %v2180
      %v2182 = vpop.f32.mrf.mxu0
      %v2183 = vadd.f32 0.0, %v2182
      %2184 = vmatmul.bf16.gmra.mxu0 %v1808
      %v2185 = vpop.f32.mrf.mxu0
      %v2186 = vadd.f32 0.0, %v2185
      %v2187 = vpop.f32.mrf.mxu0
      %v2188 = vadd.f32 0.0, %v2187
      %2189 = vmatmul.bf16.gmra.mxu0 %v1811
      %v2190 = vpop.f32.mrf.mxu0
      %v2191 = vadd.f32 0.0, %v2190
      %v2192 = vpop.f32.mrf.mxu0
      %v2193 = vadd.f32 0.0, %v2192
      %2194 = vmatmul.bf16.gmra.mxu0 %v1814
      %v2195 = vpop.f32.mrf.mxu0
      %v2196 = vadd.f32 0.0, %v2195
      %v2197 = vpop.f32.mrf.mxu0
      %v2198 = vadd.f32 0.0, %v2197
      %2199 = vmatmul.bf16.gmra.mxu0 %v1817
      %v2200 = vpop.f32.mrf.mxu0
      %v2201 = vadd.f32 0.0, %v2200
      %v2202 = vpop.f32.mrf.mxu0
      %v2203 = vadd.f32 0.0, %v2202
      %2204 = vmatmul.bf16.gmra.mxu0 %v1820
      %v2205 = vpop.f32.mrf.mxu0
      %v2206 = vadd.f32 0.0, %v2205
      %v2207 = vpop.f32.mrf.mxu0
      %v2208 = vadd.f32 0.0, %v2207
      %2209 = vmatmul.bf16.gmra.mxu0 %v1823
      %v2210 = vpop.f32.mrf.mxu0
      %v2211 = vadd.f32 0.0, %v2210
      %v2212 = vpop.f32.mrf.mxu0
      %v2213 = vadd.f32 0.0, %v2212
      %2214 = vmatmul.bf16.gmra.mxu0 %v1826
      %v2215 = vpop.f32.mrf.mxu0
      %v2216 = vadd.f32 0.0, %v2215
      %v2217 = vpop.f32.mrf.mxu0
      %v2218 = vadd.f32 0.0, %v2217
      %2219 = vmatmul.bf16.gmra.mxu0 %v1981
      %v2220 = vpop.f32.mrf.mxu0
      %v2221 = vadd.f32 0.0, %v2220
      %v2222 = vpop.f32.mrf.mxu0
      %v2223 = vadd.f32 0.0, %v2222
      %2224 = vmatmul.bf16.gmra.mxu0 %v2136
      %v2225 = vpop.f32.mrf.mxu0
      %v2226 = vadd.f32 0.0, %v2225
      %v2227 = vpop.f32.mrf.mxu0
      %v2228 = vadd.f32 0.0, %v2227
      %2229 = vdwg.mxu0
      %v2230 = vadd.f32 %v2075, %v2151
      %v2231 = vadd.f32 %v2076, %v2153
      %v2232 = vadd.f32 %v2077, %v2156
      %v2233 = vadd.f32 %v2078, %v2158
      %v2234 = vadd.f32 %v2079, %v2161
      %v2235 = vadd.f32 %v2080, %v2163
      %v2236 = vadd.f32 %v2081, %v2166
      %v2237 = vadd.f32 %v2082, %v2168
      %v2238 = vadd.f32 %v2083, %v2171
      %v2239 = vadd.f32 %v2084, %v2173
      %v2240 = vadd.f32 %v2085, %v2176
      %v2241 = vadd.f32 %v2086, %v2178
      %v2242 = vadd.f32 %v2087, %v2181
      %v2243 = vadd.f32 %v2088, %v2183
      %v2244 = vadd.f32 %v2089, %v2186
      %v2245 = vadd.f32 %v2090, %v2188
      %v2246 = vadd.f32 %v2091, %v2191
      %v2247 = vadd.f32 %v2092, %v2193
      %v2248 = vadd.f32 %v2093, %v2196
      %v2249 = vadd.f32 %v2094, %v2198
      %v2250 = vadd.f32 %v2095, %v2201
      %v2251 = vadd.f32 %v2096, %v2203
      %v2252 = vadd.f32 %v2097, %v2206
      %v2253 = vadd.f32 %v2098, %v2208
      %v2254 = vadd.f32 %v2099, %v2211
      %v2255 = vadd.f32 %v2100, %v2213
      %v2256 = vadd.f32 %v2101, %v2216
      %v2257 = vadd.f32 %v2102, %v2218
      %v2258 = vadd.f32 %v2103, %v2221
      %v2259 = vadd.f32 %v2104, %v2223
      %v2260 = vadd.f32 %v2105, %v2226
      %v2261 = vadd.f32 %v2106, %v2228
      %v2262 = vld [vmem:[#allocation2] sm:$0xe]
      %v2263 = vld [vmem:[#allocation2 + $0xc] sm:$0xe]
      %v2264 = vld [vmem:[#allocation2 + $0x18] sm:$0xe]
      %v2265 = vld [vmem:[#allocation2 + $0x24] sm:$0xe]
      %v2266 = vld [vmem:[#allocation2 + $0x30] sm:$0xe]
      %v2267 = vld [vmem:[#allocation2 + $0x3c] sm:$0xe]
      %v2268 = vld [vmem:[#allocation2 + $0x48] sm:$0xe]
      %v2269 = vld [vmem:[#allocation2 + $0x54] sm:$0xe]
      %v2270 = vld [vmem:[#allocation2 + $0x60] sm:$0xe]
      %v2271 = vld [vmem:[#allocation2 + $0x6c] sm:$0xe]
      %v2272 = vld [vmem:[#allocation2 + $0x78] sm:$0xe]
      %v2273 = vld [vmem:[#allocation2 + $0x84] sm:$0xe]
      %v2274 = vld [vmem:[#allocation2 + $0x90] sm:$0xe]
      %v2275 = vld [vmem:[#allocation2 + $0x9c] sm:$0xe]
      %v2276 = vld [vmem:[#allocation2 + $0xa8] sm:$0xe]
      %v2277 = vld [vmem:[#allocation2 + $0xb4] sm:$0xe]
      %v2278 = vld [vmem:[#allocation2 + $0xc0] sm:$0xe]
      %v2279 = vld [vmem:[#allocation2 + $0xcc] sm:$0xe]
      %vm2328 = vcmask 1042432
      %vm2329 = vcmask 1046532
      %vm2330 = vmor %vm2328, %vm2329
      %v2331 = vrot.slane %v2262, 5
      %v2332 = vrot.slane %v2331, 4
      %v2333 = vrot.slane %v1291, 5
      %v2334 = vsel %vm2330, %v2332, %v2333
      %v2335 = vrot.slane %v2333, 4
      %v2336 = vrot.slane %v1292, 5
      %v2337 = vsel %vm2330, %v2335, %v2336
      %v2338 = vrot.slane %v2263, 5
      %v2339 = vrot.slane %v2338, 4
      %v2340 = vrot.slane %v1294, 5
      %v2341 = vsel %vm2330, %v2339, %v2340
      %v2342 = vrot.slane %v2340, 4
      %v2343 = vrot.slane %v1295, 5
      %v2344 = vsel %vm2330, %v2342, %v2343
      %v2345 = vrot.slane %v2264, 5
      %v2346 = vrot.slane %v2345, 4
      %v2347 = vrot.slane %v1297, 5
      %v2348 = vsel %vm2330, %v2346, %v2347
      %v2349 = vrot.slane %v2347, 4
      %v2350 = vrot.slane %v1298, 5
      %v2351 = vsel %vm2330, %v2349, %v2350
      %v2352 = vrot.slane %v2265, 5
      %v2353 = vrot.slane %v2352, 4
      %v2354 = vrot.slane %v1300, 5
      %v2355 = vsel %vm2330, %v2353, %v2354
      %v2356 = vrot.slane %v2354, 4
      %v2357 = vrot.slane %v1301, 5
      %v2358 = vsel %vm2330, %v2356, %v2357
      %v2359 = vrot.slane %v2266, 5
      %v2360 = vrot.slane %v2359, 4
      %v2361 = vrot.slane %v1303, 5
      %v2362 = vsel %vm2330, %v2360, %v2361
      %v2363 = vrot.slane %v2361, 4
      %v2364 = vrot.slane %v1304, 5
      %v2365 = vsel %vm2330, %v2363, %v2364
      %v2366 = vrot.slane %v2267, 5
      %v2367 = vrot.slane %v2366, 4
      %v2368 = vrot.slane %v1306, 5
      %v2369 = vsel %vm2330, %v2367, %v2368
      %v2370 = vrot.slane %v2368, 4
      %v2371 = vrot.slane %v1307, 5
      %v2372 = vsel %vm2330, %v2370, %v2371
      %v2373 = vrot.slane %v2268, 5
      %v2374 = vrot.slane %v2373, 4
      %v2375 = vrot.slane %v1309, 5
      %v2376 = vsel %vm2330, %v2374, %v2375
      %v2377 = vrot.slane %v2375, 4
      %v2378 = vrot.slane %v1310, 5
      %v2379 = vsel %vm2330, %v2377, %v2378
      %v2380 = vrot.slane %v2269, 5
      %v2381 = vrot.slane %v2380, 4
      %v2382 = vrot.slane %v1312, 5
      %v2383 = vsel %vm2330, %v2381, %v2382
      %v2384 = vrot.slane %v2382, 4
      %v2385 = vrot.slane %v1313, 5
      %v2386 = vsel %vm2330, %v2384, %v2385
      %v2387 = vrot.slane %v2270, 5
      %v2388 = vrot.slane %v2387, 4
      %v2389 = vrot.slane %v1315, 5
      %v2390 = vsel %vm2330, %v2388, %v2389
      %v2391 = vrot.slane %v2389, 4
      %v2392 = vrot.slane %v1316, 5
      %v2393 = vsel %vm2330, %v2391, %v2392
      %v2394 = vrot.slane %v2271, 5
      %v2395 = vrot.slane %v2394, 4
      %v2396 = vrot.slane %v1318, 5
      %v2397 = vsel %vm2330, %v2395, %v2396
      %v2398 = vrot.slane %v2396, 4
      %v2399 = vrot.slane %v1319, 5
      %v2400 = vsel %vm2330, %v2398, %v2399
      %v2401 = vrot.slane %v2272, 5
      %v2402 = vrot.slane %v2401, 4
      %v2403 = vrot.slane %v1321, 5
      %v2404 = vsel %vm2330, %v2402, %v2403
      %v2405 = vrot.slane %v2403, 4
      %v2406 = vrot.slane %v1322, 5
      %v2407 = vsel %vm2330, %v2405, %v2406
      %v2408 = vrot.slane %v2273, 5
      %v2409 = vrot.slane %v2408, 4
      %v2410 = vrot.slane %v1324, 5
      %v2411 = vsel %vm2330, %v2409, %v2410
      %v2412 = vrot.slane %v2410, 4
      %v2413 = vrot.slane %v1325, 5
      %v2414 = vsel %vm2330, %v2412, %v2413
      %v2415 = vrot.slane %v2274, 5
      %v2416 = vrot.slane %v2415, 4
      %v2417 = vrot.slane %v1327, 5
      %v2418 = vsel %vm2330, %v2416, %v2417
      %v2419 = vrot.slane %v2417, 4
      %v2420 = vrot.slane %v1328, 5
      %v2421 = vsel %vm2330, %v2419, %v2420
      %v2422 = vrot.slane %v2275, 5
      %v2423 = vrot.slane %v2422, 4
      %v2424 = vrot.slane %v1330, 5
      %v2425 = vsel %vm2330, %v2423, %v2424
      %v2426 = vrot.slane %v2424, 4
      %v2427 = vrot.slane %v1331, 5
      %v2428 = vsel %vm2330, %v2426, %v2427
      %v2429 = vrot.slane %v2276, 5
      %v2430 = vrot.slane %v2429, 4
      %v2431 = vrot.slane %v1333, 5
      %v2432 = vsel %vm2330, %v2430, %v2431
      %v2433 = vrot.slane %v2431, 4
      %v2434 = vrot.slane %v1334, 5
      %v2435 = vsel %vm2330, %v2433, %v2434
      %v2436 = vrot.slane %v2277, 5
      %v2437 = vrot.slane %v2436, 4
      %v2438 = vrot.slane %v1336, 5
      %v2439 = vsel %vm2330, %v2437, %v2438
      %v2440 = vrot.slane %v2438, 4
      %v2441 = vrot.slane %v1337, 5
      %v2442 = vsel %vm2330, %v2440, %v2441
      %v2443 = vld [vmem:[%s3 + $0x8] sm:$0xf]
      %v2444 = vunpack.c.l.b16 %v2334
      %v2445 = vunpack.c.l.b16 %v2337
      %v2446 = vunpack.c.l.b16 %v2341
      %v2447 = vunpack.c.l.b16 %v2344
      %v2448 = vunpack.c.l.b16 %v2348
      %v2449 = vunpack.c.l.b16 %v2351
      %v2450 = vunpack.c.l.b16 %v2355
      %v2451 = vunpack.c.l.b16 %v2358
      %v2452 = vunpack.c.l.b16 %v2362
      %v2453 = vunpack.c.l.b16 %v2365
      %v2454 = vunpack.c.l.b16 %v2369
      %v2455 = vunpack.c.l.b16 %v2372
      %v2456 = vunpack.c.l.b16 %v2376
      %v2457 = vunpack.c.l.b16 %v2379
      %v2458 = vunpack.c.l.b16 %v2383
      %v2459 = vunpack.c.l.b16 %v2386
      %v2460 = vunpack.c.l.b16 %v2390
      %v2461 = vunpack.c.l.b16 %v2393
      %v2462 = vunpack.c.l.b16 %v2397
      %v2463 = vunpack.c.l.b16 %v2400
      %v2464 = vunpack.c.l.b16 %v2404
      %v2465 = vunpack.c.l.b16 %v2407
      %v2466 = vunpack.c.l.b16 %v2411
      %v2467 = vunpack.c.l.b16 %v2414
      %v2468 = vunpack.c.l.b16 %v2418
      %v2469 = vunpack.c.l.b16 %v2421
      %v2470 = vunpack.c.l.b16 %v2425
      %v2471 = vunpack.c.l.b16 %v2428
      %v2472 = vunpack.c.l.b16 %v2432
      %v2473 = vunpack.c.l.b16 %v2435
      %v2474 = vunpack.c.l.b16 %v2439
      %v2475 = vunpack.c.l.b16 %v2442
      %v2476 = vpack.c.b16 %v2445, %v2444
      %v2477 = vpack.c.b16 %v2447, %v2446
      %v2478 = vpack.c.b16 %v2449, %v2448
      %v2479 = vpack.c.b16 %v2451, %v2450
      %v2480 = vpack.c.b16 %v2453, %v2452
      %v2481 = vpack.c.b16 %v2455, %v2454
      %v2482 = vpack.c.b16 %v2457, %v2456
      %v2483 = vpack.c.b16 %v2459, %v2458
      %v2484 = vpack.c.b16 %v2461, %v2460
      %v2485 = vpack.c.b16 %v2463, %v2462
      %v2486 = vpack.c.b16 %v2465, %v2464
      %v2487 = vpack.c.b16 %v2467, %v2466
      %v2488 = vpack.c.b16 %v2469, %v2468
      %v2489 = vpack.c.b16 %v2471, %v2470
      %v2490 = vpack.c.b16 %v2473, %v2472
      %v2491 = vpack.c.b16 %v2475, %v2474
      %v2493 = vsel %vm915, %v2476, 0
      %v2496 = vsel %vm915, %v2477, 0
      %v2499 = vsel %vm915, %v2478, 0
      %v2502 = vsel %vm915, %v2479, 0
      %v2505 = vsel %vm915, %v2480, 0
      %v2508 = vsel %vm915, %v2481, 0
      %v2511 = vsel %vm915, %v2482, 0
      %v2514 = vsel %vm915, %v2483, 0
      %v2517 = vsel %vm915, %v2484, 0
      %v2520 = vsel %vm915, %v2485, 0
      %v2523 = vsel %vm915, %v2486, 0
      %v2526 = vsel %vm915, %v2487, 0
      %v2529 = vsel %vm915, %v2488, 0
      %v2532 = vsel %vm915, %v2489, 0
      %v2535 = vsel %vm915, %v2490, 0
      %v2538 = vsel %vm915, %v2491, 0
      %v2541 = vsel %vm964, %v2443, 0
      %2543 = vmatpush.bf16.msra.mxu0 0
      %2544 = vmatpush.bf16.msra.mxu0 0
      %2545 = vmatpush.bf16.msra.mxu0 0
      %2546 = vmatpush.bf16.msra.mxu0 0
      %2547 = vmatpush.bf16.msra.mxu0 0
      %2548 = vmatpush.bf16.msra.mxu0 0
      %2549 = vmatpush.bf16.msra.mxu0 0
      %2550 = vmatpush.bf16.msra.mxu0 %v2541
      %2551 = vmatmul.bf16.gmra.mxu0 %v2493
      %v2552 = vpop.f32.mrf.mxu0
      %v2553 = vadd.f32 0.0, %v2552
      %v2554 = vpop.f32.mrf.mxu0
      %v2555 = vadd.f32 0.0, %v2554
      %2556 = vmatmul.bf16.gmra.mxu0 %v2496
      %v2557 = vpop.f32.mrf.mxu0
      %v2558 = vadd.f32 0.0, %v2557
      %v2559 = vpop.f32.mrf.mxu0
      %v2560 = vadd.f32 0.0, %v2559
      %2561 = vmatmul.bf16.gmra.mxu0 %v2499
      %v2562 = vpop.f32.mrf.mxu0
      %v2563 = vadd.f32 0.0, %v2562
      %v2564 = vpop.f32.mrf.mxu0
      %v2565 = vadd.f32 0.0, %v2564
      %2566 = vmatmul.bf16.gmra.mxu0 %v2502
      %v2567 = vpop.f32.mrf.mxu0
      %v2568 = vadd.f32 0.0, %v2567
      %v2569 = vpop.f32.mrf.mxu0
      %v2570 = vadd.f32 0.0, %v2569
      %2571 = vmatmul.bf16.gmra.mxu0 %v2505
      %v2572 = vpop.f32.mrf.mxu0
      %v2573 = vadd.f32 0.0, %v2572
      %v2574 = vpop.f32.mrf.mxu0
      %v2575 = vadd.f32 0.0, %v2574
      %2576 = vmatmul.bf16.gmra.mxu0 %v2508
      %v2577 = vpop.f32.mrf.mxu0
      %v2578 = vadd.f32 0.0, %v2577
      %v2579 = vpop.f32.mrf.mxu0
      %v2580 = vadd.f32 0.0, %v2579
      %2581 = vmatmul.bf16.gmra.mxu0 %v2511
      %v2582 = vpop.f32.mrf.mxu0
      %v2583 = vadd.f32 0.0, %v2582
      %v2584 = vpop.f32.mrf.mxu0
      %v2585 = vadd.f32 0.0, %v2584
      %2586 = vmatmul.bf16.gmra.mxu0 %v2514
      %v2587 = vpop.f32.mrf.mxu0
      %v2588 = vadd.f32 0.0, %v2587
      %v2589 = vpop.f32.mrf.mxu0
      %v2590 = vadd.f32 0.0, %v2589
      %2591 = vmatmul.bf16.gmra.mxu0 %v2517
      %v2592 = vpop.f32.mrf.mxu0
      %v2593 = vadd.f32 0.0, %v2592
      %v2594 = vpop.f32.mrf.mxu0
      %v2595 = vadd.f32 0.0, %v2594
      %2596 = vmatmul.bf16.gmra.mxu0 %v2520
      %v2597 = vpop.f32.mrf.mxu0
      %v2598 = vadd.f32 0.0, %v2597
      %v2599 = vpop.f32.mrf.mxu0
      %v2600 = vadd.f32 0.0, %v2599
      %2601 = vmatmul.bf16.gmra.mxu0 %v2523
      %v2602 = vpop.f32.mrf.mxu0
      %v2603 = vadd.f32 0.0, %v2602
      %v2604 = vpop.f32.mrf.mxu0
      %v2605 = vadd.f32 0.0, %v2604
      %2606 = vmatmul.bf16.gmra.mxu0 %v2526
      %v2607 = vpop.f32.mrf.mxu0
      %v2608 = vadd.f32 0.0, %v2607
      %v2609 = vpop.f32.mrf.mxu0
      %v2610 = vadd.f32 0.0, %v2609
      %2611 = vmatmul.bf16.gmra.mxu0 %v2529
      %v2612 = vpop.f32.mrf.mxu0
      %v2613 = vadd.f32 0.0, %v2612
      %v2614 = vpop.f32.mrf.mxu0
      %v2615 = vadd.f32 0.0, %v2614
      %2616 = vmatmul.bf16.gmra.mxu0 %v2532
      %v2617 = vpop.f32.mrf.mxu0
      %v2618 = vadd.f32 0.0, %v2617
      %v2619 = vpop.f32.mrf.mxu0
      %v2620 = vadd.f32 0.0, %v2619
      %2621 = vmatmul.bf16.gmra.mxu0 %v2535
      %v2622 = vpop.f32.mrf.mxu0
      %v2623 = vadd.f32 0.0, %v2622
      %v2624 = vpop.f32.mrf.mxu0
      %v2625 = vadd.f32 0.0, %v2624
      %2626 = vmatmul.bf16.gmra.mxu0 %v2538
      %v2627 = vpop.f32.mrf.mxu0
      %v2628 = vadd.f32 0.0, %v2627
      %v2629 = vpop.f32.mrf.mxu0
      %v2630 = vadd.f32 0.0, %v2629
      %2631 = vdwg.mxu0
      %v2632 = vadd.f32 %v2230, %v2553
      %v2633 = vadd.f32 %v2231, %v2555
      %v2634 = vadd.f32 %v2232, %v2558
      %v2635 = vadd.f32 %v2233, %v2560
      %v2636 = vadd.f32 %v2234, %v2563
      %v2637 = vadd.f32 %v2235, %v2565
      %v2638 = vadd.f32 %v2236, %v2568
      %v2639 = vadd.f32 %v2237, %v2570
      %v2640 = vadd.f32 %v2238, %v2573
      %v2641 = vadd.f32 %v2239, %v2575
      %v2642 = vadd.f32 %v2240, %v2578
      %v2643 = vadd.f32 %v2241, %v2580
      %v2644 = vadd.f32 %v2242, %v2583
      %v2645 = vadd.f32 %v2243, %v2585
      %v2646 = vadd.f32 %v2244, %v2588
      %v2647 = vadd.f32 %v2245, %v2590
      %v2648 = vadd.f32 %v2246, %v2593
      %v2649 = vadd.f32 %v2247, %v2595
      %v2650 = vadd.f32 %v2248, %v2598
      %v2651 = vadd.f32 %v2249, %v2600
      %v2652 = vadd.f32 %v2250, %v2603
      %v2653 = vadd.f32 %v2251, %v2605
      %v2654 = vadd.f32 %v2252, %v2608
      %v2655 = vadd.f32 %v2253, %v2610
      %v2656 = vadd.f32 %v2254, %v2613
      %v2657 = vadd.f32 %v2255, %v2615
      %v2658 = vadd.f32 %v2256, %v2618
      %v2659 = vadd.f32 %v2257, %v2620
      %v2660 = vadd.f32 %v2258, %v2623
      %v2661 = vadd.f32 %v2259, %v2625
      %v2662 = vadd.f32 %v2260, %v2628
      %v2663 = vadd.f32 %v2261, %v2630
      %v2667 = vrot.slane %v2278, 5
      %v2668 = vrot.slane %v2667, 4
      %v2669 = vrot.slane %v1339, 5
      %v2670 = vsel %vm2330, %v2668, %v2669
      %v2671 = vrot.slane %v2669, 4
      %v2672 = vrot.slane %v1340, 5
      %v2673 = vsel %vm2330, %v2671, %v2672
      %v2674 = vld [vmem:[%s3 + $0x14] sm:$0xf]
      %v2675 = vunpack.c.l.b16 %v2670
      %v2676 = vunpack.c.l.b16 %v2673
      %v2677 = vpack.c.b16 %v2676, %v2675
      %v2679 = vsel %vm915, %v2677, 0
      %v2682 = vsel %vm964, %v2674, 0
      %2684 = vmatpush.bf16.msra.mxu0 0
      %2685 = vmatpush.bf16.msra.mxu0 0
      %2686 = vmatpush.bf16.msra.mxu0 0
      %2687 = vmatpush.bf16.msra.mxu0 0
      %2688 = vmatpush.bf16.msra.mxu0 0
      %2689 = vmatpush.bf16.msra.mxu0 0
      %2690 = vmatpush.bf16.msra.mxu0 0
      %2691 = vmatpush.bf16.msra.mxu0 %v2682
      %2692 = vmatmul.bf16.gmra.mxu0 %v2496
      %v2693 = vpop.f32.mrf.mxu0
      %v2694 = vadd.f32 0.0, %v2693
      %v2695 = vpop.f32.mrf.mxu0
      %v2696 = vadd.f32 0.0, %v2695
      %2697 = vmatmul.bf16.gmra.mxu0 %v2499
      %v2698 = vpop.f32.mrf.mxu0
      %v2699 = vadd.f32 0.0, %v2698
      %v2700 = vpop.f32.mrf.mxu0
      %v2701 = vadd.f32 0.0, %v2700
      %2702 = vmatmul.bf16.gmra.mxu0 %v2502
      %v2703 = vpop.f32.mrf.mxu0
      %v2704 = vadd.f32 0.0, %v2703
      %v2705 = vpop.f32.mrf.mxu0
      %v2706 = vadd.f32 0.0, %v2705
      %2707 = vmatmul.bf16.gmra.mxu0 %v2505
      %v2708 = vpop.f32.mrf.mxu0
      %v2709 = vadd.f32 0.0, %v2708
      %v2710 = vpop.f32.mrf.mxu0
      %v2711 = vadd.f32 0.0, %v2710
      %2712 = vmatmul.bf16.gmra.mxu0 %v2508
      %v2713 = vpop.f32.mrf.mxu0
      %v2714 = vadd.f32 0.0, %v2713
      %v2715 = vpop.f32.mrf.mxu0
      %v2716 = vadd.f32 0.0, %v2715
      %2717 = vmatmul.bf16.gmra.mxu0 %v2511
      %v2718 = vpop.f32.mrf.mxu0
      %v2719 = vadd.f32 0.0, %v2718
      %v2720 = vpop.f32.mrf.mxu0
      %v2721 = vadd.f32 0.0, %v2720
      %2722 = vmatmul.bf16.gmra.mxu0 %v2514
      %v2723 = vpop.f32.mrf.mxu0
      %v2724 = vadd.f32 0.0, %v2723
      %v2725 = vpop.f32.mrf.mxu0
      %v2726 = vadd.f32 0.0, %v2725
      %2727 = vmatmul.bf16.gmra.mxu0 %v2517
      %v2728 = vpop.f32.mrf.mxu0
      %v2729 = vadd.f32 0.0, %v2728
      %v2730 = vpop.f32.mrf.mxu0
      %v2731 = vadd.f32 0.0, %v2730
      %2732 = vmatmul.bf16.gmra.mxu0 %v2520
      %v2733 = vpop.f32.mrf.mxu0
      %v2734 = vadd.f32 0.0, %v2733
      %v2735 = vpop.f32.mrf.mxu0
      %v2736 = vadd.f32 0.0, %v2735
      %2737 = vmatmul.bf16.gmra.mxu0 %v2523
      %v2738 = vpop.f32.mrf.mxu0
      %v2739 = vadd.f32 0.0, %v2738
      %v2740 = vpop.f32.mrf.mxu0
      %v2741 = vadd.f32 0.0, %v2740
      %2742 = vmatmul.bf16.gmra.mxu0 %v2526
      %v2743 = vpop.f32.mrf.mxu0
      %v2744 = vadd.f32 0.0, %v2743
      %v2745 = vpop.f32.mrf.mxu0
      %v2746 = vadd.f32 0.0, %v2745
      %2747 = vmatmul.bf16.gmra.mxu0 %v2529
      %v2748 = vpop.f32.mrf.mxu0
      %v2749 = vadd.f32 0.0, %v2748
      %v2750 = vpop.f32.mrf.mxu0
      %v2751 = vadd.f32 0.0, %v2750
      %2752 = vmatmul.bf16.gmra.mxu0 %v2532
      %v2753 = vpop.f32.mrf.mxu0
      %v2754 = vadd.f32 0.0, %v2753
      %v2755 = vpop.f32.mrf.mxu0
      %v2756 = vadd.f32 0.0, %v2755
      %2757 = vmatmul.bf16.gmra.mxu0 %v2535
      %v2758 = vpop.f32.mrf.mxu0
      %v2759 = vadd.f32 0.0, %v2758
      %v2760 = vpop.f32.mrf.mxu0
      %v2761 = vadd.f32 0.0, %v2760
      %2762 = vmatmul.bf16.gmra.mxu0 %v2538
      %v2763 = vpop.f32.mrf.mxu0
      %v2764 = vadd.f32 0.0, %v2763
      %v2765 = vpop.f32.mrf.mxu0
      %v2766 = vadd.f32 0.0, %v2765
      %2767 = vmatmul.bf16.gmra.mxu0 %v2679
      %v2768 = vpop.f32.mrf.mxu0
      %v2769 = vadd.f32 0.0, %v2768
      %v2770 = vpop.f32.mrf.mxu0
      %v2771 = vadd.f32 0.0, %v2770
      %2772 = vdwg.mxu0
      %v2773 = vadd.f32 %v2632, %v2694
      %v2774 = vadd.f32 %v2633, %v2696
      %v2775 = vadd.f32 %v2634, %v2699
      %v2776 = vadd.f32 %v2635, %v2701
      %v2777 = vadd.f32 %v2636, %v2704
      %v2778 = vadd.f32 %v2637, %v2706
      %v2779 = vadd.f32 %v2638, %v2709
      %v2780 = vadd.f32 %v2639, %v2711
      %v2781 = vadd.f32 %v2640, %v2714
      %v2782 = vadd.f32 %v2641, %v2716
      %v2783 = vadd.f32 %v2642, %v2719
      %v2784 = vadd.f32 %v2643, %v2721
      %v2785 = vadd.f32 %v2644, %v2724
      %v2786 = vadd.f32 %v2645, %v2726
      %v2787 = vadd.f32 %v2646, %v2729
      %v2788 = vadd.f32 %v2647, %v2731
      %v2789 = vadd.f32 %v2648, %v2734
      %v2790 = vadd.f32 %v2649, %v2736
      %v2791 = vadd.f32 %v2650, %v2739
      %v2792 = vadd.f32 %v2651, %v2741
      %v2793 = vadd.f32 %v2652, %v2744
      %v2794 = vadd.f32 %v2653, %v2746
      %v2795 = vadd.f32 %v2654, %v2749
      %v2796 = vadd.f32 %v2655, %v2751
      %v2797 = vadd.f32 %v2656, %v2754
      %v2798 = vadd.f32 %v2657, %v2756
      %v2799 = vadd.f32 %v2658, %v2759
      %v2800 = vadd.f32 %v2659, %v2761
      %v2801 = vadd.f32 %v2660, %v2764
      %v2802 = vadd.f32 %v2661, %v2766
      %v2803 = vadd.f32 %v2662, %v2769
      %v2804 = vadd.f32 %v2663, %v2771
      %v2808 = vrot.slane %v2279, 5
      %v2809 = vrot.slane %v2808, 4
      %v2810 = vrot.slane %v1342, 5
      %v2811 = vsel %vm2330, %v2809, %v2810
      %v2812 = vrot.slane %v2810, 4
      %v2813 = vrot.slane %v1343, 5
      %v2814 = vsel %vm2330, %v2812, %v2813
      %v2815 = vld [vmem:[%s3 + $0x20] sm:$0xf]
      %v2816 = vunpack.c.l.b16 %v2811
      %v2817 = vunpack.c.l.b16 %v2814
      %v2818 = vpack.c.b16 %v2817, %v2816
      %v2820 = vsel %vm915, %v2818, 0
      %v2823 = vsel %vm964, %v2815, 0
      %2825 = vmatpush.bf16.msra.mxu0 0
      %2826 = vmatpush.bf16.msra.mxu0 0
      %2827 = vmatpush.bf16.msra.mxu0 0
      %2828 = vmatpush.bf16.msra.mxu0 0
      %2829 = vmatpush.bf16.msra.mxu0 0
      %2830 = vmatpush.bf16.msra.mxu0 0
      %2831 = vmatpush.bf16.msra.mxu0 0
      %2832 = vmatpush.bf16.msra.mxu0 %v2823
      %2833 = vmatmul.bf16.gmra.mxu0 %v2499
      %v2834 = vpop.f32.mrf.mxu0
      %v2835 = vadd.f32 0.0, %v2834
      %v2836 = vpop.f32.mrf.mxu0
      %v2837 = vadd.f32 0.0, %v2836
      %2838 = vmatmul.bf16.gmra.mxu0 %v2502
      %v2839 = vpop.f32.mrf.mxu0
      %v2840 = vadd.f32 0.0, %v2839
      %v2841 = vpop.f32.mrf.mxu0
      %v2842 = vadd.f32 0.0, %v2841
      %2843 = vmatmul.bf16.gmra.mxu0 %v2505
      %v2844 = vpop.f32.mrf.mxu0
      %v2845 = vadd.f32 0.0, %v2844
      %v2846 = vpop.f32.mrf.mxu0
      %v2847 = vadd.f32 0.0, %v2846
      %2848 = vmatmul.bf16.gmra.mxu0 %v2508
      %v2849 = vpop.f32.mrf.mxu0
      %v2850 = vadd.f32 0.0, %v2849
      %v2851 = vpop.f32.mrf.mxu0
      %v2852 = vadd.f32 0.0, %v2851
      %2853 = vmatmul.bf16.gmra.mxu0 %v2511
      %v2854 = vpop.f32.mrf.mxu0
      %v2855 = vadd.f32 0.0, %v2854
      %v2856 = vpop.f32.mrf.mxu0
      %v2857 = vadd.f32 0.0, %v2856
      %2858 = vmatmul.bf16.gmra.mxu0 %v2514
      %v2859 = vpop.f32.mrf.mxu0
      %v2860 = vadd.f32 0.0, %v2859
      %v2861 = vpop.f32.mrf.mxu0
      %v2862 = vadd.f32 0.0, %v2861
      %2863 = vmatmul.bf16.gmra.mxu0 %v2517
      %v2864 = vpop.f32.mrf.mxu0
      %v2865 = vadd.f32 0.0, %v2864
      %v2866 = vpop.f32.mrf.mxu0
      %v2867 = vadd.f32 0.0, %v2866
      %2868 = vmatmul.bf16.gmra.mxu0 %v2520
      %v2869 = vpop.f32.mrf.mxu0
      %v2870 = vadd.f32 0.0, %v2869
      %v2871 = vpop.f32.mrf.mxu0
      %v2872 = vadd.f32 0.0, %v2871
      %2873 = vmatmul.bf16.gmra.mxu0 %v2523
      %v2874 = vpop.f32.mrf.mxu0
      %v2875 = vadd.f32 0.0, %v2874
      %v2876 = vpop.f32.mrf.mxu0
      %v2877 = vadd.f32 0.0, %v2876
      %2878 = vmatmul.bf16.gmra.mxu0 %v2526
      %v2879 = vpop.f32.mrf.mxu0
      %v2880 = vadd.f32 0.0, %v2879
      %v2881 = vpop.f32.mrf.mxu0
      %v2882 = vadd.f32 0.0, %v2881
      %2883 = vmatmul.bf16.gmra.mxu0 %v2529
      %v2884 = vpop.f32.mrf.mxu0
      %v2885 = vadd.f32 0.0, %v2884
      %v2886 = vpop.f32.mrf.mxu0
      %v2887 = vadd.f32 0.0, %v2886
      %2888 = vmatmul.bf16.gmra.mxu0 %v2532
      %v2889 = vpop.f32.mrf.mxu0
      %v2890 = vadd.f32 0.0, %v2889
      %v2891 = vpop.f32.mrf.mxu0
      %v2892 = vadd.f32 0.0, %v2891
      %2893 = vmatmul.bf16.gmra.mxu0 %v2535
      %v2894 = vpop.f32.mrf.mxu0
      %v2895 = vadd.f32 0.0, %v2894
      %v2896 = vpop.f32.mrf.mxu0
      %v2897 = vadd.f32 0.0, %v2896
      %2898 = vmatmul.bf16.gmra.mxu0 %v2538
      %v2899 = vpop.f32.mrf.mxu0
      %v2900 = vadd.f32 0.0, %v2899
      %v2901 = vpop.f32.mrf.mxu0
      %v2902 = vadd.f32 0.0, %v2901
      %2903 = vmatmul.bf16.gmra.mxu0 %v2679
      %v2904 = vpop.f32.mrf.mxu0
      %v2905 = vadd.f32 0.0, %v2904
      %v2906 = vpop.f32.mrf.mxu0
      %v2907 = vadd.f32 0.0, %v2906
      %2908 = vmatmul.bf16.gmra.mxu0 %v2820
      %v2909 = vpop.f32.mrf.mxu0
      %v2910 = vadd.f32 0.0, %v2909
      %v2911 = vpop.f32.mrf.mxu0
      %v2912 = vadd.f32 0.0, %v2911
      %2913 = vdwg.mxu0
      %v2914 = vadd.f32 %v2773, %v2835
      %v2915 = vadd.f32 %v2774, %v2837
      %v2916 = vadd.f32 %v2775, %v2840
      %v2917 = vadd.f32 %v2776, %v2842
      %v2918 = vadd.f32 %v2777, %v2845
      %v2919 = vadd.f32 %v2778, %v2847
      %v2920 = vadd.f32 %v2779, %v2850
      %v2921 = vadd.f32 %v2780, %v2852
      %v2922 = vadd.f32 %v2781, %v2855
      %v2923 = vadd.f32 %v2782, %v2857
      %v2924 = vadd.f32 %v2783, %v2860
      %v2925 = vadd.f32 %v2784, %v2862
      %v2926 = vadd.f32 %v2785, %v2865
      %v2927 = vadd.f32 %v2786, %v2867
      %v2928 = vadd.f32 %v2787, %v2870
      %v2929 = vadd.f32 %v2788, %v2872
      %v2930 = vadd.f32 %v2789, %v2875
      %v2931 = vadd.f32 %v2790, %v2877
      %v2932 = vadd.f32 %v2791, %v2880
      %v2933 = vadd.f32 %v2792, %v2882
      %v2934 = vadd.f32 %v2793, %v2885
      %v2935 = vadd.f32 %v2794, %v2887
      %v2936 = vadd.f32 %v2795, %v2890
      %v2937 = vadd.f32 %v2796, %v2892
      %v2938 = vadd.f32 %v2797, %v2895
      %v2939 = vadd.f32 %v2798, %v2897
      %v2940 = vadd.f32 %v2799, %v2900
      %v2941 = vadd.f32 %v2800, %v2902
      %v2942 = vadd.f32 %v2801, %v2905
      %v2943 = vadd.f32 %v2802, %v2907
      %v2944 = vadd.f32 %v2803, %v2910
      %v2945 = vadd.f32 %v2804, %v2912
      %v2946 = vpack.c.bf16 %v2914, %v2914
      %v2947 = vpack.c.bf16 %v2915, %v2915
      %v2948 = vpack.c.bf16 %v2916, %v2916
      %v2949 = vpack.c.bf16 %v2917, %v2917
      %v2950 = vpack.c.bf16 %v2918, %v2918
      %v2951 = vpack.c.bf16 %v2919, %v2919
      %v2952 = vpack.c.bf16 %v2920, %v2920
      %v2953 = vpack.c.bf16 %v2921, %v2921
      %v2954 = vpack.c.bf16 %v2922, %v2922
      %v2955 = vpack.c.bf16 %v2923, %v2923
      %v2956 = vpack.c.bf16 %v2924, %v2924
      %v2957 = vpack.c.bf16 %v2925, %v2925
      %v2958 = vpack.c.bf16 %v2926, %v2926
      %v2959 = vpack.c.bf16 %v2927, %v2927
      %v2960 = vpack.c.bf16 %v2928, %v2928
      %v2961 = vpack.c.bf16 %v2929, %v2929
      %v2962 = vpack.c.bf16 %v2930, %v2930
      %v2963 = vpack.c.bf16 %v2931, %v2931
      %v2964 = vpack.c.bf16 %v2932, %v2932
      %v2965 = vpack.c.bf16 %v2933, %v2933
      %v2966 = vpack.c.bf16 %v2934, %v2934
      %v2967 = vpack.c.bf16 %v2935, %v2935
      %v2968 = vpack.c.bf16 %v2936, %v2936
      %v2969 = vpack.c.bf16 %v2937, %v2937
      %v2970 = vpack.c.bf16 %v2938, %v2938
      %v2971 = vpack.c.bf16 %v2939, %v2939
      %v2972 = vpack.c.bf16 %v2940, %v2940
      %v2973 = vpack.c.bf16 %v2941, %v2941
      %v2974 = vpack.c.bf16 %v2942, %v2942
      %v2975 = vpack.c.bf16 %v2943, %v2943
      %v2976 = vpack.c.bf16 %v2944, %v2944
      %v2977 = vpack.c.bf16 %v2945, %v2945
      %2978 = vst [vmem:[%s258] sm:$0xf] %v2946
      %2979 = vst [vmem:[%s258 + $0x4] sm:$0xf] %v2947
      %2980 = vst [vmem:[%s258 + $0x8] sm:$0xf] %v2948
      %2981 = vst [vmem:[%s258 + $0xc] sm:$0xf] %v2949
      %2982 = vst [vmem:[%s258 + $0x10] sm:$0xf] %v2950
      %2983 = vst [vmem:[%s258 + $0x14] sm:$0xf] %v2951
      %2984 = vst [vmem:[%s258 + $0x18] sm:$0xf] %v2952
      %2985 = vst [vmem:[%s258 + $0x1c] sm:$0xf] %v2953
      %2986 = vst [vmem:[%s258 + $0x20] sm:$0xf] %v2954
      %2987 = vst [vmem:[%s258 + $0x24] sm:$0xf] %v2955
      %2988 = vst [vmem:[%s258 + $0x28] sm:$0xf] %v2956
      %2989 = vst [vmem:[%s258 + $0x2c] sm:$0xf] %v2957
      %2990 = vst [vmem:[%s258 + $0x30] sm:$0xf] %v2958
      %2991 = vst [vmem:[%s258 + $0x34] sm:$0xf] %v2959
      %2992 = vst [vmem:[%s258 + $0x38] sm:$0xf] %v2960
      %2993 = vst [vmem:[%s258 + $0x3c] sm:$0xf] %v2961
      %2994 = vst [vmem:[%s258 + $0x40] sm:$0xf] %v2962
      %2995 = vst [vmem:[%s258 + $0x44] sm:$0xf] %v2963
      %2996 = vst [vmem:[%s258 + $0x48] sm:$0xf] %v2964
      %2997 = vst [vmem:[%s258 + $0x4c] sm:$0xf] %v2965
      %2998 = vst [vmem:[%s258 + $0x50] sm:$0xf] %v2966
      %2999 = vst [vmem:[%s258 + $0x54] sm:$0xf] %v2967
      %3000 = vst [vmem:[%s258 + $0x58] sm:$0xf] %v2968
      %3001 = vst [vmem:[%s258 + $0x5c] sm:$0xf] %v2969
      %3002 = vst [vmem:[%s258 + $0x60] sm:$0xf] %v2970
      %3003 = vst [vmem:[%s258 + $0x64] sm:$0xf] %v2971
      %3004 = vst [vmem:[%s258 + $0x68] sm:$0xf] %v2972
      %3005 = vst [vmem:[%s258 + $0x6c] sm:$0xf] %v2973
      %3006 = vst [vmem:[%s258 + $0x70] sm:$0xf] %v2974
      %3007 = vst [vmem:[%s258 + $0x74] sm:$0xf] %v2975
      %3008 = vst [vmem:[%s258 + $0x78] sm:$0xf] %v2976
      %3009 = vst [vmem:[%s258 + $0x7c] sm:$0xf] %v2977
      %v3010 = vadd.f32 %v2914, %v2915
      %v3011 = vadd.f32 %v3010, %v2916
      %v3012 = vadd.f32 %v3011, %v2917
      %v3013 = vadd.f32 %v3012, %v2918
      %v3014 = vadd.f32 %v3013, %v2919
      %v3015 = vadd.f32 %v3014, %v2920
      %v3016 = vadd.f32 %v3015, %v2921
      %v3017 = vadd.f32 %v3016, %v2922
      %v3018 = vadd.f32 %v3017, %v2923
      %v3019 = vadd.f32 %v3018, %v2924
      %v3020 = vadd.f32 %v3019, %v2925
      %v3021 = vadd.f32 %v3020, %v2926
      %v3022 = vadd.f32 %v3021, %v2927
      %v3023 = vadd.f32 %v3022, %v2928
      %v3024 = vadd.f32 %v3023, %v2929
      %v3025 = vadd.f32 %v3024, %v2930
      %v3026 = vadd.f32 %v3025, %v2931
      %v3027 = vadd.f32 %v3026, %v2932
      %v3028 = vadd.f32 %v3027, %v2933
      %v3029 = vadd.f32 %v3028, %v2934
      %v3030 = vadd.f32 %v3029, %v2935
      %v3031 = vadd.f32 %v3030, %v2936
      %v3032 = vadd.f32 %v3031, %v2937
      %v3033 = vadd.f32 %v3032, %v2938
      %v3034 = vadd.f32 %v3033, %v2939
      %v3035 = vadd.f32 %v3034, %v2940
      %v3036 = vadd.f32 %v3035, %v2941
      %v3037 = vadd.f32 %v3036, %v2942
      %v3038 = vadd.f32 %v3037, %v2943
      %v3039 = vadd.f32 %v3038, %v2944
      %v3040 = vadd.f32 %v3039, %v2945
      %v3041 = vrot.slane %v3040, 4
      %v3042 = vadd.f32 %v3040, %v3041
      %v3043 = vrot.slane %v3042, 2
      %v3044 = vadd.f32 %v3042, %v3043
      %v3045 = vrot.slane %v3044, 1
      %v3046 = vadd.f32 %v3044, %v3045
      %v3047 = vmul.f32 %v2914, %v2914
      %v3048 = vmul.f32 %v2915, %v2915
      %v3049 = vmul.f32 %v2916, %v2916
      %v3050 = vmul.f32 %v2917, %v2917
      %v3051 = vmul.f32 %v2918, %v2918
      %v3052 = vmul.f32 %v2919, %v2919
      %v3053 = vmul.f32 %v2920, %v2920
      %v3054 = vmul.f32 %v2921, %v2921
      %v3055 = vmul.f32 %v2922, %v2922
      %v3056 = vmul.f32 %v2923, %v2923
      %v3057 = vmul.f32 %v2924, %v2924
      %v3058 = vmul.f32 %v2925, %v2925
      %v3059 = vmul.f32 %v2926, %v2926
      %v3060 = vmul.f32 %v2927, %v2927
      %v3061 = vmul.f32 %v2928, %v2928
      %v3062 = vmul.f32 %v2929, %v2929
      %v3063 = vmul.f32 %v2930, %v2930
      %v3064 = vmul.f32 %v2931, %v2931
      %v3065 = vmul.f32 %v2932, %v2932
      %v3066 = vmul.f32 %v2933, %v2933
      %v3067 = vmul.f32 %v2934, %v2934
      %v3068 = vmul.f32 %v2935, %v2935
      %v3069 = vmul.f32 %v2936, %v2936
      %v3070 = vmul.f32 %v2937, %v2937
      %v3071 = vmul.f32 %v2938, %v2938
      %v3072 = vmul.f32 %v2939, %v2939
      %v3073 = vmul.f32 %v2940, %v2940
      %v3074 = vmul.f32 %v2941, %v2941
      %v3075 = vmul.f32 %v2942, %v2942
      %v3076 = vmul.f32 %v2943, %v2943
      %v3077 = vmul.f32 %v2944, %v2944
      %v3078 = vmul.f32 %v2945, %v2945
      %v3079 = vadd.f32 %v3047, %v3048
      %v3080 = vadd.f32 %v3079, %v3049
      %v3081 = vadd.f32 %v3080, %v3050
      %v3082 = vadd.f32 %v3081, %v3051
      %v3083 = vadd.f32 %v3082, %v3052
      %v3084 = vadd.f32 %v3083, %v3053
      %v3085 = vadd.f32 %v3084, %v3054
      %v3086 = vadd.f32 %v3085, %v3055
      %v3087 = vadd.f32 %v3086, %v3056
      %v3088 = vadd.f32 %v3087, %v3057
      %v3089 = vadd.f32 %v3088, %v3058
      %v3090 = vadd.f32 %v3089, %v3059
      %v3091 = vadd.f32 %v3090, %v3060
      %v3092 = vadd.f32 %v3091, %v3061
      %v3093 = vadd.f32 %v3092, %v3062
      %v3094 = vadd.f32 %v3093, %v3063
      %v3095 = vadd.f32 %v3094, %v3064
      %v3096 = vadd.f32 %v3095, %v3065
      %v3097 = vadd.f32 %v3096, %v3066
      %v3098 = vadd.f32 %v3097, %v3067
      %v3099 = vadd.f32 %v3098, %v3068
      %v3100 = vadd.f32 %v3099, %v3069
      %v3101 = vadd.f32 %v3100, %v3070
      %v3102 = vadd.f32 %v3101, %v3071
      %v3103 = vadd.f32 %v3102, %v3072
      %v3104 = vadd.f32 %v3103, %v3073
      %v3105 = vadd.f32 %v3104, %v3074
      %v3106 = vadd.f32 %v3105, %v3075
      %v3107 = vadd.f32 %v3106, %v3076
      %v3108 = vadd.f32 %v3107, %v3077
      %v3109 = vadd.f32 %v3108, %v3078
      %v3110 = vrot.slane %v3109, 4
      %v3111 = vadd.f32 %v3109, %v3110
      %v3112 = vrot.slane %v3111, 2
      %v3113 = vadd.f32 %v3111, %v3112
      %v3114 = vrot.slane %v3113, 1
      %v3115 = vadd.f32 %v3113, %v3114
      %vm3116 = vcmask 1040384
      %v3117 = vsel %vm3116, %v3046, %v3115
      %3118 = vst [vmem:[%s266] sm:$0x3] %v3117
      %s3119 = smul.u32 32, %s22
      %p3120 = scmp.lt.s32.totalorder %s21, 1
      %s3121 = scalar_select %p3120, %s21, 1
      %p3122 = scmp.lt.s32.totalorder %s3119, 31
      %s3123 = scalar_select %p3122, %s3119, 31
      %s3124 = smul.addr %s3121, 32
      %s3125 = sadd.s32 %s3123, %s3124
      %s3126 = smul.addr %s3125, 4
      %s3127 = scalar_lea.vmem %s4, %s3126
      %p3128 = scmp.lt.s32.totalorder %s21, 1
      %s3129 = scalar_select %p3128, %s21, 1
      %p3130 = scmp.lt.s32.totalorder %s22, 0
      %s3131 = scalar_select %p3130, %s22, 0
      %s3132 = sadd.s32 %s3131, %s3129
      %s3133 = smul.addr %s3132, 2
      %s3134 = scalar_lea.vmem %s5, %s3133
      // Predicated region
      $region37: #{double_conv.3} parent=35 // pred_check
        %p3135 = pneg %p138
      $region38: #{double_conv.3} parent=35 // pred_check_branch
        %3137 = sbr.rel (%p3135) target = $region40
      $region39: #{double_conv.3} parent=35 // pred_region
        %s3138 = smul.u32 32, %s22
      $region40: #{double_conv.3} parent=35 // pred_fallthru
        _
      // Predicated region
      $region41: #{double_conv.3} parent=35 // pred_check
        %p3139 = pneg %p166
      $region42: #{double_conv.3} parent=35 // pred_check_branch
        %3141 = sbr.rel (%p3139) target = $region44
      $region43: #{double_conv.3} parent=35 // pred_region
        _
      $region44: #{double_conv.3} parent=35 // pred_fallthru
        _
    $region36: #{double_conv.3} parent=5 // pred_fallthru
      _
    %p3142 = scmp.le.s32.totalorder 2, %s12
    // Predicated region
    $region45: #{double_conv.3} parent=5 // pred_check
      %p3143 = pneg %p3142
    $region46: #{double_conv.3} parent=5 // pred_check_branch
      %3145 = sbr.rel (%p3143) target = $region48
    $region47: #{double_conv.3} parent=5 // pred_region
      %s3146 = ssub.s32 %s12, 2
      // Predicated region
      $region49: #{double_conv.3} parent=47 // pred_check
        %p3147 = pneg %p144
      $region50: #{double_conv.3} parent=47 // pred_check_branch
        %3149 = sbr.rel (%p3147) target = $region52
      $region51: #{double_conv.3} parent=47 // pred_region
        %s3150 = smul.u32 32, %s24
        %p3151 = scmp.lt.s32.totalorder %s23, 1
        %s3152 = scalar_select %p3151, %s23, 1
        %p3153 = scmp.lt.s32.totalorder %s3150, 31
        %s3154 = scalar_select %p3153, %s3150, 31
        %s3155 = smul.addr %s3152, 32
        %s3156 = sadd.s32 %s3154, %s3155
        %s3157 = smul.addr %s3156, 4
        %s3158 = scalar_lea.vmem %s4, %s3157
      $region52: #{double_conv.3} parent=47 // pred_fallthru
        _
      // Predicated region
      $region53: #{double_conv.3} parent=47 // pred_check
        %p3159 = pneg %p172
      $region54: #{double_conv.3} parent=47 // pred_check_branch
        %3161 = sbr.rel (%p3159) target = $region56
      $region55: #{double_conv.3} parent=47 // pred_region
        %p3162 = scmp.lt.s32.totalorder %s23, 1
        %s3163 = scalar_select %p3162, %s23, 1
        %p3164 = scmp.lt.s32.totalorder %s24, 0
        %s3165 = scalar_select %p3164, %s24, 0
        %s3166 = sadd.s32 %s3165, %s3163
        %s3167 = smul.addr %s3166, 2
        %s3168 = scalar_lea.vmem %s5, %s3167
      $region56: #{double_conv.3} parent=47 // pred_fallthru
        _
    $region48: #{double_conv.3} parent=5 // pred_fallthru
      _
  $region6: #{double_conv.3} parent=0 // loop_footer
    %s16 = sadd.s32 1, %s12
  $region7: #{double_conv.3} parent=0 // loop_footer_branch
    %11 = sbr.rel target = $region3
  $region8: #{double_conv.3} parent=0 // loop_exit
    _

// kernel: double_conv.4
$region0: #{double_conv.4}
  #allocation0 [shape = 'u32[]', space=smem, size = 0x4, offset = 0x4, fixed_abs, tag = 'smem constant byte address 0x4 - core index']
  #allocation1 [shape = 'u32[72,128]{1,0:T(1,128)}', space=vmem, size = 0x9000, scoped, tag = 'internal scratch']
  #allocation2 [shape = 'bf16[18,18,128]{2,1,0:T(8,128)(2,1)}', space=vmem, size = 0x1b000, scoped, tag = 'scratch operand']
  %s0 = inlined_call_operand.vmem [shape: f32[1,128], index: 0, kind: input, shape index: {}]
  %s1 = inlined_call_operand.vmem [shape: f32[1,128], index: 1, kind: input, shape index: {}]
  %s2 = inlined_call_operand.vmem [shape: bf16[2,16,16,128], index: 2, kind: input, shape index: {}]
  %s3 = inlined_call_operand.vmem [shape: bf16[1152,128], index: 3, kind: input, shape index: {}]
  %s4 = inlined_call_operand.vmem [shape: bf16[2,256,128], index: 4, kind: output, shape index: {0}]
  %s5 = inlined_call_operand.vmem [shape: f32[2,1,2,128], index: 5, kind: output, shape index: {1}]
  %6 = xla_tuple %s4, %s5
  %s7 = sld [smem:[#allocation0]]
  $region57: #{double_conv.4} parent=0
    _
  %s9 = ssub.s32 1, %s7
  %s10 = scalar_select 0, %s9, %s7
  loop: start=0, step=1, limit=4
  $region2: #{double_conv.4} parent=0 // loop_pre_header
    _
  $region3: #{double_conv.4} parent=0 // loop_header
    %s12 = sphi 0, %s16
    %p13 = scmp.ge.s32.totalorder %s12, 4
    %s19 = sphi 0, %s31
    %s20 = sphi 0, %s27
    %s21 = sphi 0, %s19
    %s22 = sphi 0, %s20
    %s23 = sphi 0, %s21
    %s24 = sphi 0, %s22
    %s32 = sphi 0, %s32
    %s34 = sphi 0, %s32
    %s35 = sphi 0, %s34
    %s49 = sphi 0, %s35
    %s53 = sphi 0, %s53
    %s55 = sphi 0, %s53
    %s56 = sphi 0, %s55
    %s70 = sphi 0, %s56
    %s76 = sphi 0, %s78
    %s79 = sphi 0, %s76
    %s80 = sphi 0, %s79
    %s96 = sphi 0, %s80
    %s100 = sphi 0, %s100
    %s102 = sphi 0, %s100
    %s103 = sphi 0, %s102
    %s117 = sphi 0, %s103
    %s125 = sphi 0, %s127
    %s128 = sphi 0, %s125
    %s129 = sphi 0, %s128
    %s145 = sphi 0, %s129
    %s153 = sphi 0, %s155
    %s156 = sphi 0, %s153
    %s157 = sphi 0, %s156
    %s173 = sphi 0, %s157
  $region4: #{double_conv.4} parent=0 // loop_header_branch
    %15 = sbr.rel (%p13) target = $region8
  $region5: #{double_conv.4} parent=0 // loop_body
    %s17 = ssub.s32 %s12, 1
    %s18 = ssub.s32 %s12, 2
    %s25 = sadd.s32 1, %s20
    %p26 = scmp.ge.s32.totalorder %s25, 1
    %s27 = scalar_select %p26, 0, %s25
    %s28 = sadd.s32 1, %s19
    %s29 = scalar_select %p26, %s28, %s19
    %p30 = scmp.ge.s32.totalorder %s29, 2
    %s31 = scalar_select %p30, 0, %s29
    %s33 = sadd.s32 %s32, 1
    %p36 = scmp.eq.s32.totalorder %s12, 1
    %p37 = scmp.ne.s32.totalorder %s32, %s34
    %p38 = scmp.eq.s32.totalorder %s12, 0
    %p39 = por %p37, %p38
    %p40 = scmp.ne.s32.totalorder %s32, %s34
    %p41 = scmp.eq.s32.totalorder %s17, 1
    %p42 = por %p40, %p41
    %p43 = scmp.ne.s32.totalorder %s34, %s35
    %p44 = scmp.eq.s32.totalorder %s17, 0
    %p45 = por %p43, %p44
    %p46 = scmp.ne.s32.totalorder %s34, %s35
    %p47 = scmp.eq.s32.totalorder %s18, 1
    %p48 = por %p46, %p47
    %p50 = scmp.ne.s32.totalorder %s35, %s49
    %p51 = scmp.eq.s32.totalorder %s18, 0
    %p52 = por %p50, %p51
    %s54 = sadd.s32 %s53, 1
    %p57 = scmp.eq.s32.totalorder %s12, 1
    %p58 = scmp.ne.s32.totalorder %s53, %s55
    %p59 = scmp.eq.s32.totalorder %s12, 0
    %p60 = por %p58, %p59
    %p61 = scmp.ne.s32.totalorder %s53, %s55
    %p62 = scmp.eq.s32.totalorder %s17, 1
    %p63 = por %p61, %p62
    %p64 = scmp.ne.s32.totalorder %s55, %s56
    %p65 = scmp.eq.s32.totalorder %s17, 0
    %p66 = por %p64, %p65
    %p67 = scmp.ne.s32.totalorder %s55, %s56
    %p68 = scmp.eq.s32.totalorder %s18, 1
    %p69 = por %p67, %p68
    %p71 = scmp.ne.s32.totalorder %s56, %s70
    %p72 = scmp.eq.s32.totalorder %s18, 0
    %p73 = por %p71, %p72
    %s74 = ssub.s32 %s19, %s31
    %p75 = scmp.eq.s32.totalorder %s74, 0
    %s77 = sadd.s32 %s76, 1
    %s78 = scalar_select %p75, %s76, %s77
    %p81 = pneg %p75
    %p82 = scmp.eq.s32.totalorder %s12, 1
    %p83 = por %p81, %p82
    %p84 = scmp.ne.s32.totalorder %s76, %s79
    %p85 = scmp.eq.s32.totalorder %s12, 0
    %p86 = por %p84, %p85
    %p87 = scmp.ne.s32.totalorder %s76, %s79
    %p88 = scmp.eq.s32.totalorder %s17, 1
    %p89 = por %p87, %p88
    %p90 = scmp.ne.s32.totalorder %s79, %s80
    %p91 = scmp.eq.s32.totalorder %s17, 0
    %p92 = por %p90, %p91
    %p93 = scmp.ne.s32.totalorder %s79, %s80
    %p94 = scmp.eq.s32.totalorder %s18, 1
    %p95 = por %p93, %p94
    %p97 = scmp.ne.s32.totalorder %s80, %s96
    %p98 = scmp.eq.s32.totalorder %s18, 0
    %p99 = por %p97, %p98
    %s101 = sadd.s32 %s100, 1
    %p104 = scmp.eq.s32.totalorder %s12, 1
    %p105 = scmp.ne.s32.totalorder %s100, %s102
    %p106 = scmp.eq.s32.totalorder %s12, 0
    %p107 = por %p105, %p106
    %p108 = scmp.ne.s32.totalorder %s100, %s102
    %p109 = scmp.eq.s32.totalorder %s17, 1
    %p110 = por %p108, %p109
    %p111 = scmp.ne.s32.totalorder %s102, %s103
    %p112 = scmp.eq.s32.totalorder %s17, 0
    %p113 = por %p111, %p112
    %p114 = scmp.ne.s32.totalorder %s102, %s103
    %p115 = scmp.eq.s32.totalorder %s18, 1
    %p116 = por %p114, %p115
    %p118 = scmp.ne.s32.totalorder %s103, %s117
    %p119 = scmp.eq.s32.totalorder %s18, 0
    %p120 = por %p118, %p119
    %s121 = ssub.s32 %s19, %s31
    %s122 = ssub.s32 %s20, %s27
    %s123 = sor.u32 %s121, %s122
    %p124 = scmp.eq.s32.totalorder %s123, 0
    %s126 = sadd.s32 %s125, 1
    %s127 = scalar_select %p124, %s125, %s126
    %p130 = pneg %p124
    %p131 = scmp.eq.s32.totalorder %s12, 1
    %p132 = por %p130, %p131
    %p133 = scmp.ne.s32.totalorder %s125, %s128
    %p134 = scmp.eq.s32.totalorder %s12, 0
    %p135 = por %p133, %p134
    %p136 = scmp.ne.s32.totalorder %s125, %s128
    %p137 = scmp.eq.s32.totalorder %s17, 1
    %p138 = por %p136, %p137
    %p139 = scmp.ne.s32.totalorder %s128, %s129
    %p140 = scmp.eq.s32.totalorder %s17, 0
    %p141 = por %p139, %p140
    %p142 = scmp.ne.s32.totalorder %s128, %s129
    %p143 = scmp.eq.s32.totalorder %s18, 1
    %p144 = por %p142, %p143
    %p146 = scmp.ne.s32.totalorder %s129, %s145
    %p147 = scmp.eq.s32.totalorder %s18, 0
    %p148 = por %p146, %p147
    %s149 = ssub.s32 %s19, %s31
    %s150 = ssub.s32 %s20, %s27
    %s151 = sor.u32 %s149, %s150
    %p152 = scmp.eq.s32.totalorder %s151, 0
    %s154 = sadd.s32 %s153, 1
    %s155 = scalar_select %p152, %s153, %s154
    %p158 = pneg %p152
    %p159 = scmp.eq.s32.totalorder %s12, 1
    %p160 = por %p158, %p159
    %p161 = scmp.ne.s32.totalorder %s153, %s156
    %p162 = scmp.eq.s32.totalorder %s12, 0
    %p163 = por %p161, %p162
    %p164 = scmp.ne.s32.totalorder %s153, %s156
    %p165 = scmp.eq.s32.totalorder %s17, 1
    %p166 = por %p164, %p165
    %p167 = scmp.ne.s32.totalorder %s156, %s157
    %p168 = scmp.eq.s32.totalorder %s17, 0
    %p169 = por %p167, %p168
    %p170 = scmp.ne.s32.totalorder %s156, %s157
    %p171 = scmp.eq.s32.totalorder %s18, 1
    %p172 = por %p170, %p171
    %p174 = scmp.ne.s32.totalorder %s157, %s173
    %p175 = scmp.eq.s32.totalorder %s18, 0
    %p176 = por %p174, %p175
    %p177 = scmp.le.s32.totalorder 1, %s12
    %p178 = scmp.lt.s32.totalorder %s12, 3
    %p179 = pnand %p177, %p178
    %p180 = pneg %p179
    // Predicated region
    $region9: #{double_conv.4} parent=5 // pred_check
      _
    $region10: #{double_conv.4} parent=5 // pred_check_branch
      %182 = sbr.rel (%p179) target = $region12
    $region11: #{double_conv.4} parent=5 // pred_region
      %s183 = ssub.s32 %s12, 1
      // Predicated region
      $region13: #{double_conv.4} parent=11 // pred_check
        %p184 = pneg %p45
      $region14: #{double_conv.4} parent=11 // pred_check_branch
        %186 = sbr.rel (%p184) target = $region16
      $region15: #{double_conv.4} parent=11 // pred_region
        _
      $region16: #{double_conv.4} parent=11 // pred_fallthru
        _
      // Predicated region
      $region17: #{double_conv.4} parent=11 // pred_check
        %p187 = pneg %p66
      $region18: #{double_conv.4} parent=11 // pred_check_branch
        %189 = sbr.rel (%p187) target = $region20
      $region19: #{double_conv.4} parent=11 // pred_region
        _
      $region20: #{double_conv.4} parent=11 // pred_fallthru
        _
      // Predicated region
      $region21: #{double_conv.4} parent=11 // pred_check
        %p190 = pneg %p113
      $region22: #{double_conv.4} parent=11 // pred_check_branch
        %192 = sbr.rel (%p190) target = $region24
      $region23: #{double_conv.4} parent=11 // pred_region
        _
      $region24: #{double_conv.4} parent=11 // pred_fallthru
        _
    $region12: #{double_conv.4} parent=5 // pred_fallthru
      _
    %p193 = scmp.lt.s32.totalorder %s12, 2
    // Predicated region
    $region25: #{double_conv.4} parent=5 // pred_check
      %p194 = pneg %p193
    $region26: #{double_conv.4} parent=5 // pred_check_branch
      %196 = sbr.rel (%p194) target = $region28
    $region27: #{double_conv.4} parent=5 // pred_region
      // Predicated region
      $region29: #{double_conv.4} parent=27 // pred_check
        %p197 = pneg %p86
      $region30: #{double_conv.4} parent=27 // pred_check_branch
        %199 = sbr.rel (%p197) target = $region32
      $region31: #{double_conv.4} parent=27 // pred_region
        %p200 = scmp.lt.s32.totalorder %s19, 1
        %s201 = scalar_select %p200, %s19, 1
        %s202 = smul.addr %s201, 32
        %s203 = smul.addr %s202, 4
        %s204 = scalar_lea.vmem %s2, %s203
      $region32: #{double_conv.4} parent=27 // pred_fallthru
        _
    $region28: #{double_conv.4} parent=5 // pred_fallthru
      _
    %p205 = scmp.le.s32.totalorder 1, %s12
    %p206 = scmp.lt.s32.totalorder %s12, 3
    %p207 = pnand %p205, %p206
    %p208 = pneg %p207
    // Predicated region
    $region33: #{double_conv.4} parent=5 // pred_check
      _
    $region34: #{double_conv.4} parent=5 // pred_check_branch
      %210 = sbr.rel (%p207) target = $region36
    $region35: #{double_conv.4} parent=5 // pred_region
      %s211 = ssub.s32 %s12, 1
      %p212 = pneg %p45
      %p213 = pneg %p42
      %p214 = pneg %p66
      %p215 = pneg %p63
      %p216 = scmp.lt.s32.totalorder %s21, 1
      %s217 = scalar_select %p216, %s21, 1
      %s218 = smul.addr %s217, 32
      %s219 = smul.addr %s218, 4
      %s220 = scalar_lea.vmem %s2, %s219
      %p221 = pneg %p92
      %p222 = pneg %p89
      %p223 = pneg %p113
      %p224 = pneg %p110
      %p225 = pneg %p141
      %p226 = pneg %p138
      %s227 = smul.u32 32, %s22
      %p228 = scmp.lt.s32.totalorder %s21, 1
      %s229 = scalar_select %p228, %s21, 1
      %p230 = scmp.lt.s32.totalorder %s227, 31
      %s231 = scalar_select %p230, %s227, 31
      %s232 = smul.addr %s229, 32
      %s233 = sadd.s32 %s231, %s232
      %s234 = smul.addr %s233, 4
      %s235 = scalar_lea.vmem %s4, %s234
      %p236 = pneg %p169
      %p237 = pneg %p166
      %p238 = scmp.lt.s32.totalorder %s21, 1
      %s239 = scalar_select %p238, %s21, 1
      %p240 = scmp.lt.s32.totalorder %s22, 0
      %s241 = scalar_select %p240, %s22, 0
      %s242 = sadd.s32 %s241, %s239
      %s243 = smul.addr %s242, 2
      %s244 = scalar_lea.vmem %s5, %s243
      %p245 = scmp.lt.s32.totalorder %s21, 1
      %s246 = scalar_select %p245, %s21, 1
      %s247 = smul.addr %s246, 32
      %s248 = smul.addr %s247, 4
      %s249 = scalar_lea.vmem %s2, %s248
      %s250 = smul.u32 32, %s22
      %p251 = scmp.lt.s32.totalorder %s21, 1
      %s252 = scalar_select %p251, %s21, 1
      %p253 = scmp.lt.s32.totalorder %s250, 31
      %s254 = scalar_select %p253, %s250, 31
      %s255 = smul.addr %s252, 32
      %s256 = sadd.s32 %s254, %s255
      %s257 = smul.addr %s256, 4
      %s258 = scalar_lea.vmem %s4, %s257
      %s259 = smul.u32 32, %s22
      %p260 = scmp.lt.s32.totalorder %s21, 1
      %s261 = scalar_select %p260, %s21, 1
      %p262 = scmp.lt.s32.totalorder %s22, 0
      %s263 = scalar_select %p262, %s22, 0
      %s264 = sadd.s32 %s263, %s261
      %s265 = smul.addr %s264, 2
      %s266 = scalar_lea.vmem %s5, %s265
      %268 = vst [vmem:[#allocation2] sm:$0xf] 0
      %269 = vst [vmem:[#allocation2 + $0x4] sm:$0xf] 0
      %270 = vst [vmem:[#allocation2 + $0x8] sm:$0x1] 0
      %271 = vst [vmem:[#allocation2 + $0xc] sm:$0xf] 0
      %272 = vst [vmem:[#allocation2 + $0x10] sm:$0xf] 0
      %273 = vst [vmem:[#allocation2 + $0x14] sm:$0x1] 0
      %274 = vst [vmem:[#allocation2 + $0x18] sm:$0xf] 0
      %275 = vst [vmem:[#allocation2 + $0x1c] sm:$0xf] 0
      %276 = vst [vmem:[#allocation2 + $0x20] sm:$0x1] 0
      %277 = vst [vmem:[#allocation2 + $0x24] sm:$0xf] 0
      %278 = vst [vmem:[#allocation2 + $0x28] sm:$0xf] 0
      %279 = vst [vmem:[#allocation2 + $0x2c] sm:$0x1] 0
      %280 = vst [vmem:[#allocation2 + $0x30] sm:$0xf] 0
      %281 = vst [vmem:[#allocation2 + $0x34] sm:$0xf] 0
      %282 = vst [vmem:[#allocation2 + $0x38] sm:$0x1] 0
      %283 = vst [vmem:[#allocation2 + $0x3c] sm:$0xf] 0
      %284 = vst [vmem:[#allocation2 + $0x40] sm:$0xf] 0
      %285 = vst [vmem:[#allocation2 + $0x44] sm:$0x1] 0
      %286 = vst [vmem:[#allocation2 + $0x48] sm:$0xf] 0
      %287 = vst [vmem:[#allocation2 + $0x4c] sm:$0xf] 0
      %288 = vst [vmem:[#allocation2 + $0x50] sm:$0x1] 0
      %289 = vst [vmem:[#allocation2 + $0x54] sm:$0xf] 0
      %290 = vst [vmem:[#allocation2 + $0x58] sm:$0xf] 0
      %291 = vst [vmem:[#allocation2 + $0x5c] sm:$0x1] 0
      %292 = vst [vmem:[#allocation2 + $0x60] sm:$0xf] 0
      %293 = vst [vmem:[#allocation2 + $0x64] sm:$0xf] 0
      %294 = vst [vmem:[#allocation2 + $0x68] sm:$0x1] 0
      %295 = vst [vmem:[#allocation2 + $0x6c] sm:$0xf] 0
      %296 = vst [vmem:[#allocation2 + $0x70] sm:$0xf] 0
      %297 = vst [vmem:[#allocation2 + $0x74] sm:$0x1] 0
      %298 = vst [vmem:[#allocation2 + $0x78] sm:$0xf] 0
      %299 = vst [vmem:[#allocation2 + $0x7c] sm:$0xf] 0
      %300 = vst [vmem:[#allocation2 + $0x80] sm:$0x1] 0
      %301 = vst [vmem:[#allocation2 + $0x84] sm:$0xf] 0
      %302 = vst [vmem:[#allocation2 + $0x88] sm:$0xf] 0
      %303 = vst [vmem:[#allocation2 + $0x8c] sm:$0x1] 0
      %304 = vst [vmem:[#allocation2 + $0x90] sm:$0xf] 0
      %305 = vst [vmem:[#allocation2 + $0x94] sm:$0xf] 0
      %306 = vst [vmem:[#allocation2 + $0x98] sm:$0x1] 0
      %307 = vst [vmem:[#allocation2 + $0x9c] sm:$0xf] 0
      %308 = vst [vmem:[#allocation2 + $0xa0] sm:$0xf] 0
      %309 = vst [vmem:[#allocation2 + $0xa4] sm:$0x1] 0
      %310 = vst [vmem:[#allocation2 + $0xa8] sm:$0xf] 0
      %311 = vst [vmem:[#allocation2 + $0xac] sm:$0xf] 0
      %312 = vst [vmem:[#allocation2 + $0xb0] sm:$0x1] 0
      %313 = vst [vmem:[#allocation2 + $0xb4] sm:$0xf] 0
      %314 = vst [vmem:[#allocation2 + $0xb8] sm:$0xf] 0
      %315 = vst [vmem:[#allocation2 + $0xbc] sm:$0x1] 0
      %316 = vst [vmem:[#allocation2 + $0xc0] sm:$0xf] 0
      %317 = vst [vmem:[#allocation2 + $0xc4] sm:$0xf] 0
      %318 = vst [vmem:[#allocation2 + $0xc8] sm:$0x1] 0
      %319 = vst [vmem:[#allocation2 + $0xcc] sm:$0xf] 0
      %320 = vst [vmem:[#allocation2 + $0xd0] sm:$0xf] 0
      %321 = vst [vmem:[#allocation2 + $0xd4] sm:$0x1] 0
      %v322 = vld [vmem:[%s249] sm:$0xf]
      %v323 = vld [vmem:[%s249 + $0x4] sm:$0xf]
      %v324 = vld [vmem:[%s249 + $0x8] sm:$0xf]
      %v325 = vld [vmem:[%s249 + $0xc] sm:$0xf]
      %v326 = vld [vmem:[%s249 + $0x10] sm:$0xf]
      %v327 = vld [vmem:[%s249 + $0x14] sm:$0xf]
      %v328 = vld [vmem:[%s249 + $0x18] sm:$0xf]
      %v329 = vld [vmem:[%s249 + $0x1c] sm:$0xf]
      %v330 = vld [vmem:[%s249 + $0x20] sm:$0xf]
      %v331 = vld [vmem:[%s249 + $0x24] sm:$0xf]
      %v332 = vld [vmem:[%s249 + $0x28] sm:$0xf]
      %v333 = vld [vmem:[%s249 + $0x2c] sm:$0xf]
      %v334 = vld [vmem:[%s249 + $0x30] sm:$0xf]
      %v335 = vld [vmem:[%s249 + $0x34] sm:$0xf]
      %v336 = vld [vmem:[%s249 + $0x38] sm:$0xf]
      %v337 = vld [vmem:[%s249 + $0x3c] sm:$0xf]
      %v338 = vld [vmem:[%s249 + $0x40] sm:$0xf]
      %v339 = vld [vmem:[%s249 + $0x44] sm:$0xf]
      %v340 = vld [vmem:[%s249 + $0x48] sm:$0xf]
      %v341 = vld [vmem:[%s249 + $0x4c] sm:$0xf]
      %v342 = vld [vmem:[%s249 + $0x50] sm:$0xf]
      %v343 = vld [vmem:[%s249 + $0x54] sm:$0xf]
      %v344 = vld [vmem:[%s249 + $0x58] sm:$0xf]
      %v345 = vld [vmem:[%s249 + $0x5c] sm:$0xf]
      %v346 = vld [vmem:[%s249 + $0x60] sm:$0xf]
      %v347 = vld [vmem:[%s249 + $0x64] sm:$0xf]
      %v348 = vld [vmem:[%s249 + $0x68] sm:$0xf]
      %v349 = vld [vmem:[%s249 + $0x6c] sm:$0xf]
      %v350 = vld [vmem:[%s249 + $0x70] sm:$0xf]
      %v351 = vld [vmem:[%s249 + $0x74] sm:$0xf]
      %v352 = vld [vmem:[%s249 + $0x78] sm:$0xf]
      %v353 = vld [vmem:[%s249 + $0x7c] sm:$0xf]
      %v354 = vunpack.c.l.bf16 %v322
      %v355 = vunpack.c.l.bf16 %v323
      %v356 = vunpack.c.l.bf16 %v324
      %v357 = vunpack.c.l.bf16 %v325
      %v358 = vunpack.c.l.bf16 %v326
      %v359 = vunpack.c.l.bf16 %v327
      %v360 = vunpack.c.l.bf16 %v328
      %v361 = vunpack.c.l.bf16 %v329
      %v362 = vunpack.c.l.bf16 %v330
      %v363 = vunpack.c.l.bf16 %v331
      %v364 = vunpack.c.l.bf16 %v332
      %v365 = vunpack.c.l.bf16 %v333
      %v366 = vunpack.c.l.bf16 %v334
      %v367 = vunpack.c.l.bf16 %v335
      %v368 = vunpack.c.l.bf16 %v336
      %v369 = vunpack.c.l.bf16 %v337
      %v370 = vunpack.c.l.bf16 %v338
      %v371 = vunpack.c.l.bf16 %v339
      %v372 = vunpack.c.l.bf16 %v340
      %v373 = vunpack.c.l.bf16 %v341
      %v374 = vunpack.c.l.bf16 %v342
      %v375 = vunpack.c.l.bf16 %v343
      %v376 = vunpack.c.l.bf16 %v344
      %v377 = vunpack.c.l.bf16 %v345
      %v378 = vunpack.c.l.bf16 %v346
      %v379 = vunpack.c.l.bf16 %v347
      %v380 = vunpack.c.l.bf16 %v348
      %v381 = vunpack.c.l.bf16 %v349
      %v382 = vunpack.c.l.bf16 %v350
      %v383 = vunpack.c.l.bf16 %v351
      %v384 = vunpack.c.l.bf16 %v352
      %v385 = vunpack.c.l.bf16 %v353
      %v386 = vld [vmem:[%s0] sm:$0x1]
      %v388 = vperm.slane %v386, 0
      %v390 = vmul.f32 %v354, %v388
      %v391 = vmul.f32 %v355, %v388
      %v392 = vmul.f32 %v356, %v388
      %v393 = vmul.f32 %v357, %v388
      %v394 = vmul.f32 %v358, %v388
      %v395 = vmul.f32 %v359, %v388
      %v396 = vmul.f32 %v360, %v388
      %v397 = vmul.f32 %v361, %v388
      %v398 = vmul.f32 %v362, %v388
      %v399 = vmul.f32 %v363, %v388
      %v400 = vmul.f32 %v364, %v388
      %v401 = vmul.f32 %v365, %v388
      %v402 = vmul.f32 %v366, %v388
      %v403 = vmul.f32 %v367, %v388
      %v404 = vmul.f32 %v368, %v388
      %v405 = vmul.f32 %v369, %v388
      %v406 = vmul.f32 %v370, %v388
      %v407 = vmul.f32 %v371, %v388
      %v408 = vmul.f32 %v372, %v388
      %v409 = vmul.f32 %v373, %v388
      %v410 = vmul.f32 %v374, %v388
      %v411 = vmul.f32 %v375, %v388
      %v412 = vmul.f32 %v376, %v388
      %v413 = vmul.f32 %v377, %v388
      %v414 = vmul.f32 %v378, %v388
      %v415 = vmul.f32 %v379, %v388
      %v416 = vmul.f32 %v380, %v388
      %v417 = vmul.f32 %v381, %v388
      %v418 = vmul.f32 %v382, %v388
      %v419 = vmul.f32 %v383, %v388
      %v420 = vmul.f32 %v384, %v388
      %v421 = vmul.f32 %v385, %v388
      %v422 = vld [vmem:[%s1] sm:$0x1]
      %v424 = vperm.slane %v422, 0
      %v426 = vadd.f32 %v390, %v424
      %v427 = vadd.f32 %v391, %v424
      %v428 = vadd.f32 %v392, %v424
      %v429 = vadd.f32 %v393, %v424
      %v430 = vadd.f32 %v394, %v424
      %v431 = vadd.f32 %v395, %v424
      %v432 = vadd.f32 %v396, %v424
      %v433 = vadd.f32 %v397, %v424
      %v434 = vadd.f32 %v398, %v424
      %v435 = vadd.f32 %v399, %v424
      %v436 = vadd.f32 %v400, %v424
      %v437 = vadd.f32 %v401, %v424
      %v438 = vadd.f32 %v402, %v424
      %v439 = vadd.f32 %v403, %v424
      %v440 = vadd.f32 %v404, %v424
      %v441 = vadd.f32 %v405, %v424
      %v442 = vadd.f32 %v406, %v424
      %v443 = vadd.f32 %v407, %v424
      %v444 = vadd.f32 %v408, %v424
      %v445 = vadd.f32 %v409, %v424
      %v446 = vadd.f32 %v410, %v424
      %v447 = vadd.f32 %v411, %v424
      %v448 = vadd.f32 %v412, %v424
      %v449 = vadd.f32 %v413, %v424
      %v450 = vadd.f32 %v414, %v424
      %v451 = vadd.f32 %v415, %v424
      %v452 = vadd.f32 %v416, %v424
      %v453 = vadd.f32 %v417, %v424
      %v454 = vadd.f32 %v418, %v424
      %v455 = vadd.f32 %v419, %v424
      %v456 = vadd.f32 %v420, %v424
      %v457 = vadd.f32 %v421, %v424
      %v458 = vmax.f32 %v426, 0.0
      %v459 = vmax.f32 %v427, 0.0
      %v460 = vmax.f32 %v428, 0.0
      %v461 = vmax.f32 %v429, 0.0
      %v462 = vmax.f32 %v430, 0.0
      %v463 = vmax.f32 %v431, 0.0
      %v464 = vmax.f32 %v432, 0.0
      %v465 = vmax.f32 %v433, 0.0
      %v466 = vmax.f32 %v434, 0.0
      %v467 = vmax.f32 %v435, 0.0
      %v468 = vmax.f32 %v436, 0.0
      %v469 = vmax.f32 %v437, 0.0
      %v470 = vmax.f32 %v438, 0.0
      %v471 = vmax.f32 %v439, 0.0
      %v472 = vmax.f32 %v440, 0.0
      %v473 = vmax.f32 %v441, 0.0
      %v474 = vmax.f32 %v442, 0.0
      %v475 = vmax.f32 %v443, 0.0
      %v476 = vmax.f32 %v444, 0.0
      %v477 = vmax.f32 %v445, 0.0
      %v478 = vmax.f32 %v446, 0.0
      %v479 = vmax.f32 %v447, 0.0
      %v480 = vmax.f32 %v448, 0.0
      %v481 = vmax.f32 %v449, 0.0
      %v482 = vmax.f32 %v450, 0.0
      %v483 = vmax.f32 %v451, 0.0
      %v484 = vmax.f32 %v452, 0.0
      %v485 = vmax.f32 %v453, 0.0
      %v486 = vmax.f32 %v454, 0.0
      %v487 = vmax.f32 %v455, 0.0
      %v488 = vmax.f32 %v456, 0.0
      %v489 = vmax.f32 %v457, 0.0
      %v490 = vpack.c.bf16 %v458, %v458
      %v491 = vpack.c.bf16 %v459, %v459
      %v492 = vpack.c.bf16 %v460, %v460
      %v493 = vpack.c.bf16 %v461, %v461
      %v494 = vpack.c.bf16 %v462, %v462
      %v495 = vpack.c.bf16 %v463, %v463
      %v496 = vpack.c.bf16 %v464, %v464
      %v497 = vpack.c.bf16 %v465, %v465
      %v498 = vpack.c.bf16 %v466, %v466
      %v499 = vpack.c.bf16 %v467, %v467
      %v500 = vpack.c.bf16 %v468, %v468
      %v501 = vpack.c.bf16 %v469, %v469
      %v502 = vpack.c.bf16 %v470, %v470
      %v503 = vpack.c.bf16 %v471, %v471
      %v504 = vpack.c.bf16 %v472, %v472
      %v505 = vpack.c.bf16 %v473, %v473
      %v506 = vpack.c.bf16 %v474, %v474
      %v507 = vpack.c.bf16 %v475, %v475
      %v508 = vpack.c.bf16 %v476, %v476
      %v509 = vpack.c.bf16 %v477, %v477
      %v510 = vpack.c.bf16 %v478, %v478
      %v511 = vpack.c.bf16 %v479, %v479
      %v512 = vpack.c.bf16 %v480, %v480
      %v513 = vpack.c.bf16 %v481, %v481
      %v514 = vpack.c.bf16 %v482, %v482
      %v515 = vpack.c.bf16 %v483, %v483
      %v516 = vpack.c.bf16 %v484, %v484
      %v517 = vpack.c.bf16 %v485, %v485
      %v518 = vpack.c.bf16 %v486, %v486
      %v519 = vpack.c.bf16 %v487, %v487
      %v520 = vpack.c.bf16 %v488, %v488
      %v521 = vpack.c.bf16 %v489, %v489
      %vm522 = vsmask.f32 256
      %vm523 = vsmask.f32 4368
      %vm524 = vmor %vm522, %vm523
      %v526 = vshrl.u32 %v490, 16
      %v528 = vrot.slane %v526, 7
      %v529 = vshll.u32 %v490, 16
      %v531 = vor.u32 %v528, %v529
      %v532 = vrot.slane %v528, 4
      %v534 = vshrl.u32 %v491, 16
      %v536 = vrot.slane %v534, 7
      %v537 = vshll.u32 %v491, 16
      %v539 = vor.u32 %v536, %v537
      %v540 = vsel %vm524, %v532, %v539
      %v541 = vrot.slane %v536, 4
      %v543 = vshrl.u32 %v492, 16
      %v545 = vrot.slane %v543, 7
      %v546 = vshll.u32 %v492, 16
      %v548 = vor.u32 %v545, %v546
      %v549 = vrot.slane %v545, 4
      %v551 = vshrl.u32 %v493, 16
      %v553 = vrot.slane %v551, 7
      %v554 = vshll.u32 %v493, 16
      %v556 = vor.u32 %v553, %v554
      %v557 = vsel %vm524, %v549, %v556
      %v558 = vrot.slane %v553, 4
      %v560 = vshrl.u32 %v494, 16
      %v562 = vrot.slane %v560, 7
      %v563 = vshll.u32 %v494, 16
      %v565 = vor.u32 %v562, %v563
      %v566 = vrot.slane %v562, 4
      %v568 = vshrl.u32 %v495, 16
      %v570 = vrot.slane %v568, 7
      %v571 = vshll.u32 %v495, 16
      %v573 = vor.u32 %v570, %v571
      %v574 = vsel %vm524, %v566, %v573
      %v575 = vrot.slane %v570, 4
      %v577 = vshrl.u32 %v496, 16
      %v579 = vrot.slane %v577, 7
      %v580 = vshll.u32 %v496, 16
      %v582 = vor.u32 %v579, %v580
      %v583 = vrot.slane %v579, 4
      %v585 = vshrl.u32 %v497, 16
      %v587 = vrot.slane %v585, 7
      %v588 = vshll.u32 %v497, 16
      %v590 = vor.u32 %v587, %v588
      %v591 = vsel %vm524, %v583, %v590
      %v592 = vrot.slane %v587, 4
      %v594 = vshrl.u32 %v498, 16
      %v596 = vrot.slane %v594, 7
      %v597 = vshll.u32 %v498, 16
      %v599 = vor.u32 %v596, %v597
      %v600 = vrot.slane %v596, 4
      %v602 = vshrl.u32 %v499, 16
      %v604 = vrot.slane %v602, 7
      %v605 = vshll.u32 %v499, 16
      %v607 = vor.u32 %v604, %v605
      %v608 = vsel %vm524, %v600, %v607
      %v609 = vrot.slane %v604, 4
      %v611 = vshrl.u32 %v500, 16
      %v613 = vrot.slane %v611, 7
      %v614 = vshll.u32 %v500, 16
      %v616 = vor.u32 %v613, %v614
      %v617 = vrot.slane %v613, 4
      %v619 = vshrl.u32 %v501, 16
      %v621 = vrot.slane %v619, 7
      %v622 = vshll.u32 %v501, 16
      %v624 = vor.u32 %v621, %v622
      %v625 = vsel %vm524, %v617, %v624
      %v626 = vrot.slane %v621, 4
      %v628 = vshrl.u32 %v502, 16
      %v630 = vrot.slane %v628, 7
      %v631 = vshll.u32 %v502, 16
      %v633 = vor.u32 %v630, %v631
      %v634 = vrot.slane %v630, 4
      %v636 = vshrl.u32 %v503, 16
      %v638 = vrot.slane %v636, 7
      %v639 = vshll.u32 %v503, 16
      %v641 = vor.u32 %v638, %v639
      %v642 = vsel %vm524, %v634, %v641
      %v643 = vrot.slane %v638, 4
      %v645 = vshrl.u32 %v504, 16
      %v647 = vrot.slane %v645, 7
      %v648 = vshll.u32 %v504, 16
      %v650 = vor.u32 %v647, %v648
      %v651 = vrot.slane %v647, 4
      %v653 = vshrl.u32 %v505, 16
      %v655 = vrot.slane %v653, 7
      %v656 = vshll.u32 %v505, 16
      %v658 = vor.u32 %v655, %v656
      %v659 = vsel %vm524, %v651, %v658
      %v660 = vrot.slane %v655, 4
      %v662 = vshrl.u32 %v506, 16
      %v664 = vrot.slane %v662, 7
      %v665 = vshll.u32 %v506, 16
      %v667 = vor.u32 %v664, %v665
      %v668 = vrot.slane %v664, 4
      %v670 = vshrl.u32 %v507, 16
      %v672 = vrot.slane %v670, 7
      %v673 = vshll.u32 %v507, 16
      %v675 = vor.u32 %v672, %v673
      %v676 = vsel %vm524, %v668, %v675
      %v677 = vrot.slane %v672, 4
      %v679 = vshrl.u32 %v508, 16
      %v681 = vrot.slane %v679, 7
      %v682 = vshll.u32 %v508, 16
      %v684 = vor.u32 %v681, %v682
      %v685 = vrot.slane %v681, 4
      %v687 = vshrl.u32 %v509, 16
      %v689 = vrot.slane %v687, 7
      %v690 = vshll.u32 %v509, 16
      %v692 = vor.u32 %v689, %v690
      %v693 = vsel %vm524, %v685, %v692
      %v694 = vrot.slane %v689, 4
      %v696 = vshrl.u32 %v510, 16
      %v698 = vrot.slane %v696, 7
      %v699 = vshll.u32 %v510, 16
      %v701 = vor.u32 %v698, %v699
      %v702 = vrot.slane %v698, 4
      %v704 = vshrl.u32 %v511, 16
      %v706 = vrot.slane %v704, 7
      %v707 = vshll.u32 %v511, 16
      %v709 = vor.u32 %v706, %v707
      %v710 = vsel %vm524, %v702, %v709
      %v711 = vrot.slane %v706, 4
      %v713 = vshrl.u32 %v512, 16
      %v715 = vrot.slane %v713, 7
      %v716 = vshll.u32 %v512, 16
      %v718 = vor.u32 %v715, %v716
      %v719 = vrot.slane %v715, 4
      %v721 = vshrl.u32 %v513, 16
      %v723 = vrot.slane %v721, 7
      %v724 = vshll.u32 %v513, 16
      %v726 = vor.u32 %v723, %v724
      %v727 = vsel %vm524, %v719, %v726
      %v728 = vrot.slane %v723, 4
      %v730 = vshrl.u32 %v514, 16
      %v732 = vrot.slane %v730, 7
      %v733 = vshll.u32 %v514, 16
      %v735 = vor.u32 %v732, %v733
      %v736 = vrot.slane %v732, 4
      %v738 = vshrl.u32 %v515, 16
      %v740 = vrot.slane %v738, 7
      %v741 = vshll.u32 %v515, 16
      %v743 = vor.u32 %v740, %v741
      %v744 = vsel %vm524, %v736, %v743
      %v745 = vrot.slane %v740, 4
      %v747 = vshrl.u32 %v516, 16
      %v749 = vrot.slane %v747, 7
      %v750 = vshll.u32 %v516, 16
      %v752 = vor.u32 %v749, %v750
      %v753 = vrot.slane %v749, 4
      %v755 = vshrl.u32 %v517, 16
      %v757 = vrot.slane %v755, 7
      %v758 = vshll.u32 %v517, 16
      %v760 = vor.u32 %v757, %v758
      %v761 = vsel %vm524, %v753, %v760
      %v762 = vrot.slane %v757, 4
      %v764 = vshrl.u32 %v518, 16
      %v766 = vrot.slane %v764, 7
      %v767 = vshll.u32 %v518, 16
      %v769 = vor.u32 %v766, %v767
      %v770 = vrot.slane %v766, 4
      %v772 = vshrl.u32 %v519, 16
      %v774 = vrot.slane %v772, 7
      %v775 = vshll.u32 %v519, 16
      %v777 = vor.u32 %v774, %v775
      %v778 = vsel %vm524, %v770, %v777
      %v779 = vrot.slane %v774, 4
      %v781 = vshrl.u32 %v520, 16
      %v783 = vrot.slane %v781, 7
      %v784 = vshll.u32 %v520, 16
      %v786 = vor.u32 %v783, %v784
      %v787 = vrot.slane %v783, 4
      %v789 = vshrl.u32 %v521, 16
      %v791 = vrot.slane %v789, 7
      %v792 = vshll.u32 %v521, 16
      %v794 = vor.u32 %v791, %v792
      %v795 = vsel %vm524, %v787, %v794
      %v796 = vrot.slane %v791, 4
      %s845 = scalar_lea.vmem [#allocation2], 12
      %vm846 = vcmask 1043456
      %vm847 = vsmask.f32 7938
      %vm848 = vmand %vm846, %vm847
      %v849 = vld [vmem:[%s845] sm:$0xf]
      %v850 = vsel %vm848, %v531, %v849
      %851 = vst [vmem:[%s845] sm:$0xf] %v850
      %852 = vst [vmem:[%s845 + $0x4] sm:$0xf] %v540
      %vm853 = vcmask 1040384
      %vm854 = vmand %vm853, %vm522
      %v855 = vld [vmem:[%s845 + $0x8] sm:$0x1]
      %v856 = vsel %vm854, %v541, %v855
      %857 = vst [vmem:[%s845 + $0x8] sm:$0x1] %v856
      %v858 = vld [vmem:[%s845 + $0xc] sm:$0xf]
      %v859 = vsel %vm848, %v548, %v858
      %860 = vst [vmem:[%s845 + $0xc] sm:$0xf] %v859
      %861 = vst [vmem:[%s845 + $0x10] sm:$0xf] %v557
      %v862 = vld [vmem:[%s845 + $0x14] sm:$0x1]
      %v863 = vsel %vm854, %v558, %v862
      %864 = vst [vmem:[%s845 + $0x14] sm:$0x1] %v863
      %v865 = vld [vmem:[%s845 + $0x18] sm:$0xf]
      %v866 = vsel %vm848, %v565, %v865
      %867 = vst [vmem:[%s845 + $0x18] sm:$0xf] %v866
      %868 = vst [vmem:[%s845 + $0x1c] sm:$0xf] %v574
      %v869 = vld [vmem:[%s845 + $0x20] sm:$0x1]
      %v870 = vsel %vm854, %v575, %v869
      %871 = vst [vmem:[%s845 + $0x20] sm:$0x1] %v870
      %v872 = vld [vmem:[%s845 + $0x24] sm:$0xf]
      %v873 = vsel %vm848, %v582, %v872
      %874 = vst [vmem:[%s845 + $0x24] sm:$0xf] %v873
      %875 = vst [vmem:[%s845 + $0x28] sm:$0xf] %v591
      %v876 = vld [vmem:[%s845 + $0x2c] sm:$0x1]
      %v877 = vsel %vm854, %v592, %v876
      %878 = vst [vmem:[%s845 + $0x2c] sm:$0x1] %v877
      %v879 = vld [vmem:[%s845 + $0x30] sm:$0xf]
      %v880 = vsel %vm848, %v599, %v879
      %881 = vst [vmem:[%s845 + $0x30] sm:$0xf] %v880
      %882 = vst [vmem:[%s845 + $0x34] sm:$0xf] %v608
      %v883 = vld [vmem:[%s845 + $0x38] sm:$0x1]
      %v884 = vsel %vm854, %v609, %v883
      %885 = vst [vmem:[%s845 + $0x38] sm:$0x1] %v884
      %v886 = vld [vmem:[%s845 + $0x3c] sm:$0xf]
      %v887 = vsel %vm848, %v616, %v886
      %888 = vst [vmem:[%s845 + $0x3c] sm:$0xf] %v887
      %889 = vst [vmem:[%s845 + $0x40] sm:$0xf] %v625
      %v890 = vld [vmem:[%s845 + $0x44] sm:$0x1]
      %v891 = vsel %vm854, %v626, %v890
      %892 = vst [vmem:[%s845 + $0x44] sm:$0x1] %v891
      %v893 = vld [vmem:[%s845 + $0x48] sm:$0xf]
      %v894 = vsel %vm848, %v633, %v893
      %895 = vst [vmem:[%s845 + $0x48] sm:$0xf] %v894
      %896 = vst [vmem:[%s845 + $0x4c] sm:$0xf] %v642
      %v897 = vld [vmem:[%s845 + $0x50] sm:$0x1]
      %v898 = vsel %vm854, %v643, %v897
      %899 = vst [vmem:[%s845 + $0x50] sm:$0x1] %v898
      %v900 = vld [vmem:[%s845 + $0x54] sm:$0xf]
      %v901 = vsel %vm848, %v650, %v900
      %902 = vst [vmem:[%s845 + $0x54] sm:$0xf] %v901
      %903 = vst [vmem:[%s845 + $0x58] sm:$0xf] %v659
      %v904 = vld [vmem:[%s845 + $0x5c] sm:$0x1]
      %v905 = vsel %vm854, %v660, %v904
      %906 = vst [vmem:[%s845 + $0x5c] sm:$0x1] %v905
      %v907 = vld [vmem:[%s845 + $0x60] sm:$0xf]
      %v908 = vsel %vm848, %v667, %v907
      %909 = vst [vmem:[%s845 + $0x60] sm:$0xf] %v908
      %910 = vst [vmem:[%s845 + $0x64] sm:$0xf] %v676
      %v911 = vld [vmem:[%s845 + $0x68] sm:$0x1]
      %v912 = vsel %vm854, %v677, %v911
      %913 = vst [vmem:[%s845 + $0x68] sm:$0x1] %v912
      %v914 = vld [vmem:[%s845 + $0x6c] sm:$0xf]
      %v915 = vsel %vm848, %v684, %v914
      %916 = vst [vmem:[%s845 + $0x6c] sm:$0xf] %v915
      %917 = vst [vmem:[%s845 + $0x70] sm:$0xf] %v693
      %v918 = vld [vmem:[%s845 + $0x74] sm:$0x1]
      %v919 = vsel %vm854, %v694, %v918
      %920 = vst [vmem:[%s845 + $0x74] sm:$0x1] %v919
      %v921 = vld [vmem:[%s845 + $0x78] sm:$0xf]
      %v922 = vsel %vm848, %v701, %v921
      %923 = vst [vmem:[%s845 + $0x78] sm:$0xf] %v922
      %924 = vst [vmem:[%s845 + $0x7c] sm:$0xf] %v710
      %v925 = vld [vmem:[%s845 + $0x80] sm:$0x1]
      %v926 = vsel %vm854, %v711, %v925
      %927 = vst [vmem:[%s845 + $0x80] sm:$0x1] %v926
      %v928 = vld [vmem:[%s845 + $0x84] sm:$0xf]
      %v929 = vsel %vm848, %v718, %v928
      %930 = vst [vmem:[%s845 + $0x84] sm:$0xf] %v929
      %931 = vst [vmem:[%s845 + $0x88] sm:$0xf] %v727
      %v932 = vld [vmem:[%s845 + $0x8c] sm:$0x1]
      %v933 = vsel %vm854, %v728, %v932
      %934 = vst [vmem:[%s845 + $0x8c] sm:$0x1] %v933
      %v935 = vld [vmem:[%s845 + $0x90] sm:$0xf]
      %v936 = vsel %vm848, %v735, %v935
      %937 = vst [vmem:[%s845 + $0x90] sm:$0xf] %v936
      %938 = vst [vmem:[%s845 + $0x94] sm:$0xf] %v744
      %v939 = vld [vmem:[%s845 + $0x98] sm:$0x1]
      %v940 = vsel %vm854, %v745, %v939
      %941 = vst [vmem:[%s845 + $0x98] sm:$0x1] %v940
      %v942 = vld [vmem:[%s845 + $0x9c] sm:$0xf]
      %v943 = vsel %vm848, %v752, %v942
      %944 = vst [vmem:[%s845 + $0x9c] sm:$0xf] %v943
      %945 = vst [vmem:[%s845 + $0xa0] sm:$0xf] %v761
      %v946 = vld [vmem:[%s845 + $0xa4] sm:$0x1]
      %v947 = vsel %vm854, %v762, %v946
      %948 = vst [vmem:[%s845 + $0xa4] sm:$0x1] %v947
      %v949 = vld [vmem:[%s845 + $0xa8] sm:$0xf]
      %v950 = vsel %vm848, %v769, %v949
      %951 = vst [vmem:[%s845 + $0xa8] sm:$0xf] %v950
      %952 = vst [vmem:[%s845 + $0xac] sm:$0xf] %v778
      %v953 = vld [vmem:[%s845 + $0xb0] sm:$0x1]
      %v954 = vsel %vm854, %v779, %v953
      %955 = vst [vmem:[%s845 + $0xb0] sm:$0x1] %v954
      %v956 = vld [vmem:[%s845 + $0xb4] sm:$0xf]
      %v957 = vsel %vm848, %v786, %v956
      %958 = vst [vmem:[%s845 + $0xb4] sm:$0xf] %v957
      %959 = vst [vmem:[%s845 + $0xb8] sm:$0xf] %v795
      %v960 = vld [vmem:[%s845 + $0xbc] sm:$0x1]
      %v961 = vsel %vm854, %v796, %v960
      %962 = vst [vmem:[%s845 + $0xbc] sm:$0x1] %v961
      %v963 = vld [vmem:[#allocation2] sm:$0xf]
      %v964 = vld [vmem:[#allocation2 + $0x4] sm:$0xf]
      %v965 = vld [vmem:[#allocation2 + $0xc] sm:$0xf]
      %v966 = vld [vmem:[#allocation2 + $0x10] sm:$0xf]
      %v967 = vld [vmem:[#allocation2 + $0x18] sm:$0xf]
      %v968 = vld [vmem:[#allocation2 + $0x1c] sm:$0xf]
      %v969 = vld [vmem:[#allocation2 + $0x24] sm:$0xf]
      %v970 = vld [vmem:[#allocation2 + $0x28] sm:$0xf]
      %v971 = vld [vmem:[#allocation2 + $0x30] sm:$0xf]
      %v972 = vld [vmem:[#allocation2 + $0x34] sm:$0xf]
      %v973 = vld [vmem:[#allocation2 + $0x3c] sm:$0xf]
      %v974 = vld [vmem:[#allocation2 + $0x40] sm:$0xf]
      %v975 = vld [vmem:[#allocation2 + $0x48] sm:$0xf]
      %v976 = vld [vmem:[#allocation2 + $0x4c] sm:$0xf]
      %v977 = vld [vmem:[#allocation2 + $0x54] sm:$0xf]
      %v978 = vld [vmem:[#allocation2 + $0x58] sm:$0xf]
      %v979 = vld [vmem:[#allocation2 + $0x60] sm:$0xf]
      %v980 = vld [vmem:[#allocation2 + $0x64] sm:$0xf]
      %v981 = vld [vmem:[#allocation2 + $0x6c] sm:$0xf]
      %v982 = vld [vmem:[#allocation2 + $0x70] sm:$0xf]
      %v983 = vld [vmem:[#allocation2 + $0x78] sm:$0xf]
      %v984 = vld [vmem:[#allocation2 + $0x7c] sm:$0xf]
      %v985 = vld [vmem:[#allocation2 + $0x84] sm:$0xf]
      %v986 = vld [vmem:[#allocation2 + $0x88] sm:$0xf]
      %v987 = vld [vmem:[#allocation2 + $0x90] sm:$0xf]
      %v988 = vld [vmem:[#allocation2 + $0x94] sm:$0xf]
      %v989 = vld [vmem:[#allocation2 + $0x9c] sm:$0xf]
      %v990 = vld [vmem:[#allocation2 + $0xa0] sm:$0xf]
      %v991 = vld [vmem:[#allocation2 + $0xa8] sm:$0xf]
      %v992 = vld [vmem:[#allocation2 + $0xac] sm:$0xf]
      %v993 = vld [vmem:[#allocation2 + $0xb4] sm:$0xf]
      %v994 = vld [vmem:[#allocation2 + $0xb8] sm:$0xf]
      %v995 = vld [vmem:[#allocation2 + $0xc0] sm:$0xf]
      %v996 = vld [vmem:[#allocation2 + $0xc4] sm:$0xf]
      %v997 = vld [vmem:[#allocation2 + $0xcc] sm:$0xf]
      %v998 = vld [vmem:[#allocation2 + $0xd0] sm:$0xf]
      %v999 = vld [vmem:[%s3] sm:$0xf]
      %v1000 = vld [vmem:[%s3 + $0x4] sm:$0xf]
      %v1001 = vld [vmem:[%s3 + $0x8] sm:$0xf]
      %v1002 = vld [vmem:[%s3 + $0xc] sm:$0xf]
      %v1003 = vld [vmem:[%s3 + $0x10] sm:$0xf]
      %v1004 = vld [vmem:[%s3 + $0x14] sm:$0xf]
      %v1005 = vld [vmem:[%s3 + $0x18] sm:$0xf]
      %v1006 = vld [vmem:[%s3 + $0x1c] sm:$0xf]
      %v1007 = vld [vmem:[%s3 + $0x20] sm:$0xf]
      %v1008 = vld [vmem:[%s3 + $0x24] sm:$0xf]
      %v1009 = vld [vmem:[%s3 + $0x28] sm:$0xf]
      %v1010 = vld [vmem:[%s3 + $0x2c] sm:$0xf]
      %v1011 = vld [vmem:[%s3 + $0x30] sm:$0xf]
      %v1012 = vld [vmem:[%s3 + $0x34] sm:$0xf]
      %v1013 = vld [vmem:[%s3 + $0x38] sm:$0xf]
      %v1014 = vld [vmem:[%s3 + $0x3c] sm:$0xf]
      %v1015 = vld [vmem:[%s3 + $0xc0] sm:$0xf]
      %v1016 = vld [vmem:[%s3 + $0xc4] sm:$0xf]
      %v1017 = vld [vmem:[%s3 + $0xc8] sm:$0xf]
      %v1018 = vld [vmem:[%s3 + $0xcc] sm:$0xf]
      %v1019 = vld [vmem:[%s3 + $0xd0] sm:$0xf]
      %v1020 = vld [vmem:[%s3 + $0xd4] sm:$0xf]
      %v1021 = vld [vmem:[%s3 + $0xd8] sm:$0xf]
      %v1022 = vld [vmem:[%s3 + $0xdc] sm:$0xf]
      %v1023 = vld [vmem:[%s3 + $0xe0] sm:$0xf]
      %v1024 = vld [vmem:[%s3 + $0xe4] sm:$0xf]
      %v1025 = vld [vmem:[%s3 + $0xe8] sm:$0xf]
      %v1026 = vld [vmem:[%s3 + $0xec] sm:$0xf]
      %v1027 = vld [vmem:[%s3 + $0xf0] sm:$0xf]
      %v1028 = vld [vmem:[%s3 + $0xf4] sm:$0xf]
      %v1029 = vld [vmem:[%s3 + $0xf8] sm:$0xf]
      %v1030 = vld [vmem:[%s3 + $0xfc] sm:$0xf]
      %v1063 = vunpack.c.l.b16 %v965
      %v1064 = vunpack.c.l.b16 %v966
      %v1065 = vunpack.c.l.b16 %v967
      %v1066 = vunpack.c.l.b16 %v968
      %v1067 = vunpack.c.l.b16 %v969
      %v1068 = vunpack.c.l.b16 %v970
      %v1069 = vunpack.c.l.b16 %v971
      %v1070 = vunpack.c.l.b16 %v972
      %v1071 = vunpack.c.l.b16 %v973
      %v1072 = vunpack.c.l.b16 %v974
      %v1073 = vunpack.c.l.b16 %v975
      %v1074 = vunpack.c.l.b16 %v976
      %v1075 = vunpack.c.l.b16 %v977
      %v1076 = vunpack.c.l.b16 %v978
      %v1077 = vunpack.c.l.b16 %v979
      %v1078 = vunpack.c.l.b16 %v980
      %v1079 = vunpack.c.l.b16 %v981
      %v1080 = vunpack.c.l.b16 %v982
      %v1081 = vunpack.c.l.b16 %v983
      %v1082 = vunpack.c.l.b16 %v984
      %v1083 = vunpack.c.l.b16 %v985
      %v1084 = vunpack.c.l.b16 %v986
      %v1085 = vunpack.c.l.b16 %v987
      %v1086 = vunpack.c.l.b16 %v988
      %v1087 = vunpack.c.l.b16 %v989
      %v1088 = vunpack.c.l.b16 %v990
      %v1089 = vunpack.c.l.b16 %v991
      %v1090 = vunpack.c.l.b16 %v992
      %v1091 = vunpack.c.l.b16 %v993
      %v1092 = vunpack.c.l.b16 %v994
      %v1093 = vunpack.c.l.b16 %v995
      %v1094 = vunpack.c.l.b16 %v996
      %v1095 = vpack.c.b16 %v1064, %v1063
      %v1096 = vpack.c.b16 %v1066, %v1065
      %v1097 = vpack.c.b16 %v1068, %v1067
      %v1098 = vpack.c.b16 %v1070, %v1069
      %v1099 = vpack.c.b16 %v1072, %v1071
      %v1100 = vpack.c.b16 %v1074, %v1073
      %v1101 = vpack.c.b16 %v1076, %v1075
      %v1102 = vpack.c.b16 %v1078, %v1077
      %v1103 = vpack.c.b16 %v1080, %v1079
      %v1104 = vpack.c.b16 %v1082, %v1081
      %v1105 = vpack.c.b16 %v1084, %v1083
      %v1106 = vpack.c.b16 %v1086, %v1085
      %v1107 = vpack.c.b16 %v1088, %v1087
      %v1108 = vpack.c.b16 %v1090, %v1089
      %v1109 = vpack.c.b16 %v1092, %v1091
      %v1110 = vpack.c.b16 %v1094, %v1093
      %v1143 = vunpack.c.l.b16 %v1015
      %v1144 = vunpack.c.l.b16 %v1016
      %v1145 = vunpack.c.l.b16 %v1017
      %v1146 = vunpack.c.l.b16 %v1018
      %v1147 = vunpack.c.l.b16 %v1019
      %v1148 = vunpack.c.l.b16 %v1020
      %v1149 = vunpack.c.l.b16 %v1021
      %v1150 = vunpack.c.l.b16 %v1022
      %v1151 = vunpack.c.l.b16 %v1023
      %v1152 = vunpack.c.l.b16 %v1024
      %v1153 = vunpack.c.l.b16 %v1025
      %v1154 = vunpack.c.l.b16 %v1026
      %v1155 = vunpack.c.l.b16 %v1027
      %v1156 = vunpack.c.l.b16 %v1028
      %v1157 = vunpack.c.l.b16 %v1029
      %v1158 = vunpack.c.l.b16 %v1030
      %v1159 = vpack.c.b16 %v1144, %v1143
      %v1160 = vpack.c.b16 %v1146, %v1145
      %v1161 = vpack.c.b16 %v1148, %v1147
      %v1162 = vpack.c.b16 %v1150, %v1149
      %v1163 = vpack.c.b16 %v1152, %v1151
      %v1164 = vpack.c.b16 %v1154, %v1153
      %v1165 = vpack.c.b16 %v1156, %v1155
      %v1166 = vpack.c.b16 %v1158, %v1157
      %1175 = vmatpush.bf16.msra.mxu0 %v1166
      %1176 = vmatpush.bf16.msra.mxu0 %v1165
      %1177 = vmatpush.bf16.msra.mxu0 %v1164
      %1178 = vmatpush.bf16.msra.mxu0 %v1163
      %1179 = vmatpush.bf16.msra.mxu0 %v1162
      %1180 = vmatpush.bf16.msra.mxu0 %v1161
      %1181 = vmatpush.bf16.msra.mxu0 %v1160
      %1182 = vmatpush.bf16.msra.mxu0 %v1159
      %1183 = vmatmul.bf16.gmra.mxu0 %v1095
      %v1184 = vpop.f32.mrf.mxu0
      %v1185 = vadd.f32 0.0, %v1184
      %v1186 = vpop.f32.mrf.mxu0
      %v1187 = vadd.f32 0.0, %v1186
      %1188 = vmatmul.bf16.gmra.mxu0 %v1096
      %v1189 = vpop.f32.mrf.mxu0
      %v1190 = vadd.f32 0.0, %v1189
      %v1191 = vpop.f32.mrf.mxu0
      %v1192 = vadd.f32 0.0, %v1191
      %1193 = vmatmul.bf16.gmra.mxu0 %v1097
      %v1194 = vpop.f32.mrf.mxu0
      %v1195 = vadd.f32 0.0, %v1194
      %v1196 = vpop.f32.mrf.mxu0
      %v1197 = vadd.f32 0.0, %v1196
      %1198 = vmatmul.bf16.gmra.mxu0 %v1098
      %v1199 = vpop.f32.mrf.mxu0
      %v1200 = vadd.f32 0.0, %v1199
      %v1201 = vpop.f32.mrf.mxu0
      %v1202 = vadd.f32 0.0, %v1201
      %1203 = vmatmul.bf16.gmra.mxu0 %v1099
      %v1204 = vpop.f32.mrf.mxu0
      %v1205 = vadd.f32 0.0, %v1204
      %v1206 = vpop.f32.mrf.mxu0
      %v1207 = vadd.f32 0.0, %v1206
      %1208 = vmatmul.bf16.gmra.mxu0 %v1100
      %v1209 = vpop.f32.mrf.mxu0
      %v1210 = vadd.f32 0.0, %v1209
      %v1211 = vpop.f32.mrf.mxu0
      %v1212 = vadd.f32 0.0, %v1211
      %1213 = vmatmul.bf16.gmra.mxu0 %v1101
      %v1214 = vpop.f32.mrf.mxu0
      %v1215 = vadd.f32 0.0, %v1214
      %v1216 = vpop.f32.mrf.mxu0
      %v1217 = vadd.f32 0.0, %v1216
      %1218 = vmatmul.bf16.gmra.mxu0 %v1102
      %v1219 = vpop.f32.mrf.mxu0
      %v1220 = vadd.f32 0.0, %v1219
      %v1221 = vpop.f32.mrf.mxu0
      %v1222 = vadd.f32 0.0, %v1221
      %1223 = vmatmul.bf16.gmra.mxu0 %v1103
      %v1224 = vpop.f32.mrf.mxu0
      %v1225 = vadd.f32 0.0, %v1224
      %v1226 = vpop.f32.mrf.mxu0
      %v1227 = vadd.f32 0.0, %v1226
      %1228 = vmatmul.bf16.gmra.mxu0 %v1104
      %v1229 = vpop.f32.mrf.mxu0
      %v1230 = vadd.f32 0.0, %v1229
      %v1231 = vpop.f32.mrf.mxu0
      %v1232 = vadd.f32 0.0, %v1231
      %1233 = vmatmul.bf16.gmra.mxu0 %v1105
      %v1234 = vpop.f32.mrf.mxu0
      %v1235 = vadd.f32 0.0, %v1234
      %v1236 = vpop.f32.mrf.mxu0
      %v1237 = vadd.f32 0.0, %v1236
      %1238 = vmatmul.bf16.gmra.mxu0 %v1106
      %v1239 = vpop.f32.mrf.mxu0
      %v1240 = vadd.f32 0.0, %v1239
      %v1241 = vpop.f32.mrf.mxu0
      %v1242 = vadd.f32 0.0, %v1241
      %1243 = vmatmul.bf16.gmra.mxu0 %v1107
      %v1244 = vpop.f32.mrf.mxu0
      %v1245 = vadd.f32 0.0, %v1244
      %v1246 = vpop.f32.mrf.mxu0
      %v1247 = vadd.f32 0.0, %v1246
      %1248 = vmatmul.bf16.gmra.mxu0 %v1108
      %v1249 = vpop.f32.mrf.mxu0
      %v1250 = vadd.f32 0.0, %v1249
      %v1251 = vpop.f32.mrf.mxu0
      %v1252 = vadd.f32 0.0, %v1251
      %1253 = vmatmul.bf16.gmra.mxu0 %v1109
      %v1254 = vpop.f32.mrf.mxu0
      %v1255 = vadd.f32 0.0, %v1254
      %v1256 = vpop.f32.mrf.mxu0
      %v1257 = vadd.f32 0.0, %v1256
      %1258 = vmatmul.bf16.gmra.mxu0 %v1110
      %v1259 = vpop.f32.mrf.mxu0
      %v1260 = vadd.f32 0.0, %v1259
      %v1261 = vpop.f32.mrf.mxu0
      %v1262 = vadd.f32 0.0, %v1261
      %1263 = vdwg.mxu0
      %v1266 = vunpack.c.l.b16 %v963
      %v1267 = vunpack.c.l.b16 %v964
      %v1268 = vpack.c.b16 %v1267, %v1266
      %v1286 = vunpack.c.l.b16 %v999
      %v1287 = vunpack.c.l.b16 %v1000
      %v1288 = vunpack.c.l.b16 %v1001
      %v1289 = vunpack.c.l.b16 %v1002
      %v1290 = vunpack.c.l.b16 %v1003
      %v1291 = vunpack.c.l.b16 %v1004
      %v1292 = vunpack.c.l.b16 %v1005
      %v1293 = vunpack.c.l.b16 %v1006
      %v1294 = vunpack.c.l.b16 %v1007
      %v1295 = vunpack.c.l.b16 %v1008
      %v1296 = vunpack.c.l.b16 %v1009
      %v1297 = vunpack.c.l.b16 %v1010
      %v1298 = vunpack.c.l.b16 %v1011
      %v1299 = vunpack.c.l.b16 %v1012
      %v1300 = vunpack.c.l.b16 %v1013
      %v1301 = vunpack.c.l.b16 %v1014
      %v1302 = vpack.c.b16 %v1287, %v1286
      %v1303 = vpack.c.b16 %v1289, %v1288
      %v1304 = vpack.c.b16 %v1291, %v1290
      %v1305 = vpack.c.b16 %v1293, %v1292
      %v1306 = vpack.c.b16 %v1295, %v1294
      %v1307 = vpack.c.b16 %v1297, %v1296
      %v1308 = vpack.c.b16 %v1299, %v1298
      %v1309 = vpack.c.b16 %v1301, %v1300
      %1318 = vmatpush.bf16.msra.mxu0 %v1309
      %1319 = vmatpush.bf16.msra.mxu0 %v1308
      %1320 = vmatpush.bf16.msra.mxu0 %v1307
      %1321 = vmatpush.bf16.msra.mxu0 %v1306
      %1322 = vmatpush.bf16.msra.mxu0 %v1305
      %1323 = vmatpush.bf16.msra.mxu0 %v1304
      %1324 = vmatpush.bf16.msra.mxu0 %v1303
      %1325 = vmatpush.bf16.msra.mxu0 %v1302
      %1326 = vmatmul.bf16.gmra.mxu0 %v1268
      %v1327 = vpop.f32.mrf.mxu0
      %v1328 = vadd.f32 %v1185, %v1327
      %v1329 = vpop.f32.mrf.mxu0
      %v1330 = vadd.f32 %v1187, %v1329
      %1331 = vmatmul.bf16.gmra.mxu0 %v1095
      %v1332 = vpop.f32.mrf.mxu0
      %v1333 = vadd.f32 %v1190, %v1332
      %v1334 = vpop.f32.mrf.mxu0
      %v1335 = vadd.f32 %v1192, %v1334
      %1336 = vmatmul.bf16.gmra.mxu0 %v1096
      %v1337 = vpop.f32.mrf.mxu0
      %v1338 = vadd.f32 %v1195, %v1337
      %v1339 = vpop.f32.mrf.mxu0
      %v1340 = vadd.f32 %v1197, %v1339
      %1341 = vmatmul.bf16.gmra.mxu0 %v1097
      %v1342 = vpop.f32.mrf.mxu0
      %v1343 = vadd.f32 %v1200, %v1342
      %v1344 = vpop.f32.mrf.mxu0
      %v1345 = vadd.f32 %v1202, %v1344
      %1346 = vmatmul.bf16.gmra.mxu0 %v1098
      %v1347 = vpop.f32.mrf.mxu0
      %v1348 = vadd.f32 %v1205, %v1347
      %v1349 = vpop.f32.mrf.mxu0
      %v1350 = vadd.f32 %v1207, %v1349
      %1351 = vmatmul.bf16.gmra.mxu0 %v1099
      %v1352 = vpop.f32.mrf.mxu0
      %v1353 = vadd.f32 %v1210, %v1352
      %v1354 = vpop.f32.mrf.mxu0
      %v1355 = vadd.f32 %v1212, %v1354
      %1356 = vmatmul.bf16.gmra.mxu0 %v1100
      %v1357 = vpop.f32.mrf.mxu0
      %v1358 = vadd.f32 %v1215, %v1357
      %v1359 = vpop.f32.mrf.mxu0
      %v1360 = vadd.f32 %v1217, %v1359
      %1361 = vmatmul.bf16.gmra.mxu0 %v1101
      %v1362 = vpop.f32.mrf.mxu0
      %v1363 = vadd.f32 %v1220, %v1362
      %v1364 = vpop.f32.mrf.mxu0
      %v1365 = vadd.f32 %v1222, %v1364
      %1366 = vmatmul.bf16.gmra.mxu0 %v1102
      %v1367 = vpop.f32.mrf.mxu0
      %v1368 = vadd.f32 %v1225, %v1367
      %v1369 = vpop.f32.mrf.mxu0
      %v1370 = vadd.f32 %v1227, %v1369
      %1371 = vmatmul.bf16.gmra.mxu0 %v1103
      %v1372 = vpop.f32.mrf.mxu0
      %v1373 = vadd.f32 %v1230, %v1372
      %v1374 = vpop.f32.mrf.mxu0
      %v1375 = vadd.f32 %v1232, %v1374
      %1376 = vmatmul.bf16.gmra.mxu0 %v1104
      %v1377 = vpop.f32.mrf.mxu0
      %v1378 = vadd.f32 %v1235, %v1377
      %v1379 = vpop.f32.mrf.mxu0
      %v1380 = vadd.f32 %v1237, %v1379
      %1381 = vmatmul.bf16.gmra.mxu0 %v1105
      %v1382 = vpop.f32.mrf.mxu0
      %v1383 = vadd.f32 %v1240, %v1382
      %v1384 = vpop.f32.mrf.mxu0
      %v1385 = vadd.f32 %v1242, %v1384
      %1386 = vmatmul.bf16.gmra.mxu0 %v1106
      %v1387 = vpop.f32.mrf.mxu0
      %v1388 = vadd.f32 %v1245, %v1387
      %v1389 = vpop.f32.mrf.mxu0
      %v1390 = vadd.f32 %v1247, %v1389
      %1391 = vmatmul.bf16.gmra.mxu0 %v1107
      %v1392 = vpop.f32.mrf.mxu0
      %v1393 = vadd.f32 %v1250, %v1392
      %v1394 = vpop.f32.mrf.mxu0
      %v1395 = vadd.f32 %v1252, %v1394
      %1396 = vmatmul.bf16.gmra.mxu0 %v1108
      %v1397 = vpop.f32.mrf.mxu0
      %v1398 = vadd.f32 %v1255, %v1397
      %v1399 = vpop.f32.mrf.mxu0
      %v1400 = vadd.f32 %v1257, %v1399
      %1401 = vmatmul.bf16.gmra.mxu0 %v1109
      %v1402 = vpop.f32.mrf.mxu0
      %v1403 = vadd.f32 %v1260, %v1402
      %v1404 = vpop.f32.mrf.mxu0
      %v1405 = vadd.f32 %v1262, %v1404
      %1406 = vdwg.mxu0
      %v1407 = vld [vmem:[%s3 + $0x180] sm:$0xf]
      %v1408 = vld [vmem:[%s3 + $0x184] sm:$0xf]
      %v1409 = vld [vmem:[%s3 + $0x188] sm:$0xf]
      %v1410 = vld [vmem:[%s3 + $0x18c] sm:$0xf]
      %v1411 = vld [vmem:[%s3 + $0x190] sm:$0xf]
      %v1412 = vld [vmem:[%s3 + $0x194] sm:$0xf]
      %v1413 = vld [vmem:[%s3 + $0x198] sm:$0xf]
      %v1414 = vld [vmem:[%s3 + $0x19c] sm:$0xf]
      %v1415 = vld [vmem:[%s3 + $0x1a0] sm:$0xf]
      %v1416 = vld [vmem:[%s3 + $0x1a4] sm:$0xf]
      %v1417 = vld [vmem:[%s3 + $0x1a8] sm:$0xf]
      %v1418 = vld [vmem:[%s3 + $0x1ac] sm:$0xf]
      %v1419 = vld [vmem:[%s3 + $0x1b0] sm:$0xf]
      %v1420 = vld [vmem:[%s3 + $0x1b4] sm:$0xf]
      %v1421 = vld [vmem:[%s3 + $0x1b8] sm:$0xf]
      %v1422 = vld [vmem:[%s3 + $0x1bc] sm:$0xf]
      %v1425 = vunpack.c.l.b16 %v997
      %v1426 = vunpack.c.l.b16 %v998
      %v1427 = vpack.c.b16 %v1426, %v1425
      %v1445 = vunpack.c.l.b16 %v1407
      %v1446 = vunpack.c.l.b16 %v1408
      %v1447 = vunpack.c.l.b16 %v1409
      %v1448 = vunpack.c.l.b16 %v1410
      %v1449 = vunpack.c.l.b16 %v1411
      %v1450 = vunpack.c.l.b16 %v1412
      %v1451 = vunpack.c.l.b16 %v1413
      %v1452 = vunpack.c.l.b16 %v1414
      %v1453 = vunpack.c.l.b16 %v1415
      %v1454 = vunpack.c.l.b16 %v1416
      %v1455 = vunpack.c.l.b16 %v1417
      %v1456 = vunpack.c.l.b16 %v1418
      %v1457 = vunpack.c.l.b16 %v1419
      %v1458 = vunpack.c.l.b16 %v1420
      %v1459 = vunpack.c.l.b16 %v1421
      %v1460 = vunpack.c.l.b16 %v1422
      %v1461 = vpack.c.b16 %v1446, %v1445
      %v1462 = vpack.c.b16 %v1448, %v1447
      %v1463 = vpack.c.b16 %v1450, %v1449
      %v1464 = vpack.c.b16 %v1452, %v1451
      %v1465 = vpack.c.b16 %v1454, %v1453
      %v1466 = vpack.c.b16 %v1456, %v1455
      %v1467 = vpack.c.b16 %v1458, %v1457
      %v1468 = vpack.c.b16 %v1460, %v1459
      %1477 = vmatpush.bf16.msra.mxu0 %v1468
      %1478 = vmatpush.bf16.msra.mxu0 %v1467
      %1479 = vmatpush.bf16.msra.mxu0 %v1466
      %1480 = vmatpush.bf16.msra.mxu0 %v1465
      %1481 = vmatpush.bf16.msra.mxu0 %v1464
      %1482 = vmatpush.bf16.msra.mxu0 %v1463
      %1483 = vmatpush.bf16.msra.mxu0 %v1462
      %1484 = vmatpush.bf16.msra.mxu0 %v1461
      %1485 = vmatmul.bf16.gmra.mxu0 %v1096
      %v1486 = vpop.f32.mrf.mxu0
      %v1487 = vadd.f32 0.0, %v1486
      %v1488 = vpop.f32.mrf.mxu0
      %v1489 = vadd.f32 0.0, %v1488
      %1490 = vmatmul.bf16.gmra.mxu0 %v1097
      %v1491 = vpop.f32.mrf.mxu0
      %v1492 = vadd.f32 0.0, %v1491
      %v1493 = vpop.f32.mrf.mxu0
      %v1494 = vadd.f32 0.0, %v1493
      %1495 = vmatmul.bf16.gmra.mxu0 %v1098
      %v1496 = vpop.f32.mrf.mxu0
      %v1497 = vadd.f32 0.0, %v1496
      %v1498 = vpop.f32.mrf.mxu0
      %v1499 = vadd.f32 0.0, %v1498
      %1500 = vmatmul.bf16.gmra.mxu0 %v1099
      %v1501 = vpop.f32.mrf.mxu0
      %v1502 = vadd.f32 0.0, %v1501
      %v1503 = vpop.f32.mrf.mxu0
      %v1504 = vadd.f32 0.0, %v1503
      %1505 = vmatmul.bf16.gmra.mxu0 %v1100
      %v1506 = vpop.f32.mrf.mxu0
      %v1507 = vadd.f32 0.0, %v1506
      %v1508 = vpop.f32.mrf.mxu0
      %v1509 = vadd.f32 0.0, %v1508
      %1510 = vmatmul.bf16.gmra.mxu0 %v1101
      %v1511 = vpop.f32.mrf.mxu0
      %v1512 = vadd.f32 0.0, %v1511
      %v1513 = vpop.f32.mrf.mxu0
      %v1514 = vadd.f32 0.0, %v1513
      %1515 = vmatmul.bf16.gmra.mxu0 %v1102
      %v1516 = vpop.f32.mrf.mxu0
      %v1517 = vadd.f32 0.0, %v1516
      %v1518 = vpop.f32.mrf.mxu0
      %v1519 = vadd.f32 0.0, %v1518
      %1520 = vmatmul.bf16.gmra.mxu0 %v1103
      %v1521 = vpop.f32.mrf.mxu0
      %v1522 = vadd.f32 0.0, %v1521
      %v1523 = vpop.f32.mrf.mxu0
      %v1524 = vadd.f32 0.0, %v1523
      %1525 = vmatmul.bf16.gmra.mxu0 %v1104
      %v1526 = vpop.f32.mrf.mxu0
      %v1527 = vadd.f32 0.0, %v1526
      %v1528 = vpop.f32.mrf.mxu0
      %v1529 = vadd.f32 0.0, %v1528
      %1530 = vmatmul.bf16.gmra.mxu0 %v1105
      %v1531 = vpop.f32.mrf.mxu0
      %v1532 = vadd.f32 0.0, %v1531
      %v1533 = vpop.f32.mrf.mxu0
      %v1534 = vadd.f32 0.0, %v1533
      %1535 = vmatmul.bf16.gmra.mxu0 %v1106
      %v1536 = vpop.f32.mrf.mxu0
      %v1537 = vadd.f32 0.0, %v1536
      %v1538 = vpop.f32.mrf.mxu0
      %v1539 = vadd.f32 0.0, %v1538
      %1540 = vmatmul.bf16.gmra.mxu0 %v1107
      %v1541 = vpop.f32.mrf.mxu0
      %v1542 = vadd.f32 0.0, %v1541
      %v1543 = vpop.f32.mrf.mxu0
      %v1544 = vadd.f32 0.0, %v1543
      %1545 = vmatmul.bf16.gmra.mxu0 %v1108
      %v1546 = vpop.f32.mrf.mxu0
      %v1547 = vadd.f32 0.0, %v1546
      %v1548 = vpop.f32.mrf.mxu0
      %v1549 = vadd.f32 0.0, %v1548
      %1550 = vmatmul.bf16.gmra.mxu0 %v1109
      %v1551 = vpop.f32.mrf.mxu0
      %v1552 = vadd.f32 0.0, %v1551
      %v1553 = vpop.f32.mrf.mxu0
      %v1554 = vadd.f32 0.0, %v1553
      %1555 = vmatmul.bf16.gmra.mxu0 %v1110
      %v1556 = vpop.f32.mrf.mxu0
      %v1557 = vadd.f32 0.0, %v1556
      %v1558 = vpop.f32.mrf.mxu0
      %v1559 = vadd.f32 0.0, %v1558
      %1560 = vmatmul.bf16.gmra.mxu0 %v1427
      %v1561 = vpop.f32.mrf.mxu0
      %v1562 = vadd.f32 0.0, %v1561
      %v1563 = vpop.f32.mrf.mxu0
      %v1564 = vadd.f32 0.0, %v1563
      %1565 = vdwg.mxu0
      %v1566 = vadd.f32 %v1328, %v1487
      %v1567 = vadd.f32 %v1330, %v1489
      %v1568 = vadd.f32 %v1333, %v1492
      %v1569 = vadd.f32 %v1335, %v1494
      %v1570 = vadd.f32 %v1338, %v1497
      %v1571 = vadd.f32 %v1340, %v1499
      %v1572 = vadd.f32 %v1343, %v1502
      %v1573 = vadd.f32 %v1345, %v1504
      %v1574 = vadd.f32 %v1348, %v1507
      %v1575 = vadd.f32 %v1350, %v1509
      %v1576 = vadd.f32 %v1353, %v1512
      %v1577 = vadd.f32 %v1355, %v1514
      %v1578 = vadd.f32 %v1358, %v1517
      %v1579 = vadd.f32 %v1360, %v1519
      %v1580 = vadd.f32 %v1363, %v1522
      %v1581 = vadd.f32 %v1365, %v1524
      %v1582 = vadd.f32 %v1368, %v1527
      %v1583 = vadd.f32 %v1370, %v1529
      %v1584 = vadd.f32 %v1373, %v1532
      %v1585 = vadd.f32 %v1375, %v1534
      %v1586 = vadd.f32 %v1378, %v1537
      %v1587 = vadd.f32 %v1380, %v1539
      %v1588 = vadd.f32 %v1383, %v1542
      %v1589 = vadd.f32 %v1385, %v1544
      %v1590 = vadd.f32 %v1388, %v1547
      %v1591 = vadd.f32 %v1390, %v1549
      %v1592 = vadd.f32 %v1393, %v1552
      %v1593 = vadd.f32 %v1395, %v1554
      %v1594 = vadd.f32 %v1398, %v1557
      %v1595 = vadd.f32 %v1400, %v1559
      %v1596 = vadd.f32 %v1403, %v1562
      %v1597 = vadd.f32 %v1405, %v1564
      %v1598 = vld [vmem:[#allocation2] sm:$0xf]
      %v1599 = vld [vmem:[#allocation2 + $0x4] sm:$0xf]
      %v1600 = vld [vmem:[#allocation2 + $0x8] sm:$0x1]
      %v1601 = vld [vmem:[#allocation2 + $0xc] sm:$0xf]
      %v1602 = vld [vmem:[#allocation2 + $0x10] sm:$0xf]
      %v1603 = vld [vmem:[#allocation2 + $0x14] sm:$0x1]
      %v1604 = vld [vmem:[#allocation2 + $0x18] sm:$0xf]
      %v1605 = vld [vmem:[#allocation2 + $0x1c] sm:$0xf]
      %v1606 = vld [vmem:[#allocation2 + $0x20] sm:$0x1]
      %v1607 = vld [vmem:[#allocation2 + $0x24] sm:$0xf]
      %v1608 = vld [vmem:[#allocation2 + $0x28] sm:$0xf]
      %v1609 = vld [vmem:[#allocation2 + $0x2c] sm:$0x1]
      %v1610 = vld [vmem:[#allocation2 + $0x30] sm:$0xf]
      %v1611 = vld [vmem:[#allocation2 + $0x34] sm:$0xf]
      %v1612 = vld [vmem:[#allocation2 + $0x38] sm:$0x1]
      %v1613 = vld [vmem:[#allocation2 + $0x3c] sm:$0xf]
      %v1614 = vld [vmem:[#allocation2 + $0x40] sm:$0xf]
      %v1615 = vld [vmem:[#allocation2 + $0x44] sm:$0x1]
      %v1616 = vld [vmem:[#allocation2 + $0x48] sm:$0xf]
      %v1617 = vld [vmem:[#allocation2 + $0x4c] sm:$0xf]
      %v1618 = vld [vmem:[#allocation2 + $0x50] sm:$0x1]
      %v1619 = vld [vmem:[#allocation2 + $0x54] sm:$0xf]
      %v1620 = vld [vmem:[#allocation2 + $0x58] sm:$0xf]
      %v1621 = vld [vmem:[#allocation2 + $0x5c] sm:$0x1]
      %v1622 = vld [vmem:[#allocation2 + $0x60] sm:$0xf]
      %v1623 = vld [vmem:[#allocation2 + $0x64] sm:$0xf]
      %v1624 = vld [vmem:[#allocation2 + $0x68] sm:$0x1]
      %v1625 = vld [vmem:[#allocation2 + $0x6c] sm:$0xf]
      %v1626 = vld [vmem:[#allocation2 + $0x70] sm:$0xf]
      %v1627 = vld [vmem:[#allocation2 + $0x74] sm:$0x1]
      %v1628 = vld [vmem:[#allocation2 + $0x78] sm:$0xf]
      %v1629 = vld [vmem:[#allocation2 + $0x7c] sm:$0xf]
      %v1630 = vld [vmem:[#allocation2 + $0x80] sm:$0x1]
      %v1631 = vld [vmem:[#allocation2 + $0x84] sm:$0xf]
      %v1632 = vld [vmem:[#allocation2 + $0x88] sm:$0xf]
      %v1633 = vld [vmem:[#allocation2 + $0x8c] sm:$0x1]
      %v1634 = vld [vmem:[#allocation2 + $0x90] sm:$0xf]
      %v1635 = vld [vmem:[#allocation2 + $0x94] sm:$0xf]
      %v1636 = vld [vmem:[#allocation2 + $0x98] sm:$0x1]
      %v1637 = vld [vmem:[#allocation2 + $0x9c] sm:$0xf]
      %v1638 = vld [vmem:[#allocation2 + $0xa0] sm:$0xf]
      %v1639 = vld [vmem:[#allocation2 + $0xa4] sm:$0x1]
      %v1640 = vld [vmem:[#allocation2 + $0xa8] sm:$0xf]
      %v1641 = vld [vmem:[#allocation2 + $0xac] sm:$0xf]
      %v1642 = vld [vmem:[#allocation2 + $0xb0] sm:$0x1]
      %v1643 = vld [vmem:[#allocation2 + $0xb4] sm:$0xf]
      %v1644 = vld [vmem:[#allocation2 + $0xb8] sm:$0xf]
      %v1645 = vld [vmem:[#allocation2 + $0xbc] sm:$0x1]
      %v1646 = vld [vmem:[#allocation2 + $0xc0] sm:$0xf]
      %v1647 = vld [vmem:[#allocation2 + $0xc4] sm:$0xf]
      %v1648 = vld [vmem:[#allocation2 + $0xc8] sm:$0x1]
      %v1649 = vld [vmem:[#allocation2 + $0xcc] sm:$0xf]
      %v1650 = vld [vmem:[#allocation2 + $0xd0] sm:$0xf]
      %v1651 = vld [vmem:[#allocation2 + $0xd4] sm:$0x1]
      %vm1652 = vsmask.f32 3328
      %vm1653 = vsmask.f32 7440
      %vm1654 = vmor %vm1652, %vm1653
      %v1656 = vshrl.u32 %v1598, 16
      %v1658 = vrot.slane %v1656, 4
      %v1659 = vshll.u32 %v1598, 16
      %v1661 = vrot.slane %v1659, 5
      %v1662 = vor.u32 %v1658, %v1661
      %v1663 = vrot.slane %v1662, 4
      %v1665 = vshll.u32 %v1599, 16
      %v1667 = vrot.slane %v1665, 5
      %v1668 = vsel %vm1654, %v1663, %v1667
      %v1669 = vshrl.u32 %v1599, 16
      %v1671 = vrot.slane %v1669, 4
      %v1672 = vor.u32 %v1671, %v1667
      %v1673 = vrot.slane %v1672, 4
      %v1675 = vshll.u32 %v1600, 16
      %v1677 = vrot.slane %v1675, 5
      %v1678 = vsel %vm1654, %v1673, %v1677
      %v1680 = vshrl.u32 %v1601, 16
      %v1682 = vrot.slane %v1680, 4
      %v1683 = vshll.u32 %v1601, 16
      %v1685 = vrot.slane %v1683, 5
      %v1686 = vor.u32 %v1682, %v1685
      %v1687 = vrot.slane %v1686, 4
      %v1689 = vshll.u32 %v1602, 16
      %v1691 = vrot.slane %v1689, 5
      %v1692 = vsel %vm1654, %v1687, %v1691
      %v1693 = vshrl.u32 %v1602, 16
      %v1695 = vrot.slane %v1693, 4
      %v1696 = vor.u32 %v1695, %v1691
      %v1697 = vrot.slane %v1696, 4
      %v1699 = vshll.u32 %v1603, 16
      %v1701 = vrot.slane %v1699, 5
      %v1702 = vsel %vm1654, %v1697, %v1701
      %v1704 = vshrl.u32 %v1604, 16
      %v1706 = vrot.slane %v1704, 4
      %v1707 = vshll.u32 %v1604, 16
      %v1709 = vrot.slane %v1707, 5
      %v1710 = vor.u32 %v1706, %v1709
      %v1711 = vrot.slane %v1710, 4
      %v1713 = vshll.u32 %v1605, 16
      %v1715 = vrot.slane %v1713, 5
      %v1716 = vsel %vm1654, %v1711, %v1715
      %v1717 = vshrl.u32 %v1605, 16
      %v1719 = vrot.slane %v1717, 4
      %v1720 = vor.u32 %v1719, %v1715
      %v1721 = vrot.slane %v1720, 4
      %v1723 = vshll.u32 %v1606, 16
      %v1725 = vrot.slane %v1723, 5
      %v1726 = vsel %vm1654, %v1721, %v1725
      %v1728 = vshrl.u32 %v1607, 16
      %v1730 = vrot.slane %v1728, 4
      %v1731 = vshll.u32 %v1607, 16
      %v1733 = vrot.slane %v1731, 5
      %v1734 = vor.u32 %v1730, %v1733
      %v1735 = vrot.slane %v1734, 4
      %v1737 = vshll.u32 %v1608, 16
      %v1739 = vrot.slane %v1737, 5
      %v1740 = vsel %vm1654, %v1735, %v1739
      %v1741 = vshrl.u32 %v1608, 16
      %v1743 = vrot.slane %v1741, 4
      %v1744 = vor.u32 %v1743, %v1739
      %v1745 = vrot.slane %v1744, 4
      %v1747 = vshll.u32 %v1609, 16
      %v1749 = vrot.slane %v1747, 5
      %v1750 = vsel %vm1654, %v1745, %v1749
      %v1752 = vshrl.u32 %v1610, 16
      %v1754 = vrot.slane %v1752, 4
      %v1755 = vshll.u32 %v1610, 16
      %v1757 = vrot.slane %v1755, 5
      %v1758 = vor.u32 %v1754, %v1757
      %v1759 = vrot.slane %v1758, 4
      %v1761 = vshll.u32 %v1611, 16
      %v1763 = vrot.slane %v1761, 5
      %v1764 = vsel %vm1654, %v1759, %v1763
      %v1765 = vshrl.u32 %v1611, 16
      %v1767 = vrot.slane %v1765, 4
      %v1768 = vor.u32 %v1767, %v1763
      %v1769 = vrot.slane %v1768, 4
      %v1771 = vshll.u32 %v1612, 16
      %v1773 = vrot.slane %v1771, 5
      %v1774 = vsel %vm1654, %v1769, %v1773
      %v1776 = vshrl.u32 %v1613, 16
      %v1778 = vrot.slane %v1776, 4
      %v1779 = vshll.u32 %v1613, 16
      %v1781 = vrot.slane %v1779, 5
      %v1782 = vor.u32 %v1778, %v1781
      %v1783 = vrot.slane %v1782, 4
      %v1785 = vshll.u32 %v1614, 16
      %v1787 = vrot.slane %v1785, 5
      %v1788 = vsel %vm1654, %v1783, %v1787
      %v1789 = vshrl.u32 %v1614, 16
      %v1791 = vrot.slane %v1789, 4
      %v1792 = vor.u32 %v1791, %v1787
      %v1793 = vrot.slane %v1792, 4
      %v1795 = vshll.u32 %v1615, 16
      %v1797 = vrot.slane %v1795, 5
      %v1798 = vsel %vm1654, %v1793, %v1797
      %v1800 = vshrl.u32 %v1616, 16
      %v1802 = vrot.slane %v1800, 4
      %v1803 = vshll.u32 %v1616, 16
      %v1805 = vrot.slane %v1803, 5
      %v1806 = vor.u32 %v1802, %v1805
      %v1807 = vrot.slane %v1806, 4
      %v1809 = vshll.u32 %v1617, 16
      %v1811 = vrot.slane %v1809, 5
      %v1812 = vsel %vm1654, %v1807, %v1811
      %v1813 = vshrl.u32 %v1617, 16
      %v1815 = vrot.slane %v1813, 4
      %v1816 = vor.u32 %v1815, %v1811
      %v1817 = vrot.slane %v1816, 4
      %v1819 = vshll.u32 %v1618, 16
      %v1821 = vrot.slane %v1819, 5
      %v1822 = vsel %vm1654, %v1817, %v1821
      %v1824 = vshrl.u32 %v1619, 16
      %v1826 = vrot.slane %v1824, 4
      %v1827 = vshll.u32 %v1619, 16
      %v1829 = vrot.slane %v1827, 5
      %v1830 = vor.u32 %v1826, %v1829
      %v1831 = vrot.slane %v1830, 4
      %v1833 = vshll.u32 %v1620, 16
      %v1835 = vrot.slane %v1833, 5
      %v1836 = vsel %vm1654, %v1831, %v1835
      %v1837 = vshrl.u32 %v1620, 16
      %v1839 = vrot.slane %v1837, 4
      %v1840 = vor.u32 %v1839, %v1835
      %v1841 = vrot.slane %v1840, 4
      %v1843 = vshll.u32 %v1621, 16
      %v1845 = vrot.slane %v1843, 5
      %v1846 = vsel %vm1654, %v1841, %v1845
      %v1848 = vshrl.u32 %v1622, 16
      %v1850 = vrot.slane %v1848, 4
      %v1851 = vshll.u32 %v1622, 16
      %v1853 = vrot.slane %v1851, 5
      %v1854 = vor.u32 %v1850, %v1853
      %v1855 = vrot.slane %v1854, 4
      %v1857 = vshll.u32 %v1623, 16
      %v1859 = vrot.slane %v1857, 5
      %v1860 = vsel %vm1654, %v1855, %v1859
      %v1861 = vshrl.u32 %v1623, 16
      %v1863 = vrot.slane %v1861, 4
      %v1864 = vor.u32 %v1863, %v1859
      %v1865 = vrot.slane %v1864, 4
      %v1867 = vshll.u32 %v1624, 16
      %v1869 = vrot.slane %v1867, 5
      %v1870 = vsel %vm1654, %v1865, %v1869
      %v1872 = vshrl.u32 %v1625, 16
      %v1874 = vrot.slane %v1872, 4
      %v1875 = vshll.u32 %v1625, 16
      %v1877 = vrot.slane %v1875, 5
      %v1878 = vor.u32 %v1874, %v1877
      %v1879 = vrot.slane %v1878, 4
      %v1881 = vshll.u32 %v1626, 16
      %v1883 = vrot.slane %v1881, 5
      %v1884 = vsel %vm1654, %v1879, %v1883
      %v1885 = vshrl.u32 %v1626, 16
      %v1887 = vrot.slane %v1885, 4
      %v1888 = vor.u32 %v1887, %v1883
      %v1889 = vrot.slane %v1888, 4
      %v1891 = vshll.u32 %v1627, 16
      %v1893 = vrot.slane %v1891, 5
      %v1894 = vsel %vm1654, %v1889, %v1893
      %v1896 = vshrl.u32 %v1628, 16
      %v1898 = vrot.slane %v1896, 4
      %v1899 = vshll.u32 %v1628, 16
      %v1901 = vrot.slane %v1899, 5
      %v1902 = vor.u32 %v1898, %v1901
      %v1903 = vrot.slane %v1902, 4
      %v1905 = vshll.u32 %v1629, 16
      %v1907 = vrot.slane %v1905, 5
      %v1908 = vsel %vm1654, %v1903, %v1907
      %v1909 = vshrl.u32 %v1629, 16
      %v1911 = vrot.slane %v1909, 4
      %v1912 = vor.u32 %v1911, %v1907
      %v1913 = vrot.slane %v1912, 4
      %v1915 = vshll.u32 %v1630, 16
      %v1917 = vrot.slane %v1915, 5
      %v1918 = vsel %vm1654, %v1913, %v1917
      %v1920 = vshrl.u32 %v1631, 16
      %v1922 = vrot.slane %v1920, 4
      %v1923 = vshll.u32 %v1631, 16
      %v1925 = vrot.slane %v1923, 5
      %v1926 = vor.u32 %v1922, %v1925
      %v1927 = vrot.slane %v1926, 4
      %v1929 = vshll.u32 %v1632, 16
      %v1931 = vrot.slane %v1929, 5
      %v1932 = vsel %vm1654, %v1927, %v1931
      %v1933 = vshrl.u32 %v1632, 16
      %v1935 = vrot.slane %v1933, 4
      %v1936 = vor.u32 %v1935, %v1931
      %v1937 = vrot.slane %v1936, 4
      %v1939 = vshll.u32 %v1633, 16
      %v1941 = vrot.slane %v1939, 5
      %v1942 = vsel %vm1654, %v1937, %v1941
      %v1944 = vshrl.u32 %v1634, 16
      %v1946 = vrot.slane %v1944, 4
      %v1947 = vshll.u32 %v1634, 16
      %v1949 = vrot.slane %v1947, 5
      %v1950 = vor.u32 %v1946, %v1949
      %v1951 = vrot.slane %v1950, 4
      %v1953 = vshll.u32 %v1635, 16
      %v1955 = vrot.slane %v1953, 5
      %v1956 = vsel %vm1654, %v1951, %v1955
      %v1957 = vshrl.u32 %v1635, 16
      %v1959 = vrot.slane %v1957, 4
      %v1960 = vor.u32 %v1959, %v1955
      %v1961 = vrot.slane %v1960, 4
      %v1963 = vshll.u32 %v1636, 16
      %v1965 = vrot.slane %v1963, 5
      %v1966 = vsel %vm1654, %v1961, %v1965
      %v1968 = vshrl.u32 %v1637, 16
      %v1970 = vrot.slane %v1968, 4
      %v1971 = vshll.u32 %v1637, 16
      %v1973 = vrot.slane %v1971, 5
      %v1974 = vor.u32 %v1970, %v1973
      %v1975 = vrot.slane %v1974, 4
      %v1977 = vshll.u32 %v1638, 16
      %v1979 = vrot.slane %v1977, 5
      %v1980 = vsel %vm1654, %v1975, %v1979
      %v1981 = vshrl.u32 %v1638, 16
      %v1983 = vrot.slane %v1981, 4
      %v1984 = vor.u32 %v1983, %v1979
      %v1985 = vrot.slane %v1984, 4
      %v1987 = vshll.u32 %v1639, 16
      %v1989 = vrot.slane %v1987, 5
      %v1990 = vsel %vm1654, %v1985, %v1989
      %v1992 = vshrl.u32 %v1640, 16
      %v1994 = vrot.slane %v1992, 4
      %v1995 = vshll.u32 %v1640, 16
      %v1997 = vrot.slane %v1995, 5
      %v1998 = vor.u32 %v1994, %v1997
      %v1999 = vrot.slane %v1998, 4
      %v2001 = vshll.u32 %v1641, 16
      %v2003 = vrot.slane %v2001, 5
      %v2004 = vsel %vm1654, %v1999, %v2003
      %v2005 = vshrl.u32 %v1641, 16
      %v2007 = vrot.slane %v2005, 4
      %v2008 = vor.u32 %v2007, %v2003
      %v2009 = vrot.slane %v2008, 4
      %v2011 = vshll.u32 %v1642, 16
      %v2013 = vrot.slane %v2011, 5
      %v2014 = vsel %vm1654, %v2009, %v2013
      %v2016 = vshrl.u32 %v1643, 16
      %v2018 = vrot.slane %v2016, 4
      %v2019 = vshll.u32 %v1643, 16
      %v2021 = vrot.slane %v2019, 5
      %v2022 = vor.u32 %v2018, %v2021
      %v2023 = vrot.slane %v2022, 4
      %v2025 = vshll.u32 %v1644, 16
      %v2027 = vrot.slane %v2025, 5
      %v2028 = vsel %vm1654, %v2023, %v2027
      %v2029 = vshrl.u32 %v1644, 16
      %v2031 = vrot.slane %v2029, 4
      %v2032 = vor.u32 %v2031, %v2027
      %v2033 = vrot.slane %v2032, 4
      %v2035 = vshll.u32 %v1645, 16
      %v2037 = vrot.slane %v2035, 5
      %v2038 = vsel %vm1654, %v2033, %v2037
      %v2039 = vld [vmem:[%s3 + $0x40] sm:$0xf]
      %v2040 = vld [vmem:[%s3 + $0x44] sm:$0xf]
      %v2041 = vld [vmem:[%s3 + $0x48] sm:$0xf]
      %v2042 = vld [vmem:[%s3 + $0x4c] sm:$0xf]
      %v2043 = vld [vmem:[%s3 + $0x50] sm:$0xf]
      %v2044 = vld [vmem:[%s3 + $0x54] sm:$0xf]
      %v2045 = vld [vmem:[%s3 + $0x58] sm:$0xf]
      %v2046 = vld [vmem:[%s3 + $0x5c] sm:$0xf]
      %v2047 = vld [vmem:[%s3 + $0x60] sm:$0xf]
      %v2048 = vld [vmem:[%s3 + $0x64] sm:$0xf]
      %v2049 = vld [vmem:[%s3 + $0x68] sm:$0xf]
      %v2050 = vld [vmem:[%s3 + $0x6c] sm:$0xf]
      %v2051 = vld [vmem:[%s3 + $0x70] sm:$0xf]
      %v2052 = vld [vmem:[%s3 + $0x74] sm:$0xf]
      %v2053 = vld [vmem:[%s3 + $0x78] sm:$0xf]
      %v2054 = vld [vmem:[%s3 + $0x7c] sm:$0xf]
      %v2055 = vunpack.c.l.b16 %v1668
      %v2056 = vunpack.c.l.b16 %v1678
      %v2057 = vunpack.c.l.b16 %v1692
      %v2058 = vunpack.c.l.b16 %v1702
      %v2059 = vunpack.c.l.b16 %v1716
      %v2060 = vunpack.c.l.b16 %v1726
      %v2061 = vunpack.c.l.b16 %v1740
      %v2062 = vunpack.c.l.b16 %v1750
      %v2063 = vunpack.c.l.b16 %v1764
      %v2064 = vunpack.c.l.b16 %v1774
      %v2065 = vunpack.c.l.b16 %v1788
      %v2066 = vunpack.c.l.b16 %v1798
      %v2067 = vunpack.c.l.b16 %v1812
      %v2068 = vunpack.c.l.b16 %v1822
      %v2069 = vunpack.c.l.b16 %v1836
      %v2070 = vunpack.c.l.b16 %v1846
      %v2071 = vunpack.c.l.b16 %v1860
      %v2072 = vunpack.c.l.b16 %v1870
      %v2073 = vunpack.c.l.b16 %v1884
      %v2074 = vunpack.c.l.b16 %v1894
      %v2075 = vunpack.c.l.b16 %v1908
      %v2076 = vunpack.c.l.b16 %v1918
      %v2077 = vunpack.c.l.b16 %v1932
      %v2078 = vunpack.c.l.b16 %v1942
      %v2079 = vunpack.c.l.b16 %v1956
      %v2080 = vunpack.c.l.b16 %v1966
      %v2081 = vunpack.c.l.b16 %v1980
      %v2082 = vunpack.c.l.b16 %v1990
      %v2083 = vunpack.c.l.b16 %v2004
      %v2084 = vunpack.c.l.b16 %v2014
      %v2085 = vunpack.c.l.b16 %v2028
      %v2086 = vunpack.c.l.b16 %v2038
      %v2087 = vpack.c.b16 %v2056, %v2055
      %v2088 = vpack.c.b16 %v2058, %v2057
      %v2089 = vpack.c.b16 %v2060, %v2059
      %v2090 = vpack.c.b16 %v2062, %v2061
      %v2091 = vpack.c.b16 %v2064, %v2063
      %v2092 = vpack.c.b16 %v2066, %v2065
      %v2093 = vpack.c.b16 %v2068, %v2067
      %v2094 = vpack.c.b16 %v2070, %v2069
      %v2095 = vpack.c.b16 %v2072, %v2071
      %v2096 = vpack.c.b16 %v2074, %v2073
      %v2097 = vpack.c.b16 %v2076, %v2075
      %v2098 = vpack.c.b16 %v2078, %v2077
      %v2099 = vpack.c.b16 %v2080, %v2079
      %v2100 = vpack.c.b16 %v2082, %v2081
      %v2101 = vpack.c.b16 %v2084, %v2083
      %v2102 = vpack.c.b16 %v2086, %v2085
      %v2135 = vunpack.c.l.b16 %v2039
      %v2136 = vunpack.c.l.b16 %v2040
      %v2137 = vunpack.c.l.b16 %v2041
      %v2138 = vunpack.c.l.b16 %v2042
      %v2139 = vunpack.c.l.b16 %v2043
      %v2140 = vunpack.c.l.b16 %v2044
      %v2141 = vunpack.c.l.b16 %v2045
      %v2142 = vunpack.c.l.b16 %v2046
      %v2143 = vunpack.c.l.b16 %v2047
      %v2144 = vunpack.c.l.b16 %v2048
      %v2145 = vunpack.c.l.b16 %v2049
      %v2146 = vunpack.c.l.b16 %v2050
      %v2147 = vunpack.c.l.b16 %v2051
      %v2148 = vunpack.c.l.b16 %v2052
      %v2149 = vunpack.c.l.b16 %v2053
      %v2150 = vunpack.c.l.b16 %v2054
      %v2151 = vpack.c.b16 %v2136, %v2135
      %v2152 = vpack.c.b16 %v2138, %v2137
      %v2153 = vpack.c.b16 %v2140, %v2139
      %v2154 = vpack.c.b16 %v2142, %v2141
      %v2155 = vpack.c.b16 %v2144, %v2143
      %v2156 = vpack.c.b16 %v2146, %v2145
      %v2157 = vpack.c.b16 %v2148, %v2147
      %v2158 = vpack.c.b16 %v2150, %v2149
      %2167 = vmatpush.bf16.msra.mxu0 %v2158
      %2168 = vmatpush.bf16.msra.mxu0 %v2157
      %2169 = vmatpush.bf16.msra.mxu0 %v2156
      %2170 = vmatpush.bf16.msra.mxu0 %v2155
      %2171 = vmatpush.bf16.msra.mxu0 %v2154
      %2172 = vmatpush.bf16.msra.mxu0 %v2153
      %2173 = vmatpush.bf16.msra.mxu0 %v2152
      %2174 = vmatpush.bf16.msra.mxu0 %v2151
      %2175 = vmatmul.bf16.gmra.mxu0 %v2087
      %v2176 = vpop.f32.mrf.mxu0
      %v2177 = vadd.f32 0.0, %v2176
      %v2178 = vpop.f32.mrf.mxu0
      %v2179 = vadd.f32 0.0, %v2178
      %2180 = vmatmul.bf16.gmra.mxu0 %v2088
      %v2181 = vpop.f32.mrf.mxu0
      %v2182 = vadd.f32 0.0, %v2181
      %v2183 = vpop.f32.mrf.mxu0
      %v2184 = vadd.f32 0.0, %v2183
      %2185 = vmatmul.bf16.gmra.mxu0 %v2089
      %v2186 = vpop.f32.mrf.mxu0
      %v2187 = vadd.f32 0.0, %v2186
      %v2188 = vpop.f32.mrf.mxu0
      %v2189 = vadd.f32 0.0, %v2188
      %2190 = vmatmul.bf16.gmra.mxu0 %v2090
      %v2191 = vpop.f32.mrf.mxu0
      %v2192 = vadd.f32 0.0, %v2191
      %v2193 = vpop.f32.mrf.mxu0
      %v2194 = vadd.f32 0.0, %v2193
      %2195 = vmatmul.bf16.gmra.mxu0 %v2091
      %v2196 = vpop.f32.mrf.mxu0
      %v2197 = vadd.f32 0.0, %v2196
      %v2198 = vpop.f32.mrf.mxu0
      %v2199 = vadd.f32 0.0, %v2198
      %2200 = vmatmul.bf16.gmra.mxu0 %v2092
      %v2201 = vpop.f32.mrf.mxu0
      %v2202 = vadd.f32 0.0, %v2201
      %v2203 = vpop.f32.mrf.mxu0
      %v2204 = vadd.f32 0.0, %v2203
      %2205 = vmatmul.bf16.gmra.mxu0 %v2093
      %v2206 = vpop.f32.mrf.mxu0
      %v2207 = vadd.f32 0.0, %v2206
      %v2208 = vpop.f32.mrf.mxu0
      %v2209 = vadd.f32 0.0, %v2208
      %2210 = vmatmul.bf16.gmra.mxu0 %v2094
      %v2211 = vpop.f32.mrf.mxu0
      %v2212 = vadd.f32 0.0, %v2211
      %v2213 = vpop.f32.mrf.mxu0
      %v2214 = vadd.f32 0.0, %v2213
      %2215 = vmatmul.bf16.gmra.mxu0 %v2095
      %v2216 = vpop.f32.mrf.mxu0
      %v2217 = vadd.f32 0.0, %v2216
      %v2218 = vpop.f32.mrf.mxu0
      %v2219 = vadd.f32 0.0, %v2218
      %2220 = vmatmul.bf16.gmra.mxu0 %v2096
      %v2221 = vpop.f32.mrf.mxu0
      %v2222 = vadd.f32 0.0, %v2221
      %v2223 = vpop.f32.mrf.mxu0
      %v2224 = vadd.f32 0.0, %v2223
      %2225 = vmatmul.bf16.gmra.mxu0 %v2097
      %v2226 = vpop.f32.mrf.mxu0
      %v2227 = vadd.f32 0.0, %v2226
      %v2228 = vpop.f32.mrf.mxu0
      %v2229 = vadd.f32 0.0, %v2228
      %2230 = vmatmul.bf16.gmra.mxu0 %v2098
      %v2231 = vpop.f32.mrf.mxu0
      %v2232 = vadd.f32 0.0, %v2231
      %v2233 = vpop.f32.mrf.mxu0
      %v2234 = vadd.f32 0.0, %v2233
      %2235 = vmatmul.bf16.gmra.mxu0 %v2099
      %v2236 = vpop.f32.mrf.mxu0
      %v2237 = vadd.f32 0.0, %v2236
      %v2238 = vpop.f32.mrf.mxu0
      %v2239 = vadd.f32 0.0, %v2238
      %2240 = vmatmul.bf16.gmra.mxu0 %v2100
      %v2241 = vpop.f32.mrf.mxu0
      %v2242 = vadd.f32 0.0, %v2241
      %v2243 = vpop.f32.mrf.mxu0
      %v2244 = vadd.f32 0.0, %v2243
      %2245 = vmatmul.bf16.gmra.mxu0 %v2101
      %v2246 = vpop.f32.mrf.mxu0
      %v2247 = vadd.f32 0.0, %v2246
      %v2248 = vpop.f32.mrf.mxu0
      %v2249 = vadd.f32 0.0, %v2248
      %2250 = vmatmul.bf16.gmra.mxu0 %v2102
      %v2251 = vpop.f32.mrf.mxu0
      %v2252 = vadd.f32 0.0, %v2251
      %v2253 = vpop.f32.mrf.mxu0
      %v2254 = vadd.f32 0.0, %v2253
      %2255 = vdwg.mxu0
      %v2256 = vadd.f32 %v1566, %v2177
      %v2257 = vadd.f32 %v1567, %v2179
      %v2258 = vadd.f32 %v1568, %v2182
      %v2259 = vadd.f32 %v1569, %v2184
      %v2260 = vadd.f32 %v1570, %v2187
      %v2261 = vadd.f32 %v1571, %v2189
      %v2262 = vadd.f32 %v1572, %v2192
      %v2263 = vadd.f32 %v1573, %v2194
      %v2264 = vadd.f32 %v1574, %v2197
      %v2265 = vadd.f32 %v1575, %v2199
      %v2266 = vadd.f32 %v1576, %v2202
      %v2267 = vadd.f32 %v1577, %v2204
      %v2268 = vadd.f32 %v1578, %v2207
      %v2269 = vadd.f32 %v1579, %v2209
      %v2270 = vadd.f32 %v1580, %v2212
      %v2271 = vadd.f32 %v1581, %v2214
      %v2272 = vadd.f32 %v1582, %v2217
      %v2273 = vadd.f32 %v1583, %v2219
      %v2274 = vadd.f32 %v1584, %v2222
      %v2275 = vadd.f32 %v1585, %v2224
      %v2276 = vadd.f32 %v1586, %v2227
      %v2277 = vadd.f32 %v1587, %v2229
      %v2278 = vadd.f32 %v1588, %v2232
      %v2279 = vadd.f32 %v1589, %v2234
      %v2280 = vadd.f32 %v1590, %v2237
      %v2281 = vadd.f32 %v1591, %v2239
      %v2282 = vadd.f32 %v1592, %v2242
      %v2283 = vadd.f32 %v1593, %v2244
      %v2284 = vadd.f32 %v1594, %v2247
      %v2285 = vadd.f32 %v1595, %v2249
      %v2286 = vadd.f32 %v1596, %v2252
      %v2287 = vadd.f32 %v1597, %v2254
      %v2289 = vshrl.u32 %v1646, 16
      %v2291 = vrot.slane %v2289, 4
      %v2292 = vshll.u32 %v1646, 16
      %v2294 = vrot.slane %v2292, 5
      %v2295 = vor.u32 %v2291, %v2294
      %v2296 = vrot.slane %v2295, 4
      %v2298 = vshll.u32 %v1647, 16
      %v2300 = vrot.slane %v2298, 5
      %v2301 = vsel %vm1654, %v2296, %v2300
      %v2302 = vshrl.u32 %v1647, 16
      %v2304 = vrot.slane %v2302, 4
      %v2305 = vor.u32 %v2304, %v2300
      %v2306 = vrot.slane %v2305, 4
      %v2308 = vshll.u32 %v1648, 16
      %v2310 = vrot.slane %v2308, 5
      %v2311 = vsel %vm1654, %v2306, %v2310
      %v2312 = vld [vmem:[%s3 + $0x100] sm:$0xf]
      %v2313 = vld [vmem:[%s3 + $0x104] sm:$0xf]
      %v2314 = vld [vmem:[%s3 + $0x108] sm:$0xf]
      %v2315 = vld [vmem:[%s3 + $0x10c] sm:$0xf]
      %v2316 = vld [vmem:[%s3 + $0x110] sm:$0xf]
      %v2317 = vld [vmem:[%s3 + $0x114] sm:$0xf]
      %v2318 = vld [vmem:[%s3 + $0x118] sm:$0xf]
      %v2319 = vld [vmem:[%s3 + $0x11c] sm:$0xf]
      %v2320 = vld [vmem:[%s3 + $0x120] sm:$0xf]
      %v2321 = vld [vmem:[%s3 + $0x124] sm:$0xf]
      %v2322 = vld [vmem:[%s3 + $0x128] sm:$0xf]
      %v2323 = vld [vmem:[%s3 + $0x12c] sm:$0xf]
      %v2324 = vld [vmem:[%s3 + $0x130] sm:$0xf]
      %v2325 = vld [vmem:[%s3 + $0x134] sm:$0xf]
      %v2326 = vld [vmem:[%s3 + $0x138] sm:$0xf]
      %v2327 = vld [vmem:[%s3 + $0x13c] sm:$0xf]
      %v2328 = vunpack.c.l.b16 %v2301
      %v2329 = vunpack.c.l.b16 %v2311
      %v2330 = vpack.c.b16 %v2329, %v2328
      %v2348 = vunpack.c.l.b16 %v2312
      %v2349 = vunpack.c.l.b16 %v2313
      %v2350 = vunpack.c.l.b16 %v2314
      %v2351 = vunpack.c.l.b16 %v2315
      %v2352 = vunpack.c.l.b16 %v2316
      %v2353 = vunpack.c.l.b16 %v2317
      %v2354 = vunpack.c.l.b16 %v2318
      %v2355 = vunpack.c.l.b16 %v2319
      %v2356 = vunpack.c.l.b16 %v2320
      %v2357 = vunpack.c.l.b16 %v2321
      %v2358 = vunpack.c.l.b16 %v2322
      %v2359 = vunpack.c.l.b16 %v2323
      %v2360 = vunpack.c.l.b16 %v2324
      %v2361 = vunpack.c.l.b16 %v2325
      %v2362 = vunpack.c.l.b16 %v2326
      %v2363 = vunpack.c.l.b16 %v2327
      %v2364 = vpack.c.b16 %v2349, %v2348
      %v2365 = vpack.c.b16 %v2351, %v2350
      %v2366 = vpack.c.b16 %v2353, %v2352
      %v2367 = vpack.c.b16 %v2355, %v2354
      %v2368 = vpack.c.b16 %v2357, %v2356
      %v2369 = vpack.c.b16 %v2359, %v2358
      %v2370 = vpack.c.b16 %v2361, %v2360
      %v2371 = vpack.c.b16 %v2363, %v2362
      %2380 = vmatpush.bf16.msra.mxu0 %v2371
      %2381 = vmatpush.bf16.msra.mxu0 %v2370
      %2382 = vmatpush.bf16.msra.mxu0 %v2369
      %2383 = vmatpush.bf16.msra.mxu0 %v2368
      %2384 = vmatpush.bf16.msra.mxu0 %v2367
      %2385 = vmatpush.bf16.msra.mxu0 %v2366
      %2386 = vmatpush.bf16.msra.mxu0 %v2365
      %2387 = vmatpush.bf16.msra.mxu0 %v2364
      %2388 = vmatmul.bf16.gmra.mxu0 %v2088
      %v2389 = vpop.f32.mrf.mxu0
      %v2390 = vadd.f32 0.0, %v2389
      %v2391 = vpop.f32.mrf.mxu0
      %v2392 = vadd.f32 0.0, %v2391
      %2393 = vmatmul.bf16.gmra.mxu0 %v2089
      %v2394 = vpop.f32.mrf.mxu0
      %v2395 = vadd.f32 0.0, %v2394
      %v2396 = vpop.f32.mrf.mxu0
      %v2397 = vadd.f32 0.0, %v2396
      %2398 = vmatmul.bf16.gmra.mxu0 %v2090
      %v2399 = vpop.f32.mrf.mxu0
      %v2400 = vadd.f32 0.0, %v2399
      %v2401 = vpop.f32.mrf.mxu0
      %v2402 = vadd.f32 0.0, %v2401
      %2403 = vmatmul.bf16.gmra.mxu0 %v2091
      %v2404 = vpop.f32.mrf.mxu0
      %v2405 = vadd.f32 0.0, %v2404
      %v2406 = vpop.f32.mrf.mxu0
      %v2407 = vadd.f32 0.0, %v2406
      %2408 = vmatmul.bf16.gmra.mxu0 %v2092
      %v2409 = vpop.f32.mrf.mxu0
      %v2410 = vadd.f32 0.0, %v2409
      %v2411 = vpop.f32.mrf.mxu0
      %v2412 = vadd.f32 0.0, %v2411
      %2413 = vmatmul.bf16.gmra.mxu0 %v2093
      %v2414 = vpop.f32.mrf.mxu0
      %v2415 = vadd.f32 0.0, %v2414
      %v2416 = vpop.f32.mrf.mxu0
      %v2417 = vadd.f32 0.0, %v2416
      %2418 = vmatmul.bf16.gmra.mxu0 %v2094
      %v2419 = vpop.f32.mrf.mxu0
      %v2420 = vadd.f32 0.0, %v2419
      %v2421 = vpop.f32.mrf.mxu0
      %v2422 = vadd.f32 0.0, %v2421
      %2423 = vmatmul.bf16.gmra.mxu0 %v2095
      %v2424 = vpop.f32.mrf.mxu0
      %v2425 = vadd.f32 0.0, %v2424
      %v2426 = vpop.f32.mrf.mxu0
      %v2427 = vadd.f32 0.0, %v2426
      %2428 = vmatmul.bf16.gmra.mxu0 %v2096
      %v2429 = vpop.f32.mrf.mxu0
      %v2430 = vadd.f32 0.0, %v2429
      %v2431 = vpop.f32.mrf.mxu0
      %v2432 = vadd.f32 0.0, %v2431
      %2433 = vmatmul.bf16.gmra.mxu0 %v2097
      %v2434 = vpop.f32.mrf.mxu0
      %v2435 = vadd.f32 0.0, %v2434
      %v2436 = vpop.f32.mrf.mxu0
      %v2437 = vadd.f32 0.0, %v2436
      %2438 = vmatmul.bf16.gmra.mxu0 %v2098
      %v2439 = vpop.f32.mrf.mxu0
      %v2440 = vadd.f32 0.0, %v2439
      %v2441 = vpop.f32.mrf.mxu0
      %v2442 = vadd.f32 0.0, %v2441
      %2443 = vmatmul.bf16.gmra.mxu0 %v2099
      %v2444 = vpop.f32.mrf.mxu0
      %v2445 = vadd.f32 0.0, %v2444
      %v2446 = vpop.f32.mrf.mxu0
      %v2447 = vadd.f32 0.0, %v2446
      %2448 = vmatmul.bf16.gmra.mxu0 %v2100
      %v2449 = vpop.f32.mrf.mxu0
      %v2450 = vadd.f32 0.0, %v2449
      %v2451 = vpop.f32.mrf.mxu0
      %v2452 = vadd.f32 0.0, %v2451
      %2453 = vmatmul.bf16.gmra.mxu0 %v2101
      %v2454 = vpop.f32.mrf.mxu0
      %v2455 = vadd.f32 0.0, %v2454
      %v2456 = vpop.f32.mrf.mxu0
      %v2457 = vadd.f32 0.0, %v2456
      %2458 = vmatmul.bf16.gmra.mxu0 %v2102
      %v2459 = vpop.f32.mrf.mxu0
      %v2460 = vadd.f32 0.0, %v2459
      %v2461 = vpop.f32.mrf.mxu0
      %v2462 = vadd.f32 0.0, %v2461
      %2463 = vmatmul.bf16.gmra.mxu0 %v2330
      %v2464 = vpop.f32.mrf.mxu0
      %v2465 = vadd.f32 0.0, %v2464
      %v2466 = vpop.f32.mrf.mxu0
      %v2467 = vadd.f32 0.0, %v2466
      %2468 = vdwg.mxu0
      %v2469 = vadd.f32 %v2256, %v2390
      %v2470 = vadd.f32 %v2257, %v2392
      %v2471 = vadd.f32 %v2258, %v2395
      %v2472 = vadd.f32 %v2259, %v2397
      %v2473 = vadd.f32 %v2260, %v2400
      %v2474 = vadd.f32 %v2261, %v2402
      %v2475 = vadd.f32 %v2262, %v2405
      %v2476 = vadd.f32 %v2263, %v2407
      %v2477 = vadd.f32 %v2264, %v2410
      %v2478 = vadd.f32 %v2265, %v2412
      %v2479 = vadd.f32 %v2266, %v2415
      %v2480 = vadd.f32 %v2267, %v2417
      %v2481 = vadd.f32 %v2268, %v2420
      %v2482 = vadd.f32 %v2269, %v2422
      %v2483 = vadd.f32 %v2270, %v2425
      %v2484 = vadd.f32 %v2271, %v2427
      %v2485 = vadd.f32 %v2272, %v2430
      %v2486 = vadd.f32 %v2273, %v2432
      %v2487 = vadd.f32 %v2274, %v2435
      %v2488 = vadd.f32 %v2275, %v2437
      %v2489 = vadd.f32 %v2276, %v2440
      %v2490 = vadd.f32 %v2277, %v2442
      %v2491 = vadd.f32 %v2278, %v2445
      %v2492 = vadd.f32 %v2279, %v2447
      %v2493 = vadd.f32 %v2280, %v2450
      %v2494 = vadd.f32 %v2281, %v2452
      %v2495 = vadd.f32 %v2282, %v2455
      %v2496 = vadd.f32 %v2283, %v2457
      %v2497 = vadd.f32 %v2284, %v2460
      %v2498 = vadd.f32 %v2285, %v2462
      %v2499 = vadd.f32 %v2286, %v2465
      %v2500 = vadd.f32 %v2287, %v2467
      %v2502 = vshrl.u32 %v1649, 16
      %v2504 = vrot.slane %v2502, 4
      %v2505 = vshll.u32 %v1649, 16
      %v2507 = vrot.slane %v2505, 5
      %v2508 = vor.u32 %v2504, %v2507
      %v2509 = vrot.slane %v2508, 4
      %v2511 = vshll.u32 %v1650, 16
      %v2513 = vrot.slane %v2511, 5
      %v2514 = vsel %vm1654, %v2509, %v2513
      %v2515 = vshrl.u32 %v1650, 16
      %v2517 = vrot.slane %v2515, 4
      %v2518 = vor.u32 %v2517, %v2513
      %v2519 = vrot.slane %v2518, 4
      %v2521 = vshll.u32 %v1651, 16
      %v2523 = vrot.slane %v2521, 5
      %v2524 = vsel %vm1654, %v2519, %v2523
      %v2525 = vld [vmem:[%s3 + $0x1c0] sm:$0xf]
      %v2526 = vld [vmem:[%s3 + $0x1c4] sm:$0xf]
      %v2527 = vld [vmem:[%s3 + $0x1c8] sm:$0xf]
      %v2528 = vld [vmem:[%s3 + $0x1cc] sm:$0xf]
      %v2529 = vld [vmem:[%s3 + $0x1d0] sm:$0xf]
      %v2530 = vld [vmem:[%s3 + $0x1d4] sm:$0xf]
      %v2531 = vld [vmem:[%s3 + $0x1d8] sm:$0xf]
      %v2532 = vld [vmem:[%s3 + $0x1dc] sm:$0xf]
      %v2533 = vld [vmem:[%s3 + $0x1e0] sm:$0xf]
      %v2534 = vld [vmem:[%s3 + $0x1e4] sm:$0xf]
      %v2535 = vld [vmem:[%s3 + $0x1e8] sm:$0xf]
      %v2536 = vld [vmem:[%s3 + $0x1ec] sm:$0xf]
      %v2537 = vld [vmem:[%s3 + $0x1f0] sm:$0xf]
      %v2538 = vld [vmem:[%s3 + $0x1f4] sm:$0xf]
      %v2539 = vld [vmem:[%s3 + $0x1f8] sm:$0xf]
      %v2540 = vld [vmem:[%s3 + $0x1fc] sm:$0xf]
      %v2541 = vunpack.c.l.b16 %v2514
      %v2542 = vunpack.c.l.b16 %v2524
      %v2543 = vpack.c.b16 %v2542, %v2541
      %v2561 = vunpack.c.l.b16 %v2525
      %v2562 = vunpack.c.l.b16 %v2526
      %v2563 = vunpack.c.l.b16 %v2527
      %v2564 = vunpack.c.l.b16 %v2528
      %v2565 = vunpack.c.l.b16 %v2529
      %v2566 = vunpack.c.l.b16 %v2530
      %v2567 = vunpack.c.l.b16 %v2531
      %v2568 = vunpack.c.l.b16 %v2532
      %v2569 = vunpack.c.l.b16 %v2533
      %v2570 = vunpack.c.l.b16 %v2534
      %v2571 = vunpack.c.l.b16 %v2535
      %v2572 = vunpack.c.l.b16 %v2536
      %v2573 = vunpack.c.l.b16 %v2537
      %v2574 = vunpack.c.l.b16 %v2538
      %v2575 = vunpack.c.l.b16 %v2539
      %v2576 = vunpack.c.l.b16 %v2540
      %v2577 = vpack.c.b16 %v2562, %v2561
      %v2578 = vpack.c.b16 %v2564, %v2563
      %v2579 = vpack.c.b16 %v2566, %v2565
      %v2580 = vpack.c.b16 %v2568, %v2567
      %v2581 = vpack.c.b16 %v2570, %v2569
      %v2582 = vpack.c.b16 %v2572, %v2571
      %v2583 = vpack.c.b16 %v2574, %v2573
      %v2584 = vpack.c.b16 %v2576, %v2575
      %2593 = vmatpush.bf16.msra.mxu0 %v2584
      %2594 = vmatpush.bf16.msra.mxu0 %v2583
      %2595 = vmatpush.bf16.msra.mxu0 %v2582
      %2596 = vmatpush.bf16.msra.mxu0 %v2581
      %2597 = vmatpush.bf16.msra.mxu0 %v2580
      %2598 = vmatpush.bf16.msra.mxu0 %v2579
      %2599 = vmatpush.bf16.msra.mxu0 %v2578
      %2600 = vmatpush.bf16.msra.mxu0 %v2577
      %2601 = vmatmul.bf16.gmra.mxu0 %v2089
      %v2602 = vpop.f32.mrf.mxu0
      %v2603 = vadd.f32 0.0, %v2602
      %v2604 = vpop.f32.mrf.mxu0
      %v2605 = vadd.f32 0.0, %v2604
      %2606 = vmatmul.bf16.gmra.mxu0 %v2090
      %v2607 = vpop.f32.mrf.mxu0
      %v2608 = vadd.f32 0.0, %v2607
      %v2609 = vpop.f32.mrf.mxu0
      %v2610 = vadd.f32 0.0, %v2609
      %2611 = vmatmul.bf16.gmra.mxu0 %v2091
      %v2612 = vpop.f32.mrf.mxu0
      %v2613 = vadd.f32 0.0, %v2612
      %v2614 = vpop.f32.mrf.mxu0
      %v2615 = vadd.f32 0.0, %v2614
      %2616 = vmatmul.bf16.gmra.mxu0 %v2092
      %v2617 = vpop.f32.mrf.mxu0
      %v2618 = vadd.f32 0.0, %v2617
      %v2619 = vpop.f32.mrf.mxu0
      %v2620 = vadd.f32 0.0, %v2619
      %2621 = vmatmul.bf16.gmra.mxu0 %v2093
      %v2622 = vpop.f32.mrf.mxu0
      %v2623 = vadd.f32 0.0, %v2622
      %v2624 = vpop.f32.mrf.mxu0
      %v2625 = vadd.f32 0.0, %v2624
      %2626 = vmatmul.bf16.gmra.mxu0 %v2094
      %v2627 = vpop.f32.mrf.mxu0
      %v2628 = vadd.f32 0.0, %v2627
      %v2629 = vpop.f32.mrf.mxu0
      %v2630 = vadd.f32 0.0, %v2629
      %2631 = vmatmul.bf16.gmra.mxu0 %v2095
      %v2632 = vpop.f32.mrf.mxu0
      %v2633 = vadd.f32 0.0, %v2632
      %v2634 = vpop.f32.mrf.mxu0
      %v2635 = vadd.f32 0.0, %v2634
      %2636 = vmatmul.bf16.gmra.mxu0 %v2096
      %v2637 = vpop.f32.mrf.mxu0
      %v2638 = vadd.f32 0.0, %v2637
      %v2639 = vpop.f32.mrf.mxu0
      %v2640 = vadd.f32 0.0, %v2639
      %2641 = vmatmul.bf16.gmra.mxu0 %v2097
      %v2642 = vpop.f32.mrf.mxu0
      %v2643 = vadd.f32 0.0, %v2642
      %v2644 = vpop.f32.mrf.mxu0
      %v2645 = vadd.f32 0.0, %v2644
      %2646 = vmatmul.bf16.gmra.mxu0 %v2098
      %v2647 = vpop.f32.mrf.mxu0
      %v2648 = vadd.f32 0.0, %v2647
      %v2649 = vpop.f32.mrf.mxu0
      %v2650 = vadd.f32 0.0, %v2649
      %2651 = vmatmul.bf16.gmra.mxu0 %v2099
      %v2652 = vpop.f32.mrf.mxu0
      %v2653 = vadd.f32 0.0, %v2652
      %v2654 = vpop.f32.mrf.mxu0
      %v2655 = vadd.f32 0.0, %v2654
      %2656 = vmatmul.bf16.gmra.mxu0 %v2100
      %v2657 = vpop.f32.mrf.mxu0
      %v2658 = vadd.f32 0.0, %v2657
      %v2659 = vpop.f32.mrf.mxu0
      %v2660 = vadd.f32 0.0, %v2659
      %2661 = vmatmul.bf16.gmra.mxu0 %v2101
      %v2662 = vpop.f32.mrf.mxu0
      %v2663 = vadd.f32 0.0, %v2662
      %v2664 = vpop.f32.mrf.mxu0
      %v2665 = vadd.f32 0.0, %v2664
      %2666 = vmatmul.bf16.gmra.mxu0 %v2102
      %v2667 = vpop.f32.mrf.mxu0
      %v2668 = vadd.f32 0.0, %v2667
      %v2669 = vpop.f32.mrf.mxu0
      %v2670 = vadd.f32 0.0, %v2669
      %2671 = vmatmul.bf16.gmra.mxu0 %v2330
      %v2672 = vpop.f32.mrf.mxu0
      %v2673 = vadd.f32 0.0, %v2672
      %v2674 = vpop.f32.mrf.mxu0
      %v2675 = vadd.f32 0.0, %v2674
      %2676 = vmatmul.bf16.gmra.mxu0 %v2543
      %v2677 = vpop.f32.mrf.mxu0
      %v2678 = vadd.f32 0.0, %v2677
      %v2679 = vpop.f32.mrf.mxu0
      %v2680 = vadd.f32 0.0, %v2679
      %2681 = vdwg.mxu0
      %v2682 = vadd.f32 %v2469, %v2603
      %v2683 = vadd.f32 %v2470, %v2605
      %v2684 = vadd.f32 %v2471, %v2608
      %v2685 = vadd.f32 %v2472, %v2610
      %v2686 = vadd.f32 %v2473, %v2613
      %v2687 = vadd.f32 %v2474, %v2615
      %v2688 = vadd.f32 %v2475, %v2618
      %v2689 = vadd.f32 %v2476, %v2620
      %v2690 = vadd.f32 %v2477, %v2623
      %v2691 = vadd.f32 %v2478, %v2625
      %v2692 = vadd.f32 %v2479, %v2628
      %v2693 = vadd.f32 %v2480, %v2630
      %v2694 = vadd.f32 %v2481, %v2633
      %v2695 = vadd.f32 %v2482, %v2635
      %v2696 = vadd.f32 %v2483, %v2638
      %v2697 = vadd.f32 %v2484, %v2640
      %v2698 = vadd.f32 %v2485, %v2643
      %v2699 = vadd.f32 %v2486, %v2645
      %v2700 = vadd.f32 %v2487, %v2648
      %v2701 = vadd.f32 %v2488, %v2650
      %v2702 = vadd.f32 %v2489, %v2653
      %v2703 = vadd.f32 %v2490, %v2655
      %v2704 = vadd.f32 %v2491, %v2658
      %v2705 = vadd.f32 %v2492, %v2660
      %v2706 = vadd.f32 %v2493, %v2663
      %v2707 = vadd.f32 %v2494, %v2665
      %v2708 = vadd.f32 %v2495, %v2668
      %v2709 = vadd.f32 %v2496, %v2670
      %v2710 = vadd.f32 %v2497, %v2673
      %v2711 = vadd.f32 %v2498, %v2675
      %v2712 = vadd.f32 %v2499, %v2678
      %v2713 = vadd.f32 %v2500, %v2680
      %v2714 = vld [vmem:[#allocation2] sm:$0xe]
      %v2715 = vld [vmem:[#allocation2 + $0xc] sm:$0xe]
      %v2716 = vld [vmem:[#allocation2 + $0x18] sm:$0xe]
      %v2717 = vld [vmem:[#allocation2 + $0x24] sm:$0xe]
      %v2718 = vld [vmem:[#allocation2 + $0x30] sm:$0xe]
      %v2719 = vld [vmem:[#allocation2 + $0x3c] sm:$0xe]
      %v2720 = vld [vmem:[#allocation2 + $0x48] sm:$0xe]
      %v2721 = vld [vmem:[#allocation2 + $0x54] sm:$0xe]
      %v2722 = vld [vmem:[#allocation2 + $0x60] sm:$0xe]
      %v2723 = vld [vmem:[#allocation2 + $0x6c] sm:$0xe]
      %v2724 = vld [vmem:[#allocation2 + $0x78] sm:$0xe]
      %v2725 = vld [vmem:[#allocation2 + $0x84] sm:$0xe]
      %v2726 = vld [vmem:[#allocation2 + $0x90] sm:$0xe]
      %v2727 = vld [vmem:[#allocation2 + $0x9c] sm:$0xe]
      %v2728 = vld [vmem:[#allocation2 + $0xa8] sm:$0xe]
      %v2729 = vld [vmem:[#allocation2 + $0xb4] sm:$0xe]
      %v2730 = vld [vmem:[#allocation2 + $0xc0] sm:$0xe]
      %v2731 = vld [vmem:[#allocation2 + $0xcc] sm:$0xe]
      %vm2780 = vcmask 1042432
      %vm2781 = vcmask 1046532
      %vm2782 = vmor %vm2780, %vm2781
      %v2783 = vrot.slane %v2714, 5
      %v2784 = vrot.slane %v2783, 4
      %v2785 = vrot.slane %v1599, 5
      %v2786 = vsel %vm2782, %v2784, %v2785
      %v2787 = vrot.slane %v2785, 4
      %v2788 = vrot.slane %v1600, 5
      %v2789 = vsel %vm2782, %v2787, %v2788
      %v2790 = vrot.slane %v2715, 5
      %v2791 = vrot.slane %v2790, 4
      %v2792 = vrot.slane %v1602, 5
      %v2793 = vsel %vm2782, %v2791, %v2792
      %v2794 = vrot.slane %v2792, 4
      %v2795 = vrot.slane %v1603, 5
      %v2796 = vsel %vm2782, %v2794, %v2795
      %v2797 = vrot.slane %v2716, 5
      %v2798 = vrot.slane %v2797, 4
      %v2799 = vrot.slane %v1605, 5
      %v2800 = vsel %vm2782, %v2798, %v2799
      %v2801 = vrot.slane %v2799, 4
      %v2802 = vrot.slane %v1606, 5
      %v2803 = vsel %vm2782, %v2801, %v2802
      %v2804 = vrot.slane %v2717, 5
      %v2805 = vrot.slane %v2804, 4
      %v2806 = vrot.slane %v1608, 5
      %v2807 = vsel %vm2782, %v2805, %v2806
      %v2808 = vrot.slane %v2806, 4
      %v2809 = vrot.slane %v1609, 5
      %v2810 = vsel %vm2782, %v2808, %v2809
      %v2811 = vrot.slane %v2718, 5
      %v2812 = vrot.slane %v2811, 4
      %v2813 = vrot.slane %v1611, 5
      %v2814 = vsel %vm2782, %v2812, %v2813
      %v2815 = vrot.slane %v2813, 4
      %v2816 = vrot.slane %v1612, 5
      %v2817 = vsel %vm2782, %v2815, %v2816
      %v2818 = vrot.slane %v2719, 5
      %v2819 = vrot.slane %v2818, 4
      %v2820 = vrot.slane %v1614, 5
      %v2821 = vsel %vm2782, %v2819, %v2820
      %v2822 = vrot.slane %v2820, 4
      %v2823 = vrot.slane %v1615, 5
      %v2824 = vsel %vm2782, %v2822, %v2823
      %v2825 = vrot.slane %v2720, 5
      %v2826 = vrot.slane %v2825, 4
      %v2827 = vrot.slane %v1617, 5
      %v2828 = vsel %vm2782, %v2826, %v2827
      %v2829 = vrot.slane %v2827, 4
      %v2830 = vrot.slane %v1618, 5
      %v2831 = vsel %vm2782, %v2829, %v2830
      %v2832 = vrot.slane %v2721, 5
      %v2833 = vrot.slane %v2832, 4
      %v2834 = vrot.slane %v1620, 5
      %v2835 = vsel %vm2782, %v2833, %v2834
      %v2836 = vrot.slane %v2834, 4
      %v2837 = vrot.slane %v1621, 5
      %v2838 = vsel %vm2782, %v2836, %v2837
      %v2839 = vrot.slane %v2722, 5
      %v2840 = vrot.slane %v2839, 4
      %v2841 = vrot.slane %v1623, 5
      %v2842 = vsel %vm2782, %v2840, %v2841
      %v2843 = vrot.slane %v2841, 4
      %v2844 = vrot.slane %v1624, 5
      %v2845 = vsel %vm2782, %v2843, %v2844
      %v2846 = vrot.slane %v2723, 5
      %v2847 = vrot.slane %v2846, 4
      %v2848 = vrot.slane %v1626, 5
      %v2849 = vsel %vm2782, %v2847, %v2848
      %v2850 = vrot.slane %v2848, 4
      %v2851 = vrot.slane %v1627, 5
      %v2852 = vsel %vm2782, %v2850, %v2851
      %v2853 = vrot.slane %v2724, 5
      %v2854 = vrot.slane %v2853, 4
      %v2855 = vrot.slane %v1629, 5
      %v2856 = vsel %vm2782, %v2854, %v2855
      %v2857 = vrot.slane %v2855, 4
      %v2858 = vrot.slane %v1630, 5
      %v2859 = vsel %vm2782, %v2857, %v2858
      %v2860 = vrot.slane %v2725, 5
      %v2861 = vrot.slane %v2860, 4
      %v2862 = vrot.slane %v1632, 5
      %v2863 = vsel %vm2782, %v2861, %v2862
      %v2864 = vrot.slane %v2862, 4
      %v2865 = vrot.slane %v1633, 5
      %v2866 = vsel %vm2782, %v2864, %v2865
      %v2867 = vrot.slane %v2726, 5
      %v2868 = vrot.slane %v2867, 4
      %v2869 = vrot.slane %v1635, 5
      %v2870 = vsel %vm2782, %v2868, %v2869
      %v2871 = vrot.slane %v2869, 4
      %v2872 = vrot.slane %v1636, 5
      %v2873 = vsel %vm2782, %v2871, %v2872
      %v2874 = vrot.slane %v2727, 5
      %v2875 = vrot.slane %v2874, 4
      %v2876 = vrot.slane %v1638, 5
      %v2877 = vsel %vm2782, %v2875, %v2876
      %v2878 = vrot.slane %v2876, 4
      %v2879 = vrot.slane %v1639, 5
      %v2880 = vsel %vm2782, %v2878, %v2879
      %v2881 = vrot.slane %v2728, 5
      %v2882 = vrot.slane %v2881, 4
      %v2883 = vrot.slane %v1641, 5
      %v2884 = vsel %vm2782, %v2882, %v2883
      %v2885 = vrot.slane %v2883, 4
      %v2886 = vrot.slane %v1642, 5
      %v2887 = vsel %vm2782, %v2885, %v2886
      %v2888 = vrot.slane %v2729, 5
      %v2889 = vrot.slane %v2888, 4
      %v2890 = vrot.slane %v1644, 5
      %v2891 = vsel %vm2782, %v2889, %v2890
      %v2892 = vrot.slane %v2890, 4
      %v2893 = vrot.slane %v1645, 5
      %v2894 = vsel %vm2782, %v2892, %v2893
      %v2895 = vld [vmem:[%s3 + $0x80] sm:$0xf]
      %v2896 = vld [vmem:[%s3 + $0x84] sm:$0xf]
      %v2897 = vld [vmem:[%s3 + $0x88] sm:$0xf]
      %v2898 = vld [vmem:[%s3 + $0x8c] sm:$0xf]
      %v2899 = vld [vmem:[%s3 + $0x90] sm:$0xf]
      %v2900 = vld [vmem:[%s3 + $0x94] sm:$0xf]
      %v2901 = vld [vmem:[%s3 + $0x98] sm:$0xf]
      %v2902 = vld [vmem:[%s3 + $0x9c] sm:$0xf]
      %v2903 = vld [vmem:[%s3 + $0xa0] sm:$0xf]
      %v2904 = vld [vmem:[%s3 + $0xa4] sm:$0xf]
      %v2905 = vld [vmem:[%s3 + $0xa8] sm:$0xf]
      %v2906 = vld [vmem:[%s3 + $0xac] sm:$0xf]
      %v2907 = vld [vmem:[%s3 + $0xb0] sm:$0xf]
      %v2908 = vld [vmem:[%s3 + $0xb4] sm:$0xf]
      %v2909 = vld [vmem:[%s3 + $0xb8] sm:$0xf]
      %v2910 = vld [vmem:[%s3 + $0xbc] sm:$0xf]
      %v2911 = vunpack.c.l.b16 %v2786
      %v2912 = vunpack.c.l.b16 %v2789
      %v2913 = vunpack.c.l.b16 %v2793
      %v2914 = vunpack.c.l.b16 %v2796
      %v2915 = vunpack.c.l.b16 %v2800
      %v2916 = vunpack.c.l.b16 %v2803
      %v2917 = vunpack.c.l.b16 %v2807
      %v2918 = vunpack.c.l.b16 %v2810
      %v2919 = vunpack.c.l.b16 %v2814
      %v2920 = vunpack.c.l.b16 %v2817
      %v2921 = vunpack.c.l.b16 %v2821
      %v2922 = vunpack.c.l.b16 %v2824
      %v2923 = vunpack.c.l.b16 %v2828
      %v2924 = vunpack.c.l.b16 %v2831
      %v2925 = vunpack.c.l.b16 %v2835
      %v2926 = vunpack.c.l.b16 %v2838
      %v2927 = vunpack.c.l.b16 %v2842
      %v2928 = vunpack.c.l.b16 %v2845
      %v2929 = vunpack.c.l.b16 %v2849
      %v2930 = vunpack.c.l.b16 %v2852
      %v2931 = vunpack.c.l.b16 %v2856
      %v2932 = vunpack.c.l.b16 %v2859
      %v2933 = vunpack.c.l.b16 %v2863
      %v2934 = vunpack.c.l.b16 %v2866
      %v2935 = vunpack.c.l.b16 %v2870
      %v2936 = vunpack.c.l.b16 %v2873
      %v2937 = vunpack.c.l.b16 %v2877
      %v2938 = vunpack.c.l.b16 %v2880
      %v2939 = vunpack.c.l.b16 %v2884
      %v2940 = vunpack.c.l.b16 %v2887
      %v2941 = vunpack.c.l.b16 %v2891
      %v2942 = vunpack.c.l.b16 %v2894
      %v2943 = vpack.c.b16 %v2912, %v2911
      %v2944 = vpack.c.b16 %v2914, %v2913
      %v2945 = vpack.c.b16 %v2916, %v2915
      %v2946 = vpack.c.b16 %v2918, %v2917
      %v2947 = vpack.c.b16 %v2920, %v2919
      %v2948 = vpack.c.b16 %v2922, %v2921
      %v2949 = vpack.c.b16 %v2924, %v2923
      %v2950 = vpack.c.b16 %v2926, %v2925
      %v2951 = vpack.c.b16 %v2928, %v2927
      %v2952 = vpack.c.b16 %v2930, %v2929
      %v2953 = vpack.c.b16 %v2932, %v2931
      %v2954 = vpack.c.b16 %v2934, %v2933
      %v2955 = vpack.c.b16 %v2936, %v2935
      %v2956 = vpack.c.b16 %v2938, %v2937
      %v2957 = vpack.c.b16 %v2940, %v2939
      %v2958 = vpack.c.b16 %v2942, %v2941
      %v2991 = vunpack.c.l.b16 %v2895
      %v2992 = vunpack.c.l.b16 %v2896
      %v2993 = vunpack.c.l.b16 %v2897
      %v2994 = vunpack.c.l.b16 %v2898
      %v2995 = vunpack.c.l.b16 %v2899
      %v2996 = vunpack.c.l.b16 %v2900
      %v2997 = vunpack.c.l.b16 %v2901
      %v2998 = vunpack.c.l.b16 %v2902
      %v2999 = vunpack.c.l.b16 %v2903
      %v3000 = vunpack.c.l.b16 %v2904
      %v3001 = vunpack.c.l.b16 %v2905
      %v3002 = vunpack.c.l.b16 %v2906
      %v3003 = vunpack.c.l.b16 %v2907
      %v3004 = vunpack.c.l.b16 %v2908
      %v3005 = vunpack.c.l.b16 %v2909
      %v3006 = vunpack.c.l.b16 %v2910
      %v3007 = vpack.c.b16 %v2992, %v2991
      %v3008 = vpack.c.b16 %v2994, %v2993
      %v3009 = vpack.c.b16 %v2996, %v2995
      %v3010 = vpack.c.b16 %v2998, %v2997
      %v3011 = vpack.c.b16 %v3000, %v2999
      %v3012 = vpack.c.b16 %v3002, %v3001
      %v3013 = vpack.c.b16 %v3004, %v3003
      %v3014 = vpack.c.b16 %v3006, %v3005
      %3023 = vmatpush.bf16.msra.mxu0 %v3014
      %3024 = vmatpush.bf16.msra.mxu0 %v3013
      %3025 = vmatpush.bf16.msra.mxu0 %v3012
      %3026 = vmatpush.bf16.msra.mxu0 %v3011
      %3027 = vmatpush.bf16.msra.mxu0 %v3010
      %3028 = vmatpush.bf16.msra.mxu0 %v3009
      %3029 = vmatpush.bf16.msra.mxu0 %v3008
      %3030 = vmatpush.bf16.msra.mxu0 %v3007
      %3031 = vmatmul.bf16.gmra.mxu0 %v2943
      %v3032 = vpop.f32.mrf.mxu0
      %v3033 = vadd.f32 0.0, %v3032
      %v3034 = vpop.f32.mrf.mxu0
      %v3035 = vadd.f32 0.0, %v3034
      %3036 = vmatmul.bf16.gmra.mxu0 %v2944
      %v3037 = vpop.f32.mrf.mxu0
      %v3038 = vadd.f32 0.0, %v3037
      %v3039 = vpop.f32.mrf.mxu0
      %v3040 = vadd.f32 0.0, %v3039
      %3041 = vmatmul.bf16.gmra.mxu0 %v2945
      %v3042 = vpop.f32.mrf.mxu0
      %v3043 = vadd.f32 0.0, %v3042
      %v3044 = vpop.f32.mrf.mxu0
      %v3045 = vadd.f32 0.0, %v3044
      %3046 = vmatmul.bf16.gmra.mxu0 %v2946
      %v3047 = vpop.f32.mrf.mxu0
      %v3048 = vadd.f32 0.0, %v3047
      %v3049 = vpop.f32.mrf.mxu0
      %v3050 = vadd.f32 0.0, %v3049
      %3051 = vmatmul.bf16.gmra.mxu0 %v2947
      %v3052 = vpop.f32.mrf.mxu0
      %v3053 = vadd.f32 0.0, %v3052
      %v3054 = vpop.f32.mrf.mxu0
      %v3055 = vadd.f32 0.0, %v3054
      %3056 = vmatmul.bf16.gmra.mxu0 %v2948
      %v3057 = vpop.f32.mrf.mxu0
      %v3058 = vadd.f32 0.0, %v3057
      %v3059 = vpop.f32.mrf.mxu0
      %v3060 = vadd.f32 0.0, %v3059
      %3061 = vmatmul.bf16.gmra.mxu0 %v2949
      %v3062 = vpop.f32.mrf.mxu0
      %v3063 = vadd.f32 0.0, %v3062
      %v3064 = vpop.f32.mrf.mxu0
      %v3065 = vadd.f32 0.0, %v3064
      %3066 = vmatmul.bf16.gmra.mxu0 %v2950
      %v3067 = vpop.f32.mrf.mxu0
      %v3068 = vadd.f32 0.0, %v3067
      %v3069 = vpop.f32.mrf.mxu0
      %v3070 = vadd.f32 0.0, %v3069
      %3071 = vmatmul.bf16.gmra.mxu0 %v2951
      %v3072 = vpop.f32.mrf.mxu0
      %v3073 = vadd.f32 0.0, %v3072
      %v3074 = vpop.f32.mrf.mxu0
      %v3075 = vadd.f32 0.0, %v3074
      %3076 = vmatmul.bf16.gmra.mxu0 %v2952
      %v3077 = vpop.f32.mrf.mxu0
      %v3078 = vadd.f32 0.0, %v3077
      %v3079 = vpop.f32.mrf.mxu0
      %v3080 = vadd.f32 0.0, %v3079
      %3081 = vmatmul.bf16.gmra.mxu0 %v2953
      %v3082 = vpop.f32.mrf.mxu0
      %v3083 = vadd.f32 0.0, %v3082
      %v3084 = vpop.f32.mrf.mxu0
      %v3085 = vadd.f32 0.0, %v3084
      %3086 = vmatmul.bf16.gmra.mxu0 %v2954
      %v3087 = vpop.f32.mrf.mxu0
      %v3088 = vadd.f32 0.0, %v3087
      %v3089 = vpop.f32.mrf.mxu0
      %v3090 = vadd.f32 0.0, %v3089
      %3091 = vmatmul.bf16.gmra.mxu0 %v2955
      %v3092 = vpop.f32.mrf.mxu0
      %v3093 = vadd.f32 0.0, %v3092
      %v3094 = vpop.f32.mrf.mxu0
      %v3095 = vadd.f32 0.0, %v3094
      %3096 = vmatmul.bf16.gmra.mxu0 %v2956
      %v3097 = vpop.f32.mrf.mxu0
      %v3098 = vadd.f32 0.0, %v3097
      %v3099 = vpop.f32.mrf.mxu0
      %v3100 = vadd.f32 0.0, %v3099
      %3101 = vmatmul.bf16.gmra.mxu0 %v2957
      %v3102 = vpop.f32.mrf.mxu0
      %v3103 = vadd.f32 0.0, %v3102
      %v3104 = vpop.f32.mrf.mxu0
      %v3105 = vadd.f32 0.0, %v3104
      %3106 = vmatmul.bf16.gmra.mxu0 %v2958
      %v3107 = vpop.f32.mrf.mxu0
      %v3108 = vadd.f32 0.0, %v3107
      %v3109 = vpop.f32.mrf.mxu0
      %v3110 = vadd.f32 0.0, %v3109
      %3111 = vdwg.mxu0
      %v3112 = vadd.f32 %v2682, %v3033
      %v3113 = vadd.f32 %v2683, %v3035
      %v3114 = vadd.f32 %v2684, %v3038
      %v3115 = vadd.f32 %v2685, %v3040
      %v3116 = vadd.f32 %v2686, %v3043
      %v3117 = vadd.f32 %v2687, %v3045
      %v3118 = vadd.f32 %v2688, %v3048
      %v3119 = vadd.f32 %v2689, %v3050
      %v3120 = vadd.f32 %v2690, %v3053
      %v3121 = vadd.f32 %v2691, %v3055
      %v3122 = vadd.f32 %v2692, %v3058
      %v3123 = vadd.f32 %v2693, %v3060
      %v3124 = vadd.f32 %v2694, %v3063
      %v3125 = vadd.f32 %v2695, %v3065
      %v3126 = vadd.f32 %v2696, %v3068
      %v3127 = vadd.f32 %v2697, %v3070
      %v3128 = vadd.f32 %v2698, %v3073
      %v3129 = vadd.f32 %v2699, %v3075
      %v3130 = vadd.f32 %v2700, %v3078
      %v3131 = vadd.f32 %v2701, %v3080
      %v3132 = vadd.f32 %v2702, %v3083
      %v3133 = vadd.f32 %v2703, %v3085
      %v3134 = vadd.f32 %v2704, %v3088
      %v3135 = vadd.f32 %v2705, %v3090
      %v3136 = vadd.f32 %v2706, %v3093
      %v3137 = vadd.f32 %v2707, %v3095
      %v3138 = vadd.f32 %v2708, %v3098
      %v3139 = vadd.f32 %v2709, %v3100
      %v3140 = vadd.f32 %v2710, %v3103
      %v3141 = vadd.f32 %v2711, %v3105
      %v3142 = vadd.f32 %v2712, %v3108
      %v3143 = vadd.f32 %v2713, %v3110
      %v3147 = vrot.slane %v2730, 5
      %v3148 = vrot.slane %v3147, 4
      %v3149 = vrot.slane %v1647, 5
      %v3150 = vsel %vm2782, %v3148, %v3149
      %v3151 = vrot.slane %v3149, 4
      %v3152 = vrot.slane %v1648, 5
      %v3153 = vsel %vm2782, %v3151, %v3152
      %v3154 = vld [vmem:[%s3 + $0x140] sm:$0xf]
      %v3155 = vld [vmem:[%s3 + $0x144] sm:$0xf]
      %v3156 = vld [vmem:[%s3 + $0x148] sm:$0xf]
      %v3157 = vld [vmem:[%s3 + $0x14c] sm:$0xf]
      %v3158 = vld [vmem:[%s3 + $0x150] sm:$0xf]
      %v3159 = vld [vmem:[%s3 + $0x154] sm:$0xf]
      %v3160 = vld [vmem:[%s3 + $0x158] sm:$0xf]
      %v3161 = vld [vmem:[%s3 + $0x15c] sm:$0xf]
      %v3162 = vld [vmem:[%s3 + $0x160] sm:$0xf]
      %v3163 = vld [vmem:[%s3 + $0x164] sm:$0xf]
      %v3164 = vld [vmem:[%s3 + $0x168] sm:$0xf]
      %v3165 = vld [vmem:[%s3 + $0x16c] sm:$0xf]
      %v3166 = vld [vmem:[%s3 + $0x170] sm:$0xf]
      %v3167 = vld [vmem:[%s3 + $0x174] sm:$0xf]
      %v3168 = vld [vmem:[%s3 + $0x178] sm:$0xf]
      %v3169 = vld [vmem:[%s3 + $0x17c] sm:$0xf]
      %v3170 = vunpack.c.l.b16 %v3150
      %v3171 = vunpack.c.l.b16 %v3153
      %v3172 = vpack.c.b16 %v3171, %v3170
      %v3190 = vunpack.c.l.b16 %v3154
      %v3191 = vunpack.c.l.b16 %v3155
      %v3192 = vunpack.c.l.b16 %v3156
      %v3193 = vunpack.c.l.b16 %v3157
      %v3194 = vunpack.c.l.b16 %v3158
      %v3195 = vunpack.c.l.b16 %v3159
      %v3196 = vunpack.c.l.b16 %v3160
      %v3197 = vunpack.c.l.b16 %v3161
      %v3198 = vunpack.c.l.b16 %v3162
      %v3199 = vunpack.c.l.b16 %v3163
      %v3200 = vunpack.c.l.b16 %v3164
      %v3201 = vunpack.c.l.b16 %v3165
      %v3202 = vunpack.c.l.b16 %v3166
      %v3203 = vunpack.c.l.b16 %v3167
      %v3204 = vunpack.c.l.b16 %v3168
      %v3205 = vunpack.c.l.b16 %v3169
      %v3206 = vpack.c.b16 %v3191, %v3190
      %v3207 = vpack.c.b16 %v3193, %v3192
      %v3208 = vpack.c.b16 %v3195, %v3194
      %v3209 = vpack.c.b16 %v3197, %v3196
      %v3210 = vpack.c.b16 %v3199, %v3198
      %v3211 = vpack.c.b16 %v3201, %v3200
      %v3212 = vpack.c.b16 %v3203, %v3202
      %v3213 = vpack.c.b16 %v3205, %v3204
      %3222 = vmatpush.bf16.msra.mxu0 %v3213
      %3223 = vmatpush.bf16.msra.mxu0 %v3212
      %3224 = vmatpush.bf16.msra.mxu0 %v3211
      %3225 = vmatpush.bf16.msra.mxu0 %v3210
      %3226 = vmatpush.bf16.msra.mxu0 %v3209
      %3227 = vmatpush.bf16.msra.mxu0 %v3208
      %3228 = vmatpush.bf16.msra.mxu0 %v3207
      %3229 = vmatpush.bf16.msra.mxu0 %v3206
      %3230 = vmatmul.bf16.gmra.mxu0 %v2944
      %v3231 = vpop.f32.mrf.mxu0
      %v3232 = vadd.f32 0.0, %v3231
      %v3233 = vpop.f32.mrf.mxu0
      %v3234 = vadd.f32 0.0, %v3233
      %3235 = vmatmul.bf16.gmra.mxu0 %v2945
      %v3236 = vpop.f32.mrf.mxu0
      %v3237 = vadd.f32 0.0, %v3236
      %v3238 = vpop.f32.mrf.mxu0
      %v3239 = vadd.f32 0.0, %v3238
      %3240 = vmatmul.bf16.gmra.mxu0 %v2946
      %v3241 = vpop.f32.mrf.mxu0
      %v3242 = vadd.f32 0.0, %v3241
      %v3243 = vpop.f32.mrf.mxu0
      %v3244 = vadd.f32 0.0, %v3243
      %3245 = vmatmul.bf16.gmra.mxu0 %v2947
      %v3246 = vpop.f32.mrf.mxu0
      %v3247 = vadd.f32 0.0, %v3246
      %v3248 = vpop.f32.mrf.mxu0
      %v3249 = vadd.f32 0.0, %v3248
      %3250 = vmatmul.bf16.gmra.mxu0 %v2948
      %v3251 = vpop.f32.mrf.mxu0
      %v3252 = vadd.f32 0.0, %v3251
      %v3253 = vpop.f32.mrf.mxu0
      %v3254 = vadd.f32 0.0, %v3253
      %3255 = vmatmul.bf16.gmra.mxu0 %v2949
      %v3256 = vpop.f32.mrf.mxu0
      %v3257 = vadd.f32 0.0, %v3256
      %v3258 = vpop.f32.mrf.mxu0
      %v3259 = vadd.f32 0.0, %v3258
      %3260 = vmatmul.bf16.gmra.mxu0 %v2950
      %v3261 = vpop.f32.mrf.mxu0
      %v3262 = vadd.f32 0.0, %v3261
      %v3263 = vpop.f32.mrf.mxu0
      %v3264 = vadd.f32 0.0, %v3263
      %3265 = vmatmul.bf16.gmra.mxu0 %v2951
      %v3266 = vpop.f32.mrf.mxu0
      %v3267 = vadd.f32 0.0, %v3266
      %v3268 = vpop.f32.mrf.mxu0
      %v3269 = vadd.f32 0.0, %v3268
      %3270 = vmatmul.bf16.gmra.mxu0 %v2952
      %v3271 = vpop.f32.mrf.mxu0
      %v3272 = vadd.f32 0.0, %v3271
      %v3273 = vpop.f32.mrf.mxu0
      %v3274 = vadd.f32 0.0, %v3273
      %3275 = vmatmul.bf16.gmra.mxu0 %v2953
      %v3276 = vpop.f32.mrf.mxu0
      %v3277 = vadd.f32 0.0, %v3276
      %v3278 = vpop.f32.mrf.mxu0
      %v3279 = vadd.f32 0.0, %v3278
      %3280 = vmatmul.bf16.gmra.mxu0 %v2954
      %v3281 = vpop.f32.mrf.mxu0
      %v3282 = vadd.f32 0.0, %v3281
      %v3283 = vpop.f32.mrf.mxu0
      %v3284 = vadd.f32 0.0, %v3283
      %3285 = vmatmul.bf16.gmra.mxu0 %v2955
      %v3286 = vpop.f32.mrf.mxu0
      %v3287 = vadd.f32 0.0, %v3286
      %v3288 = vpop.f32.mrf.mxu0
      %v3289 = vadd.f32 0.0, %v3288
      %3290 = vmatmul.bf16.gmra.mxu0 %v2956
      %v3291 = vpop.f32.mrf.mxu0
      %v3292 = vadd.f32 0.0, %v3291
      %v3293 = vpop.f32.mrf.mxu0
      %v3294 = vadd.f32 0.0, %v3293
      %3295 = vmatmul.bf16.gmra.mxu0 %v2957
      %v3296 = vpop.f32.mrf.mxu0
      %v3297 = vadd.f32 0.0, %v3296
      %v3298 = vpop.f32.mrf.mxu0
      %v3299 = vadd.f32 0.0, %v3298
      %3300 = vmatmul.bf16.gmra.mxu0 %v2958
      %v3301 = vpop.f32.mrf.mxu0
      %v3302 = vadd.f32 0.0, %v3301
      %v3303 = vpop.f32.mrf.mxu0
      %v3304 = vadd.f32 0.0, %v3303
      %3305 = vmatmul.bf16.gmra.mxu0 %v3172
      %v3306 = vpop.f32.mrf.mxu0
      %v3307 = vadd.f32 0.0, %v3306
      %v3308 = vpop.f32.mrf.mxu0
      %v3309 = vadd.f32 0.0, %v3308
      %3310 = vdwg.mxu0
      %v3311 = vadd.f32 %v3112, %v3232
      %v3312 = vadd.f32 %v3113, %v3234
      %v3313 = vadd.f32 %v3114, %v3237
      %v3314 = vadd.f32 %v3115, %v3239
      %v3315 = vadd.f32 %v3116, %v3242
      %v3316 = vadd.f32 %v3117, %v3244
      %v3317 = vadd.f32 %v3118, %v3247
      %v3318 = vadd.f32 %v3119, %v3249
      %v3319 = vadd.f32 %v3120, %v3252
      %v3320 = vadd.f32 %v3121, %v3254
      %v3321 = vadd.f32 %v3122, %v3257
      %v3322 = vadd.f32 %v3123, %v3259
      %v3323 = vadd.f32 %v3124, %v3262
      %v3324 = vadd.f32 %v3125, %v3264
      %v3325 = vadd.f32 %v3126, %v3267
      %v3326 = vadd.f32 %v3127, %v3269
      %v3327 = vadd.f32 %v3128, %v3272
      %v3328 = vadd.f32 %v3129, %v3274
      %v3329 = vadd.f32 %v3130, %v3277
      %v3330 = vadd.f32 %v3131, %v3279
      %v3331 = vadd.f32 %v3132, %v3282
      %v3332 = vadd.f32 %v3133, %v3284
      %v3333 = vadd.f32 %v3134, %v3287
      %v3334 = vadd.f32 %v3135, %v3289
      %v3335 = vadd.f32 %v3136, %v3292
      %v3336 = vadd.f32 %v3137, %v3294
      %v3337 = vadd.f32 %v3138, %v3297
      %v3338 = vadd.f32 %v3139, %v3299
      %v3339 = vadd.f32 %v3140, %v3302
      %v3340 = vadd.f32 %v3141, %v3304
      %v3341 = vadd.f32 %v3142, %v3307
      %v3342 = vadd.f32 %v3143, %v3309
      %v3346 = vrot.slane %v2731, 5
      %v3347 = vrot.slane %v3346, 4
      %v3348 = vrot.slane %v1650, 5
      %v3349 = vsel %vm2782, %v3347, %v3348
      %v3350 = vrot.slane %v3348, 4
      %v3351 = vrot.slane %v1651, 5
      %v3352 = vsel %vm2782, %v3350, %v3351
      %v3353 = vld [vmem:[%s3 + $0x200] sm:$0xf]
      %v3354 = vld [vmem:[%s3 + $0x204] sm:$0xf]
      %v3355 = vld [vmem:[%s3 + $0x208] sm:$0xf]
      %v3356 = vld [vmem:[%s3 + $0x20c] sm:$0xf]
      %v3357 = vld [vmem:[%s3 + $0x210] sm:$0xf]
      %v3358 = vld [vmem:[%s3 + $0x214] sm:$0xf]
      %v3359 = vld [vmem:[%s3 + $0x218] sm:$0xf]
      %v3360 = vld [vmem:[%s3 + $0x21c] sm:$0xf]
      %v3361 = vld [vmem:[%s3 + $0x220] sm:$0xf]
      %v3362 = vld [vmem:[%s3 + $0x224] sm:$0xf]
      %v3363 = vld [vmem:[%s3 + $0x228] sm:$0xf]
      %v3364 = vld [vmem:[%s3 + $0x22c] sm:$0xf]
      %v3365 = vld [vmem:[%s3 + $0x230] sm:$0xf]
      %v3366 = vld [vmem:[%s3 + $0x234] sm:$0xf]
      %v3367 = vld [vmem:[%s3 + $0x238] sm:$0xf]
      %v3368 = vld [vmem:[%s3 + $0x23c] sm:$0xf]
      %v3369 = vunpack.c.l.b16 %v3349
      %v3370 = vunpack.c.l.b16 %v3352
      %v3371 = vpack.c.b16 %v3370, %v3369
      %v3389 = vunpack.c.l.b16 %v3353
      %v3390 = vunpack.c.l.b16 %v3354
      %v3391 = vunpack.c.l.b16 %v3355
      %v3392 = vunpack.c.l.b16 %v3356
      %v3393 = vunpack.c.l.b16 %v3357
      %v3394 = vunpack.c.l.b16 %v3358
      %v3395 = vunpack.c.l.b16 %v3359
      %v3396 = vunpack.c.l.b16 %v3360
      %v3397 = vunpack.c.l.b16 %v3361
      %v3398 = vunpack.c.l.b16 %v3362
      %v3399 = vunpack.c.l.b16 %v3363
      %v3400 = vunpack.c.l.b16 %v3364
      %v3401 = vunpack.c.l.b16 %v3365
      %v3402 = vunpack.c.l.b16 %v3366
      %v3403 = vunpack.c.l.b16 %v3367
      %v3404 = vunpack.c.l.b16 %v3368
      %v3405 = vpack.c.b16 %v3390, %v3389
      %v3406 = vpack.c.b16 %v3392, %v3391
      %v3407 = vpack.c.b16 %v3394, %v3393
      %v3408 = vpack.c.b16 %v3396, %v3395
      %v3409 = vpack.c.b16 %v3398, %v3397
      %v3410 = vpack.c.b16 %v3400, %v3399
      %v3411 = vpack.c.b16 %v3402, %v3401
      %v3412 = vpack.c.b16 %v3404, %v3403
      %3421 = vmatpush.bf16.msra.mxu0 %v3412
      %3422 = vmatpush.bf16.msra.mxu0 %v3411
      %3423 = vmatpush.bf16.msra.mxu0 %v3410
      %3424 = vmatpush.bf16.msra.mxu0 %v3409
      %3425 = vmatpush.bf16.msra.mxu0 %v3408
      %3426 = vmatpush.bf16.msra.mxu0 %v3407
      %3427 = vmatpush.bf16.msra.mxu0 %v3406
      %3428 = vmatpush.bf16.msra.mxu0 %v3405
      %3429 = vmatmul.bf16.gmra.mxu0 %v2945
      %v3430 = vpop.f32.mrf.mxu0
      %v3431 = vadd.f32 0.0, %v3430
      %v3432 = vpop.f32.mrf.mxu0
      %v3433 = vadd.f32 0.0, %v3432
      %3434 = vmatmul.bf16.gmra.mxu0 %v2946
      %v3435 = vpop.f32.mrf.mxu0
      %v3436 = vadd.f32 0.0, %v3435
      %v3437 = vpop.f32.mrf.mxu0
      %v3438 = vadd.f32 0.0, %v3437
      %3439 = vmatmul.bf16.gmra.mxu0 %v2947
      %v3440 = vpop.f32.mrf.mxu0
      %v3441 = vadd.f32 0.0, %v3440
      %v3442 = vpop.f32.mrf.mxu0
      %v3443 = vadd.f32 0.0, %v3442
      %3444 = vmatmul.bf16.gmra.mxu0 %v2948
      %v3445 = vpop.f32.mrf.mxu0
      %v3446 = vadd.f32 0.0, %v3445
      %v3447 = vpop.f32.mrf.mxu0
      %v3448 = vadd.f32 0.0, %v3447
      %3449 = vmatmul.bf16.gmra.mxu0 %v2949
      %v3450 = vpop.f32.mrf.mxu0
      %v3451 = vadd.f32 0.0, %v3450
      %v3452 = vpop.f32.mrf.mxu0
      %v3453 = vadd.f32 0.0, %v3452
      %3454 = vmatmul.bf16.gmra.mxu0 %v2950
      %v3455 = vpop.f32.mrf.mxu0
      %v3456 = vadd.f32 0.0, %v3455
      %v3457 = vpop.f32.mrf.mxu0
      %v3458 = vadd.f32 0.0, %v3457
      %3459 = vmatmul.bf16.gmra.mxu0 %v2951
      %v3460 = vpop.f32.mrf.mxu0
      %v3461 = vadd.f32 0.0, %v3460
      %v3462 = vpop.f32.mrf.mxu0
      %v3463 = vadd.f32 0.0, %v3462
      %3464 = vmatmul.bf16.gmra.mxu0 %v2952
      %v3465 = vpop.f32.mrf.mxu0
      %v3466 = vadd.f32 0.0, %v3465
      %v3467 = vpop.f32.mrf.mxu0
      %v3468 = vadd.f32 0.0, %v3467
      %3469 = vmatmul.bf16.gmra.mxu0 %v2953
      %v3470 = vpop.f32.mrf.mxu0
      %v3471 = vadd.f32 0.0, %v3470
      %v3472 = vpop.f32.mrf.mxu0
      %v3473 = vadd.f32 0.0, %v3472
      %3474 = vmatmul.bf16.gmra.mxu0 %v2954
      %v3475 = vpop.f32.mrf.mxu0
      %v3476 = vadd.f32 0.0, %v3475
      %v3477 = vpop.f32.mrf.mxu0
      %v3478 = vadd.f32 0.0, %v3477
      %3479 = vmatmul.bf16.gmra.mxu0 %v2955
      %v3480 = vpop.f32.mrf.mxu0
      %v3481 = vadd.f32 0.0, %v3480
      %v3482 = vpop.f32.mrf.mxu0
      %v3483 = vadd.f32 0.0, %v3482
      %3484 = vmatmul.bf16.gmra.mxu0 %v2956
      %v3485 = vpop.f32.mrf.mxu0
      %v3486 = vadd.f32 0.0, %v3485
      %v3487 = vpop.f32.mrf.mxu0
      %v3488 = vadd.f32 0.0, %v3487
      %3489 = vmatmul.bf16.gmra.mxu0 %v2957
      %v3490 = vpop.f32.mrf.mxu0
      %v3491 = vadd.f32 0.0, %v3490
      %v3492 = vpop.f32.mrf.mxu0
      %v3493 = vadd.f32 0.0, %v3492
      %3494 = vmatmul.bf16.gmra.mxu0 %v2958
      %v3495 = vpop.f32.mrf.mxu0
      %v3496 = vadd.f32 0.0, %v3495
      %v3497 = vpop.f32.mrf.mxu0
      %v3498 = vadd.f32 0.0, %v3497
      %3499 = vmatmul.bf16.gmra.mxu0 %v3172
      %v3500 = vpop.f32.mrf.mxu0
      %v3501 = vadd.f32 0.0, %v3500
      %v3502 = vpop.f32.mrf.mxu0
      %v3503 = vadd.f32 0.0, %v3502
      %3504 = vmatmul.bf16.gmra.mxu0 %v3371
      %v3505 = vpop.f32.mrf.mxu0
      %v3506 = vadd.f32 0.0, %v3505
      %v3507 = vpop.f32.mrf.mxu0
      %v3508 = vadd.f32 0.0, %v3507
      %3509 = vdwg.mxu0
      %v3510 = vadd.f32 %v3311, %v3431
      %v3511 = vadd.f32 %v3312, %v3433
      %v3512 = vadd.f32 %v3313, %v3436
      %v3513 = vadd.f32 %v3314, %v3438
      %v3514 = vadd.f32 %v3315, %v3441
      %v3515 = vadd.f32 %v3316, %v3443
      %v3516 = vadd.f32 %v3317, %v3446
      %v3517 = vadd.f32 %v3318, %v3448
      %v3518 = vadd.f32 %v3319, %v3451
      %v3519 = vadd.f32 %v3320, %v3453
      %v3520 = vadd.f32 %v3321, %v3456
      %v3521 = vadd.f32 %v3322, %v3458
      %v3522 = vadd.f32 %v3323, %v3461
      %v3523 = vadd.f32 %v3324, %v3463
      %v3524 = vadd.f32 %v3325, %v3466
      %v3525 = vadd.f32 %v3326, %v3468
      %v3526 = vadd.f32 %v3327, %v3471
      %v3527 = vadd.f32 %v3328, %v3473
      %v3528 = vadd.f32 %v3329, %v3476
      %v3529 = vadd.f32 %v3330, %v3478
      %v3530 = vadd.f32 %v3331, %v3481
      %v3531 = vadd.f32 %v3332, %v3483
      %v3532 = vadd.f32 %v3333, %v3486
      %v3533 = vadd.f32 %v3334, %v3488
      %v3534 = vadd.f32 %v3335, %v3491
      %v3535 = vadd.f32 %v3336, %v3493
      %v3536 = vadd.f32 %v3337, %v3496
      %v3537 = vadd.f32 %v3338, %v3498
      %v3538 = vadd.f32 %v3339, %v3501
      %v3539 = vadd.f32 %v3340, %v3503
      %v3540 = vadd.f32 %v3341, %v3506
      %v3541 = vadd.f32 %v3342, %v3508
      %v3542 = vpack.c.bf16 %v3510, %v3510
      %v3543 = vpack.c.bf16 %v3511, %v3511
      %v3544 = vpack.c.bf16 %v3512, %v3512
      %v3545 = vpack.c.bf16 %v3513, %v3513
      %v3546 = vpack.c.bf16 %v3514, %v3514
      %v3547 = vpack.c.bf16 %v3515, %v3515
      %v3548 = vpack.c.bf16 %v3516, %v3516
      %v3549 = vpack.c.bf16 %v3517, %v3517
      %v3550 = vpack.c.bf16 %v3518, %v3518
      %v3551 = vpack.c.bf16 %v3519, %v3519
      %v3552 = vpack.c.bf16 %v3520, %v3520
      %v3553 = vpack.c.bf16 %v3521, %v3521
      %v3554 = vpack.c.bf16 %v3522, %v3522
      %v3555 = vpack.c.bf16 %v3523, %v3523
      %v3556 = vpack.c.bf16 %v3524, %v3524
      %v3557 = vpack.c.bf16 %v3525, %v3525
      %v3558 = vpack.c.bf16 %v3526, %v3526
      %v3559 = vpack.c.bf16 %v3527, %v3527
      %v3560 = vpack.c.bf16 %v3528, %v3528
      %v3561 = vpack.c.bf16 %v3529, %v3529
      %v3562 = vpack.c.bf16 %v3530, %v3530
      %v3563 = vpack.c.bf16 %v3531, %v3531
      %v3564 = vpack.c.bf16 %v3532, %v3532
      %v3565 = vpack.c.bf16 %v3533, %v3533
      %v3566 = vpack.c.bf16 %v3534, %v3534
      %v3567 = vpack.c.bf16 %v3535, %v3535
      %v3568 = vpack.c.bf16 %v3536, %v3536
      %v3569 = vpack.c.bf16 %v3537, %v3537
      %v3570 = vpack.c.bf16 %v3538, %v3538
      %v3571 = vpack.c.bf16 %v3539, %v3539
      %v3572 = vpack.c.bf16 %v3540, %v3540
      %v3573 = vpack.c.bf16 %v3541, %v3541
      %3574 = vst [vmem:[%s258] sm:$0xf] %v3542
      %3575 = vst [vmem:[%s258 + $0x4] sm:$0xf] %v3543
      %3576 = vst [vmem:[%s258 + $0x8] sm:$0xf] %v3544
      %3577 = vst [vmem:[%s258 + $0xc] sm:$0xf] %v3545
      %3578 = vst [vmem:[%s258 + $0x10] sm:$0xf] %v3546
      %3579 = vst [vmem:[%s258 + $0x14] sm:$0xf] %v3547
      %3580 = vst [vmem:[%s258 + $0x18] sm:$0xf] %v3548
      %3581 = vst [vmem:[%s258 + $0x1c] sm:$0xf] %v3549
      %3582 = vst [vmem:[%s258 + $0x20] sm:$0xf] %v3550
      %3583 = vst [vmem:[%s258 + $0x24] sm:$0xf] %v3551
      %3584 = vst [vmem:[%s258 + $0x28] sm:$0xf] %v3552
      %3585 = vst [vmem:[%s258 + $0x2c] sm:$0xf] %v3553
      %3586 = vst [vmem:[%s258 + $0x30] sm:$0xf] %v3554
      %3587 = vst [vmem:[%s258 + $0x34] sm:$0xf] %v3555
      %3588 = vst [vmem:[%s258 + $0x38] sm:$0xf] %v3556
      %3589 = vst [vmem:[%s258 + $0x3c] sm:$0xf] %v3557
      %3590 = vst [vmem:[%s258 + $0x40] sm:$0xf] %v3558
      %3591 = vst [vmem:[%s258 + $0x44] sm:$0xf] %v3559
      %3592 = vst [vmem:[%s258 + $0x48] sm:$0xf] %v3560
      %3593 = vst [vmem:[%s258 + $0x4c] sm:$0xf] %v3561
      %3594 = vst [vmem:[%s258 + $0x50] sm:$0xf] %v3562
      %3595 = vst [vmem:[%s258 + $0x54] sm:$0xf] %v3563
      %3596 = vst [vmem:[%s258 + $0x58] sm:$0xf] %v3564
      %3597 = vst [vmem:[%s258 + $0x5c] sm:$0xf] %v3565
      %3598 = vst [vmem:[%s258 + $0x60] sm:$0xf] %v3566
      %3599 = vst [vmem:[%s258 + $0x64] sm:$0xf] %v3567
      %3600 = vst [vmem:[%s258 + $0x68] sm:$0xf] %v3568
      %3601 = vst [vmem:[%s258 + $0x6c] sm:$0xf] %v3569
      %3602 = vst [vmem:[%s258 + $0x70] sm:$0xf] %v3570
      %3603 = vst [vmem:[%s258 + $0x74] sm:$0xf] %v3571
      %3604 = vst [vmem:[%s258 + $0x78] sm:$0xf] %v3572
      %3605 = vst [vmem:[%s258 + $0x7c] sm:$0xf] %v3573
      %v3606 = vadd.f32 %v3510, %v3511
      %v3607 = vadd.f32 %v3606, %v3512
      %v3608 = vadd.f32 %v3607, %v3513
      %v3609 = vadd.f32 %v3608, %v3514
      %v3610 = vadd.f32 %v3609, %v3515
      %v3611 = vadd.f32 %v3610, %v3516
      %v3612 = vadd.f32 %v3611, %v3517
      %v3613 = vadd.f32 %v3612, %v3518
      %v3614 = vadd.f32 %v3613, %v3519
      %v3615 = vadd.f32 %v3614, %v3520
      %v3616 = vadd.f32 %v3615, %v3521
      %v3617 = vadd.f32 %v3616, %v3522
      %v3618 = vadd.f32 %v3617, %v3523
      %v3619 = vadd.f32 %v3618, %v3524
      %v3620 = vadd.f32 %v3619, %v3525
      %v3621 = vadd.f32 %v3620, %v3526
      %v3622 = vadd.f32 %v3621, %v3527
      %v3623 = vadd.f32 %v3622, %v3528
      %v3624 = vadd.f32 %v3623, %v3529
      %v3625 = vadd.f32 %v3624, %v3530
      %v3626 = vadd.f32 %v3625, %v3531
      %v3627 = vadd.f32 %v3626, %v3532
      %v3628 = vadd.f32 %v3627, %v3533
      %v3629 = vadd.f32 %v3628, %v3534
      %v3630 = vadd.f32 %v3629, %v3535
      %v3631 = vadd.f32 %v3630, %v3536
      %v3632 = vadd.f32 %v3631, %v3537
      %v3633 = vadd.f32 %v3632, %v3538
      %v3634 = vadd.f32 %v3633, %v3539
      %v3635 = vadd.f32 %v3634, %v3540
      %v3636 = vadd.f32 %v3635, %v3541
      %v3637 = vrot.slane %v3636, 4
      %v3638 = vadd.f32 %v3636, %v3637
      %v3639 = vrot.slane %v3638, 2
      %v3640 = vadd.f32 %v3638, %v3639
      %v3641 = vrot.slane %v3640, 1
      %v3642 = vadd.f32 %v3640, %v3641
      %v3643 = vmul.f32 %v3510, %v3510
      %v3644 = vmul.f32 %v3511, %v3511
      %v3645 = vmul.f32 %v3512, %v3512
      %v3646 = vmul.f32 %v3513, %v3513
      %v3647 = vmul.f32 %v3514, %v3514
      %v3648 = vmul.f32 %v3515, %v3515
      %v3649 = vmul.f32 %v3516, %v3516
      %v3650 = vmul.f32 %v3517, %v3517
      %v3651 = vmul.f32 %v3518, %v3518
      %v3652 = vmul.f32 %v3519, %v3519
      %v3653 = vmul.f32 %v3520, %v3520
      %v3654 = vmul.f32 %v3521, %v3521
      %v3655 = vmul.f32 %v3522, %v3522
      %v3656 = vmul.f32 %v3523, %v3523
      %v3657 = vmul.f32 %v3524, %v3524
      %v3658 = vmul.f32 %v3525, %v3525
      %v3659 = vmul.f32 %v3526, %v3526
      %v3660 = vmul.f32 %v3527, %v3527
      %v3661 = vmul.f32 %v3528, %v3528
      %v3662 = vmul.f32 %v3529, %v3529
      %v3663 = vmul.f32 %v3530, %v3530
      %v3664 = vmul.f32 %v3531, %v3531
      %v3665 = vmul.f32 %v3532, %v3532
      %v3666 = vmul.f32 %v3533, %v3533
      %v3667 = vmul.f32 %v3534, %v3534
      %v3668 = vmul.f32 %v3535, %v3535
      %v3669 = vmul.f32 %v3536, %v3536
      %v3670 = vmul.f32 %v3537, %v3537
      %v3671 = vmul.f32 %v3538, %v3538
      %v3672 = vmul.f32 %v3539, %v3539
      %v3673 = vmul.f32 %v3540, %v3540
      %v3674 = vmul.f32 %v3541, %v3541
      %v3675 = vadd.f32 %v3643, %v3644
      %v3676 = vadd.f32 %v3675, %v3645
      %v3677 = vadd.f32 %v3676, %v3646
      %v3678 = vadd.f32 %v3677, %v3647
      %v3679 = vadd.f32 %v3678, %v3648
      %v3680 = vadd.f32 %v3679, %v3649
      %v3681 = vadd.f32 %v3680, %v3650
      %v3682 = vadd.f32 %v3681, %v3651
      %v3683 = vadd.f32 %v3682, %v3652
      %v3684 = vadd.f32 %v3683, %v3653
      %v3685 = vadd.f32 %v3684, %v3654
      %v3686 = vadd.f32 %v3685, %v3655
      %v3687 = vadd.f32 %v3686, %v3656
      %v3688 = vadd.f32 %v3687, %v3657
      %v3689 = vadd.f32 %v3688, %v3658
      %v3690 = vadd.f32 %v3689, %v3659
      %v3691 = vadd.f32 %v3690, %v3660
      %v3692 = vadd.f32 %v3691, %v3661
      %v3693 = vadd.f32 %v3692, %v3662
      %v3694 = vadd.f32 %v3693, %v3663
      %v3695 = vadd.f32 %v3694, %v3664
      %v3696 = vadd.f32 %v3695, %v3665
      %v3697 = vadd.f32 %v3696, %v3666
      %v3698 = vadd.f32 %v3697, %v3667
      %v3699 = vadd.f32 %v3698, %v3668
      %v3700 = vadd.f32 %v3699, %v3669
      %v3701 = vadd.f32 %v3700, %v3670
      %v3702 = vadd.f32 %v3701, %v3671
      %v3703 = vadd.f32 %v3702, %v3672
      %v3704 = vadd.f32 %v3703, %v3673
      %v3705 = vadd.f32 %v3704, %v3674
      %v3706 = vrot.slane %v3705, 4
      %v3707 = vadd.f32 %v3705, %v3706
      %v3708 = vrot.slane %v3707, 2
      %v3709 = vadd.f32 %v3707, %v3708
      %v3710 = vrot.slane %v3709, 1
      %v3711 = vadd.f32 %v3709, %v3710
      %vm3712 = vcmask 1040384
      %v3713 = vsel %vm3712, %v3642, %v3711
      %3714 = vst [vmem:[%s266] sm:$0x3] %v3713
      %s3715 = smul.u32 32, %s22
      %p3716 = scmp.lt.s32.totalorder %s21, 1
      %s3717 = scalar_select %p3716, %s21, 1
      %p3718 = scmp.lt.s32.totalorder %s3715, 31
      %s3719 = scalar_select %p3718, %s3715, 31
      %s3720 = smul.addr %s3717, 32
      %s3721 = sadd.s32 %s3719, %s3720
      %s3722 = smul.addr %s3721, 4
      %s3723 = scalar_lea.vmem %s4, %s3722
      %p3724 = scmp.lt.s32.totalorder %s21, 1
      %s3725 = scalar_select %p3724, %s21, 1
      %p3726 = scmp.lt.s32.totalorder %s22, 0
      %s3727 = scalar_select %p3726, %s22, 0
      %s3728 = sadd.s32 %s3727, %s3725
      %s3729 = smul.addr %s3728, 2
      %s3730 = scalar_lea.vmem %s5, %s3729
      // Predicated region
      $region37: #{double_conv.4} parent=35 // pred_check
        %p3731 = pneg %p138
      $region38: #{double_conv.4} parent=35 // pred_check_branch
        %3733 = sbr.rel (%p3731) target = $region40
      $region39: #{double_conv.4} parent=35 // pred_region
        %s3734 = smul.u32 32, %s22
      $region40: #{double_conv.4} parent=35 // pred_fallthru
        _
      // Predicated region
      $region41: #{double_conv.4} parent=35 // pred_check
        %p3735 = pneg %p166
      $region42: #{double_conv.4} parent=35 // pred_check_branch
        %3737 = sbr.rel (%p3735) target = $region44
      $region43: #{double_conv.4} parent=35 // pred_region
        _
      $region44: #{double_conv.4} parent=35 // pred_fallthru
        _
    $region36: #{double_conv.4} parent=5 // pred_fallthru
      _
    %p3738 = scmp.le.s32.totalorder 2, %s12
    // Predicated region
    $region45: #{double_conv.4} parent=5 // pred_check
      %p3739 = pneg %p3738
    $region46: #{double_conv.4} parent=5 // pred_check_branch
      %3741 = sbr.rel (%p3739) target = $region48
    $region47: #{double_conv.4} parent=5 // pred_region
      %s3742 = ssub.s32 %s12, 2
      // Predicated region
      $region49: #{double_conv.4} parent=47 // pred_check
        %p3743 = pneg %p144
      $region50: #{double_conv.4} parent=47 // pred_check_branch
        %3745 = sbr.rel (%p3743) target = $region52
      $region51: #{double_conv.4} parent=47 // pred_region
        %s3746 = smul.u32 32, %s24
        %p3747 = scmp.lt.s32.totalorder %s23, 1
        %s3748 = scalar_select %p3747, %s23, 1
        %p3749 = scmp.lt.s32.totalorder %s3746, 31
        %s3750 = scalar_select %p3749, %s3746, 31
        %s3751 = smul.addr %s3748, 32
        %s3752 = sadd.s32 %s3750, %s3751
        %s3753 = smul.addr %s3752, 4
        %s3754 = scalar_lea.vmem %s4, %s3753
      $region52: #{double_conv.4} parent=47 // pred_fallthru
        _
      // Predicated region
      $region53: #{double_conv.4} parent=47 // pred_check
        %p3755 = pneg %p172
      $region54: #{double_conv.4} parent=47 // pred_check_branch
        %3757 = sbr.rel (%p3755) target = $region56
      $region55: #{double_conv.4} parent=47 // pred_region
        %p3758 = scmp.lt.s32.totalorder %s23, 1
        %s3759 = scalar_select %p3758, %s23, 1
        %p3760 = scmp.lt.s32.totalorder %s24, 0
        %s3761 = scalar_select %p3760, %s24, 0
        %s3762 = sadd.s32 %s3761, %s3759
        %s3763 = smul.addr %s3762, 2
        %s3764 = scalar_lea.vmem %s5, %s3763
      $region56: #{double_conv.4} parent=47 // pred_fallthru
        _
    $region48: #{double_conv.4} parent=5 // pred_fallthru
      _
  $region6: #{double_conv.4} parent=0 // loop_footer
    %s16 = sadd.s32 1, %s12
  $region7: #{double_conv.4} parent=0 // loop_footer_branch
    %11 = sbr.rel target = $region3
  $region8: #{double_conv.4} parent=0 // loop_exit
    _

</llo_original>
